<compile_context>
chip_gen: v7x
topology: tpu7x:2x2x1
jax: 0.10.0
libtpu: 0.0.40
codegen_flags: <defaults>
</compile_context>

<pallas_src>
import jax
import jax.numpy as jnp
from jax.experimental import pallas as pl
from jax.experimental.pallas import tpu as pltpu


def wl_cnn_kernel(xt_ref, m1_ref, m2_ref, wf1_ref, wf2_ref, b_ref, o_ref):
    lc1 = m1_ref.shape[0]          # L * C1  (512)
    lc2 = m2_ref.shape[0]          # L * C2  (1024)
    f = wf1_ref.shape[0]           # FC hidden width (32)

    xt = xt_ref[...].astype(jnp.bfloat16)      # (L, TILE_N), batch on lanes
    sh1 = b_ref[0:lc1, 0:1]                    # conv1 bias*bn1 scale + bn1 shift
    sh2 = b_ref[0:lc2, 1:2]                    # conv2 bias*bn2 scale + bn2 shift
    bf1 = b_ref[0:f, 2:3]                      # FC1 bias (column)
    bf2 = b_ref[0:1, 3:4]                      # FC2 bias (scalar)

    # conv1 (+ BN1 folded) + tanh            -> (L*C1, TILE_N)
    h1 = jnp.tanh(jnp.dot(m1_ref[...], xt,
                          preferred_element_type=jnp.float32) + sh1)
    # conv2 (+ BN2 folded) + tanh            -> (L*C2, TILE_N)
    h2 = jnp.tanh(jnp.dot(m2_ref[...], h1.astype(jnp.bfloat16),
                          preferred_element_type=jnp.float32) + sh2)
    # FC1 + tanh (torch's (c,l) flatten folded into the weight permutation)
    z1 = jnp.tanh(jnp.dot(wf1_ref[...], h2.astype(jnp.bfloat16),
                          preferred_element_type=jnp.float32) + bf1)
    # FC2 + ReLU, computed directly as the lane-dense (1, TILE_N) output row
    z2 = jnp.dot(wf2_ref[...], z1, preferred_element_type=jnp.float32) + bf2
    o_ref[...] = jnp.maximum(z2, 0.0)


def _round_up(n, m):
    return -(-n // m) * m


def _vmem_capacity_bytes():
    """Best-effort VMEM capacity query; conservative (v7x) fallback."""
    try:
        info = pltpu.get_tpu_info()
    except Exception:
        return 64 * 1024 * 1024
    for attr in ("vmem_capacity_bytes", "vmem_bytes", "vmem_capacity"):
        v = getattr(info, attr, None)
        try:
            v = int(v)
        except (TypeError, ValueError):
            continue
        if v > 0:
            return v
    return 64 * 1024 * 1024


def wl_cnn_forward(x, params, *, tile_n=None):
    """x: (N, 1, L) float32 (torch NCL). Returns (N, 1) float32."""
    (w1, b1, g1, be1, m1, v1,
     w2, b2, g2, be2, m2, v2,
     wf1, bf1, wf2, bf2) = params
    eps = 1e-5
    N, _, L = x.shape
    C1, _, K = w1.shape
    C2 = w2.shape[0]
    F = wf1.shape[0]
    P = (K - 1) // 2

    # ---- wrapper-side folding (plain JAX, runs once per call) ----
    s1 = g1 / jnp.sqrt(v1 + eps); t1 = be1 - m1 * s1
    s2 = g2 / jnp.sqrt(v2 + eps); t2 = be2 - m2 * s2

    # banded conv matrices over the flattened (l, c) axis (zero padding folded)
    li = jnp.arange(L)[:, None]            # input position
    lo = jnp.arange(L)[None, :]            # output position
    kk = li - lo + P
    valid = (kk >= 0) & (kk < K)
    kk_c = jnp.clip(kk, 0, K - 1)

    w1k = jnp.transpose(w1[:, 0, :], (1, 0))                     # (K, C1)
    M1 = jnp.where(valid[:, :, None], w1k[kk_c], 0.0)            # (L, L, C1)
    M1 = M1.reshape(L, L * C1)
    w2k = jnp.transpose(w2, (2, 1, 0))                           # (K, C1, C2)
    M2 = jnp.where(valid[:, :, None, None], w2k[kk_c], 0.0)      # (L, L, C1, C2)
    M2 = jnp.transpose(M2, (0, 2, 1, 3)).reshape(L * C1, L * C2)

    # BN scale folded into columns; transpose to feature-major; cast to bf16
    M1T = (M1 * jnp.tile(s1, L)[None, :]).T.astype(jnp.bfloat16)   # (L*C1, L)
    M2T = (M2 * jnp.tile(s2, L)[None, :]).T.astype(jnp.bfloat16)   # (L*C2, L*C1)
    # FC1 weight permuted so h2's (l, c) feature axis matches torch's (c, l) flatten
    Wf1t = wf1.reshape(F, C2, L).transpose(0, 2, 1).reshape(F, L * C2)
    Wf1t = Wf1t.astype(jnp.bfloat16)                               # (F, L*C2)
    wf2r = wf2.reshape(1, F).astype(jnp.float32)                   # tiny: keep f32

    # per-feature shift/bias columns packed into one slab (fewer operands)
    sh1 = jnp.tile(b1 * s1 + t1, L)
    sh2 = jnp.tile(b2 * s2 + t2, L)
    bias = jnp.zeros((L * C2, 4), jnp.float32)
    bias = bias.at[:L * C1, 0].set(sh1)
    bias = bias.at[:, 1].set(sh2)
    bias = bias.at[:F, 2].set(bf1)
    bias = bias.at[0, 3].set(bf2[0])

    # ---- batch tiling (feature-major: batch on the 128-lane axis) ----
    big_vmem = _vmem_capacity_bytes() >= 100 * 1024 * 1024
    max_tile = 2048 if big_vmem else 1024        # v7x: 64 MiB/TC -> cap at 1024
    vmem_limit = (96 << 20) if big_vmem else (48 << 20)

    if tile_n is None:
        tile_n = min(max_tile, _round_up(max(N, 1), 128))
        if N > 128:
            # guarantee >=2 grid steps so the "parallel" axis feeds both
            # TensorCores (v7x megacore); also amortizes per-step overhead
            half = _round_up(-(-N // 2), 128)
            tile_n = min(tile_n, max(half, 128))
    tile_n = max(128, _round_up(tile_n, 128))    # lane-dense output stores

    n_pad = _round_up(N, tile_n)
    x2d = x[:, 0, :].astype(jnp.float32)                          # (N, L)
    if n_pad != N:
        x2d = jnp.pad(x2d, ((0, n_pad - N), (0, 0)))
    xt = x2d.T                                                    # (L, n_pad)
    grid = (n_pad // tile_n,)

    flops = 2 * n_pad * (L * L * C1 + L * C1 * L * C2 + L * C2 * F + F)
    transcendentals = n_pad * (L * C1 + L * C2 + F)
    bytes_accessed = ((xt.size + n_pad) * 4
                      + (M1T.size + M2T.size + Wf1t.size) * 2
                      + (wf2r.size + bias.size) * 4)
    cost = pl.CostEstimate(flops=flops, transcendentals=transcendentals,
                           bytes_accessed=bytes_accessed)

    def resident(shape, pmode):
        if pmode is None:
            return pl.BlockSpec(shape, lambda i: (0, 0))
        return pl.BlockSpec(shape, lambda i: (0, 0), pipeline_mode=pmode)

    def run(pmode):
        grid_spec = pltpu.PrefetchScalarGridSpec(
            num_scalar_prefetch=0,
            grid=grid,
            in_specs=[
                pl.BlockSpec((L, tile_n), lambda i: (0, i)),   # x tile (pipelined)
                resident(M1T.shape, pmode),                    # resident weights
                resident(M2T.shape, pmode),
                resident(Wf1t.shape, pmode),
                resident(wf2r.shape, pmode),
                resident(bias.shape, pmode),
            ],
            out_specs=pl.BlockSpec((1, tile_n), lambda i: (0, i)),
        )
        return pl.pallas_call(
            wl_cnn_kernel,
            out_shape=jax.ShapeDtypeStruct((1, n_pad), jnp.float32),
            grid_spec=grid_spec,
            compiler_params=pltpu.CompilerParams(
                dimension_semantics=("parallel",),
                vmem_limit_bytes=vmem_limit),
            cost_estimate=cost,
        )(xt, M1T, M2T, Wf1t, wf2r, bias)

    buffered = getattr(pl, "Buffered", None)
    try:
        out = run(buffered(1) if buffered is not None else None)
    except Exception:
        # fall back to default (double-buffered) resident blocks
        out = run(None)

    return out[0, :N].reshape(N, 1)


def ref_forward(x, params):
    """Pure-JAX f32 reference in torch layout (NCL) for correctness checking."""
    (w1, b1, g1, be1, m1, v1,
     w2, b2, g2, be2, m2, v2,
     wf1, bf1, wf2, bf2) = params
    eps = 1e-5
    K = w1.shape[2]
    P = (K - 1) // 2
    dn = ('NCH', 'OIH', 'NCH')
    h = jax.lax.conv_general_dilated(x, w1, (1,), [(P, P)],
                                     dimension_numbers=dn) + b1[None, :, None]
    h = (h - m1[None, :, None]) / jnp.sqrt(v1[None, :, None] + eps) \
        * g1[None, :, None] + be1[None, :, None]
    h = jnp.tanh(h)
    h = jax.lax.conv_general_dilated(h, w2, (1,), [(P, P)],
                                     dimension_numbers=dn) + b2[None, :, None]
    h = (h - m2[None, :, None]) / jnp.sqrt(v2[None, :, None] + eps) \
        * g2[None, :, None] + be2[None, :, None]
    h = jnp.tanh(h)
    f = h.reshape(h.shape[0], -1)                          # torch (c, l) flatten
    z = jnp.tanh(f @ wf1.T + bf1)
    z = z @ wf2.T + bf2
    return jnp.maximum(z, 0.0)


def init_params(key, n_inputs, c1=32, c2=64, f=32, k=3):
    ks = jax.random.split(key, 16)
    w1 = 0.2 * jax.random.normal(ks[0], (c1, 1, k), jnp.float32)
    b1 = 0.1 * jax.random.normal(ks[1], (c1,), jnp.float32)
    g1 = 1.0 + 0.1 * jax.random.normal(ks[2], (c1,), jnp.float32)
    be1 = 0.1 * jax.random.normal(ks[3], (c1,), jnp.float32)
    m1 = 0.1 * jax.random.normal(ks[4], (c1,), jnp.float32)
    v1 = 1.0 + 0.1 * jnp.abs(jax.random.normal(ks[5], (c1,), jnp.float32))
    w2 = 0.2 * jax.random.normal(ks[6], (c2, c1, k), jnp.float32)
    b2 = 0.1 * jax.random.normal(ks[7], (c2,), jnp.float32)
    g2 = 1.0 + 0.1 * jax.random.normal(ks[8], (c2,), jnp.float32)
    be2 = 0.1 * jax.random.normal(ks[9], (c2,), jnp.float32)
    m2 = 0.1 * jax.random.normal(ks[10], (c2,), jnp.float32)
    v2 = 1.0 + 0.1 * jnp.abs(jax.random.normal(ks[11], (c2,), jnp.float32))
    wf1 = 0.05 * jax.random.normal(ks[12], (f, c2 * n_inputs), jnp.float32)
    bf1 = 0.1 * jax.random.normal(ks[13], (f,), jnp.float32)
    wf2 = 0.2 * jax.random.normal(ks[14], (1, f), jnp.float32)
    bf2 = 0.1 * jax.random.normal(ks[15], (1,), jnp.float32)
    return (w1, b1, g1, be1, m1, v1, w2, b2, g2, be2, m2, v2, wf1, bf1, wf2, bf2)


if __name__ == "__main__":
    key = jax.random.PRNGKey(0)
    kx, kp = jax.random.split(key)
    n_inputs = 16       # sequence length L
    params = init_params(kp, n_inputs)

    # bf16 matmul operands (f32 accumulation) -> looser tolerance than pure f32
    tol = dict(atol=5e-2, rtol=5e-2)

    # small batch, single-tile path (batch padded to one lane-dense 128 tile)
    x_small = jax.random.normal(kx, (2, 1, n_inputs), jnp.float32)
    out = jax.block_until_ready(wl_cnn_forward(x_small, params))
    ref = jax.block_until_ready(ref_forward(x_small, params))
    assert out.shape == (2, 1), out.shape
    assert jnp.allclose(out, ref, **tol), (out, ref)

    # larger batch with an explicit tile -> exercises the multi-step grid /
    # pipelined path (2 grid steps of 128 samples)
    x_big = jax.random.normal(kx, (256, 1, n_inputs), jnp.float32)
    out_b = jax.block_until_ready(wl_cnn_forward(x_big, params, tile_n=128))
    ref_b = jax.block_until_ready(ref_forward(x_big, params))
    assert out_b.shape == (256, 1), out_b.shape
    assert jnp.allclose(out_b, ref_b, **tol)

    # default tile selection path (auto >=2 grid steps for megacore)
    out_d = jax.block_until_ready(wl_cnn_forward(x_big, params))
    assert jnp.allclose(out_d, ref_b, **tol)

    print("KERNEL_OK")
</pallas_src>

<mosaic_0001>
module attributes {stable_mosaic.version = 11 : i64} {
  func.func @wl_cnn_kernel(%arg0: i32, %arg1: memref<16x128xf32, #tpu.memory_space<vmem>>, %arg2: memref<512x16xbf16, #tpu.memory_space<vmem>>, %arg3: memref<1024x512xbf16, #tpu.memory_space<vmem>>, %arg4: memref<32x1024xbf16, #tpu.memory_space<vmem>>, %arg5: memref<1x32xf32, #tpu.memory_space<vmem>>, %arg6: memref<1024x4xf32, #tpu.memory_space<vmem>>, %arg7: memref<1x128xf32, #tpu.memory_space<vmem>>) attributes {dimension_semantics = [#tpu.dimension_semantics<parallel>], iteration_bounds = array<i64: 1>, scalar_prefetch = 0 : i64, scratch_operands = 0 : i64, tpu.core_type = #tpu.core_type<tc>, window_params = [{transform_indices = @transform_0, window_bounds = array<i64: 16, 128>}, {pipeline_mode = #tpu.pipeline_mode<synchronous>, transform_indices = @transform_1, window_bounds = array<i64: 512, 16>}, {pipeline_mode = #tpu.pipeline_mode<synchronous>, transform_indices = @transform_2, window_bounds = array<i64: 1024, 512>}, {pipeline_mode = #tpu.pipeline_mode<synchronous>, transform_indices = @transform_3, window_bounds = array<i64: 32, 1024>}, {pipeline_mode = #tpu.pipeline_mode<synchronous>, transform_indices = @transform_4, window_bounds = array<i64: 1, 32>}, {pipeline_mode = #tpu.pipeline_mode<synchronous>, transform_indices = @transform_5, window_bounds = array<i64: 1024, 4>}, {transform_indices = @transform_6, window_bounds = array<i64: 1, 128>}]} {
    %c0 = arith.constant 0 : index
    %c0_0 = arith.constant 0 : index
    %0 = vector.load %arg1[%c0, %c0_0] : memref<16x128xf32, #tpu.memory_space<vmem>>, vector<16x128xf32>
    %1 = arith.truncf %0 : vector<16x128xf32> to vector<16x128xbf16>
    %c0_1 = arith.constant 0 : index
    %c0_2 = arith.constant 0 : index
    %2 = vector.load %arg6[%c0_1, %c0_2] : memref<1024x4xf32, #tpu.memory_space<vmem>>, vector<512x1xf32>
    %c0_3 = arith.constant 0 : index
    %c1 = arith.constant 1 : index
    %3 = vector.load %arg6[%c0_3, %c1] : memref<1024x4xf32, #tpu.memory_space<vmem>>, vector<1024x1xf32>
    %c0_4 = arith.constant 0 : index
    %c2 = arith.constant 2 : index
    %4 = vector.load %arg6[%c0_4, %c2] : memref<1024x4xf32, #tpu.memory_space<vmem>>, vector<32x1xf32>
    %c0_5 = arith.constant 0 : index
    %c3 = arith.constant 3 : index
    %5 = vector.load %arg6[%c0_5, %c3] : memref<1024x4xf32, #tpu.memory_space<vmem>>, vector<1x1xf32>
    %c0_6 = arith.constant 0 : index
    %c0_7 = arith.constant 0 : index
    %6 = vector.load %arg2[%c0_6, %c0_7] : memref<512x16xbf16, #tpu.memory_space<vmem>>, vector<512x16xbf16>
    %cst = arith.constant dense<0.000000e+00> : vector<512x128xf32>
    %7 = tpu.matmul %6, %1, %cst {dimension_numbers = #tpu.dot_dimension_numbers<[1], [0], [0], [1], [0, 0, 1, 1], [], []>} : vector<512x16xbf16>, vector<16x128xbf16>, vector<512x128xf32> -> vector<512x128xf32>
    %8 = vector.broadcast %2 : vector<512x1xf32> to vector<512x128xf32>
    %9 = arith.addf %7, %8 : vector<512x128xf32>
    %10 = math.tanh %9 : vector<512x128xf32>
    %c0_8 = arith.constant 0 : index
    %c0_9 = arith.constant 0 : index
    %11 = vector.load %arg3[%c0_8, %c0_9] : memref<1024x512xbf16, #tpu.memory_space<vmem>>, vector<1024x512xbf16>
    %12 = arith.truncf %10 : vector<512x128xf32> to vector<512x128xbf16>
    %cst_10 = arith.constant dense<0.000000e+00> : vector<1024x128xf32>
    %13 = tpu.matmul %11, %12, %cst_10 {dimension_numbers = #tpu.dot_dimension_numbers<[1], [0], [0], [1], [0, 0, 1, 1], [], []>} : vector<1024x512xbf16>, vector<512x128xbf16>, vector<1024x128xf32> -> vector<1024x128xf32>
    %14 = vector.broadcast %3 : vector<1024x1xf32> to vector<1024x128xf32>
    %15 = arith.addf %13, %14 : vector<1024x128xf32>
    %16 = math.tanh %15 : vector<1024x128xf32>
    %c0_11 = arith.constant 0 : index
    %c0_12 = arith.constant 0 : index
    %17 = vector.load %arg4[%c0_11, %c0_12] : memref<32x1024xbf16, #tpu.memory_space<vmem>>, vector<32x1024xbf16>
    %18 = arith.truncf %16 : vector<1024x128xf32> to vector<1024x128xbf16>
    %cst_13 = arith.constant dense<0.000000e+00> : vector<32x128xf32>
    %19 = tpu.matmul %17, %18, %cst_13 {dimension_numbers = #tpu.dot_dimension_numbers<[1], [0], [0], [1], [0, 0, 1, 1], [], []>} : vector<32x1024xbf16>, vector<1024x128xbf16>, vector<32x128xf32> -> vector<32x128xf32>
    %20 = vector.broadcast %4 : vector<32x1xf32> to vector<32x128xf32>
    %21 = arith.addf %19, %20 : vector<32x128xf32>
    %22 = math.tanh %21 : vector<32x128xf32>
    %c0_14 = arith.constant 0 : index
    %c0_15 = arith.constant 0 : index
    %23 = vector.load %arg5[%c0_14, %c0_15] : memref<1x32xf32, #tpu.memory_space<vmem>>, vector<1x32xf32>
    %cst_16 = arith.constant dense<0.000000e+00> : vector<1x128xf32>
    %24 = tpu.matmul %23, %22, %cst_16 {dimension_numbers = #tpu.dot_dimension_numbers<[1], [0], [0], [1], [0, 0, 1, 1], [], []>} : vector<1x32xf32>, vector<32x128xf32>, vector<1x128xf32> -> vector<1x128xf32>
    %25 = vector.broadcast %5 : vector<1x1xf32> to vector<1x128xf32>
    %26 = arith.addf %24, %25 : vector<1x128xf32>
    %cst_17 = arith.constant 0.000000e+00 : f32
    %27 = vector.broadcast %cst_17 : f32 to vector<1x128xf32>
    %28 = arith.maximumf %26, %27 : vector<1x128xf32>
    %c0_18 = arith.constant 0 : index
    %c0_19 = arith.constant 0 : index
    %29 = vector.load %arg7[%c0_18, %c0_19] : memref<1x128xf32, #tpu.memory_space<vmem>>, vector<1x128xf32>
    tpu.vector_store %arg7[%c0_18, %c0_19], %28 {strides = array<i32>} : memref<1x128xf32, #tpu.memory_space<vmem>>, vector<1x128xf32>,
    return
  }
  func.func @transform_0(%arg0: i32) -> (i32, i32) {
    %c0_i32 = arith.constant 0 : i32
    %c0_i32_0 = arith.constant 0 : i32
    return %c0_i32, %arg0 : i32, i32
  }
  func.func @transform_1(%arg0: i32) -> (i32, i32) {
    %c0_i32 = arith.constant 0 : i32
    %c0_i32_0 = arith.constant 0 : i32
    %c0_i32_1 = arith.constant 0 : i32
    return %c0_i32, %c0_i32_0 : i32, i32
  }
  func.func @transform_2(%arg0: i32) -> (i32, i32) {
    %c0_i32 = arith.constant 0 : i32
    %c0_i32_0 = arith.constant 0 : i32
    %c0_i32_1 = arith.constant 0 : i32
    return %c0_i32, %c0_i32_0 : i32, i32
  }
  func.func @transform_3(%arg0: i32) -> (i32, i32) {
    %c0_i32 = arith.constant 0 : i32
    %c0_i32_0 = arith.constant 0 : i32
    %c0_i32_1 = arith.constant 0 : i32
    return %c0_i32, %c0_i32_0 : i32, i32
  }
  func.func @transform_4(%arg0: i32) -> (i32, i32) {
    %c0_i32 = arith.constant 0 : i32
    %c0_i32_0 = arith.constant 0 : i32
    %c0_i32_1 = arith.constant 0 : i32
    return %c0_i32, %c0_i32_0 : i32, i32
  }
  func.func @transform_5(%arg0: i32) -> (i32, i32) {
    %c0_i32 = arith.constant 0 : i32
    %c0_i32_0 = arith.constant 0 : i32
    %c0_i32_1 = arith.constant 0 : i32
    return %c0_i32, %c0_i32_0 : i32, i32
  }
  func.func @transform_6(%arg0: i32) -> (i32, i32) {
    %c0_i32 = arith.constant 0 : i32
    %c0_i32_0 = arith.constant 0 : i32
    return %c0_i32, %arg0 : i32, i32
  }
}

module attributes {stable_mosaic.version = 11 : i64} {
  func.func @wl_cnn_kernel(%arg0: i32, %arg1: memref<16x128xf32, #tpu.memory_space<vmem>>, %arg2: memref<512x16xbf16, #tpu.memory_space<vmem>>, %arg3: memref<1024x512xbf16, #tpu.memory_space<vmem>>, %arg4: memref<32x1024xbf16, #tpu.memory_space<vmem>>, %arg5: memref<1x32xf32, #tpu.memory_space<vmem>>, %arg6: memref<1024x4xf32, #tpu.memory_space<vmem>>, %arg7: memref<1x128xf32, #tpu.memory_space<vmem>>) attributes {dimension_semantics = [#tpu.dimension_semantics<parallel>], iteration_bounds = array<i64: 1>, scalar_prefetch = 0 : i64, scratch_operands = 0 : i64, tpu.core_type = #tpu.core_type<tc>, window_params = [{transform_indices = @transform_0, window_bounds = array<i64: 16, 128>}, {pipeline_mode = #tpu.pipeline_mode<synchronous>, transform_indices = @transform_1, window_bounds = array<i64: 512, 16>}, {pipeline_mode = #tpu.pipeline_mode<synchronous>, transform_indices = @transform_2, window_bounds = array<i64: 1024, 512>}, {pipeline_mode = #tpu.pipeline_mode<synchronous>, transform_indices = @transform_3, window_bounds = array<i64: 32, 1024>}, {pipeline_mode = #tpu.pipeline_mode<synchronous>, transform_indices = @transform_4, window_bounds = array<i64: 1, 32>}, {pipeline_mode = #tpu.pipeline_mode<synchronous>, transform_indices = @transform_5, window_bounds = array<i64: 1024, 4>}, {transform_indices = @transform_6, window_bounds = array<i64: 1, 128>}]} {
    %c0 = arith.constant 0 : index
    %c0_0 = arith.constant 0 : index
    %0 = vector.load %arg1[%c0, %c0_0] : memref<16x128xf32, #tpu.memory_space<vmem>>, vector<16x128xf32>
    %1 = arith.truncf %0 : vector<16x128xf32> to vector<16x128xbf16>
    %c0_1 = arith.constant 0 : index
    %c0_2 = arith.constant 0 : index
    %2 = vector.load %arg6[%c0_1, %c0_2] : memref<1024x4xf32, #tpu.memory_space<vmem>>, vector<512x1xf32>
    %c0_3 = arith.constant 0 : index
    %c1 = arith.constant 1 : index
    %3 = vector.load %arg6[%c0_3, %c1] : memref<1024x4xf32, #tpu.memory_space<vmem>>, vector<1024x1xf32>
    %c0_4 = arith.constant 0 : index
    %c2 = arith.constant 2 : index
    %4 = vector.load %arg6[%c0_4, %c2] : memref<1024x4xf32, #tpu.memory_space<vmem>>, vector<32x1xf32>
    %c0_5 = arith.constant 0 : index
    %c3 = arith.constant 3 : index
    %5 = vector.load %arg6[%c0_5, %c3] : memref<1024x4xf32, #tpu.memory_space<vmem>>, vector<1x1xf32>
    %c0_6 = arith.constant 0 : index
    %c0_7 = arith.constant 0 : index
    %6 = vector.load %arg2[%c0_6, %c0_7] : memref<512x16xbf16, #tpu.memory_space<vmem>>, vector<512x16xbf16>
    %cst = arith.constant dense<0.000000e+00> : vector<512x128xf32>
    %7 = tpu.matmul %6, %1, %cst {dimension_numbers = #tpu.dot_dimension_numbers<[1], [0], [0], [1], [0, 0, 1, 1], [], []>} : vector<512x16xbf16>, vector<16x128xbf16>, vector<512x128xf32> -> vector<512x128xf32>
    %8 = vector.broadcast %2 : vector<512x1xf32> to vector<512x128xf32>
    %9 = arith.addf %7, %8 : vector<512x128xf32>
    %10 = math.tanh %9 : vector<512x128xf32>
    %c0_8 = arith.constant 0 : index
    %c0_9 = arith.constant 0 : index
    %11 = vector.load %arg3[%c0_8, %c0_9] : memref<1024x512xbf16, #tpu.memory_space<vmem>>, vector<1024x512xbf16>
    %12 = arith.truncf %10 : vector<512x128xf32> to vector<512x128xbf16>
    %cst_10 = arith.constant dense<0.000000e+00> : vector<1024x128xf32>
    %13 = tpu.matmul %11, %12, %cst_10 {dimension_numbers = #tpu.dot_dimension_numbers<[1], [0], [0], [1], [0, 0, 1, 1], [], []>} : vector<1024x512xbf16>, vector<512x128xbf16>, vector<1024x128xf32> -> vector<1024x128xf32>
    %14 = vector.broadcast %3 : vector<1024x1xf32> to vector<1024x128xf32>
    %15 = arith.addf %13, %14 : vector<1024x128xf32>
    %16 = math.tanh %15 : vector<1024x128xf32>
    %c0_11 = arith.constant 0 : index
    %c0_12 = arith.constant 0 : index
    %17 = vector.load %arg4[%c0_11, %c0_12] : memref<32x1024xbf16, #tpu.memory_space<vmem>>, vector<32x1024xbf16>
    %18 = arith.truncf %16 : vector<1024x128xf32> to vector<1024x128xbf16>
    %cst_13 = arith.constant dense<0.000000e+00> : vector<32x128xf32>
    %19 = tpu.matmul %17, %18, %cst_13 {dimension_numbers = #tpu.dot_dimension_numbers<[1], [0], [0], [1], [0, 0, 1, 1], [], []>} : vector<32x1024xbf16>, vector<1024x128xbf16>, vector<32x128xf32> -> vector<32x128xf32>
    %20 = vector.broadcast %4 : vector<32x1xf32> to vector<32x128xf32>
    %21 = arith.addf %19, %20 : vector<32x128xf32>
    %22 = math.tanh %21 : vector<32x128xf32>
    %c0_14 = arith.constant 0 : index
    %c0_15 = arith.constant 0 : index
    %23 = vector.load %arg5[%c0_14, %c0_15] : memref<1x32xf32, #tpu.memory_space<vmem>>, vector<1x32xf32>
    %cst_16 = arith.constant dense<0.000000e+00> : vector<1x128xf32>
    %24 = tpu.matmul %23, %22, %cst_16 {dimension_numbers = #tpu.dot_dimension_numbers<[1], [0], [0], [1], [0, 0, 1, 1], [], []>} : vector<1x32xf32>, vector<32x128xf32>, vector<1x128xf32> -> vector<1x128xf32>
    %25 = vector.broadcast %5 : vector<1x1xf32> to vector<1x128xf32>
    %26 = arith.addf %24, %25 : vector<1x128xf32>
    %cst_17 = arith.constant 0.000000e+00 : f32
    %27 = vector.broadcast %cst_17 : f32 to vector<1x128xf32>
    %28 = arith.maximumf %26, %27 : vector<1x128xf32>
    %c0_18 = arith.constant 0 : index
    %c0_19 = arith.constant 0 : index
    %29 = vector.load %arg7[%c0_18, %c0_19] : memref<1x128xf32, #tpu.memory_space<vmem>>, vector<1x128xf32>
    tpu.vector_store %arg7[%c0_18, %c0_19], %28 {strides = array<i32>} : memref<1x128xf32, #tpu.memory_space<vmem>>, vector<1x128xf32>,
    return
  }
  func.func @transform_0(%arg0: i32) -> (i32, i32) {
    %c0_i32 = arith.constant 0 : i32
    %c0_i32_0 = arith.constant 0 : i32
    return %c0_i32, %arg0 : i32, i32
  }
  func.func @transform_1(%arg0: i32) -> (i32, i32) {
    %c0_i32 = arith.constant 0 : i32
    %c0_i32_0 = arith.constant 0 : i32
    %c0_i32_1 = arith.constant 0 : i32
    return %c0_i32, %c0_i32_0 : i32, i32
  }
  func.func @transform_2(%arg0: i32) -> (i32, i32) {
    %c0_i32 = arith.constant 0 : i32
    %c0_i32_0 = arith.constant 0 : i32
    %c0_i32_1 = arith.constant 0 : i32
    return %c0_i32, %c0_i32_0 : i32, i32
  }
  func.func @transform_3(%arg0: i32) -> (i32, i32) {
    %c0_i32 = arith.constant 0 : i32
    %c0_i32_0 = arith.constant 0 : i32
    %c0_i32_1 = arith.constant 0 : i32
    return %c0_i32, %c0_i32_0 : i32, i32
  }
  func.func @transform_4(%arg0: i32) -> (i32, i32) {
    %c0_i32 = arith.constant 0 : i32
    %c0_i32_0 = arith.constant 0 : i32
    %c0_i32_1 = arith.constant 0 : i32
    return %c0_i32, %c0_i32_0 : i32, i32
  }
  func.func @transform_5(%arg0: i32) -> (i32, i32) {
    %c0_i32 = arith.constant 0 : i32
    %c0_i32_0 = arith.constant 0 : i32
    %c0_i32_1 = arith.constant 0 : i32
    return %c0_i32, %c0_i32_0 : i32, i32
  }
  func.func @transform_6(%arg0: i32) -> (i32, i32) {
    %c0_i32 = arith.constant 0 : i32
    %c0_i32_0 = arith.constant 0 : i32
    return %c0_i32, %arg0 : i32, i32
  }
}

</mosaic_0001>

<llo_original>
// kernel: tpu_custom_call.1
$region0: #{tpu_custom_call.1}
  #allocation0 [shape = 'u32[]', space=smem, size = 0x4, offset = 0x4, fixed_abs, tag = 'smem constant byte address 0x4 - core index']
  #allocation1 [shape = 'u32[144,128]{1,0:T(1,128)}', space=vmem, size = 0x12000, scoped, tag = 'internal scratch']
  %s0 = inlined_call_operand.vmem [shape: f32[16,128], index: 0, kind: input, shape index: {}]
  %s1 = inlined_call_operand.vmem [shape: bf16[512,16], index: 1, kind: input, shape index: {}]
  %s2 = inlined_call_operand.hbm [shape: bf16[1024,512], index: 2, kind: input, shape index: {}]
  %s3 = inlined_call_operand.vmem [shape: bf16[32,1024], index: 3, kind: input, shape index: {}]
  %s4 = inlined_call_operand.vmem [shape: f32[1,32], index: 4, kind: input, shape index: {}]
  %s5 = inlined_call_operand.vmem [shape: f32[1024,4], index: 5, kind: input, shape index: {}]
  %s6 = inlined_call_operand.hbm [shape: f32[1,128], index: 6, kind: output, shape index: {}]
  %s7 = sld [smem:[#allocation0]]
  $region38: #{tpu_custom_call.1} parent=0
    _
  %s9 = ssub.s32 1, %s7
  %s10 = scalar_select 0, %s9, %s7
  $region1: #{tpu_custom_call.1} parent=0
    #allocation2 [shape = 'u8[1048576]{0}', space=vmem, size = 0x100000, scoped, tag = 'input window, operand 2, single buffered']
    #allocation3 [shape = 's32[1]{0}', space=sflag, size = 0x4, scoped, tag = 'scoped memory for tpu_custom_call.1']
    #allocation4 [shape = 's32[1]{0}', space=sflag, size = 0x4, scoped, tag = 'scoped memory for tpu_custom_call.1']
    #allocation5 [shape = 'u8[512]{0}', space=vmem, size = 0x400, scoped, tag = 'output window, operand 0, single buffered']
    %11 = vsyncpa [#allocation3], 0
    %12 = vsyncpa [#allocation4], 0
    // Predicated region
    $region2: #{tpu_custom_call.1} parent=1 // pred_check
      _
    $region3: #{tpu_custom_call.1} parent=1 // pred_check_branch
      %14 = sbr.rel (0) target = $region5
    $region4: #{tpu_custom_call.1} parent=1 // pred_region
      _
    $region5: #{tpu_custom_call.1} parent=1 // pred_fallthru
      _
    // Predicated region
    $region6: #{tpu_custom_call.1} parent=1 // pred_check
      _
    $region7: #{tpu_custom_call.1} parent=1 // pred_check_branch
      %16 = sbr.rel (0) target = $region9
    $region8: #{tpu_custom_call.1} parent=1 // pred_region
      _
    $region9: #{tpu_custom_call.1} parent=1 // pred_fallthru
      _
    // Predicated region
    $region10: #{tpu_custom_call.1} parent=1 // pred_check
      _
    $region11: #{tpu_custom_call.1} parent=1 // pred_check_branch
      %18 = sbr.rel (0) target = $region13
    $region12: #{tpu_custom_call.1} parent=1 // pred_region
      %s20 = ssub.s32 32768, 32768
      %21 = vsyncadd [#allocation3], %s20
      %s22 = sshll.u32 [#allocation2], 4
      %s23 = int_to_ptr.vmem [resolvable:$true] %s22
      %28 = dma.hbm_to_vmem [thread:$0]  %s2, 32768, %s23, [#allocation3], 256, 256, 16
    $region13: #{tpu_custom_call.1} parent=1 // pred_fallthru
      _
    // Predicated region
    $region14: #{tpu_custom_call.1} parent=1 // pred_check
      _
    $region15: #{tpu_custom_call.1} parent=1 // pred_check_branch
      %30 = sbr.rel (0) target = $region17
    $region16: #{tpu_custom_call.1} parent=1 // pred_region
      _
    $region17: #{tpu_custom_call.1} parent=1 // pred_fallthru
      _
    // Predicated region
    $region18: #{tpu_custom_call.1} parent=1 // pred_check
      _
    $region19: #{tpu_custom_call.1} parent=1 // pred_check_branch
      %32 = sbr.rel (0) target = $region21
    $region20: #{tpu_custom_call.1} parent=1 // pred_region
      _
    $region21: #{tpu_custom_call.1} parent=1 // pred_fallthru
      _
    // Predicated region
    $region22: #{tpu_custom_call.1} parent=1 // pred_check
      _
    $region23: #{tpu_custom_call.1} parent=1 // pred_check_branch
      %34 = sbr.rel (0) target = $region25
    $region24: #{tpu_custom_call.1} parent=1 // pred_region
      _
    $region25: #{tpu_custom_call.1} parent=1 // pred_fallthru
      _
    // Predicated region
    $region26: #{tpu_custom_call.1} parent=1 // pred_check
      _
    $region27: #{tpu_custom_call.1} parent=1 // pred_check_branch
      %36 = sbr.rel (0) target = $region29
    $region28: #{tpu_custom_call.1} parent=1 // pred_region
      %37 = dma.done [#allocation3], 32768
    $region29: #{tpu_custom_call.1} parent=1 // pred_fallthru
      _
    %v39 = vld [vmem:[%s0] sm:$0xff]
    %v40 = vld [vmem:[%s0 + $0x8] sm:$0xff]
    %v41 = vpack.c.bf16 %v40, %v39
    %v42 = vld [vmem:[%s5] sm:$0xff]
    %v43 = vld [vmem:[%s5 + $0x8] sm:$0xff]
    %v44 = vld [vmem:[%s5 + $0x10] sm:$0xff]
    %v45 = vld [vmem:[%s5 + $0x18] sm:$0xff]
    %v46 = vld [vmem:[%s5 + $0x20] sm:$0xff]
    %v47 = vld [vmem:[%s5 + $0x28] sm:$0xff]
    %v48 = vld [vmem:[%s5 + $0x30] sm:$0xff]
    %v49 = vld [vmem:[%s5 + $0x38] sm:$0xff]
    %v50 = vld [vmem:[%s5 + $0x40] sm:$0xff]
    %v51 = vld [vmem:[%s5 + $0x48] sm:$0xff]
    %v52 = vld [vmem:[%s5 + $0x50] sm:$0xff]
    %v53 = vld [vmem:[%s5 + $0x58] sm:$0xff]
    %v54 = vld [vmem:[%s5 + $0x60] sm:$0xff]
    %v55 = vld [vmem:[%s5 + $0x68] sm:$0xff]
    %v56 = vld [vmem:[%s5 + $0x70] sm:$0xff]
    %v57 = vld [vmem:[%s5 + $0x78] sm:$0xff]
    %v58 = vld [vmem:[%s5 + $0x80] sm:$0xff]
    %v59 = vld [vmem:[%s5 + $0x88] sm:$0xff]
    %v60 = vld [vmem:[%s5 + $0x90] sm:$0xff]
    %v61 = vld [vmem:[%s5 + $0x98] sm:$0xff]
    %v62 = vld [vmem:[%s5 + $0xa0] sm:$0xff]
    %v63 = vld [vmem:[%s5 + $0xa8] sm:$0xff]
    %v64 = vld [vmem:[%s5 + $0xb0] sm:$0xff]
    %v65 = vld [vmem:[%s5 + $0xb8] sm:$0xff]
    %v66 = vld [vmem:[%s5 + $0xc0] sm:$0xff]
    %v67 = vld [vmem:[%s5 + $0xc8] sm:$0xff]
    %v68 = vld [vmem:[%s5 + $0xd0] sm:$0xff]
    %v69 = vld [vmem:[%s5 + $0xd8] sm:$0xff]
    %v70 = vld [vmem:[%s5 + $0xe0] sm:$0xff]
    %v71 = vld [vmem:[%s5 + $0xe8] sm:$0xff]
    %v72 = vld [vmem:[%s5 + $0xf0] sm:$0xff]
    %v73 = vld [vmem:[%s5 + $0xf8] sm:$0xff]
    %v74 = vld [vmem:[%s5 + $0x100] sm:$0xff]
    %v75 = vld [vmem:[%s5 + $0x108] sm:$0xff]
    %v76 = vld [vmem:[%s5 + $0x110] sm:$0xff]
    %v77 = vld [vmem:[%s5 + $0x118] sm:$0xff]
    %v78 = vld [vmem:[%s5 + $0x120] sm:$0xff]
    %v79 = vld [vmem:[%s5 + $0x128] sm:$0xff]
    %v80 = vld [vmem:[%s5 + $0x130] sm:$0xff]
    %v81 = vld [vmem:[%s5 + $0x138] sm:$0xff]
    %v82 = vld [vmem:[%s5 + $0x140] sm:$0xff]
    %v83 = vld [vmem:[%s5 + $0x148] sm:$0xff]
    %v84 = vld [vmem:[%s5 + $0x150] sm:$0xff]
    %v85 = vld [vmem:[%s5 + $0x158] sm:$0xff]
    %v86 = vld [vmem:[%s5 + $0x160] sm:$0xff]
    %v87 = vld [vmem:[%s5 + $0x168] sm:$0xff]
    %v88 = vld [vmem:[%s5 + $0x170] sm:$0xff]
    %v89 = vld [vmem:[%s5 + $0x178] sm:$0xff]
    %v90 = vld [vmem:[%s5 + $0x180] sm:$0xff]
    %v91 = vld [vmem:[%s5 + $0x188] sm:$0xff]
    %v92 = vld [vmem:[%s5 + $0x190] sm:$0xff]
    %v93 = vld [vmem:[%s5 + $0x198] sm:$0xff]
    %v94 = vld [vmem:[%s5 + $0x1a0] sm:$0xff]
    %v95 = vld [vmem:[%s5 + $0x1a8] sm:$0xff]
    %v96 = vld [vmem:[%s5 + $0x1b0] sm:$0xff]
    %v97 = vld [vmem:[%s5 + $0x1b8] sm:$0xff]
    %v98 = vld [vmem:[%s5 + $0x1c0] sm:$0xff]
    %v99 = vld [vmem:[%s5 + $0x1c8] sm:$0xff]
    %v100 = vld [vmem:[%s5 + $0x1d0] sm:$0xff]
    %v101 = vld [vmem:[%s5 + $0x1d8] sm:$0xff]
    %v102 = vld [vmem:[%s5 + $0x1e0] sm:$0xff]
    %v103 = vld [vmem:[%s5 + $0x1e8] sm:$0xff]
    %v104 = vld [vmem:[%s5 + $0x1f0] sm:$0xff]
    %v105 = vld [vmem:[%s5 + $0x1f8] sm:$0xff]
    %v106 = vld [vmem:[%s5 + $0x200] sm:$0xff]
    %v107 = vld [vmem:[%s5 + $0x208] sm:$0xff]
    %v108 = vld [vmem:[%s5 + $0x210] sm:$0xff]
    %v109 = vld [vmem:[%s5 + $0x218] sm:$0xff]
    %v110 = vld [vmem:[%s5 + $0x220] sm:$0xff]
    %v111 = vld [vmem:[%s5 + $0x228] sm:$0xff]
    %v112 = vld [vmem:[%s5 + $0x230] sm:$0xff]
    %v113 = vld [vmem:[%s5 + $0x238] sm:$0xff]
    %v114 = vld [vmem:[%s5 + $0x240] sm:$0xff]
    %v115 = vld [vmem:[%s5 + $0x248] sm:$0xff]
    %v116 = vld [vmem:[%s5 + $0x250] sm:$0xff]
    %v117 = vld [vmem:[%s5 + $0x258] sm:$0xff]
    %v118 = vld [vmem:[%s5 + $0x260] sm:$0xff]
    %v119 = vld [vmem:[%s5 + $0x268] sm:$0xff]
    %v120 = vld [vmem:[%s5 + $0x270] sm:$0xff]
    %v121 = vld [vmem:[%s5 + $0x278] sm:$0xff]
    %v122 = vld [vmem:[%s5 + $0x280] sm:$0xff]
    %v123 = vld [vmem:[%s5 + $0x288] sm:$0xff]
    %v124 = vld [vmem:[%s5 + $0x290] sm:$0xff]
    %v125 = vld [vmem:[%s5 + $0x298] sm:$0xff]
    %v126 = vld [vmem:[%s5 + $0x2a0] sm:$0xff]
    %v127 = vld [vmem:[%s5 + $0x2a8] sm:$0xff]
    %v128 = vld [vmem:[%s5 + $0x2b0] sm:$0xff]
    %v129 = vld [vmem:[%s5 + $0x2b8] sm:$0xff]
    %v130 = vld [vmem:[%s5 + $0x2c0] sm:$0xff]
    %v131 = vld [vmem:[%s5 + $0x2c8] sm:$0xff]
    %v132 = vld [vmem:[%s5 + $0x2d0] sm:$0xff]
    %v133 = vld [vmem:[%s5 + $0x2d8] sm:$0xff]
    %v134 = vld [vmem:[%s5 + $0x2e0] sm:$0xff]
    %v135 = vld [vmem:[%s5 + $0x2e8] sm:$0xff]
    %v136 = vld [vmem:[%s5 + $0x2f0] sm:$0xff]
    %v137 = vld [vmem:[%s5 + $0x2f8] sm:$0xff]
    %v138 = vld [vmem:[%s5 + $0x300] sm:$0xff]
    %v139 = vld [vmem:[%s5 + $0x308] sm:$0xff]
    %v140 = vld [vmem:[%s5 + $0x310] sm:$0xff]
    %v141 = vld [vmem:[%s5 + $0x318] sm:$0xff]
    %v142 = vld [vmem:[%s5 + $0x320] sm:$0xff]
    %v143 = vld [vmem:[%s5 + $0x328] sm:$0xff]
    %v144 = vld [vmem:[%s5 + $0x330] sm:$0xff]
    %v145 = vld [vmem:[%s5 + $0x338] sm:$0xff]
    %v146 = vld [vmem:[%s5 + $0x340] sm:$0xff]
    %v147 = vld [vmem:[%s5 + $0x348] sm:$0xff]
    %v148 = vld [vmem:[%s5 + $0x350] sm:$0xff]
    %v149 = vld [vmem:[%s5 + $0x358] sm:$0xff]
    %v150 = vld [vmem:[%s5 + $0x360] sm:$0xff]
    %v151 = vld [vmem:[%s5 + $0x368] sm:$0xff]
    %v152 = vld [vmem:[%s5 + $0x370] sm:$0xff]
    %v153 = vld [vmem:[%s5 + $0x378] sm:$0xff]
    %v154 = vld [vmem:[%s5 + $0x380] sm:$0xff]
    %v155 = vld [vmem:[%s5 + $0x388] sm:$0xff]
    %v156 = vld [vmem:[%s5 + $0x390] sm:$0xff]
    %v157 = vld [vmem:[%s5 + $0x398] sm:$0xff]
    %v158 = vld [vmem:[%s5 + $0x3a0] sm:$0xff]
    %v159 = vld [vmem:[%s5 + $0x3a8] sm:$0xff]
    %v160 = vld [vmem:[%s5 + $0x3b0] sm:$0xff]
    %v161 = vld [vmem:[%s5 + $0x3b8] sm:$0xff]
    %v162 = vld [vmem:[%s5 + $0x3c0] sm:$0xff]
    %v163 = vld [vmem:[%s5 + $0x3c8] sm:$0xff]
    %v164 = vld [vmem:[%s5 + $0x3d0] sm:$0xff]
    %v165 = vld [vmem:[%s5 + $0x3d8] sm:$0xff]
    %v166 = vld [vmem:[%s5 + $0x3e0] sm:$0xff]
    %v167 = vld [vmem:[%s5 + $0x3e8] sm:$0xff]
    %v168 = vld [vmem:[%s5 + $0x3f0] sm:$0xff]
    %v169 = vld [vmem:[%s5 + $0x3f8] sm:$0xff]
    %v170 = vld [vmem:[%s5] sm:$0x1]
    %v171 = vld [vmem:[%s1] sm:$0xf]
    %v172 = vld [vmem:[%s1 + $0x4] sm:$0xf]
    %v173 = vld [vmem:[%s1 + $0x8] sm:$0xf]
    %v174 = vld [vmem:[%s1 + $0xc] sm:$0xf]
    %v175 = vld [vmem:[%s1 + $0x10] sm:$0xf]
    %v176 = vld [vmem:[%s1 + $0x14] sm:$0xf]
    %v177 = vld [vmem:[%s1 + $0x18] sm:$0xf]
    %v178 = vld [vmem:[%s1 + $0x1c] sm:$0xf]
    %v179 = vld [vmem:[%s1 + $0x20] sm:$0xf]
    %v180 = vld [vmem:[%s1 + $0x24] sm:$0xf]
    %v181 = vld [vmem:[%s1 + $0x28] sm:$0xf]
    %v182 = vld [vmem:[%s1 + $0x2c] sm:$0xf]
    %v183 = vld [vmem:[%s1 + $0x30] sm:$0xf]
    %v184 = vld [vmem:[%s1 + $0x34] sm:$0xf]
    %v185 = vld [vmem:[%s1 + $0x38] sm:$0xf]
    %v186 = vld [vmem:[%s1 + $0x3c] sm:$0xf]
    %v187 = vld [vmem:[%s1 + $0x40] sm:$0xf]
    %v188 = vld [vmem:[%s1 + $0x44] sm:$0xf]
    %v189 = vld [vmem:[%s1 + $0x48] sm:$0xf]
    %v190 = vld [vmem:[%s1 + $0x4c] sm:$0xf]
    %v191 = vld [vmem:[%s1 + $0x50] sm:$0xf]
    %v192 = vld [vmem:[%s1 + $0x54] sm:$0xf]
    %v193 = vld [vmem:[%s1 + $0x58] sm:$0xf]
    %v194 = vld [vmem:[%s1 + $0x5c] sm:$0xf]
    %v195 = vld [vmem:[%s1 + $0x60] sm:$0xf]
    %v196 = vld [vmem:[%s1 + $0x64] sm:$0xf]
    %v197 = vld [vmem:[%s1 + $0x68] sm:$0xf]
    %v198 = vld [vmem:[%s1 + $0x6c] sm:$0xf]
    %v199 = vld [vmem:[%s1 + $0x70] sm:$0xf]
    %v200 = vld [vmem:[%s1 + $0x74] sm:$0xf]
    %v201 = vld [vmem:[%s1 + $0x78] sm:$0xf]
    %v202 = vld [vmem:[%s1 + $0x7c] sm:$0xf]
    %v203 = vld [vmem:[%s1 + $0x80] sm:$0xf]
    %v204 = vld [vmem:[%s1 + $0x84] sm:$0xf]
    %v205 = vld [vmem:[%s1 + $0x88] sm:$0xf]
    %v206 = vld [vmem:[%s1 + $0x8c] sm:$0xf]
    %v207 = vld [vmem:[%s1 + $0x90] sm:$0xf]
    %v208 = vld [vmem:[%s1 + $0x94] sm:$0xf]
    %v209 = vld [vmem:[%s1 + $0x98] sm:$0xf]
    %v210 = vld [vmem:[%s1 + $0x9c] sm:$0xf]
    %v211 = vld [vmem:[%s1 + $0xa0] sm:$0xf]
    %v212 = vld [vmem:[%s1 + $0xa4] sm:$0xf]
    %v213 = vld [vmem:[%s1 + $0xa8] sm:$0xf]
    %v214 = vld [vmem:[%s1 + $0xac] sm:$0xf]
    %v215 = vld [vmem:[%s1 + $0xb0] sm:$0xf]
    %v216 = vld [vmem:[%s1 + $0xb4] sm:$0xf]
    %v217 = vld [vmem:[%s1 + $0xb8] sm:$0xf]
    %v218 = vld [vmem:[%s1 + $0xbc] sm:$0xf]
    %v219 = vld [vmem:[%s1 + $0xc0] sm:$0xf]
    %v220 = vld [vmem:[%s1 + $0xc4] sm:$0xf]
    %v221 = vld [vmem:[%s1 + $0xc8] sm:$0xf]
    %v222 = vld [vmem:[%s1 + $0xcc] sm:$0xf]
    %v223 = vld [vmem:[%s1 + $0xd0] sm:$0xf]
    %v224 = vld [vmem:[%s1 + $0xd4] sm:$0xf]
    %v225 = vld [vmem:[%s1 + $0xd8] sm:$0xf]
    %v226 = vld [vmem:[%s1 + $0xdc] sm:$0xf]
    %v227 = vld [vmem:[%s1 + $0xe0] sm:$0xf]
    %v228 = vld [vmem:[%s1 + $0xe4] sm:$0xf]
    %v229 = vld [vmem:[%s1 + $0xe8] sm:$0xf]
    %v230 = vld [vmem:[%s1 + $0xec] sm:$0xf]
    %v231 = vld [vmem:[%s1 + $0xf0] sm:$0xf]
    %v232 = vld [vmem:[%s1 + $0xf4] sm:$0xf]
    %v233 = vld [vmem:[%s1 + $0xf8] sm:$0xf]
    %v234 = vld [vmem:[%s1 + $0xfc] sm:$0xf]
    %236 = vset.pattern.permute.xlu0 0
    %237 = vperm.xlu0 %236, %v42
    %v238 = vpop.permute.xlu0 %237
    %241 = vset.pattern.permute.xlu0 0
    %242 = vperm.xlu0 %241, %v43
    %v243 = vpop.permute.xlu0 %242
    %246 = vset.pattern.permute.xlu0 0
    %247 = vperm.xlu0 %246, %v44
    %v248 = vpop.permute.xlu0 %247
    %251 = vset.pattern.permute.xlu0 0
    %252 = vperm.xlu0 %251, %v45
    %v253 = vpop.permute.xlu0 %252
    %256 = vset.pattern.permute.xlu0 0
    %257 = vperm.xlu0 %256, %v46
    %v258 = vpop.permute.xlu0 %257
    %261 = vset.pattern.permute.xlu0 0
    %262 = vperm.xlu0 %261, %v47
    %v263 = vpop.permute.xlu0 %262
    %266 = vset.pattern.permute.xlu0 0
    %267 = vperm.xlu0 %266, %v48
    %v268 = vpop.permute.xlu0 %267
    %271 = vset.pattern.permute.xlu0 0
    %272 = vperm.xlu0 %271, %v49
    %v273 = vpop.permute.xlu0 %272
    %276 = vset.pattern.permute.xlu0 0
    %277 = vperm.xlu0 %276, %v50
    %v278 = vpop.permute.xlu0 %277
    %281 = vset.pattern.permute.xlu0 0
    %282 = vperm.xlu0 %281, %v51
    %v283 = vpop.permute.xlu0 %282
    %286 = vset.pattern.permute.xlu0 0
    %287 = vperm.xlu0 %286, %v52
    %v288 = vpop.permute.xlu0 %287
    %291 = vset.pattern.permute.xlu0 0
    %292 = vperm.xlu0 %291, %v53
    %v293 = vpop.permute.xlu0 %292
    %296 = vset.pattern.permute.xlu0 0
    %297 = vperm.xlu0 %296, %v54
    %v298 = vpop.permute.xlu0 %297
    %301 = vset.pattern.permute.xlu0 0
    %302 = vperm.xlu0 %301, %v55
    %v303 = vpop.permute.xlu0 %302
    %306 = vset.pattern.permute.xlu0 0
    %307 = vperm.xlu0 %306, %v56
    %v308 = vpop.permute.xlu0 %307
    %311 = vset.pattern.permute.xlu0 0
    %312 = vperm.xlu0 %311, %v57
    %v313 = vpop.permute.xlu0 %312
    %316 = vset.pattern.permute.xlu0 0
    %317 = vperm.xlu0 %316, %v58
    %v318 = vpop.permute.xlu0 %317
    %321 = vset.pattern.permute.xlu0 0
    %322 = vperm.xlu0 %321, %v59
    %v323 = vpop.permute.xlu0 %322
    %326 = vset.pattern.permute.xlu0 0
    %327 = vperm.xlu0 %326, %v60
    %v328 = vpop.permute.xlu0 %327
    %331 = vset.pattern.permute.xlu0 0
    %332 = vperm.xlu0 %331, %v61
    %v333 = vpop.permute.xlu0 %332
    %336 = vset.pattern.permute.xlu0 0
    %337 = vperm.xlu0 %336, %v62
    %v338 = vpop.permute.xlu0 %337
    %341 = vset.pattern.permute.xlu0 0
    %342 = vperm.xlu0 %341, %v63
    %v343 = vpop.permute.xlu0 %342
    %346 = vset.pattern.permute.xlu0 0
    %347 = vperm.xlu0 %346, %v64
    %v348 = vpop.permute.xlu0 %347
    %351 = vset.pattern.permute.xlu0 0
    %352 = vperm.xlu0 %351, %v65
    %v353 = vpop.permute.xlu0 %352
    %356 = vset.pattern.permute.xlu0 0
    %357 = vperm.xlu0 %356, %v66
    %v358 = vpop.permute.xlu0 %357
    %361 = vset.pattern.permute.xlu0 0
    %362 = vperm.xlu0 %361, %v67
    %v363 = vpop.permute.xlu0 %362
    %366 = vset.pattern.permute.xlu0 0
    %367 = vperm.xlu0 %366, %v68
    %v368 = vpop.permute.xlu0 %367
    %371 = vset.pattern.permute.xlu0 0
    %372 = vperm.xlu0 %371, %v69
    %v373 = vpop.permute.xlu0 %372
    %376 = vset.pattern.permute.xlu0 0
    %377 = vperm.xlu0 %376, %v70
    %v378 = vpop.permute.xlu0 %377
    %381 = vset.pattern.permute.xlu0 0
    %382 = vperm.xlu0 %381, %v71
    %v383 = vpop.permute.xlu0 %382
    %386 = vset.pattern.permute.xlu0 0
    %387 = vperm.xlu0 %386, %v72
    %v388 = vpop.permute.xlu0 %387
    %391 = vset.pattern.permute.xlu0 0
    %392 = vperm.xlu0 %391, %v73
    %v393 = vpop.permute.xlu0 %392
    %396 = vset.pattern.permute.xlu0 0
    %397 = vperm.xlu0 %396, %v74
    %v398 = vpop.permute.xlu0 %397
    %401 = vset.pattern.permute.xlu0 0
    %402 = vperm.xlu0 %401, %v75
    %v403 = vpop.permute.xlu0 %402
    %406 = vset.pattern.permute.xlu0 0
    %407 = vperm.xlu0 %406, %v76
    %v408 = vpop.permute.xlu0 %407
    %411 = vset.pattern.permute.xlu0 0
    %412 = vperm.xlu0 %411, %v77
    %v413 = vpop.permute.xlu0 %412
    %416 = vset.pattern.permute.xlu0 0
    %417 = vperm.xlu0 %416, %v78
    %v418 = vpop.permute.xlu0 %417
    %421 = vset.pattern.permute.xlu0 0
    %422 = vperm.xlu0 %421, %v79
    %v423 = vpop.permute.xlu0 %422
    %426 = vset.pattern.permute.xlu0 0
    %427 = vperm.xlu0 %426, %v80
    %v428 = vpop.permute.xlu0 %427
    %431 = vset.pattern.permute.xlu0 0
    %432 = vperm.xlu0 %431, %v81
    %v433 = vpop.permute.xlu0 %432
    %436 = vset.pattern.permute.xlu0 0
    %437 = vperm.xlu0 %436, %v82
    %v438 = vpop.permute.xlu0 %437
    %441 = vset.pattern.permute.xlu0 0
    %442 = vperm.xlu0 %441, %v83
    %v443 = vpop.permute.xlu0 %442
    %446 = vset.pattern.permute.xlu0 0
    %447 = vperm.xlu0 %446, %v84
    %v448 = vpop.permute.xlu0 %447
    %451 = vset.pattern.permute.xlu0 0
    %452 = vperm.xlu0 %451, %v85
    %v453 = vpop.permute.xlu0 %452
    %456 = vset.pattern.permute.xlu0 0
    %457 = vperm.xlu0 %456, %v86
    %v458 = vpop.permute.xlu0 %457
    %461 = vset.pattern.permute.xlu0 0
    %462 = vperm.xlu0 %461, %v87
    %v463 = vpop.permute.xlu0 %462
    %466 = vset.pattern.permute.xlu0 0
    %467 = vperm.xlu0 %466, %v88
    %v468 = vpop.permute.xlu0 %467
    %471 = vset.pattern.permute.xlu0 0
    %472 = vperm.xlu0 %471, %v89
    %v473 = vpop.permute.xlu0 %472
    %476 = vset.pattern.permute.xlu0 0
    %477 = vperm.xlu0 %476, %v90
    %v478 = vpop.permute.xlu0 %477
    %481 = vset.pattern.permute.xlu0 0
    %482 = vperm.xlu0 %481, %v91
    %v483 = vpop.permute.xlu0 %482
    %486 = vset.pattern.permute.xlu0 0
    %487 = vperm.xlu0 %486, %v92
    %v488 = vpop.permute.xlu0 %487
    %491 = vset.pattern.permute.xlu0 0
    %492 = vperm.xlu0 %491, %v93
    %v493 = vpop.permute.xlu0 %492
    %496 = vset.pattern.permute.xlu0 0
    %497 = vperm.xlu0 %496, %v94
    %v498 = vpop.permute.xlu0 %497
    %501 = vset.pattern.permute.xlu0 0
    %502 = vperm.xlu0 %501, %v95
    %v503 = vpop.permute.xlu0 %502
    %506 = vset.pattern.permute.xlu0 0
    %507 = vperm.xlu0 %506, %v96
    %v508 = vpop.permute.xlu0 %507
    %511 = vset.pattern.permute.xlu0 0
    %512 = vperm.xlu0 %511, %v97
    %v513 = vpop.permute.xlu0 %512
    %516 = vset.pattern.permute.xlu0 0
    %517 = vperm.xlu0 %516, %v98
    %v518 = vpop.permute.xlu0 %517
    %521 = vset.pattern.permute.xlu0 0
    %522 = vperm.xlu0 %521, %v99
    %v523 = vpop.permute.xlu0 %522
    %526 = vset.pattern.permute.xlu0 0
    %527 = vperm.xlu0 %526, %v100
    %v528 = vpop.permute.xlu0 %527
    %531 = vset.pattern.permute.xlu0 0
    %532 = vperm.xlu0 %531, %v101
    %v533 = vpop.permute.xlu0 %532
    %536 = vset.pattern.permute.xlu0 0
    %537 = vperm.xlu0 %536, %v102
    %v538 = vpop.permute.xlu0 %537
    %541 = vset.pattern.permute.xlu0 0
    %542 = vperm.xlu0 %541, %v103
    %v543 = vpop.permute.xlu0 %542
    %546 = vset.pattern.permute.xlu0 0
    %547 = vperm.xlu0 %546, %v104
    %v548 = vpop.permute.xlu0 %547
    %551 = vset.pattern.permute.xlu0 0
    %552 = vperm.xlu0 %551, %v105
    %v553 = vpop.permute.xlu0 %552
    %v619 = vunpack.c.l.b16 %v171
    %v620 = vunpack.c.l.b16 %v172
    %v621 = vunpack.c.l.b16 %v173
    %v622 = vunpack.c.l.b16 %v174
    %v623 = vunpack.c.l.b16 %v175
    %v624 = vunpack.c.l.b16 %v176
    %v625 = vunpack.c.l.b16 %v177
    %v626 = vunpack.c.l.b16 %v178
    %v627 = vunpack.c.l.b16 %v179
    %v628 = vunpack.c.l.b16 %v180
    %v629 = vunpack.c.l.b16 %v181
    %v630 = vunpack.c.l.b16 %v182
    %v631 = vunpack.c.l.b16 %v183
    %v632 = vunpack.c.l.b16 %v184
    %v633 = vunpack.c.l.b16 %v185
    %v634 = vunpack.c.l.b16 %v186
    %v635 = vunpack.c.l.b16 %v187
    %v636 = vunpack.c.l.b16 %v188
    %v637 = vunpack.c.l.b16 %v189
    %v638 = vunpack.c.l.b16 %v190
    %v639 = vunpack.c.l.b16 %v191
    %v640 = vunpack.c.l.b16 %v192
    %v641 = vunpack.c.l.b16 %v193
    %v642 = vunpack.c.l.b16 %v194
    %v643 = vunpack.c.l.b16 %v195
    %v644 = vunpack.c.l.b16 %v196
    %v645 = vunpack.c.l.b16 %v197
    %v646 = vunpack.c.l.b16 %v198
    %v647 = vunpack.c.l.b16 %v199
    %v648 = vunpack.c.l.b16 %v200
    %v649 = vunpack.c.l.b16 %v201
    %v650 = vunpack.c.l.b16 %v202
    %v651 = vunpack.c.l.b16 %v203
    %v652 = vunpack.c.l.b16 %v204
    %v653 = vunpack.c.l.b16 %v205
    %v654 = vunpack.c.l.b16 %v206
    %v655 = vunpack.c.l.b16 %v207
    %v656 = vunpack.c.l.b16 %v208
    %v657 = vunpack.c.l.b16 %v209
    %v658 = vunpack.c.l.b16 %v210
    %v659 = vunpack.c.l.b16 %v211
    %v660 = vunpack.c.l.b16 %v212
    %v661 = vunpack.c.l.b16 %v213
    %v662 = vunpack.c.l.b16 %v214
    %v663 = vunpack.c.l.b16 %v215
    %v664 = vunpack.c.l.b16 %v216
    %v665 = vunpack.c.l.b16 %v217
    %v666 = vunpack.c.l.b16 %v218
    %v667 = vunpack.c.l.b16 %v219
    %v668 = vunpack.c.l.b16 %v220
    %v669 = vunpack.c.l.b16 %v221
    %v670 = vunpack.c.l.b16 %v222
    %v671 = vunpack.c.l.b16 %v223
    %v672 = vunpack.c.l.b16 %v224
    %v673 = vunpack.c.l.b16 %v225
    %v674 = vunpack.c.l.b16 %v226
    %v675 = vunpack.c.l.b16 %v227
    %v676 = vunpack.c.l.b16 %v228
    %v677 = vunpack.c.l.b16 %v229
    %v678 = vunpack.c.l.b16 %v230
    %v679 = vunpack.c.l.b16 %v231
    %v680 = vunpack.c.l.b16 %v232
    %v681 = vunpack.c.l.b16 %v233
    %v682 = vunpack.c.l.b16 %v234
    %v683 = vpack.c.b16 %v620, %v619
    %v684 = vpack.c.b16 %v622, %v621
    %v685 = vpack.c.b16 %v624, %v623
    %v686 = vpack.c.b16 %v626, %v625
    %v687 = vpack.c.b16 %v628, %v627
    %v688 = vpack.c.b16 %v630, %v629
    %v689 = vpack.c.b16 %v632, %v631
    %v690 = vpack.c.b16 %v634, %v633
    %v691 = vpack.c.b16 %v636, %v635
    %v692 = vpack.c.b16 %v638, %v637
    %v693 = vpack.c.b16 %v640, %v639
    %v694 = vpack.c.b16 %v642, %v641
    %v695 = vpack.c.b16 %v644, %v643
    %v696 = vpack.c.b16 %v646, %v645
    %v697 = vpack.c.b16 %v648, %v647
    %v698 = vpack.c.b16 %v650, %v649
    %v699 = vpack.c.b16 %v652, %v651
    %v700 = vpack.c.b16 %v654, %v653
    %v701 = vpack.c.b16 %v656, %v655
    %v702 = vpack.c.b16 %v658, %v657
    %v703 = vpack.c.b16 %v660, %v659
    %v704 = vpack.c.b16 %v662, %v661
    %v705 = vpack.c.b16 %v664, %v663
    %v706 = vpack.c.b16 %v666, %v665
    %v707 = vpack.c.b16 %v668, %v667
    %v708 = vpack.c.b16 %v670, %v669
    %v709 = vpack.c.b16 %v672, %v671
    %v710 = vpack.c.b16 %v674, %v673
    %v711 = vpack.c.b16 %v676, %v675
    %v712 = vpack.c.b16 %v678, %v677
    %v713 = vpack.c.b16 %v680, %v679
    %v714 = vpack.c.b16 %v682, %v681
    %vm715 = vcmask 130048
    %v717 = vsel %vm715, %v683, 0
    %v720 = vsel %vm715, %v684, 0
    %v723 = vsel %vm715, %v685, 0
    %v726 = vsel %vm715, %v686, 0
    %v729 = vsel %vm715, %v687, 0
    %v732 = vsel %vm715, %v688, 0
    %v735 = vsel %vm715, %v689, 0
    %v738 = vsel %vm715, %v690, 0
    %v741 = vsel %vm715, %v691, 0
    %v744 = vsel %vm715, %v692, 0
    %v747 = vsel %vm715, %v693, 0
    %v750 = vsel %vm715, %v694, 0
    %v753 = vsel %vm715, %v695, 0
    %v756 = vsel %vm715, %v696, 0
    %v759 = vsel %vm715, %v697, 0
    %v762 = vsel %vm715, %v698, 0
    %v765 = vsel %vm715, %v699, 0
    %v768 = vsel %vm715, %v700, 0
    %v771 = vsel %vm715, %v701, 0
    %v774 = vsel %vm715, %v702, 0
    %v777 = vsel %vm715, %v703, 0
    %v780 = vsel %vm715, %v704, 0
    %v783 = vsel %vm715, %v705, 0
    %v786 = vsel %vm715, %v706, 0
    %v789 = vsel %vm715, %v707, 0
    %v792 = vsel %vm715, %v708, 0
    %v795 = vsel %vm715, %v709, 0
    %v798 = vsel %vm715, %v710, 0
    %v801 = vsel %vm715, %v711, 0
    %v804 = vsel %vm715, %v712, 0
    %v807 = vsel %vm715, %v713, 0
    %v810 = vsel %vm715, %v714, 0
    %812 = vmatprep.subr.bf16.mxu0 0
    %813 = vmatpush1.bf16.msra.mxu0 %v41
    %814 = vmatprep.subr.bf16.mxu0 0
    %815 = vmatpush1.bf16.msra.mxu0 0
    %816 = vmatprep.subr.bf16.mxu0 0
    %817 = vmatpush1.bf16.msra.mxu0 0
    %818 = vmatprep.subr.bf16.mxu0 0
    %819 = vmatpush1.bf16.msra.mxu0 0
    %820 = vmatprep.subr.bf16.mxu0 0
    %821 = vmatpush1.bf16.msra.mxu0 0
    %822 = vmatprep.subr.bf16.mxu0 0
    %823 = vmatpush1.bf16.msra.mxu0 0
    %824 = vmatprep.subr.bf16.mxu0 0
    %825 = vmatpush1.bf16.msra.mxu0 0
    %826 = vmatprep.subr.bf16.mxu0 0
    %827 = vmatpush1.bf16.msra.mxu0 0
    %828 = vmatprep.subr.bf16.mxu0 0
    %829 = vmatpush1.bf16.msra.mxu0 0
    %830 = vmatprep.subr.bf16.mxu0 0
    %831 = vmatpush1.bf16.msra.mxu0 0
    %832 = vmatprep.subr.bf16.mxu0 0
    %833 = vmatpush1.bf16.msra.mxu0 0
    %834 = vmatprep.subr.bf16.mxu0 0
    %835 = vmatpush1.bf16.msra.mxu0 0
    %836 = vmatprep.subr.bf16.mxu0 0
    %837 = vmatpush1.bf16.msra.mxu0 0
    %838 = vmatprep.subr.bf16.mxu0 0
    %839 = vmatpush1.bf16.msra.mxu0 0
    %840 = vmatprep.subr.bf16.mxu0 0
    %841 = vmatpush1.bf16.msra.mxu0 0
    %842 = vmatprep.subr.bf16.mxu0 0
    %843 = vmatpush1.bf16.msra.mxu0 0
    %844 = vmatprep.mubr.bf16.mxu0 0
    %845 = vmatmul.mubr.bf16.gmra.mrb[0].mxu0 %v717
    %v846 = vpop.f32.mrb[0].mxu0
    %v847 = vadd.f32 %v238, %v846
    %v848 = vpop.f32.mrb[0].mxu0
    %v849 = vpop.f32.mrb[0].mxu0
    %v850 = vadd.f32 %v243, %v849
    %v851 = vpop.f32.mrb[0].mxu0
    %852 = vmatprep.mubr.bf16.mxu0 0
    %853 = vmatmul.mubr.bf16.gmra.mrb[0].mxu0 %v720
    %v854 = vpop.f32.mrb[0].mxu0
    %v855 = vadd.f32 %v248, %v854
    %v856 = vpop.f32.mrb[0].mxu0
    %v857 = vpop.f32.mrb[0].mxu0
    %v858 = vadd.f32 %v253, %v857
    %v859 = vpop.f32.mrb[0].mxu0
    %860 = vmatprep.mubr.bf16.mxu0 0
    %861 = vmatmul.mubr.bf16.gmra.mrb[0].mxu0 %v723
    %v862 = vpop.f32.mrb[0].mxu0
    %v863 = vadd.f32 %v258, %v862
    %v864 = vpop.f32.mrb[0].mxu0
    %v865 = vpop.f32.mrb[0].mxu0
    %v866 = vadd.f32 %v263, %v865
    %v867 = vpop.f32.mrb[0].mxu0
    %868 = vmatprep.mubr.bf16.mxu0 0
    %869 = vmatmul.mubr.bf16.gmra.mrb[0].mxu0 %v726
    %v870 = vpop.f32.mrb[0].mxu0
    %v871 = vadd.f32 %v268, %v870
    %v872 = vpop.f32.mrb[0].mxu0
    %v873 = vpop.f32.mrb[0].mxu0
    %v874 = vadd.f32 %v273, %v873
    %v875 = vpop.f32.mrb[0].mxu0
    %876 = vmatprep.mubr.bf16.mxu0 0
    %877 = vmatmul.mubr.bf16.gmra.mrb[0].mxu0 %v729
    %v878 = vpop.f32.mrb[0].mxu0
    %v879 = vadd.f32 %v278, %v878
    %v880 = vpop.f32.mrb[0].mxu0
    %v881 = vpop.f32.mrb[0].mxu0
    %v882 = vadd.f32 %v283, %v881
    %v883 = vpop.f32.mrb[0].mxu0
    %884 = vmatprep.mubr.bf16.mxu0 0
    %885 = vmatmul.mubr.bf16.gmra.mrb[0].mxu0 %v732
    %v886 = vpop.f32.mrb[0].mxu0
    %v887 = vadd.f32 %v288, %v886
    %v888 = vpop.f32.mrb[0].mxu0
    %v889 = vpop.f32.mrb[0].mxu0
    %v890 = vadd.f32 %v293, %v889
    %v891 = vpop.f32.mrb[0].mxu0
    %892 = vmatprep.mubr.bf16.mxu0 0
    %893 = vmatmul.mubr.bf16.gmra.mrb[0].mxu0 %v735
    %v894 = vpop.f32.mrb[0].mxu0
    %v895 = vadd.f32 %v298, %v894
    %v896 = vpop.f32.mrb[0].mxu0
    %v897 = vpop.f32.mrb[0].mxu0
    %v898 = vadd.f32 %v303, %v897
    %v899 = vpop.f32.mrb[0].mxu0
    %900 = vmatprep.mubr.bf16.mxu0 0
    %901 = vmatmul.mubr.bf16.gmra.mrb[0].mxu0 %v738
    %v902 = vpop.f32.mrb[0].mxu0
    %v903 = vadd.f32 %v308, %v902
    %v904 = vpop.f32.mrb[0].mxu0
    %v905 = vpop.f32.mrb[0].mxu0
    %v906 = vadd.f32 %v313, %v905
    %v907 = vpop.f32.mrb[0].mxu0
    %908 = vmatprep.mubr.bf16.mxu0 0
    %909 = vmatmul.mubr.bf16.gmra.mrb[0].mxu0 %v741
    %v910 = vpop.f32.mrb[0].mxu0
    %v911 = vadd.f32 %v318, %v910
    %v912 = vpop.f32.mrb[0].mxu0
    %v913 = vpop.f32.mrb[0].mxu0
    %v914 = vadd.f32 %v323, %v913
    %v915 = vpop.f32.mrb[0].mxu0
    %916 = vmatprep.mubr.bf16.mxu0 0
    %917 = vmatmul.mubr.bf16.gmra.mrb[0].mxu0 %v744
    %v918 = vpop.f32.mrb[0].mxu0
    %v919 = vadd.f32 %v328, %v918
    %v920 = vpop.f32.mrb[0].mxu0
    %v921 = vpop.f32.mrb[0].mxu0
    %v922 = vadd.f32 %v333, %v921
    %v923 = vpop.f32.mrb[0].mxu0
    %924 = vmatprep.mubr.bf16.mxu0 0
    %925 = vmatmul.mubr.bf16.gmra.mrb[0].mxu0 %v747
    %v926 = vpop.f32.mrb[0].mxu0
    %v927 = vadd.f32 %v338, %v926
    %v928 = vpop.f32.mrb[0].mxu0
    %v929 = vpop.f32.mrb[0].mxu0
    %v930 = vadd.f32 %v343, %v929
    %v931 = vpop.f32.mrb[0].mxu0
    %932 = vmatprep.mubr.bf16.mxu0 0
    %933 = vmatmul.mubr.bf16.gmra.mrb[0].mxu0 %v750
    %v934 = vpop.f32.mrb[0].mxu0
    %v935 = vadd.f32 %v348, %v934
    %v936 = vpop.f32.mrb[0].mxu0
    %v937 = vpop.f32.mrb[0].mxu0
    %v938 = vadd.f32 %v353, %v937
    %v939 = vpop.f32.mrb[0].mxu0
    %940 = vmatprep.mubr.bf16.mxu0 0
    %941 = vmatmul.mubr.bf16.gmra.mrb[0].mxu0 %v753
    %v942 = vpop.f32.mrb[0].mxu0
    %v943 = vadd.f32 %v358, %v942
    %v944 = vpop.f32.mrb[0].mxu0
    %v945 = vpop.f32.mrb[0].mxu0
    %v946 = vadd.f32 %v363, %v945
    %v947 = vpop.f32.mrb[0].mxu0
    %948 = vmatprep.mubr.bf16.mxu0 0
    %949 = vmatmul.mubr.bf16.gmra.mrb[0].mxu0 %v756
    %v950 = vpop.f32.mrb[0].mxu0
    %v951 = vadd.f32 %v368, %v950
    %v952 = vpop.f32.mrb[0].mxu0
    %v953 = vpop.f32.mrb[0].mxu0
    %v954 = vadd.f32 %v373, %v953
    %v955 = vpop.f32.mrb[0].mxu0
    %956 = vmatprep.mubr.bf16.mxu0 0
    %957 = vmatmul.mubr.bf16.gmra.mrb[0].mxu0 %v759
    %v958 = vpop.f32.mrb[0].mxu0
    %v959 = vadd.f32 %v378, %v958
    %v960 = vpop.f32.mrb[0].mxu0
    %v961 = vpop.f32.mrb[0].mxu0
    %v962 = vadd.f32 %v383, %v961
    %v963 = vpop.f32.mrb[0].mxu0
    %964 = vmatprep.mubr.bf16.mxu0 0
    %965 = vmatmul.mubr.bf16.gmra.mrb[0].mxu0 %v762
    %v966 = vpop.f32.mrb[0].mxu0
    %v967 = vadd.f32 %v388, %v966
    %v968 = vpop.f32.mrb[0].mxu0
    %v969 = vpop.f32.mrb[0].mxu0
    %v970 = vadd.f32 %v393, %v969
    %v971 = vpop.f32.mrb[0].mxu0
    %972 = vmatprep.mubr.bf16.mxu0 0
    %973 = vmatmul.mubr.bf16.gmra.mrb[0].mxu0 %v765
    %v974 = vpop.f32.mrb[0].mxu0
    %v975 = vadd.f32 %v398, %v974
    %v976 = vpop.f32.mrb[0].mxu0
    %v977 = vpop.f32.mrb[0].mxu0
    %v978 = vadd.f32 %v403, %v977
    %v979 = vpop.f32.mrb[0].mxu0
    %980 = vmatprep.mubr.bf16.mxu0 0
    %981 = vmatmul.mubr.bf16.gmra.mrb[0].mxu0 %v768
    %v982 = vpop.f32.mrb[0].mxu0
    %v983 = vadd.f32 %v408, %v982
    %v984 = vpop.f32.mrb[0].mxu0
    %v985 = vpop.f32.mrb[0].mxu0
    %v986 = vadd.f32 %v413, %v985
    %v987 = vpop.f32.mrb[0].mxu0
    %988 = vmatprep.mubr.bf16.mxu0 0
    %989 = vmatmul.mubr.bf16.gmra.mrb[0].mxu0 %v771
    %v990 = vpop.f32.mrb[0].mxu0
    %v991 = vadd.f32 %v418, %v990
    %v992 = vpop.f32.mrb[0].mxu0
    %v993 = vpop.f32.mrb[0].mxu0
    %v994 = vadd.f32 %v423, %v993
    %v995 = vpop.f32.mrb[0].mxu0
    %996 = vmatprep.mubr.bf16.mxu0 0
    %997 = vmatmul.mubr.bf16.gmra.mrb[0].mxu0 %v774
    %v998 = vpop.f32.mrb[0].mxu0
    %v999 = vadd.f32 %v428, %v998
    %v1000 = vpop.f32.mrb[0].mxu0
    %v1001 = vpop.f32.mrb[0].mxu0
    %v1002 = vadd.f32 %v433, %v1001
    %v1003 = vpop.f32.mrb[0].mxu0
    %1004 = vmatprep.mubr.bf16.mxu0 0
    %1005 = vmatmul.mubr.bf16.gmra.mrb[0].mxu0 %v777
    %v1006 = vpop.f32.mrb[0].mxu0
    %v1007 = vadd.f32 %v438, %v1006
    %v1008 = vpop.f32.mrb[0].mxu0
    %v1009 = vpop.f32.mrb[0].mxu0
    %v1010 = vadd.f32 %v443, %v1009
    %v1011 = vpop.f32.mrb[0].mxu0
    %1012 = vmatprep.mubr.bf16.mxu0 0
    %1013 = vmatmul.mubr.bf16.gmra.mrb[0].mxu0 %v780
    %v1014 = vpop.f32.mrb[0].mxu0
    %v1015 = vadd.f32 %v448, %v1014
    %v1016 = vpop.f32.mrb[0].mxu0
    %v1017 = vpop.f32.mrb[0].mxu0
    %v1018 = vadd.f32 %v453, %v1017
    %v1019 = vpop.f32.mrb[0].mxu0
    %1020 = vmatprep.mubr.bf16.mxu0 0
    %1021 = vmatmul.mubr.bf16.gmra.mrb[0].mxu0 %v783
    %v1022 = vpop.f32.mrb[0].mxu0
    %v1023 = vadd.f32 %v458, %v1022
    %v1024 = vpop.f32.mrb[0].mxu0
    %v1025 = vpop.f32.mrb[0].mxu0
    %v1026 = vadd.f32 %v463, %v1025
    %v1027 = vpop.f32.mrb[0].mxu0
    %1028 = vmatprep.mubr.bf16.mxu0 0
    %1029 = vmatmul.mubr.bf16.gmra.mrb[0].mxu0 %v786
    %v1030 = vpop.f32.mrb[0].mxu0
    %v1031 = vadd.f32 %v468, %v1030
    %v1032 = vpop.f32.mrb[0].mxu0
    %v1033 = vpop.f32.mrb[0].mxu0
    %v1034 = vadd.f32 %v473, %v1033
    %v1035 = vpop.f32.mrb[0].mxu0
    %1036 = vmatprep.mubr.bf16.mxu0 0
    %1037 = vmatmul.mubr.bf16.gmra.mrb[0].mxu0 %v789
    %v1038 = vpop.f32.mrb[0].mxu0
    %v1039 = vadd.f32 %v478, %v1038
    %v1040 = vpop.f32.mrb[0].mxu0
    %v1041 = vpop.f32.mrb[0].mxu0
    %v1042 = vadd.f32 %v483, %v1041
    %v1043 = vpop.f32.mrb[0].mxu0
    %1044 = vmatprep.mubr.bf16.mxu0 0
    %1045 = vmatmul.mubr.bf16.gmra.mrb[0].mxu0 %v792
    %v1046 = vpop.f32.mrb[0].mxu0
    %v1047 = vadd.f32 %v488, %v1046
    %v1048 = vpop.f32.mrb[0].mxu0
    %v1049 = vpop.f32.mrb[0].mxu0
    %v1050 = vadd.f32 %v493, %v1049
    %v1051 = vpop.f32.mrb[0].mxu0
    %1052 = vmatprep.mubr.bf16.mxu0 0
    %1053 = vmatmul.mubr.bf16.gmra.mrb[0].mxu0 %v795
    %v1054 = vpop.f32.mrb[0].mxu0
    %v1055 = vadd.f32 %v498, %v1054
    %v1056 = vpop.f32.mrb[0].mxu0
    %v1057 = vpop.f32.mrb[0].mxu0
    %v1058 = vadd.f32 %v503, %v1057
    %v1059 = vpop.f32.mrb[0].mxu0
    %1060 = vmatprep.mubr.bf16.mxu0 0
    %1061 = vmatmul.mubr.bf16.gmra.mrb[0].mxu0 %v798
    %v1062 = vpop.f32.mrb[0].mxu0
    %v1063 = vadd.f32 %v508, %v1062
    %v1064 = vpop.f32.mrb[0].mxu0
    %v1065 = vpop.f32.mrb[0].mxu0
    %v1066 = vadd.f32 %v513, %v1065
    %v1067 = vpop.f32.mrb[0].mxu0
    %1068 = vmatprep.mubr.bf16.mxu0 0
    %1069 = vmatmul.mubr.bf16.gmra.mrb[0].mxu0 %v801
    %v1070 = vpop.f32.mrb[0].mxu0
    %v1071 = vadd.f32 %v518, %v1070
    %v1072 = vpop.f32.mrb[0].mxu0
    %v1073 = vpop.f32.mrb[0].mxu0
    %v1074 = vadd.f32 %v523, %v1073
    %v1075 = vpop.f32.mrb[0].mxu0
    %1076 = vmatprep.mubr.bf16.mxu0 0
    %1077 = vmatmul.mubr.bf16.gmra.mrb[0].mxu0 %v804
    %v1078 = vpop.f32.mrb[0].mxu0
    %v1079 = vadd.f32 %v528, %v1078
    %v1080 = vpop.f32.mrb[0].mxu0
    %v1081 = vpop.f32.mrb[0].mxu0
    %v1082 = vadd.f32 %v533, %v1081
    %v1083 = vpop.f32.mrb[0].mxu0
    %1084 = vmatprep.mubr.bf16.mxu0 0
    %1085 = vmatmul.mubr.bf16.gmra.mrb[0].mxu0 %v807
    %v1086 = vpop.f32.mrb[0].mxu0
    %v1087 = vadd.f32 %v538, %v1086
    %v1088 = vpop.f32.mrb[0].mxu0
    %v1089 = vpop.f32.mrb[0].mxu0
    %v1090 = vadd.f32 %v543, %v1089
    %v1091 = vpop.f32.mrb[0].mxu0
    %1092 = vmatprep.mubr.bf16.mxu0 0
    %1093 = vmatmul.mubr.bf16.gmra.mrb[0].mxu0 %v810
    %v1094 = vpop.f32.mrb[0].mxu0
    %v1095 = vadd.f32 %v548, %v1094
    %v1096 = vpop.f32.mrb[0].mxu0
    %v1097 = vpop.f32.mrb[0].mxu0
    %v1098 = vadd.f32 %v553, %v1097
    %v1099 = vpop.f32.mrb[0].mxu0
    %1100 = vdwg.mxu0
    %v1101 = vtanh.pop %v847
    %v1102 = vtanh.pop %v850
    %v1103 = vtanh.pop %v855
    %v1104 = vtanh.pop %v858
    %v1105 = vtanh.pop %v863
    %v1106 = vtanh.pop %v866
    %v1107 = vtanh.pop %v871
    %v1108 = vtanh.pop %v874
    %v1109 = vtanh.pop %v879
    %v1110 = vtanh.pop %v882
    %v1111 = vtanh.pop %v887
    %v1112 = vtanh.pop %v890
    %v1113 = vtanh.pop %v895
    %v1114 = vtanh.pop %v898
    %v1115 = vtanh.pop %v903
    %v1116 = vtanh.pop %v906
    %v1117 = vtanh.pop %v911
    %v1118 = vtanh.pop %v914
    %v1119 = vtanh.pop %v919
    %v1120 = vtanh.pop %v922
    %v1121 = vtanh.pop %v927
    %v1122 = vtanh.pop %v930
    %v1123 = vtanh.pop %v935
    %v1124 = vtanh.pop %v938
    %v1125 = vtanh.pop %v943
    %v1126 = vtanh.pop %v946
    %v1127 = vtanh.pop %v951
    %v1128 = vtanh.pop %v954
    %v1129 = vtanh.pop %v959
    %v1130 = vtanh.pop %v962
    %v1131 = vtanh.pop %v967
    %v1132 = vtanh.pop %v970
    %v1133 = vtanh.pop %v975
    %v1134 = vtanh.pop %v978
    %v1135 = vtanh.pop %v983
    %v1136 = vtanh.pop %v986
    %v1137 = vtanh.pop %v991
    %v1138 = vtanh.pop %v994
    %v1139 = vtanh.pop %v999
    %v1140 = vtanh.pop %v1002
    %v1141 = vtanh.pop %v1007
    %v1142 = vtanh.pop %v1010
    %v1143 = vtanh.pop %v1015
    %v1144 = vtanh.pop %v1018
    %v1145 = vtanh.pop %v1023
    %v1146 = vtanh.pop %v1026
    %v1147 = vtanh.pop %v1031
    %v1148 = vtanh.pop %v1034
    %v1149 = vtanh.pop %v1039
    %v1150 = vtanh.pop %v1042
    %v1151 = vtanh.pop %v1047
    %v1152 = vtanh.pop %v1050
    %v1153 = vtanh.pop %v1055
    %v1154 = vtanh.pop %v1058
    %v1155 = vtanh.pop %v1063
    %v1156 = vtanh.pop %v1066
    %v1157 = vtanh.pop %v1071
    %v1158 = vtanh.pop %v1074
    %v1159 = vtanh.pop %v1079
    %v1160 = vtanh.pop %v1082
    %v1161 = vtanh.pop %v1087
    %v1162 = vtanh.pop %v1090
    %v1163 = vtanh.pop %v1095
    %v1164 = vtanh.pop %v1098
    %v1165 = vld [vmem:[#allocation2] sm:$0xff]
    %v1166 = vld [vmem:[#allocation2 + $0x8] sm:$0xff]
    %v1167 = vld [vmem:[#allocation2 + $0x10] sm:$0xff]
    %v1168 = vld [vmem:[#allocation2 + $0x18] sm:$0xff]
    %v1169 = vld [vmem:[#allocation2 + $0x20] sm:$0xff]
    %v1170 = vld [vmem:[#allocation2 + $0x28] sm:$0xff]
    %v1171 = vld [vmem:[#allocation2 + $0x30] sm:$0xff]
    %v1172 = vld [vmem:[#allocation2 + $0x38] sm:$0xff]
    %v1173 = vld [vmem:[#allocation2 + $0x40] sm:$0xff]
    %v1174 = vld [vmem:[#allocation2 + $0x48] sm:$0xff]
    %v1175 = vld [vmem:[#allocation2 + $0x50] sm:$0xff]
    %v1176 = vld [vmem:[#allocation2 + $0x58] sm:$0xff]
    %v1177 = vld [vmem:[#allocation2 + $0x60] sm:$0xff]
    %v1178 = vld [vmem:[#allocation2 + $0x68] sm:$0xff]
    %v1179 = vld [vmem:[#allocation2 + $0x70] sm:$0xff]
    %v1180 = vld [vmem:[#allocation2 + $0x78] sm:$0xff]
    %v1181 = vld [vmem:[#allocation2 + $0x80] sm:$0xff]
    %v1182 = vld [vmem:[#allocation2 + $0x88] sm:$0xff]
    %v1183 = vld [vmem:[#allocation2 + $0x90] sm:$0xff]
    %v1184 = vld [vmem:[#allocation2 + $0x98] sm:$0xff]
    %v1185 = vld [vmem:[#allocation2 + $0xa0] sm:$0xff]
    %v1186 = vld [vmem:[#allocation2 + $0xa8] sm:$0xff]
    %v1187 = vld [vmem:[#allocation2 + $0xb0] sm:$0xff]
    %v1188 = vld [vmem:[#allocation2 + $0xb8] sm:$0xff]
    %v1189 = vld [vmem:[#allocation2 + $0xc0] sm:$0xff]
    %v1190 = vld [vmem:[#allocation2 + $0xc8] sm:$0xff]
    %v1191 = vld [vmem:[#allocation2 + $0xd0] sm:$0xff]
    %v1192 = vld [vmem:[#allocation2 + $0xd8] sm:$0xff]
    %v1193 = vld [vmem:[#allocation2 + $0xe0] sm:$0xff]
    %v1194 = vld [vmem:[#allocation2 + $0xe8] sm:$0xff]
    %v1195 = vld [vmem:[#allocation2 + $0xf0] sm:$0xff]
    %v1196 = vld [vmem:[#allocation2 + $0xf8] sm:$0xff]
    %v1197 = vld [vmem:[#allocation2 + $0x100] sm:$0xff]
    %v1198 = vld [vmem:[#allocation2 + $0x108] sm:$0xff]
    %v1199 = vld [vmem:[#allocation2 + $0x110] sm:$0xff]
    %v1200 = vld [vmem:[#allocation2 + $0x118] sm:$0xff]
    %v1201 = vld [vmem:[#allocation2 + $0x120] sm:$0xff]
    %v1202 = vld [vmem:[#allocation2 + $0x128] sm:$0xff]
    %v1203 = vld [vmem:[#allocation2 + $0x130] sm:$0xff]
    %v1204 = vld [vmem:[#allocation2 + $0x138] sm:$0xff]
    %v1205 = vld [vmem:[#allocation2 + $0x140] sm:$0xff]
    %v1206 = vld [vmem:[#allocation2 + $0x148] sm:$0xff]
    %v1207 = vld [vmem:[#allocation2 + $0x150] sm:$0xff]
    %v1208 = vld [vmem:[#allocation2 + $0x158] sm:$0xff]
    %v1209 = vld [vmem:[#allocation2 + $0x160] sm:$0xff]
    %v1210 = vld [vmem:[#allocation2 + $0x168] sm:$0xff]
    %v1211 = vld [vmem:[#allocation2 + $0x170] sm:$0xff]
    %v1212 = vld [vmem:[#allocation2 + $0x178] sm:$0xff]
    %v1213 = vld [vmem:[#allocation2 + $0x180] sm:$0xff]
    %v1214 = vld [vmem:[#allocation2 + $0x188] sm:$0xff]
    %v1215 = vld [vmem:[#allocation2 + $0x190] sm:$0xff]
    %v1216 = vld [vmem:[#allocation2 + $0x198] sm:$0xff]
    %v1217 = vld [vmem:[#allocation2 + $0x1a0] sm:$0xff]
    %v1218 = vld [vmem:[#allocation2 + $0x1a8] sm:$0xff]
    %v1219 = vld [vmem:[#allocation2 + $0x1b0] sm:$0xff]
    %v1220 = vld [vmem:[#allocation2 + $0x1b8] sm:$0xff]
    %v1221 = vld [vmem:[#allocation2 + $0x1c0] sm:$0xff]
    %v1222 = vld [vmem:[#allocation2 + $0x1c8] sm:$0xff]
    %v1223 = vld [vmem:[#allocation2 + $0x1d0] sm:$0xff]
    %v1224 = vld [vmem:[#allocation2 + $0x1d8] sm:$0xff]
    %v1225 = vld [vmem:[#allocation2 + $0x1e0] sm:$0xff]
    %v1226 = vld [vmem:[#allocation2 + $0x1e8] sm:$0xff]
    %v1227 = vld [vmem:[#allocation2 + $0x1f0] sm:$0xff]
    %v1228 = vld [vmem:[#allocation2 + $0x1f8] sm:$0xff]
    %v1229 = vld [vmem:[#allocation2 + $0x200] sm:$0xff]
    %v1230 = vld [vmem:[#allocation2 + $0x208] sm:$0xff]
    %v1231 = vld [vmem:[#allocation2 + $0x210] sm:$0xff]
    %v1232 = vld [vmem:[#allocation2 + $0x218] sm:$0xff]
    %v1233 = vld [vmem:[#allocation2 + $0x220] sm:$0xff]
    %v1234 = vld [vmem:[#allocation2 + $0x228] sm:$0xff]
    %v1235 = vld [vmem:[#allocation2 + $0x230] sm:$0xff]
    %v1236 = vld [vmem:[#allocation2 + $0x238] sm:$0xff]
    %v1237 = vld [vmem:[#allocation2 + $0x240] sm:$0xff]
    %v1238 = vld [vmem:[#allocation2 + $0x248] sm:$0xff]
    %v1239 = vld [vmem:[#allocation2 + $0x250] sm:$0xff]
    %v1240 = vld [vmem:[#allocation2 + $0x258] sm:$0xff]
    %v1241 = vld [vmem:[#allocation2 + $0x260] sm:$0xff]
    %v1242 = vld [vmem:[#allocation2 + $0x268] sm:$0xff]
    %v1243 = vld [vmem:[#allocation2 + $0x270] sm:$0xff]
    %v1244 = vld [vmem:[#allocation2 + $0x278] sm:$0xff]
    %v1245 = vld [vmem:[#allocation2 + $0x280] sm:$0xff]
    %v1246 = vld [vmem:[#allocation2 + $0x288] sm:$0xff]
    %v1247 = vld [vmem:[#allocation2 + $0x290] sm:$0xff]
    %v1248 = vld [vmem:[#allocation2 + $0x298] sm:$0xff]
    %v1249 = vld [vmem:[#allocation2 + $0x2a0] sm:$0xff]
    %v1250 = vld [vmem:[#allocation2 + $0x2a8] sm:$0xff]
    %v1251 = vld [vmem:[#allocation2 + $0x2b0] sm:$0xff]
    %v1252 = vld [vmem:[#allocation2 + $0x2b8] sm:$0xff]
    %v1253 = vld [vmem:[#allocation2 + $0x2c0] sm:$0xff]
    %v1254 = vld [vmem:[#allocation2 + $0x2c8] sm:$0xff]
    %v1255 = vld [vmem:[#allocation2 + $0x2d0] sm:$0xff]
    %v1256 = vld [vmem:[#allocation2 + $0x2d8] sm:$0xff]
    %v1257 = vld [vmem:[#allocation2 + $0x2e0] sm:$0xff]
    %v1258 = vld [vmem:[#allocation2 + $0x2e8] sm:$0xff]
    %v1259 = vld [vmem:[#allocation2 + $0x2f0] sm:$0xff]
    %v1260 = vld [vmem:[#allocation2 + $0x2f8] sm:$0xff]
    %v1261 = vld [vmem:[#allocation2 + $0x300] sm:$0xff]
    %v1262 = vld [vmem:[#allocation2 + $0x308] sm:$0xff]
    %v1263 = vld [vmem:[#allocation2 + $0x310] sm:$0xff]
    %v1264 = vld [vmem:[#allocation2 + $0x318] sm:$0xff]
    %v1265 = vld [vmem:[#allocation2 + $0x320] sm:$0xff]
    %v1266 = vld [vmem:[#allocation2 + $0x328] sm:$0xff]
    %v1267 = vld [vmem:[#allocation2 + $0x330] sm:$0xff]
    %v1268 = vld [vmem:[#allocation2 + $0x338] sm:$0xff]
    %v1269 = vld [vmem:[#allocation2 + $0x340] sm:$0xff]
    %v1270 = vld [vmem:[#allocation2 + $0x348] sm:$0xff]
    %v1271 = vld [vmem:[#allocation2 + $0x350] sm:$0xff]
    %v1272 = vld [vmem:[#allocation2 + $0x358] sm:$0xff]
    %v1273 = vld [vmem:[#allocation2 + $0x360] sm:$0xff]
    %v1274 = vld [vmem:[#allocation2 + $0x368] sm:$0xff]
    %v1275 = vld [vmem:[#allocation2 + $0x370] sm:$0xff]
    %v1276 = vld [vmem:[#allocation2 + $0x378] sm:$0xff]
    %v1277 = vld [vmem:[#allocation2 + $0x380] sm:$0xff]
    %v1278 = vld [vmem:[#allocation2 + $0x388] sm:$0xff]
    %v1279 = vld [vmem:[#allocation2 + $0x390] sm:$0xff]
    %v1280 = vld [vmem:[#allocation2 + $0x398] sm:$0xff]
    %v1281 = vld [vmem:[#allocation2 + $0x3a0] sm:$0xff]
    %v1282 = vld [vmem:[#allocation2 + $0x3a8] sm:$0xff]
    %v1283 = vld [vmem:[#allocation2 + $0x3b0] sm:$0xff]
    %v1284 = vld [vmem:[#allocation2 + $0x3b8] sm:$0xff]
    %v1285 = vld [vmem:[#allocation2 + $0x3c0] sm:$0xff]
    %v1286 = vld [vmem:[#allocation2 + $0x3c8] sm:$0xff]
    %v1287 = vld [vmem:[#allocation2 + $0x3d0] sm:$0xff]
    %v1288 = vld [vmem:[#allocation2 + $0x3d8] sm:$0xff]
    %v1289 = vld [vmem:[#allocation2 + $0x3e0] sm:$0xff]
    %v1290 = vld [vmem:[#allocation2 + $0x3e8] sm:$0xff]
    %v1291 = vld [vmem:[#allocation2 + $0x3f0] sm:$0xff]
    %v1292 = vld [vmem:[#allocation2 + $0x3f8] sm:$0xff]
    %v1293 = vld [vmem:[#allocation2 + $0x400] sm:$0xff]
    %v1294 = vld [vmem:[#allocation2 + $0x408] sm:$0xff]
    %v1295 = vld [vmem:[#allocation2 + $0x410] sm:$0xff]
    %v1296 = vld [vmem:[#allocation2 + $0x418] sm:$0xff]
    %v1297 = vld [vmem:[#allocation2 + $0x420] sm:$0xff]
    %v1298 = vld [vmem:[#allocation2 + $0x428] sm:$0xff]
    %v1299 = vld [vmem:[#allocation2 + $0x430] sm:$0xff]
    %v1300 = vld [vmem:[#allocation2 + $0x438] sm:$0xff]
    %v1301 = vld [vmem:[#allocation2 + $0x440] sm:$0xff]
    %v1302 = vld [vmem:[#allocation2 + $0x448] sm:$0xff]
    %v1303 = vld [vmem:[#allocation2 + $0x450] sm:$0xff]
    %v1304 = vld [vmem:[#allocation2 + $0x458] sm:$0xff]
    %v1305 = vld [vmem:[#allocation2 + $0x460] sm:$0xff]
    %v1306 = vld [vmem:[#allocation2 + $0x468] sm:$0xff]
    %v1307 = vld [vmem:[#allocation2 + $0x470] sm:$0xff]
    %v1308 = vld [vmem:[#allocation2 + $0x478] sm:$0xff]
    %v1309 = vld [vmem:[#allocation2 + $0x480] sm:$0xff]
    %v1310 = vld [vmem:[#allocation2 + $0x488] sm:$0xff]
    %v1311 = vld [vmem:[#allocation2 + $0x490] sm:$0xff]
    %v1312 = vld [vmem:[#allocation2 + $0x498] sm:$0xff]
    %v1313 = vld [vmem:[#allocation2 + $0x4a0] sm:$0xff]
    %v1314 = vld [vmem:[#allocation2 + $0x4a8] sm:$0xff]
    %v1315 = vld [vmem:[#allocation2 + $0x4b0] sm:$0xff]
    %v1316 = vld [vmem:[#allocation2 + $0x4b8] sm:$0xff]
    %v1317 = vld [vmem:[#allocation2 + $0x4c0] sm:$0xff]
    %v1318 = vld [vmem:[#allocation2 + $0x4c8] sm:$0xff]
    %v1319 = vld [vmem:[#allocation2 + $0x4d0] sm:$0xff]
    %v1320 = vld [vmem:[#allocation2 + $0x4d8] sm:$0xff]
    %v1321 = vld [vmem:[#allocation2 + $0x4e0] sm:$0xff]
    %v1322 = vld [vmem:[#allocation2 + $0x4e8] sm:$0xff]
    %v1323 = vld [vmem:[#allocation2 + $0x4f0] sm:$0xff]
    %v1324 = vld [vmem:[#allocation2 + $0x4f8] sm:$0xff]
    %v1325 = vld [vmem:[#allocation2 + $0x500] sm:$0xff]
    %v1326 = vld [vmem:[#allocation2 + $0x508] sm:$0xff]
    %v1327 = vld [vmem:[#allocation2 + $0x510] sm:$0xff]
    %v1328 = vld [vmem:[#allocation2 + $0x518] sm:$0xff]
    %v1329 = vld [vmem:[#allocation2 + $0x520] sm:$0xff]
    %v1330 = vld [vmem:[#allocation2 + $0x528] sm:$0xff]
    %v1331 = vld [vmem:[#allocation2 + $0x530] sm:$0xff]
    %v1332 = vld [vmem:[#allocation2 + $0x538] sm:$0xff]
    %v1333 = vld [vmem:[#allocation2 + $0x540] sm:$0xff]
    %v1334 = vld [vmem:[#allocation2 + $0x548] sm:$0xff]
    %v1335 = vld [vmem:[#allocation2 + $0x550] sm:$0xff]
    %v1336 = vld [vmem:[#allocation2 + $0x558] sm:$0xff]
    %v1337 = vld [vmem:[#allocation2 + $0x560] sm:$0xff]
    %v1338 = vld [vmem:[#allocation2 + $0x568] sm:$0xff]
    %v1339 = vld [vmem:[#allocation2 + $0x570] sm:$0xff]
    %v1340 = vld [vmem:[#allocation2 + $0x578] sm:$0xff]
    %v1341 = vld [vmem:[#allocation2 + $0x580] sm:$0xff]
    %v1342 = vld [vmem:[#allocation2 + $0x588] sm:$0xff]
    %v1343 = vld [vmem:[#allocation2 + $0x590] sm:$0xff]
    %v1344 = vld [vmem:[#allocation2 + $0x598] sm:$0xff]
    %v1345 = vld [vmem:[#allocation2 + $0x5a0] sm:$0xff]
    %v1346 = vld [vmem:[#allocation2 + $0x5a8] sm:$0xff]
    %v1347 = vld [vmem:[#allocation2 + $0x5b0] sm:$0xff]
    %v1348 = vld [vmem:[#allocation2 + $0x5b8] sm:$0xff]
    %v1349 = vld [vmem:[#allocation2 + $0x5c0] sm:$0xff]
    %v1350 = vld [vmem:[#allocation2 + $0x5c8] sm:$0xff]
    %v1351 = vld [vmem:[#allocation2 + $0x5d0] sm:$0xff]
    %v1352 = vld [vmem:[#allocation2 + $0x5d8] sm:$0xff]
    %v1353 = vld [vmem:[#allocation2 + $0x5e0] sm:$0xff]
    %v1354 = vld [vmem:[#allocation2 + $0x5e8] sm:$0xff]
    %v1355 = vld [vmem:[#allocation2 + $0x5f0] sm:$0xff]
    %v1356 = vld [vmem:[#allocation2 + $0x5f8] sm:$0xff]
    %v1357 = vld [vmem:[#allocation2 + $0x600] sm:$0xff]
    %v1358 = vld [vmem:[#allocation2 + $0x608] sm:$0xff]
    %v1359 = vld [vmem:[#allocation2 + $0x610] sm:$0xff]
    %v1360 = vld [vmem:[#allocation2 + $0x618] sm:$0xff]
    %v1361 = vld [vmem:[#allocation2 + $0x620] sm:$0xff]
    %v1362 = vld [vmem:[#allocation2 + $0x628] sm:$0xff]
    %v1363 = vld [vmem:[#allocation2 + $0x630] sm:$0xff]
    %v1364 = vld [vmem:[#allocation2 + $0x638] sm:$0xff]
    %v1365 = vld [vmem:[#allocation2 + $0x640] sm:$0xff]
    %v1366 = vld [vmem:[#allocation2 + $0x648] sm:$0xff]
    %v1367 = vld [vmem:[#allocation2 + $0x650] sm:$0xff]
    %v1368 = vld [vmem:[#allocation2 + $0x658] sm:$0xff]
    %v1369 = vld [vmem:[#allocation2 + $0x660] sm:$0xff]
    %v1370 = vld [vmem:[#allocation2 + $0x668] sm:$0xff]
    %v1371 = vld [vmem:[#allocation2 + $0x670] sm:$0xff]
    %v1372 = vld [vmem:[#allocation2 + $0x678] sm:$0xff]
    %v1373 = vld [vmem:[#allocation2 + $0x680] sm:$0xff]
    %v1374 = vld [vmem:[#allocation2 + $0x688] sm:$0xff]
    %v1375 = vld [vmem:[#allocation2 + $0x690] sm:$0xff]
    %v1376 = vld [vmem:[#allocation2 + $0x698] sm:$0xff]
    %v1377 = vld [vmem:[#allocation2 + $0x6a0] sm:$0xff]
    %v1378 = vld [vmem:[#allocation2 + $0x6a8] sm:$0xff]
    %v1379 = vld [vmem:[#allocation2 + $0x6b0] sm:$0xff]
    %v1380 = vld [vmem:[#allocation2 + $0x6b8] sm:$0xff]
    %v1381 = vld [vmem:[#allocation2 + $0x6c0] sm:$0xff]
    %v1382 = vld [vmem:[#allocation2 + $0x6c8] sm:$0xff]
    %v1383 = vld [vmem:[#allocation2 + $0x6d0] sm:$0xff]
    %v1384 = vld [vmem:[#allocation2 + $0x6d8] sm:$0xff]
    %v1385 = vld [vmem:[#allocation2 + $0x6e0] sm:$0xff]
    %v1386 = vld [vmem:[#allocation2 + $0x6e8] sm:$0xff]
    %v1387 = vld [vmem:[#allocation2 + $0x6f0] sm:$0xff]
    %v1388 = vld [vmem:[#allocation2 + $0x6f8] sm:$0xff]
    %v1389 = vld [vmem:[#allocation2 + $0x700] sm:$0xff]
    %v1390 = vld [vmem:[#allocation2 + $0x708] sm:$0xff]
    %v1391 = vld [vmem:[#allocation2 + $0x710] sm:$0xff]
    %v1392 = vld [vmem:[#allocation2 + $0x718] sm:$0xff]
    %v1393 = vld [vmem:[#allocation2 + $0x720] sm:$0xff]
    %v1394 = vld [vmem:[#allocation2 + $0x728] sm:$0xff]
    %v1395 = vld [vmem:[#allocation2 + $0x730] sm:$0xff]
    %v1396 = vld [vmem:[#allocation2 + $0x738] sm:$0xff]
    %v1397 = vld [vmem:[#allocation2 + $0x740] sm:$0xff]
    %v1398 = vld [vmem:[#allocation2 + $0x748] sm:$0xff]
    %v1399 = vld [vmem:[#allocation2 + $0x750] sm:$0xff]
    %v1400 = vld [vmem:[#allocation2 + $0x758] sm:$0xff]
    %v1401 = vld [vmem:[#allocation2 + $0x760] sm:$0xff]
    %v1402 = vld [vmem:[#allocation2 + $0x768] sm:$0xff]
    %v1403 = vld [vmem:[#allocation2 + $0x770] sm:$0xff]
    %v1404 = vld [vmem:[#allocation2 + $0x778] sm:$0xff]
    %v1405 = vld [vmem:[#allocation2 + $0x780] sm:$0xff]
    %v1406 = vld [vmem:[#allocation2 + $0x788] sm:$0xff]
    %v1407 = vld [vmem:[#allocation2 + $0x790] sm:$0xff]
    %v1408 = vld [vmem:[#allocation2 + $0x798] sm:$0xff]
    %v1409 = vld [vmem:[#allocation2 + $0x7a0] sm:$0xff]
    %v1410 = vld [vmem:[#allocation2 + $0x7a8] sm:$0xff]
    %v1411 = vld [vmem:[#allocation2 + $0x7b0] sm:$0xff]
    %v1412 = vld [vmem:[#allocation2 + $0x7b8] sm:$0xff]
    %v1413 = vld [vmem:[#allocation2 + $0x7c0] sm:$0xff]
    %v1414 = vld [vmem:[#allocation2 + $0x7c8] sm:$0xff]
    %v1415 = vld [vmem:[#allocation2 + $0x7d0] sm:$0xff]
    %v1416 = vld [vmem:[#allocation2 + $0x7d8] sm:$0xff]
    %v1417 = vld [vmem:[#allocation2 + $0x7e0] sm:$0xff]
    %v1418 = vld [vmem:[#allocation2 + $0x7e8] sm:$0xff]
    %v1419 = vld [vmem:[#allocation2 + $0x7f0] sm:$0xff]
    %v1420 = vld [vmem:[#allocation2 + $0x7f8] sm:$0xff]
    %v1421 = vpack.c.bf16 %v1102, %v1101
    %v1422 = vpack.c.bf16 %v1104, %v1103
    %v1423 = vpack.c.bf16 %v1106, %v1105
    %v1424 = vpack.c.bf16 %v1108, %v1107
    %v1425 = vpack.c.bf16 %v1110, %v1109
    %v1426 = vpack.c.bf16 %v1112, %v1111
    %v1427 = vpack.c.bf16 %v1114, %v1113
    %v1428 = vpack.c.bf16 %v1116, %v1115
    %v1429 = vpack.c.bf16 %v1118, %v1117
    %v1430 = vpack.c.bf16 %v1120, %v1119
    %v1431 = vpack.c.bf16 %v1122, %v1121
    %v1432 = vpack.c.bf16 %v1124, %v1123
    %v1433 = vpack.c.bf16 %v1126, %v1125
    %v1434 = vpack.c.bf16 %v1128, %v1127
    %v1435 = vpack.c.bf16 %v1130, %v1129
    %v1436 = vpack.c.bf16 %v1132, %v1131
    %v1437 = vpack.c.bf16 %v1134, %v1133
    %v1438 = vpack.c.bf16 %v1136, %v1135
    %v1439 = vpack.c.bf16 %v1138, %v1137
    %v1440 = vpack.c.bf16 %v1140, %v1139
    %v1441 = vpack.c.bf16 %v1142, %v1141
    %v1442 = vpack.c.bf16 %v1144, %v1143
    %v1443 = vpack.c.bf16 %v1146, %v1145
    %v1444 = vpack.c.bf16 %v1148, %v1147
    %v1445 = vpack.c.bf16 %v1150, %v1149
    %v1446 = vpack.c.bf16 %v1152, %v1151
    %v1447 = vpack.c.bf16 %v1154, %v1153
    %v1448 = vpack.c.bf16 %v1156, %v1155
    %v1449 = vpack.c.bf16 %v1158, %v1157
    %v1450 = vpack.c.bf16 %v1160, %v1159
    %v1451 = vpack.c.bf16 %v1162, %v1161
    %v1452 = vpack.c.bf16 %v1164, %v1163
    %1453 = vset.pattern.permute.xlu0 1
    %1454 = vperm.xlu0 %1453, %v42
    %v1455 = vpop.permute.xlu0 %1454
    %1457 = vset.pattern.permute.xlu0 1
    %1458 = vperm.xlu0 %1457, %v43
    %v1459 = vpop.permute.xlu0 %1458
    %1461 = vset.pattern.permute.xlu0 1
    %1462 = vperm.xlu0 %1461, %v44
    %v1463 = vpop.permute.xlu0 %1462
    %1465 = vset.pattern.permute.xlu0 1
    %1466 = vperm.xlu0 %1465, %v45
    %v1467 = vpop.permute.xlu0 %1466
    %1469 = vset.pattern.permute.xlu0 1
    %1470 = vperm.xlu0 %1469, %v46
    %v1471 = vpop.permute.xlu0 %1470
    %1473 = vset.pattern.permute.xlu0 1
    %1474 = vperm.xlu0 %1473, %v47
    %v1475 = vpop.permute.xlu0 %1474
    %1477 = vset.pattern.permute.xlu0 1
    %1478 = vperm.xlu0 %1477, %v48
    %v1479 = vpop.permute.xlu0 %1478
    %1481 = vset.pattern.permute.xlu0 1
    %1482 = vperm.xlu0 %1481, %v49
    %v1483 = vpop.permute.xlu0 %1482
    %1485 = vset.pattern.permute.xlu0 1
    %1486 = vperm.xlu0 %1485, %v50
    %v1487 = vpop.permute.xlu0 %1486
    %1489 = vset.pattern.permute.xlu0 1
    %1490 = vperm.xlu0 %1489, %v51
    %v1491 = vpop.permute.xlu0 %1490
    %1493 = vset.pattern.permute.xlu0 1
    %1494 = vperm.xlu0 %1493, %v52
    %v1495 = vpop.permute.xlu0 %1494
    %1497 = vset.pattern.permute.xlu0 1
    %1498 = vperm.xlu0 %1497, %v53
    %v1499 = vpop.permute.xlu0 %1498
    %1501 = vset.pattern.permute.xlu0 1
    %1502 = vperm.xlu0 %1501, %v54
    %v1503 = vpop.permute.xlu0 %1502
    %1505 = vset.pattern.permute.xlu0 1
    %1506 = vperm.xlu0 %1505, %v55
    %v1507 = vpop.permute.xlu0 %1506
    %1509 = vset.pattern.permute.xlu0 1
    %1510 = vperm.xlu0 %1509, %v56
    %v1511 = vpop.permute.xlu0 %1510
    %1513 = vset.pattern.permute.xlu0 1
    %1514 = vperm.xlu0 %1513, %v57
    %v1515 = vpop.permute.xlu0 %1514
    %1517 = vset.pattern.permute.xlu0 1
    %1518 = vperm.xlu0 %1517, %v58
    %v1519 = vpop.permute.xlu0 %1518
    %1521 = vset.pattern.permute.xlu0 1
    %1522 = vperm.xlu0 %1521, %v59
    %v1523 = vpop.permute.xlu0 %1522
    %1525 = vset.pattern.permute.xlu0 1
    %1526 = vperm.xlu0 %1525, %v60
    %v1527 = vpop.permute.xlu0 %1526
    %1529 = vset.pattern.permute.xlu0 1
    %1530 = vperm.xlu0 %1529, %v61
    %v1531 = vpop.permute.xlu0 %1530
    %1533 = vset.pattern.permute.xlu0 1
    %1534 = vperm.xlu0 %1533, %v62
    %v1535 = vpop.permute.xlu0 %1534
    %1537 = vset.pattern.permute.xlu0 1
    %1538 = vperm.xlu0 %1537, %v63
    %v1539 = vpop.permute.xlu0 %1538
    %1541 = vset.pattern.permute.xlu0 1
    %1542 = vperm.xlu0 %1541, %v64
    %v1543 = vpop.permute.xlu0 %1542
    %1545 = vset.pattern.permute.xlu0 1
    %1546 = vperm.xlu0 %1545, %v65
    %v1547 = vpop.permute.xlu0 %1546
    %1549 = vset.pattern.permute.xlu0 1
    %1550 = vperm.xlu0 %1549, %v66
    %v1551 = vpop.permute.xlu0 %1550
    %1553 = vset.pattern.permute.xlu0 1
    %1554 = vperm.xlu0 %1553, %v67
    %v1555 = vpop.permute.xlu0 %1554
    %1557 = vset.pattern.permute.xlu0 1
    %1558 = vperm.xlu0 %1557, %v68
    %v1559 = vpop.permute.xlu0 %1558
    %1561 = vset.pattern.permute.xlu0 1
    %1562 = vperm.xlu0 %1561, %v69
    %v1563 = vpop.permute.xlu0 %1562
    %1565 = vset.pattern.permute.xlu0 1
    %1566 = vperm.xlu0 %1565, %v70
    %v1567 = vpop.permute.xlu0 %1566
    %1569 = vset.pattern.permute.xlu0 1
    %1570 = vperm.xlu0 %1569, %v71
    %v1571 = vpop.permute.xlu0 %1570
    %1573 = vset.pattern.permute.xlu0 1
    %1574 = vperm.xlu0 %1573, %v72
    %v1575 = vpop.permute.xlu0 %1574
    %1577 = vset.pattern.permute.xlu0 1
    %1578 = vperm.xlu0 %1577, %v73
    %v1579 = vpop.permute.xlu0 %1578
    %1581 = vset.pattern.permute.xlu0 1
    %1582 = vperm.xlu0 %1581, %v74
    %v1583 = vpop.permute.xlu0 %1582
    %1585 = vset.pattern.permute.xlu0 1
    %1586 = vperm.xlu0 %1585, %v75
    %v1587 = vpop.permute.xlu0 %1586
    %1589 = vset.pattern.permute.xlu0 1
    %1590 = vperm.xlu0 %1589, %v76
    %v1591 = vpop.permute.xlu0 %1590
    %1593 = vset.pattern.permute.xlu0 1
    %1594 = vperm.xlu0 %1593, %v77
    %v1595 = vpop.permute.xlu0 %1594
    %1597 = vset.pattern.permute.xlu0 1
    %1598 = vperm.xlu0 %1597, %v78
    %v1599 = vpop.permute.xlu0 %1598
    %1601 = vset.pattern.permute.xlu0 1
    %1602 = vperm.xlu0 %1601, %v79
    %v1603 = vpop.permute.xlu0 %1602
    %1605 = vset.pattern.permute.xlu0 1
    %1606 = vperm.xlu0 %1605, %v80
    %v1607 = vpop.permute.xlu0 %1606
    %1609 = vset.pattern.permute.xlu0 1
    %1610 = vperm.xlu0 %1609, %v81
    %v1611 = vpop.permute.xlu0 %1610
    %1613 = vset.pattern.permute.xlu0 1
    %1614 = vperm.xlu0 %1613, %v82
    %v1615 = vpop.permute.xlu0 %1614
    %1617 = vset.pattern.permute.xlu0 1
    %1618 = vperm.xlu0 %1617, %v83
    %v1619 = vpop.permute.xlu0 %1618
    %1621 = vset.pattern.permute.xlu0 1
    %1622 = vperm.xlu0 %1621, %v84
    %v1623 = vpop.permute.xlu0 %1622
    %1625 = vset.pattern.permute.xlu0 1
    %1626 = vperm.xlu0 %1625, %v85
    %v1627 = vpop.permute.xlu0 %1626
    %1629 = vset.pattern.permute.xlu0 1
    %1630 = vperm.xlu0 %1629, %v86
    %v1631 = vpop.permute.xlu0 %1630
    %1633 = vset.pattern.permute.xlu0 1
    %1634 = vperm.xlu0 %1633, %v87
    %v1635 = vpop.permute.xlu0 %1634
    %1637 = vset.pattern.permute.xlu0 1
    %1638 = vperm.xlu0 %1637, %v88
    %v1639 = vpop.permute.xlu0 %1638
    %1641 = vset.pattern.permute.xlu0 1
    %1642 = vperm.xlu0 %1641, %v89
    %v1643 = vpop.permute.xlu0 %1642
    %1645 = vset.pattern.permute.xlu0 1
    %1646 = vperm.xlu0 %1645, %v90
    %v1647 = vpop.permute.xlu0 %1646
    %1649 = vset.pattern.permute.xlu0 1
    %1650 = vperm.xlu0 %1649, %v91
    %v1651 = vpop.permute.xlu0 %1650
    %1653 = vset.pattern.permute.xlu0 1
    %1654 = vperm.xlu0 %1653, %v92
    %v1655 = vpop.permute.xlu0 %1654
    %1657 = vset.pattern.permute.xlu0 1
    %1658 = vperm.xlu0 %1657, %v93
    %v1659 = vpop.permute.xlu0 %1658
    %1661 = vset.pattern.permute.xlu0 1
    %1662 = vperm.xlu0 %1661, %v94
    %v1663 = vpop.permute.xlu0 %1662
    %1665 = vset.pattern.permute.xlu0 1
    %1666 = vperm.xlu0 %1665, %v95
    %v1667 = vpop.permute.xlu0 %1666
    %1669 = vset.pattern.permute.xlu0 1
    %1670 = vperm.xlu0 %1669, %v96
    %v1671 = vpop.permute.xlu0 %1670
    %1673 = vset.pattern.permute.xlu0 1
    %1674 = vperm.xlu0 %1673, %v97
    %v1675 = vpop.permute.xlu0 %1674
    %1677 = vset.pattern.permute.xlu0 1
    %1678 = vperm.xlu0 %1677, %v98
    %v1679 = vpop.permute.xlu0 %1678
    %1681 = vset.pattern.permute.xlu0 1
    %1682 = vperm.xlu0 %1681, %v99
    %v1683 = vpop.permute.xlu0 %1682
    %1685 = vset.pattern.permute.xlu0 1
    %1686 = vperm.xlu0 %1685, %v100
    %v1687 = vpop.permute.xlu0 %1686
    %1689 = vset.pattern.permute.xlu0 1
    %1690 = vperm.xlu0 %1689, %v101
    %v1691 = vpop.permute.xlu0 %1690
    %1693 = vset.pattern.permute.xlu0 1
    %1694 = vperm.xlu0 %1693, %v102
    %v1695 = vpop.permute.xlu0 %1694
    %1697 = vset.pattern.permute.xlu0 1
    %1698 = vperm.xlu0 %1697, %v103
    %v1699 = vpop.permute.xlu0 %1698
    %1701 = vset.pattern.permute.xlu0 1
    %1702 = vperm.xlu0 %1701, %v104
    %v1703 = vpop.permute.xlu0 %1702
    %1705 = vset.pattern.permute.xlu0 1
    %1706 = vperm.xlu0 %1705, %v105
    %v1707 = vpop.permute.xlu0 %1706
    %1710 = vset.pattern.permute.xlu0 1
    %1711 = vperm.xlu0 %1710, %v106
    %v1712 = vpop.permute.xlu0 %1711
    %1715 = vset.pattern.permute.xlu0 1
    %1716 = vperm.xlu0 %1715, %v107
    %v1717 = vpop.permute.xlu0 %1716
    %1720 = vset.pattern.permute.xlu0 1
    %1721 = vperm.xlu0 %1720, %v108
    %v1722 = vpop.permute.xlu0 %1721
    %1725 = vset.pattern.permute.xlu0 1
    %1726 = vperm.xlu0 %1725, %v109
    %v1727 = vpop.permute.xlu0 %1726
    %1730 = vset.pattern.permute.xlu0 1
    %1731 = vperm.xlu0 %1730, %v110
    %v1732 = vpop.permute.xlu0 %1731
    %1735 = vset.pattern.permute.xlu0 1
    %1736 = vperm.xlu0 %1735, %v111
    %v1737 = vpop.permute.xlu0 %1736
    %1740 = vset.pattern.permute.xlu0 1
    %1741 = vperm.xlu0 %1740, %v112
    %v1742 = vpop.permute.xlu0 %1741
    %1745 = vset.pattern.permute.xlu0 1
    %1746 = vperm.xlu0 %1745, %v113
    %v1747 = vpop.permute.xlu0 %1746
    %1750 = vset.pattern.permute.xlu0 1
    %1751 = vperm.xlu0 %1750, %v114
    %v1752 = vpop.permute.xlu0 %1751
    %1755 = vset.pattern.permute.xlu0 1
    %1756 = vperm.xlu0 %1755, %v115
    %v1757 = vpop.permute.xlu0 %1756
    %1760 = vset.pattern.permute.xlu0 1
    %1761 = vperm.xlu0 %1760, %v116
    %v1762 = vpop.permute.xlu0 %1761
    %1765 = vset.pattern.permute.xlu0 1
    %1766 = vperm.xlu0 %1765, %v117
    %v1767 = vpop.permute.xlu0 %1766
    %1770 = vset.pattern.permute.xlu0 1
    %1771 = vperm.xlu0 %1770, %v118
    %v1772 = vpop.permute.xlu0 %1771
    %1775 = vset.pattern.permute.xlu0 1
    %1776 = vperm.xlu0 %1775, %v119
    %v1777 = vpop.permute.xlu0 %1776
    %1780 = vset.pattern.permute.xlu0 1
    %1781 = vperm.xlu0 %1780, %v120
    %v1782 = vpop.permute.xlu0 %1781
    %1785 = vset.pattern.permute.xlu0 1
    %1786 = vperm.xlu0 %1785, %v121
    %v1787 = vpop.permute.xlu0 %1786
    %1790 = vset.pattern.permute.xlu0 1
    %1791 = vperm.xlu0 %1790, %v122
    %v1792 = vpop.permute.xlu0 %1791
    %1795 = vset.pattern.permute.xlu0 1
    %1796 = vperm.xlu0 %1795, %v123
    %v1797 = vpop.permute.xlu0 %1796
    %1800 = vset.pattern.permute.xlu0 1
    %1801 = vperm.xlu0 %1800, %v124
    %v1802 = vpop.permute.xlu0 %1801
    %1805 = vset.pattern.permute.xlu0 1
    %1806 = vperm.xlu0 %1805, %v125
    %v1807 = vpop.permute.xlu0 %1806
    %1810 = vset.pattern.permute.xlu0 1
    %1811 = vperm.xlu0 %1810, %v126
    %v1812 = vpop.permute.xlu0 %1811
    %1815 = vset.pattern.permute.xlu0 1
    %1816 = vperm.xlu0 %1815, %v127
    %v1817 = vpop.permute.xlu0 %1816
    %1820 = vset.pattern.permute.xlu0 1
    %1821 = vperm.xlu0 %1820, %v128
    %v1822 = vpop.permute.xlu0 %1821
    %1825 = vset.pattern.permute.xlu0 1
    %1826 = vperm.xlu0 %1825, %v129
    %v1827 = vpop.permute.xlu0 %1826
    %1830 = vset.pattern.permute.xlu0 1
    %1831 = vperm.xlu0 %1830, %v130
    %v1832 = vpop.permute.xlu0 %1831
    %1835 = vset.pattern.permute.xlu0 1
    %1836 = vperm.xlu0 %1835, %v131
    %v1837 = vpop.permute.xlu0 %1836
    %1840 = vset.pattern.permute.xlu0 1
    %1841 = vperm.xlu0 %1840, %v132
    %v1842 = vpop.permute.xlu0 %1841
    %1845 = vset.pattern.permute.xlu0 1
    %1846 = vperm.xlu0 %1845, %v133
    %v1847 = vpop.permute.xlu0 %1846
    %1850 = vset.pattern.permute.xlu0 1
    %1851 = vperm.xlu0 %1850, %v134
    %v1852 = vpop.permute.xlu0 %1851
    %1855 = vset.pattern.permute.xlu0 1
    %1856 = vperm.xlu0 %1855, %v135
    %v1857 = vpop.permute.xlu0 %1856
    %1860 = vset.pattern.permute.xlu0 1
    %1861 = vperm.xlu0 %1860, %v136
    %v1862 = vpop.permute.xlu0 %1861
    %1865 = vset.pattern.permute.xlu0 1
    %1866 = vperm.xlu0 %1865, %v137
    %v1867 = vpop.permute.xlu0 %1866
    %1870 = vset.pattern.permute.xlu0 1
    %1871 = vperm.xlu0 %1870, %v138
    %v1872 = vpop.permute.xlu0 %1871
    %1875 = vset.pattern.permute.xlu0 1
    %1876 = vperm.xlu0 %1875, %v139
    %v1877 = vpop.permute.xlu0 %1876
    %1880 = vset.pattern.permute.xlu0 1
    %1881 = vperm.xlu0 %1880, %v140
    %v1882 = vpop.permute.xlu0 %1881
    %1885 = vset.pattern.permute.xlu0 1
    %1886 = vperm.xlu0 %1885, %v141
    %v1887 = vpop.permute.xlu0 %1886
    %1890 = vset.pattern.permute.xlu0 1
    %1891 = vperm.xlu0 %1890, %v142
    %v1892 = vpop.permute.xlu0 %1891
    %1895 = vset.pattern.permute.xlu0 1
    %1896 = vperm.xlu0 %1895, %v143
    %v1897 = vpop.permute.xlu0 %1896
    %1900 = vset.pattern.permute.xlu0 1
    %1901 = vperm.xlu0 %1900, %v144
    %v1902 = vpop.permute.xlu0 %1901
    %1905 = vset.pattern.permute.xlu0 1
    %1906 = vperm.xlu0 %1905, %v145
    %v1907 = vpop.permute.xlu0 %1906
    %1910 = vset.pattern.permute.xlu0 1
    %1911 = vperm.xlu0 %1910, %v146
    %v1912 = vpop.permute.xlu0 %1911
    %1915 = vset.pattern.permute.xlu0 1
    %1916 = vperm.xlu0 %1915, %v147
    %v1917 = vpop.permute.xlu0 %1916
    %1920 = vset.pattern.permute.xlu0 1
    %1921 = vperm.xlu0 %1920, %v148
    %v1922 = vpop.permute.xlu0 %1921
    %1925 = vset.pattern.permute.xlu0 1
    %1926 = vperm.xlu0 %1925, %v149
    %v1927 = vpop.permute.xlu0 %1926
    %1930 = vset.pattern.permute.xlu0 1
    %1931 = vperm.xlu0 %1930, %v150
    %v1932 = vpop.permute.xlu0 %1931
    %1935 = vset.pattern.permute.xlu0 1
    %1936 = vperm.xlu0 %1935, %v151
    %v1937 = vpop.permute.xlu0 %1936
    %1940 = vset.pattern.permute.xlu0 1
    %1941 = vperm.xlu0 %1940, %v152
    %v1942 = vpop.permute.xlu0 %1941
    %1945 = vset.pattern.permute.xlu0 1
    %1946 = vperm.xlu0 %1945, %v153
    %v1947 = vpop.permute.xlu0 %1946
    %1950 = vset.pattern.permute.xlu0 1
    %1951 = vperm.xlu0 %1950, %v154
    %v1952 = vpop.permute.xlu0 %1951
    %1955 = vset.pattern.permute.xlu0 1
    %1956 = vperm.xlu0 %1955, %v155
    %v1957 = vpop.permute.xlu0 %1956
    %1960 = vset.pattern.permute.xlu0 1
    %1961 = vperm.xlu0 %1960, %v156
    %v1962 = vpop.permute.xlu0 %1961
    %1965 = vset.pattern.permute.xlu0 1
    %1966 = vperm.xlu0 %1965, %v157
    %v1967 = vpop.permute.xlu0 %1966
    %1970 = vset.pattern.permute.xlu0 1
    %1971 = vperm.xlu0 %1970, %v158
    %v1972 = vpop.permute.xlu0 %1971
    %1975 = vset.pattern.permute.xlu0 1
    %1976 = vperm.xlu0 %1975, %v159
    %v1977 = vpop.permute.xlu0 %1976
    %1980 = vset.pattern.permute.xlu0 1
    %1981 = vperm.xlu0 %1980, %v160
    %v1982 = vpop.permute.xlu0 %1981
    %1985 = vset.pattern.permute.xlu0 1
    %1986 = vperm.xlu0 %1985, %v161
    %v1987 = vpop.permute.xlu0 %1986
    %1990 = vset.pattern.permute.xlu0 1
    %1991 = vperm.xlu0 %1990, %v162
    %v1992 = vpop.permute.xlu0 %1991
    %1995 = vset.pattern.permute.xlu0 1
    %1996 = vperm.xlu0 %1995, %v163
    %v1997 = vpop.permute.xlu0 %1996
    %2000 = vset.pattern.permute.xlu0 1
    %2001 = vperm.xlu0 %2000, %v164
    %v2002 = vpop.permute.xlu0 %2001
    %2005 = vset.pattern.permute.xlu0 1
    %2006 = vperm.xlu0 %2005, %v165
    %v2007 = vpop.permute.xlu0 %2006
    %2010 = vset.pattern.permute.xlu0 1
    %2011 = vperm.xlu0 %2010, %v166
    %v2012 = vpop.permute.xlu0 %2011
    %2015 = vset.pattern.permute.xlu0 1
    %2016 = vperm.xlu0 %2015, %v167
    %v2017 = vpop.permute.xlu0 %2016
    %2020 = vset.pattern.permute.xlu0 1
    %2021 = vperm.xlu0 %2020, %v168
    %v2022 = vpop.permute.xlu0 %2021
    %2025 = vset.pattern.permute.xlu0 1
    %2026 = vperm.xlu0 %2025, %v169
    %v2027 = vpop.permute.xlu0 %2026
    %v2285 = vunpack.c.l.b16 %v1165
    %v2286 = vunpack.c.h.b16 %v1165
    %v2287 = vunpack.c.l.b16 %v1166
    %v2288 = vunpack.c.h.b16 %v1166
    %v2289 = vunpack.c.l.b16 %v1167
    %v2290 = vunpack.c.h.b16 %v1167
    %v2291 = vunpack.c.l.b16 %v1168
    %v2292 = vunpack.c.h.b16 %v1168
    %v2293 = vunpack.c.l.b16 %v1169
    %v2294 = vunpack.c.h.b16 %v1169
    %v2295 = vunpack.c.l.b16 %v1170
    %v2296 = vunpack.c.h.b16 %v1170
    %v2297 = vunpack.c.l.b16 %v1171
    %v2298 = vunpack.c.h.b16 %v1171
    %v2299 = vunpack.c.l.b16 %v1172
    %v2300 = vunpack.c.h.b16 %v1172
    %v2301 = vunpack.c.l.b16 %v1173
    %v2302 = vunpack.c.h.b16 %v1173
    %v2303 = vunpack.c.l.b16 %v1174
    %v2304 = vunpack.c.h.b16 %v1174
    %v2305 = vunpack.c.l.b16 %v1175
    %v2306 = vunpack.c.h.b16 %v1175
    %v2307 = vunpack.c.l.b16 %v1176
    %v2308 = vunpack.c.h.b16 %v1176
    %v2309 = vunpack.c.l.b16 %v1177
    %v2310 = vunpack.c.h.b16 %v1177
    %v2311 = vunpack.c.l.b16 %v1178
    %v2312 = vunpack.c.h.b16 %v1178
    %v2313 = vunpack.c.l.b16 %v1179
    %v2314 = vunpack.c.h.b16 %v1179
    %v2315 = vunpack.c.l.b16 %v1180
    %v2316 = vunpack.c.h.b16 %v1180
    %v2317 = vunpack.c.l.b16 %v1181
    %v2318 = vunpack.c.h.b16 %v1181
    %v2319 = vunpack.c.l.b16 %v1182
    %v2320 = vunpack.c.h.b16 %v1182
    %v2321 = vunpack.c.l.b16 %v1183
    %v2322 = vunpack.c.h.b16 %v1183
    %v2323 = vunpack.c.l.b16 %v1184
    %v2324 = vunpack.c.h.b16 %v1184
    %v2325 = vunpack.c.l.b16 %v1185
    %v2326 = vunpack.c.h.b16 %v1185
    %v2327 = vunpack.c.l.b16 %v1186
    %v2328 = vunpack.c.h.b16 %v1186
    %v2329 = vunpack.c.l.b16 %v1187
    %v2330 = vunpack.c.h.b16 %v1187
    %v2331 = vunpack.c.l.b16 %v1188
    %v2332 = vunpack.c.h.b16 %v1188
    %v2333 = vunpack.c.l.b16 %v1189
    %v2334 = vunpack.c.h.b16 %v1189
    %v2335 = vunpack.c.l.b16 %v1190
    %v2336 = vunpack.c.h.b16 %v1190
    %v2337 = vunpack.c.l.b16 %v1191
    %v2338 = vunpack.c.h.b16 %v1191
    %v2339 = vunpack.c.l.b16 %v1192
    %v2340 = vunpack.c.h.b16 %v1192
    %v2341 = vunpack.c.l.b16 %v1193
    %v2342 = vunpack.c.h.b16 %v1193
    %v2343 = vunpack.c.l.b16 %v1194
    %v2344 = vunpack.c.h.b16 %v1194
    %v2345 = vunpack.c.l.b16 %v1195
    %v2346 = vunpack.c.h.b16 %v1195
    %v2347 = vunpack.c.l.b16 %v1196
    %v2348 = vunpack.c.h.b16 %v1196
    %v2349 = vunpack.c.l.b16 %v1197
    %v2350 = vunpack.c.h.b16 %v1197
    %v2351 = vunpack.c.l.b16 %v1198
    %v2352 = vunpack.c.h.b16 %v1198
    %v2353 = vunpack.c.l.b16 %v1199
    %v2354 = vunpack.c.h.b16 %v1199
    %v2355 = vunpack.c.l.b16 %v1200
    %v2356 = vunpack.c.h.b16 %v1200
    %v2357 = vunpack.c.l.b16 %v1201
    %v2358 = vunpack.c.h.b16 %v1201
    %v2359 = vunpack.c.l.b16 %v1202
    %v2360 = vunpack.c.h.b16 %v1202
    %v2361 = vunpack.c.l.b16 %v1203
    %v2362 = vunpack.c.h.b16 %v1203
    %v2363 = vunpack.c.l.b16 %v1204
    %v2364 = vunpack.c.h.b16 %v1204
    %v2365 = vunpack.c.l.b16 %v1205
    %v2366 = vunpack.c.h.b16 %v1205
    %v2367 = vunpack.c.l.b16 %v1206
    %v2368 = vunpack.c.h.b16 %v1206
    %v2369 = vunpack.c.l.b16 %v1207
    %v2370 = vunpack.c.h.b16 %v1207
    %v2371 = vunpack.c.l.b16 %v1208
    %v2372 = vunpack.c.h.b16 %v1208
    %v2373 = vunpack.c.l.b16 %v1209
    %v2374 = vunpack.c.h.b16 %v1209
    %v2375 = vunpack.c.l.b16 %v1210
    %v2376 = vunpack.c.h.b16 %v1210
    %v2377 = vunpack.c.l.b16 %v1211
    %v2378 = vunpack.c.h.b16 %v1211
    %v2379 = vunpack.c.l.b16 %v1212
    %v2380 = vunpack.c.h.b16 %v1212
    %v2381 = vunpack.c.l.b16 %v1213
    %v2382 = vunpack.c.h.b16 %v1213
    %v2383 = vunpack.c.l.b16 %v1214
    %v2384 = vunpack.c.h.b16 %v1214
    %v2385 = vunpack.c.l.b16 %v1215
    %v2386 = vunpack.c.h.b16 %v1215
    %v2387 = vunpack.c.l.b16 %v1216
    %v2388 = vunpack.c.h.b16 %v1216
    %v2389 = vunpack.c.l.b16 %v1217
    %v2390 = vunpack.c.h.b16 %v1217
    %v2391 = vunpack.c.l.b16 %v1218
    %v2392 = vunpack.c.h.b16 %v1218
    %v2393 = vunpack.c.l.b16 %v1219
    %v2394 = vunpack.c.h.b16 %v1219
    %v2395 = vunpack.c.l.b16 %v1220
    %v2396 = vunpack.c.h.b16 %v1220
    %v2397 = vunpack.c.l.b16 %v1221
    %v2398 = vunpack.c.h.b16 %v1221
    %v2399 = vunpack.c.l.b16 %v1222
    %v2400 = vunpack.c.h.b16 %v1222
    %v2401 = vunpack.c.l.b16 %v1223
    %v2402 = vunpack.c.h.b16 %v1223
    %v2403 = vunpack.c.l.b16 %v1224
    %v2404 = vunpack.c.h.b16 %v1224
    %v2405 = vunpack.c.l.b16 %v1225
    %v2406 = vunpack.c.h.b16 %v1225
    %v2407 = vunpack.c.l.b16 %v1226
    %v2408 = vunpack.c.h.b16 %v1226
    %v2409 = vunpack.c.l.b16 %v1227
    %v2410 = vunpack.c.h.b16 %v1227
    %v2411 = vunpack.c.l.b16 %v1228
    %v2412 = vunpack.c.h.b16 %v1228
    %v2413 = vunpack.c.l.b16 %v1229
    %v2414 = vunpack.c.h.b16 %v1229
    %v2415 = vunpack.c.l.b16 %v1230
    %v2416 = vunpack.c.h.b16 %v1230
    %v2417 = vunpack.c.l.b16 %v1231
    %v2418 = vunpack.c.h.b16 %v1231
    %v2419 = vunpack.c.l.b16 %v1232
    %v2420 = vunpack.c.h.b16 %v1232
    %v2421 = vunpack.c.l.b16 %v1233
    %v2422 = vunpack.c.h.b16 %v1233
    %v2423 = vunpack.c.l.b16 %v1234
    %v2424 = vunpack.c.h.b16 %v1234
    %v2425 = vunpack.c.l.b16 %v1235
    %v2426 = vunpack.c.h.b16 %v1235
    %v2427 = vunpack.c.l.b16 %v1236
    %v2428 = vunpack.c.h.b16 %v1236
    %v2429 = vunpack.c.l.b16 %v1237
    %v2430 = vunpack.c.h.b16 %v1237
    %v2431 = vunpack.c.l.b16 %v1238
    %v2432 = vunpack.c.h.b16 %v1238
    %v2433 = vunpack.c.l.b16 %v1239
    %v2434 = vunpack.c.h.b16 %v1239
    %v2435 = vunpack.c.l.b16 %v1240
    %v2436 = vunpack.c.h.b16 %v1240
    %v2437 = vunpack.c.l.b16 %v1241
    %v2438 = vunpack.c.h.b16 %v1241
    %v2439 = vunpack.c.l.b16 %v1242
    %v2440 = vunpack.c.h.b16 %v1242
    %v2441 = vunpack.c.l.b16 %v1243
    %v2442 = vunpack.c.h.b16 %v1243
    %v2443 = vunpack.c.l.b16 %v1244
    %v2444 = vunpack.c.h.b16 %v1244
    %v2445 = vunpack.c.l.b16 %v1245
    %v2446 = vunpack.c.h.b16 %v1245
    %v2447 = vunpack.c.l.b16 %v1246
    %v2448 = vunpack.c.h.b16 %v1246
    %v2449 = vunpack.c.l.b16 %v1247
    %v2450 = vunpack.c.h.b16 %v1247
    %v2451 = vunpack.c.l.b16 %v1248
    %v2452 = vunpack.c.h.b16 %v1248
    %v2453 = vunpack.c.l.b16 %v1249
    %v2454 = vunpack.c.h.b16 %v1249
    %v2455 = vunpack.c.l.b16 %v1250
    %v2456 = vunpack.c.h.b16 %v1250
    %v2457 = vunpack.c.l.b16 %v1251
    %v2458 = vunpack.c.h.b16 %v1251
    %v2459 = vunpack.c.l.b16 %v1252
    %v2460 = vunpack.c.h.b16 %v1252
    %v2461 = vunpack.c.l.b16 %v1253
    %v2462 = vunpack.c.h.b16 %v1253
    %v2463 = vunpack.c.l.b16 %v1254
    %v2464 = vunpack.c.h.b16 %v1254
    %v2465 = vunpack.c.l.b16 %v1255
    %v2466 = vunpack.c.h.b16 %v1255
    %v2467 = vunpack.c.l.b16 %v1256
    %v2468 = vunpack.c.h.b16 %v1256
    %v2469 = vunpack.c.l.b16 %v1257
    %v2470 = vunpack.c.h.b16 %v1257
    %v2471 = vunpack.c.l.b16 %v1258
    %v2472 = vunpack.c.h.b16 %v1258
    %v2473 = vunpack.c.l.b16 %v1259
    %v2474 = vunpack.c.h.b16 %v1259
    %v2475 = vunpack.c.l.b16 %v1260
    %v2476 = vunpack.c.h.b16 %v1260
    %v2477 = vunpack.c.l.b16 %v1261
    %v2478 = vunpack.c.h.b16 %v1261
    %v2479 = vunpack.c.l.b16 %v1262
    %v2480 = vunpack.c.h.b16 %v1262
    %v2481 = vunpack.c.l.b16 %v1263
    %v2482 = vunpack.c.h.b16 %v1263
    %v2483 = vunpack.c.l.b16 %v1264
    %v2484 = vunpack.c.h.b16 %v1264
    %v2485 = vunpack.c.l.b16 %v1265
    %v2486 = vunpack.c.h.b16 %v1265
    %v2487 = vunpack.c.l.b16 %v1266
    %v2488 = vunpack.c.h.b16 %v1266
    %v2489 = vunpack.c.l.b16 %v1267
    %v2490 = vunpack.c.h.b16 %v1267
    %v2491 = vunpack.c.l.b16 %v1268
    %v2492 = vunpack.c.h.b16 %v1268
    %v2493 = vunpack.c.l.b16 %v1269
    %v2494 = vunpack.c.h.b16 %v1269
    %v2495 = vunpack.c.l.b16 %v1270
    %v2496 = vunpack.c.h.b16 %v1270
    %v2497 = vunpack.c.l.b16 %v1271
    %v2498 = vunpack.c.h.b16 %v1271
    %v2499 = vunpack.c.l.b16 %v1272
    %v2500 = vunpack.c.h.b16 %v1272
    %v2501 = vunpack.c.l.b16 %v1273
    %v2502 = vunpack.c.h.b16 %v1273
    %v2503 = vunpack.c.l.b16 %v1274
    %v2504 = vunpack.c.h.b16 %v1274
    %v2505 = vunpack.c.l.b16 %v1275
    %v2506 = vunpack.c.h.b16 %v1275
    %v2507 = vunpack.c.l.b16 %v1276
    %v2508 = vunpack.c.h.b16 %v1276
    %v2509 = vunpack.c.l.b16 %v1277
    %v2510 = vunpack.c.h.b16 %v1277
    %v2511 = vunpack.c.l.b16 %v1278
    %v2512 = vunpack.c.h.b16 %v1278
    %v2513 = vunpack.c.l.b16 %v1279
    %v2514 = vunpack.c.h.b16 %v1279
    %v2515 = vunpack.c.l.b16 %v1280
    %v2516 = vunpack.c.h.b16 %v1280
    %v2517 = vunpack.c.l.b16 %v1281
    %v2518 = vunpack.c.h.b16 %v1281
    %v2519 = vunpack.c.l.b16 %v1282
    %v2520 = vunpack.c.h.b16 %v1282
    %v2521 = vunpack.c.l.b16 %v1283
    %v2522 = vunpack.c.h.b16 %v1283
    %v2523 = vunpack.c.l.b16 %v1284
    %v2524 = vunpack.c.h.b16 %v1284
    %v2525 = vunpack.c.l.b16 %v1285
    %v2526 = vunpack.c.h.b16 %v1285
    %v2527 = vunpack.c.l.b16 %v1286
    %v2528 = vunpack.c.h.b16 %v1286
    %v2529 = vunpack.c.l.b16 %v1287
    %v2530 = vunpack.c.h.b16 %v1287
    %v2531 = vunpack.c.l.b16 %v1288
    %v2532 = vunpack.c.h.b16 %v1288
    %v2533 = vunpack.c.l.b16 %v1289
    %v2534 = vunpack.c.h.b16 %v1289
    %v2535 = vunpack.c.l.b16 %v1290
    %v2536 = vunpack.c.h.b16 %v1290
    %v2537 = vunpack.c.l.b16 %v1291
    %v2538 = vunpack.c.h.b16 %v1291
    %v2539 = vunpack.c.l.b16 %v1292
    %v2540 = vunpack.c.h.b16 %v1292
    %v2541 = vunpack.c.l.b16 %v1293
    %v2542 = vunpack.c.h.b16 %v1293
    %v2543 = vunpack.c.l.b16 %v1294
    %v2544 = vunpack.c.h.b16 %v1294
    %v2545 = vunpack.c.l.b16 %v1295
    %v2546 = vunpack.c.h.b16 %v1295
    %v2547 = vunpack.c.l.b16 %v1296
    %v2548 = vunpack.c.h.b16 %v1296
    %v2549 = vunpack.c.l.b16 %v1297
    %v2550 = vunpack.c.h.b16 %v1297
    %v2551 = vunpack.c.l.b16 %v1298
    %v2552 = vunpack.c.h.b16 %v1298
    %v2553 = vunpack.c.l.b16 %v1299
    %v2554 = vunpack.c.h.b16 %v1299
    %v2555 = vunpack.c.l.b16 %v1300
    %v2556 = vunpack.c.h.b16 %v1300
    %v2557 = vunpack.c.l.b16 %v1301
    %v2558 = vunpack.c.h.b16 %v1301
    %v2559 = vunpack.c.l.b16 %v1302
    %v2560 = vunpack.c.h.b16 %v1302
    %v2561 = vunpack.c.l.b16 %v1303
    %v2562 = vunpack.c.h.b16 %v1303
    %v2563 = vunpack.c.l.b16 %v1304
    %v2564 = vunpack.c.h.b16 %v1304
    %v2565 = vunpack.c.l.b16 %v1305
    %v2566 = vunpack.c.h.b16 %v1305
    %v2567 = vunpack.c.l.b16 %v1306
    %v2568 = vunpack.c.h.b16 %v1306
    %v2569 = vunpack.c.l.b16 %v1307
    %v2570 = vunpack.c.h.b16 %v1307
    %v2571 = vunpack.c.l.b16 %v1308
    %v2572 = vunpack.c.h.b16 %v1308
    %v2573 = vunpack.c.l.b16 %v1309
    %v2574 = vunpack.c.h.b16 %v1309
    %v2575 = vunpack.c.l.b16 %v1310
    %v2576 = vunpack.c.h.b16 %v1310
    %v2577 = vunpack.c.l.b16 %v1311
    %v2578 = vunpack.c.h.b16 %v1311
    %v2579 = vunpack.c.l.b16 %v1312
    %v2580 = vunpack.c.h.b16 %v1312
    %v2581 = vunpack.c.l.b16 %v1313
    %v2582 = vunpack.c.h.b16 %v1313
    %v2583 = vunpack.c.l.b16 %v1314
    %v2584 = vunpack.c.h.b16 %v1314
    %v2585 = vunpack.c.l.b16 %v1315
    %v2586 = vunpack.c.h.b16 %v1315
    %v2587 = vunpack.c.l.b16 %v1316
    %v2588 = vunpack.c.h.b16 %v1316
    %v2589 = vunpack.c.l.b16 %v1317
    %v2590 = vunpack.c.h.b16 %v1317
    %v2591 = vunpack.c.l.b16 %v1318
    %v2592 = vunpack.c.h.b16 %v1318
    %v2593 = vunpack.c.l.b16 %v1319
    %v2594 = vunpack.c.h.b16 %v1319
    %v2595 = vunpack.c.l.b16 %v1320
    %v2596 = vunpack.c.h.b16 %v1320
    %v2597 = vunpack.c.l.b16 %v1321
    %v2598 = vunpack.c.h.b16 %v1321
    %v2599 = vunpack.c.l.b16 %v1322
    %v2600 = vunpack.c.h.b16 %v1322
    %v2601 = vunpack.c.l.b16 %v1323
    %v2602 = vunpack.c.h.b16 %v1323
    %v2603 = vunpack.c.l.b16 %v1324
    %v2604 = vunpack.c.h.b16 %v1324
    %v2605 = vunpack.c.l.b16 %v1325
    %v2606 = vunpack.c.h.b16 %v1325
    %v2607 = vunpack.c.l.b16 %v1326
    %v2608 = vunpack.c.h.b16 %v1326
    %v2609 = vunpack.c.l.b16 %v1327
    %v2610 = vunpack.c.h.b16 %v1327
    %v2611 = vunpack.c.l.b16 %v1328
    %v2612 = vunpack.c.h.b16 %v1328
    %v2613 = vunpack.c.l.b16 %v1329
    %v2614 = vunpack.c.h.b16 %v1329
    %v2615 = vunpack.c.l.b16 %v1330
    %v2616 = vunpack.c.h.b16 %v1330
    %v2617 = vunpack.c.l.b16 %v1331
    %v2618 = vunpack.c.h.b16 %v1331
    %v2619 = vunpack.c.l.b16 %v1332
    %v2620 = vunpack.c.h.b16 %v1332
    %v2621 = vunpack.c.l.b16 %v1333
    %v2622 = vunpack.c.h.b16 %v1333
    %v2623 = vunpack.c.l.b16 %v1334
    %v2624 = vunpack.c.h.b16 %v1334
    %v2625 = vunpack.c.l.b16 %v1335
    %v2626 = vunpack.c.h.b16 %v1335
    %v2627 = vunpack.c.l.b16 %v1336
    %v2628 = vunpack.c.h.b16 %v1336
    %v2629 = vunpack.c.l.b16 %v1337
    %v2630 = vunpack.c.h.b16 %v1337
    %v2631 = vunpack.c.l.b16 %v1338
    %v2632 = vunpack.c.h.b16 %v1338
    %v2633 = vunpack.c.l.b16 %v1339
    %v2634 = vunpack.c.h.b16 %v1339
    %v2635 = vunpack.c.l.b16 %v1340
    %v2636 = vunpack.c.h.b16 %v1340
    %v2637 = vunpack.c.l.b16 %v1341
    %v2638 = vunpack.c.h.b16 %v1341
    %v2639 = vunpack.c.l.b16 %v1342
    %v2640 = vunpack.c.h.b16 %v1342
    %v2641 = vunpack.c.l.b16 %v1343
    %v2642 = vunpack.c.h.b16 %v1343
    %v2643 = vunpack.c.l.b16 %v1344
    %v2644 = vunpack.c.h.b16 %v1344
    %v2645 = vunpack.c.l.b16 %v1345
    %v2646 = vunpack.c.h.b16 %v1345
    %v2647 = vunpack.c.l.b16 %v1346
    %v2648 = vunpack.c.h.b16 %v1346
    %v2649 = vunpack.c.l.b16 %v1347
    %v2650 = vunpack.c.h.b16 %v1347
    %v2651 = vunpack.c.l.b16 %v1348
    %v2652 = vunpack.c.h.b16 %v1348
    %v2653 = vunpack.c.l.b16 %v1349
    %v2654 = vunpack.c.h.b16 %v1349
    %v2655 = vunpack.c.l.b16 %v1350
    %v2656 = vunpack.c.h.b16 %v1350
    %v2657 = vunpack.c.l.b16 %v1351
    %v2658 = vunpack.c.h.b16 %v1351
    %v2659 = vunpack.c.l.b16 %v1352
    %v2660 = vunpack.c.h.b16 %v1352
    %v2661 = vunpack.c.l.b16 %v1353
    %v2662 = vunpack.c.h.b16 %v1353
    %v2663 = vunpack.c.l.b16 %v1354
    %v2664 = vunpack.c.h.b16 %v1354
    %v2665 = vunpack.c.l.b16 %v1355
    %v2666 = vunpack.c.h.b16 %v1355
    %v2667 = vunpack.c.l.b16 %v1356
    %v2668 = vunpack.c.h.b16 %v1356
    %v2669 = vunpack.c.l.b16 %v1357
    %v2670 = vunpack.c.h.b16 %v1357
    %v2671 = vunpack.c.l.b16 %v1358
    %v2672 = vunpack.c.h.b16 %v1358
    %v2673 = vunpack.c.l.b16 %v1359
    %v2674 = vunpack.c.h.b16 %v1359
    %v2675 = vunpack.c.l.b16 %v1360
    %v2676 = vunpack.c.h.b16 %v1360
    %v2677 = vunpack.c.l.b16 %v1361
    %v2678 = vunpack.c.h.b16 %v1361
    %v2679 = vunpack.c.l.b16 %v1362
    %v2680 = vunpack.c.h.b16 %v1362
    %v2681 = vunpack.c.l.b16 %v1363
    %v2682 = vunpack.c.h.b16 %v1363
    %v2683 = vunpack.c.l.b16 %v1364
    %v2684 = vunpack.c.h.b16 %v1364
    %v2685 = vunpack.c.l.b16 %v1365
    %v2686 = vunpack.c.h.b16 %v1365
    %v2687 = vunpack.c.l.b16 %v1366
    %v2688 = vunpack.c.h.b16 %v1366
    %v2689 = vunpack.c.l.b16 %v1367
    %v2690 = vunpack.c.h.b16 %v1367
    %v2691 = vunpack.c.l.b16 %v1368
    %v2692 = vunpack.c.h.b16 %v1368
    %v2693 = vunpack.c.l.b16 %v1369
    %v2694 = vunpack.c.h.b16 %v1369
    %v2695 = vunpack.c.l.b16 %v1370
    %v2696 = vunpack.c.h.b16 %v1370
    %v2697 = vunpack.c.l.b16 %v1371
    %v2698 = vunpack.c.h.b16 %v1371
    %v2699 = vunpack.c.l.b16 %v1372
    %v2700 = vunpack.c.h.b16 %v1372
    %v2701 = vunpack.c.l.b16 %v1373
    %v2702 = vunpack.c.h.b16 %v1373
    %v2703 = vunpack.c.l.b16 %v1374
    %v2704 = vunpack.c.h.b16 %v1374
    %v2705 = vunpack.c.l.b16 %v1375
    %v2706 = vunpack.c.h.b16 %v1375
    %v2707 = vunpack.c.l.b16 %v1376
    %v2708 = vunpack.c.h.b16 %v1376
    %v2709 = vunpack.c.l.b16 %v1377
    %v2710 = vunpack.c.h.b16 %v1377
    %v2711 = vunpack.c.l.b16 %v1378
    %v2712 = vunpack.c.h.b16 %v1378
    %v2713 = vunpack.c.l.b16 %v1379
    %v2714 = vunpack.c.h.b16 %v1379
    %v2715 = vunpack.c.l.b16 %v1380
    %v2716 = vunpack.c.h.b16 %v1380
    %v2717 = vunpack.c.l.b16 %v1381
    %v2718 = vunpack.c.h.b16 %v1381
    %v2719 = vunpack.c.l.b16 %v1382
    %v2720 = vunpack.c.h.b16 %v1382
    %v2721 = vunpack.c.l.b16 %v1383
    %v2722 = vunpack.c.h.b16 %v1383
    %v2723 = vunpack.c.l.b16 %v1384
    %v2724 = vunpack.c.h.b16 %v1384
    %v2725 = vunpack.c.l.b16 %v1385
    %v2726 = vunpack.c.h.b16 %v1385
    %v2727 = vunpack.c.l.b16 %v1386
    %v2728 = vunpack.c.h.b16 %v1386
    %v2729 = vunpack.c.l.b16 %v1387
    %v2730 = vunpack.c.h.b16 %v1387
    %v2731 = vunpack.c.l.b16 %v1388
    %v2732 = vunpack.c.h.b16 %v1388
    %v2733 = vunpack.c.l.b16 %v1389
    %v2734 = vunpack.c.h.b16 %v1389
    %v2735 = vunpack.c.l.b16 %v1390
    %v2736 = vunpack.c.h.b16 %v1390
    %v2737 = vunpack.c.l.b16 %v1391
    %v2738 = vunpack.c.h.b16 %v1391
    %v2739 = vunpack.c.l.b16 %v1392
    %v2740 = vunpack.c.h.b16 %v1392
    %v2741 = vunpack.c.l.b16 %v1393
    %v2742 = vunpack.c.h.b16 %v1393
    %v2743 = vunpack.c.l.b16 %v1394
    %v2744 = vunpack.c.h.b16 %v1394
    %v2745 = vunpack.c.l.b16 %v1395
    %v2746 = vunpack.c.h.b16 %v1395
    %v2747 = vunpack.c.l.b16 %v1396
    %v2748 = vunpack.c.h.b16 %v1396
    %v2749 = vunpack.c.l.b16 %v1397
    %v2750 = vunpack.c.h.b16 %v1397
    %v2751 = vunpack.c.l.b16 %v1398
    %v2752 = vunpack.c.h.b16 %v1398
    %v2753 = vunpack.c.l.b16 %v1399
    %v2754 = vunpack.c.h.b16 %v1399
    %v2755 = vunpack.c.l.b16 %v1400
    %v2756 = vunpack.c.h.b16 %v1400
    %v2757 = vunpack.c.l.b16 %v1401
    %v2758 = vunpack.c.h.b16 %v1401
    %v2759 = vunpack.c.l.b16 %v1402
    %v2760 = vunpack.c.h.b16 %v1402
    %v2761 = vunpack.c.l.b16 %v1403
    %v2762 = vunpack.c.h.b16 %v1403
    %v2763 = vunpack.c.l.b16 %v1404
    %v2764 = vunpack.c.h.b16 %v1404
    %v2765 = vunpack.c.l.b16 %v1405
    %v2766 = vunpack.c.h.b16 %v1405
    %v2767 = vunpack.c.l.b16 %v1406
    %v2768 = vunpack.c.h.b16 %v1406
    %v2769 = vunpack.c.l.b16 %v1407
    %v2770 = vunpack.c.h.b16 %v1407
    %v2771 = vunpack.c.l.b16 %v1408
    %v2772 = vunpack.c.h.b16 %v1408
    %v2773 = vunpack.c.l.b16 %v1409
    %v2774 = vunpack.c.h.b16 %v1409
    %v2775 = vunpack.c.l.b16 %v1410
    %v2776 = vunpack.c.h.b16 %v1410
    %v2777 = vunpack.c.l.b16 %v1411
    %v2778 = vunpack.c.h.b16 %v1411
    %v2779 = vunpack.c.l.b16 %v1412
    %v2780 = vunpack.c.h.b16 %v1412
    %v2781 = vunpack.c.l.b16 %v1413
    %v2782 = vunpack.c.h.b16 %v1413
    %v2783 = vunpack.c.l.b16 %v1414
    %v2784 = vunpack.c.h.b16 %v1414
    %v2785 = vunpack.c.l.b16 %v1415
    %v2786 = vunpack.c.h.b16 %v1415
    %v2787 = vunpack.c.l.b16 %v1416
    %v2788 = vunpack.c.h.b16 %v1416
    %v2789 = vunpack.c.l.b16 %v1417
    %v2790 = vunpack.c.h.b16 %v1417
    %v2791 = vunpack.c.l.b16 %v1418
    %v2792 = vunpack.c.h.b16 %v1418
    %v2793 = vunpack.c.l.b16 %v1419
    %v2794 = vunpack.c.h.b16 %v1419
    %v2795 = vunpack.c.l.b16 %v1420
    %v2796 = vunpack.c.h.b16 %v1420
    %v2797 = vpack.c.b16 %v2289, %v2285
    %v2798 = vpack.c.b16 %v2290, %v2286
    %v2799 = vpack.c.b16 %v2291, %v2287
    %v2800 = vpack.c.b16 %v2292, %v2288
    %v2801 = vpack.c.b16 %v2297, %v2293
    %v2802 = vpack.c.b16 %v2298, %v2294
    %v2803 = vpack.c.b16 %v2299, %v2295
    %v2804 = vpack.c.b16 %v2300, %v2296
    %v2805 = vpack.c.b16 %v2305, %v2301
    %v2806 = vpack.c.b16 %v2306, %v2302
    %v2807 = vpack.c.b16 %v2307, %v2303
    %v2808 = vpack.c.b16 %v2308, %v2304
    %v2809 = vpack.c.b16 %v2313, %v2309
    %v2810 = vpack.c.b16 %v2314, %v2310
    %v2811 = vpack.c.b16 %v2315, %v2311
    %v2812 = vpack.c.b16 %v2316, %v2312
    %v2813 = vpack.c.b16 %v2321, %v2317
    %v2814 = vpack.c.b16 %v2322, %v2318
    %v2815 = vpack.c.b16 %v2323, %v2319
    %v2816 = vpack.c.b16 %v2324, %v2320
    %v2817 = vpack.c.b16 %v2329, %v2325
    %v2818 = vpack.c.b16 %v2330, %v2326
    %v2819 = vpack.c.b16 %v2331, %v2327
    %v2820 = vpack.c.b16 %v2332, %v2328
    %v2821 = vpack.c.b16 %v2337, %v2333
    %v2822 = vpack.c.b16 %v2338, %v2334
    %v2823 = vpack.c.b16 %v2339, %v2335
    %v2824 = vpack.c.b16 %v2340, %v2336
    %v2825 = vpack.c.b16 %v2345, %v2341
    %v2826 = vpack.c.b16 %v2346, %v2342
    %v2827 = vpack.c.b16 %v2347, %v2343
    %v2828 = vpack.c.b16 %v2348, %v2344
    %v2829 = vpack.c.b16 %v2353, %v2349
    %v2830 = vpack.c.b16 %v2354, %v2350
    %v2831 = vpack.c.b16 %v2355, %v2351
    %v2832 = vpack.c.b16 %v2356, %v2352
    %v2833 = vpack.c.b16 %v2361, %v2357
    %v2834 = vpack.c.b16 %v2362, %v2358
    %v2835 = vpack.c.b16 %v2363, %v2359
    %v2836 = vpack.c.b16 %v2364, %v2360
    %v2837 = vpack.c.b16 %v2369, %v2365
    %v2838 = vpack.c.b16 %v2370, %v2366
    %v2839 = vpack.c.b16 %v2371, %v2367
    %v2840 = vpack.c.b16 %v2372, %v2368
    %v2841 = vpack.c.b16 %v2377, %v2373
    %v2842 = vpack.c.b16 %v2378, %v2374
    %v2843 = vpack.c.b16 %v2379, %v2375
    %v2844 = vpack.c.b16 %v2380, %v2376
    %v2845 = vpack.c.b16 %v2385, %v2381
    %v2846 = vpack.c.b16 %v2386, %v2382
    %v2847 = vpack.c.b16 %v2387, %v2383
    %v2848 = vpack.c.b16 %v2388, %v2384
    %v2849 = vpack.c.b16 %v2393, %v2389
    %v2850 = vpack.c.b16 %v2394, %v2390
    %v2851 = vpack.c.b16 %v2395, %v2391
    %v2852 = vpack.c.b16 %v2396, %v2392
    %v2853 = vpack.c.b16 %v2401, %v2397
    %v2854 = vpack.c.b16 %v2402, %v2398
    %v2855 = vpack.c.b16 %v2403, %v2399
    %v2856 = vpack.c.b16 %v2404, %v2400
    %v2857 = vpack.c.b16 %v2409, %v2405
    %v2858 = vpack.c.b16 %v2410, %v2406
    %v2859 = vpack.c.b16 %v2411, %v2407
    %v2860 = vpack.c.b16 %v2412, %v2408
    %v2861 = vpack.c.b16 %v2417, %v2413
    %v2862 = vpack.c.b16 %v2418, %v2414
    %v2863 = vpack.c.b16 %v2419, %v2415
    %v2864 = vpack.c.b16 %v2420, %v2416
    %v2865 = vpack.c.b16 %v2425, %v2421
    %v2866 = vpack.c.b16 %v2426, %v2422
    %v2867 = vpack.c.b16 %v2427, %v2423
    %v2868 = vpack.c.b16 %v2428, %v2424
    %v2869 = vpack.c.b16 %v2433, %v2429
    %v2870 = vpack.c.b16 %v2434, %v2430
    %v2871 = vpack.c.b16 %v2435, %v2431
    %v2872 = vpack.c.b16 %v2436, %v2432
    %v2873 = vpack.c.b16 %v2441, %v2437
    %v2874 = vpack.c.b16 %v2442, %v2438
    %v2875 = vpack.c.b16 %v2443, %v2439
    %v2876 = vpack.c.b16 %v2444, %v2440
    %v2877 = vpack.c.b16 %v2449, %v2445
    %v2878 = vpack.c.b16 %v2450, %v2446
    %v2879 = vpack.c.b16 %v2451, %v2447
    %v2880 = vpack.c.b16 %v2452, %v2448
    %v2881 = vpack.c.b16 %v2457, %v2453
    %v2882 = vpack.c.b16 %v2458, %v2454
    %v2883 = vpack.c.b16 %v2459, %v2455
    %v2884 = vpack.c.b16 %v2460, %v2456
    %v2885 = vpack.c.b16 %v2465, %v2461
    %v2886 = vpack.c.b16 %v2466, %v2462
    %v2887 = vpack.c.b16 %v2467, %v2463
    %v2888 = vpack.c.b16 %v2468, %v2464
    %v2889 = vpack.c.b16 %v2473, %v2469
    %v2890 = vpack.c.b16 %v2474, %v2470
    %v2891 = vpack.c.b16 %v2475, %v2471
    %v2892 = vpack.c.b16 %v2476, %v2472
    %v2893 = vpack.c.b16 %v2481, %v2477
    %v2894 = vpack.c.b16 %v2482, %v2478
    %v2895 = vpack.c.b16 %v2483, %v2479
    %v2896 = vpack.c.b16 %v2484, %v2480
    %v2897 = vpack.c.b16 %v2489, %v2485
    %v2898 = vpack.c.b16 %v2490, %v2486
    %v2899 = vpack.c.b16 %v2491, %v2487
    %v2900 = vpack.c.b16 %v2492, %v2488
    %v2901 = vpack.c.b16 %v2497, %v2493
    %v2902 = vpack.c.b16 %v2498, %v2494
    %v2903 = vpack.c.b16 %v2499, %v2495
    %v2904 = vpack.c.b16 %v2500, %v2496
    %v2905 = vpack.c.b16 %v2505, %v2501
    %v2906 = vpack.c.b16 %v2506, %v2502
    %v2907 = vpack.c.b16 %v2507, %v2503
    %v2908 = vpack.c.b16 %v2508, %v2504
    %v2909 = vpack.c.b16 %v2513, %v2509
    %v2910 = vpack.c.b16 %v2514, %v2510
    %v2911 = vpack.c.b16 %v2515, %v2511
    %v2912 = vpack.c.b16 %v2516, %v2512
    %v2913 = vpack.c.b16 %v2521, %v2517
    %v2914 = vpack.c.b16 %v2522, %v2518
    %v2915 = vpack.c.b16 %v2523, %v2519
    %v2916 = vpack.c.b16 %v2524, %v2520
    %v2917 = vpack.c.b16 %v2529, %v2525
    %v2918 = vpack.c.b16 %v2530, %v2526
    %v2919 = vpack.c.b16 %v2531, %v2527
    %v2920 = vpack.c.b16 %v2532, %v2528
    %v2921 = vpack.c.b16 %v2537, %v2533
    %v2922 = vpack.c.b16 %v2538, %v2534
    %v2923 = vpack.c.b16 %v2539, %v2535
    %v2924 = vpack.c.b16 %v2540, %v2536
    %v2925 = vpack.c.b16 %v2545, %v2541
    %v2926 = vpack.c.b16 %v2546, %v2542
    %v2927 = vpack.c.b16 %v2547, %v2543
    %v2928 = vpack.c.b16 %v2548, %v2544
    %v2929 = vpack.c.b16 %v2553, %v2549
    %v2930 = vpack.c.b16 %v2554, %v2550
    %v2931 = vpack.c.b16 %v2555, %v2551
    %v2932 = vpack.c.b16 %v2556, %v2552
    %v2933 = vpack.c.b16 %v2561, %v2557
    %v2934 = vpack.c.b16 %v2562, %v2558
    %v2935 = vpack.c.b16 %v2563, %v2559
    %v2936 = vpack.c.b16 %v2564, %v2560
    %v2937 = vpack.c.b16 %v2569, %v2565
    %v2938 = vpack.c.b16 %v2570, %v2566
    %v2939 = vpack.c.b16 %v2571, %v2567
    %v2940 = vpack.c.b16 %v2572, %v2568
    %v2941 = vpack.c.b16 %v2577, %v2573
    %v2942 = vpack.c.b16 %v2578, %v2574
    %v2943 = vpack.c.b16 %v2579, %v2575
    %v2944 = vpack.c.b16 %v2580, %v2576
    %v2945 = vpack.c.b16 %v2585, %v2581
    %v2946 = vpack.c.b16 %v2586, %v2582
    %v2947 = vpack.c.b16 %v2587, %v2583
    %v2948 = vpack.c.b16 %v2588, %v2584
    %v2949 = vpack.c.b16 %v2593, %v2589
    %v2950 = vpack.c.b16 %v2594, %v2590
    %v2951 = vpack.c.b16 %v2595, %v2591
    %v2952 = vpack.c.b16 %v2596, %v2592
    %v2953 = vpack.c.b16 %v2601, %v2597
    %v2954 = vpack.c.b16 %v2602, %v2598
    %v2955 = vpack.c.b16 %v2603, %v2599
    %v2956 = vpack.c.b16 %v2604, %v2600
    %v2957 = vpack.c.b16 %v2609, %v2605
    %v2958 = vpack.c.b16 %v2610, %v2606
    %v2959 = vpack.c.b16 %v2611, %v2607
    %v2960 = vpack.c.b16 %v2612, %v2608
    %v2961 = vpack.c.b16 %v2617, %v2613
    %v2962 = vpack.c.b16 %v2618, %v2614
    %v2963 = vpack.c.b16 %v2619, %v2615
    %v2964 = vpack.c.b16 %v2620, %v2616
    %v2965 = vpack.c.b16 %v2625, %v2621
    %v2966 = vpack.c.b16 %v2626, %v2622
    %v2967 = vpack.c.b16 %v2627, %v2623
    %v2968 = vpack.c.b16 %v2628, %v2624
    %v2969 = vpack.c.b16 %v2633, %v2629
    %v2970 = vpack.c.b16 %v2634, %v2630
    %v2971 = vpack.c.b16 %v2635, %v2631
    %v2972 = vpack.c.b16 %v2636, %v2632
    %v2973 = vpack.c.b16 %v2641, %v2637
    %v2974 = vpack.c.b16 %v2642, %v2638
    %v2975 = vpack.c.b16 %v2643, %v2639
    %v2976 = vpack.c.b16 %v2644, %v2640
    %v2977 = vpack.c.b16 %v2649, %v2645
    %v2978 = vpack.c.b16 %v2650, %v2646
    %v2979 = vpack.c.b16 %v2651, %v2647
    %v2980 = vpack.c.b16 %v2652, %v2648
    %v2981 = vpack.c.b16 %v2657, %v2653
    %v2982 = vpack.c.b16 %v2658, %v2654
    %v2983 = vpack.c.b16 %v2659, %v2655
    %v2984 = vpack.c.b16 %v2660, %v2656
    %v2985 = vpack.c.b16 %v2665, %v2661
    %v2986 = vpack.c.b16 %v2666, %v2662
    %v2987 = vpack.c.b16 %v2667, %v2663
    %v2988 = vpack.c.b16 %v2668, %v2664
    %v2989 = vpack.c.b16 %v2673, %v2669
    %v2990 = vpack.c.b16 %v2674, %v2670
    %v2991 = vpack.c.b16 %v2675, %v2671
    %v2992 = vpack.c.b16 %v2676, %v2672
    %v2993 = vpack.c.b16 %v2681, %v2677
    %v2994 = vpack.c.b16 %v2682, %v2678
    %v2995 = vpack.c.b16 %v2683, %v2679
    %v2996 = vpack.c.b16 %v2684, %v2680
    %v2997 = vpack.c.b16 %v2689, %v2685
    %v2998 = vpack.c.b16 %v2690, %v2686
    %v2999 = vpack.c.b16 %v2691, %v2687
    %v3000 = vpack.c.b16 %v2692, %v2688
    %v3001 = vpack.c.b16 %v2697, %v2693
    %v3002 = vpack.c.b16 %v2698, %v2694
    %v3003 = vpack.c.b16 %v2699, %v2695
    %v3004 = vpack.c.b16 %v2700, %v2696
    %v3005 = vpack.c.b16 %v2705, %v2701
    %v3006 = vpack.c.b16 %v2706, %v2702
    %v3007 = vpack.c.b16 %v2707, %v2703
    %v3008 = vpack.c.b16 %v2708, %v2704
    %v3009 = vpack.c.b16 %v2713, %v2709
    %v3010 = vpack.c.b16 %v2714, %v2710
    %v3011 = vpack.c.b16 %v2715, %v2711
    %v3012 = vpack.c.b16 %v2716, %v2712
    %v3013 = vpack.c.b16 %v2721, %v2717
    %v3014 = vpack.c.b16 %v2722, %v2718
    %v3015 = vpack.c.b16 %v2723, %v2719
    %v3016 = vpack.c.b16 %v2724, %v2720
    %v3017 = vpack.c.b16 %v2729, %v2725
    %v3018 = vpack.c.b16 %v2730, %v2726
    %v3019 = vpack.c.b16 %v2731, %v2727
    %v3020 = vpack.c.b16 %v2732, %v2728
    %v3021 = vpack.c.b16 %v2737, %v2733
    %v3022 = vpack.c.b16 %v2738, %v2734
    %v3023 = vpack.c.b16 %v2739, %v2735
    %v3024 = vpack.c.b16 %v2740, %v2736
    %v3025 = vpack.c.b16 %v2745, %v2741
    %v3026 = vpack.c.b16 %v2746, %v2742
    %v3027 = vpack.c.b16 %v2747, %v2743
    %v3028 = vpack.c.b16 %v2748, %v2744
    %v3029 = vpack.c.b16 %v2753, %v2749
    %v3030 = vpack.c.b16 %v2754, %v2750
    %v3031 = vpack.c.b16 %v2755, %v2751
    %v3032 = vpack.c.b16 %v2756, %v2752
    %v3033 = vpack.c.b16 %v2761, %v2757
    %v3034 = vpack.c.b16 %v2762, %v2758
    %v3035 = vpack.c.b16 %v2763, %v2759
    %v3036 = vpack.c.b16 %v2764, %v2760
    %v3037 = vpack.c.b16 %v2769, %v2765
    %v3038 = vpack.c.b16 %v2770, %v2766
    %v3039 = vpack.c.b16 %v2771, %v2767
    %v3040 = vpack.c.b16 %v2772, %v2768
    %v3041 = vpack.c.b16 %v2777, %v2773
    %v3042 = vpack.c.b16 %v2778, %v2774
    %v3043 = vpack.c.b16 %v2779, %v2775
    %v3044 = vpack.c.b16 %v2780, %v2776
    %v3045 = vpack.c.b16 %v2785, %v2781
    %v3046 = vpack.c.b16 %v2786, %v2782
    %v3047 = vpack.c.b16 %v2787, %v2783
    %v3048 = vpack.c.b16 %v2788, %v2784
    %v3049 = vpack.c.b16 %v2793, %v2789
    %v3050 = vpack.c.b16 %v2794, %v2790
    %v3051 = vpack.c.b16 %v2795, %v2791
    %v3052 = vpack.c.b16 %v2796, %v2792
    %3309 = vmatprep.subr.bf16.mxu0 0
    %3310 = vmatpush1.bf16.msra.mxu0 %v1421
    %3311 = vmatprep.subr.bf16.mxu0 0
    %3312 = vmatpush1.bf16.msra.mxu0 %v1422
    %3313 = vmatprep.subr.bf16.mxu0 0
    %3314 = vmatpush1.bf16.msra.mxu0 %v1423
    %3315 = vmatprep.subr.bf16.mxu0 0
    %3316 = vmatpush1.bf16.msra.mxu0 %v1424
    %3317 = vmatprep.subr.bf16.mxu0 0
    %3318 = vmatpush1.bf16.msra.mxu0 %v1425
    %3319 = vmatprep.subr.bf16.mxu0 0
    %3320 = vmatpush1.bf16.msra.mxu0 %v1426
    %3321 = vmatprep.subr.bf16.mxu0 0
    %3322 = vmatpush1.bf16.msra.mxu0 %v1427
    %3323 = vmatprep.subr.bf16.mxu0 0
    %3324 = vmatpush1.bf16.msra.mxu0 %v1428
    %3325 = vmatprep.subr.bf16.mxu0 0
    %3326 = vmatpush1.bf16.msra.mxu0 %v1429
    %3327 = vmatprep.subr.bf16.mxu0 0
    %3328 = vmatpush1.bf16.msra.mxu0 %v1430
    %3329 = vmatprep.subr.bf16.mxu0 0
    %3330 = vmatpush1.bf16.msra.mxu0 %v1431
    %3331 = vmatprep.subr.bf16.mxu0 0
    %3332 = vmatpush1.bf16.msra.mxu0 %v1432
    %3333 = vmatprep.subr.bf16.mxu0 0
    %3334 = vmatpush1.bf16.msra.mxu0 %v1433
    %3335 = vmatprep.subr.bf16.mxu0 0
    %3336 = vmatpush1.bf16.msra.mxu0 %v1434
    %3337 = vmatprep.subr.bf16.mxu0 0
    %3338 = vmatpush1.bf16.msra.mxu0 %v1435
    %3339 = vmatprep.subr.bf16.mxu0 0
    %3340 = vmatpush1.bf16.msra.mxu0 %v1436
    %3341 = vmatprep.mubr.bf16.mxu0 %v2798
    %3342 = vmatmul.mubr.bf16.gmra.mrb[0].mxu0 %v2797
    %v3343 = vpop.f32.mrb[0].mxu0
    %v3344 = vadd.f32 %v1455, %v3343
    %v3345 = vpop.f32.mrb[0].mxu0
    %v3346 = vpop.f32.mrb[0].mxu0
    %v3347 = vadd.f32 %v1459, %v3346
    %v3348 = vpop.f32.mrb[0].mxu0
    %3349 = vmatprep.mubr.bf16.mxu0 %v2802
    %3350 = vmatmul.mubr.bf16.gmra.mrb[0].mxu0 %v2801
    %v3351 = vpop.f32.mrb[0].mxu0
    %v3352 = vadd.f32 %v1463, %v3351
    %v3353 = vpop.f32.mrb[0].mxu0
    %v3354 = vpop.f32.mrb[0].mxu0
    %v3355 = vadd.f32 %v1467, %v3354
    %v3356 = vpop.f32.mrb[0].mxu0
    %3357 = vmatprep.mubr.bf16.mxu0 %v2806
    %3358 = vmatmul.mubr.bf16.gmra.mrb[0].mxu0 %v2805
    %v3359 = vpop.f32.mrb[0].mxu0
    %v3360 = vadd.f32 %v1471, %v3359
    %v3361 = vpop.f32.mrb[0].mxu0
    %v3362 = vpop.f32.mrb[0].mxu0
    %v3363 = vadd.f32 %v1475, %v3362
    %v3364 = vpop.f32.mrb[0].mxu0
    %3365 = vmatprep.mubr.bf16.mxu0 %v2810
    %3366 = vmatmul.mubr.bf16.gmra.mrb[0].mxu0 %v2809
    %v3367 = vpop.f32.mrb[0].mxu0
    %v3368 = vadd.f32 %v1479, %v3367
    %v3369 = vpop.f32.mrb[0].mxu0
    %v3370 = vpop.f32.mrb[0].mxu0
    %v3371 = vadd.f32 %v1483, %v3370
    %v3372 = vpop.f32.mrb[0].mxu0
    %3373 = vmatprep.mubr.bf16.mxu0 %v2814
    %3374 = vmatmul.mubr.bf16.gmra.mrb[0].mxu0 %v2813
    %v3375 = vpop.f32.mrb[0].mxu0
    %v3376 = vadd.f32 %v1487, %v3375
    %v3377 = vpop.f32.mrb[0].mxu0
    %v3378 = vpop.f32.mrb[0].mxu0
    %v3379 = vadd.f32 %v1491, %v3378
    %v3380 = vpop.f32.mrb[0].mxu0
    %3381 = vmatprep.mubr.bf16.mxu0 %v2818
    %3382 = vmatmul.mubr.bf16.gmra.mrb[0].mxu0 %v2817
    %v3383 = vpop.f32.mrb[0].mxu0
    %v3384 = vadd.f32 %v1495, %v3383
    %v3385 = vpop.f32.mrb[0].mxu0
    %v3386 = vpop.f32.mrb[0].mxu0
    %v3387 = vadd.f32 %v1499, %v3386
    %v3388 = vpop.f32.mrb[0].mxu0
    %3389 = vmatprep.mubr.bf16.mxu0 %v2822
    %3390 = vmatmul.mubr.bf16.gmra.mrb[0].mxu0 %v2821
    %v3391 = vpop.f32.mrb[0].mxu0
    %v3392 = vadd.f32 %v1503, %v3391
    %v3393 = vpop.f32.mrb[0].mxu0
    %v3394 = vpop.f32.mrb[0].mxu0
    %v3395 = vadd.f32 %v1507, %v3394
    %v3396 = vpop.f32.mrb[0].mxu0
    %3397 = vmatprep.mubr.bf16.mxu0 %v2826
    %3398 = vmatmul.mubr.bf16.gmra.mrb[0].mxu0 %v2825
    %v3399 = vpop.f32.mrb[0].mxu0
    %v3400 = vadd.f32 %v1511, %v3399
    %v3401 = vpop.f32.mrb[0].mxu0
    %v3402 = vpop.f32.mrb[0].mxu0
    %v3403 = vadd.f32 %v1515, %v3402
    %v3404 = vpop.f32.mrb[0].mxu0
    %3405 = vmatprep.mubr.bf16.mxu0 %v2830
    %3406 = vmatmul.mubr.bf16.gmra.mrb[0].mxu0 %v2829
    %v3407 = vpop.f32.mrb[0].mxu0
    %v3408 = vadd.f32 %v1519, %v3407
    %v3409 = vpop.f32.mrb[0].mxu0
    %v3410 = vpop.f32.mrb[0].mxu0
    %v3411 = vadd.f32 %v1523, %v3410
    %v3412 = vpop.f32.mrb[0].mxu0
    %3413 = vmatprep.mubr.bf16.mxu0 %v2834
    %3414 = vmatmul.mubr.bf16.gmra.mrb[0].mxu0 %v2833
    %v3415 = vpop.f32.mrb[0].mxu0
    %v3416 = vadd.f32 %v1527, %v3415
    %v3417 = vpop.f32.mrb[0].mxu0
    %v3418 = vpop.f32.mrb[0].mxu0
    %v3419 = vadd.f32 %v1531, %v3418
    %v3420 = vpop.f32.mrb[0].mxu0
    %3421 = vmatprep.mubr.bf16.mxu0 %v2838
    %3422 = vmatmul.mubr.bf16.gmra.mrb[0].mxu0 %v2837
    %v3423 = vpop.f32.mrb[0].mxu0
    %v3424 = vadd.f32 %v1535, %v3423
    %v3425 = vpop.f32.mrb[0].mxu0
    %v3426 = vpop.f32.mrb[0].mxu0
    %v3427 = vadd.f32 %v1539, %v3426
    %v3428 = vpop.f32.mrb[0].mxu0
    %3429 = vmatprep.mubr.bf16.mxu0 %v2842
    %3430 = vmatmul.mubr.bf16.gmra.mrb[0].mxu0 %v2841
    %v3431 = vpop.f32.mrb[0].mxu0
    %v3432 = vadd.f32 %v1543, %v3431
    %v3433 = vpop.f32.mrb[0].mxu0
    %v3434 = vpop.f32.mrb[0].mxu0
    %v3435 = vadd.f32 %v1547, %v3434
    %v3436 = vpop.f32.mrb[0].mxu0
    %3437 = vmatprep.mubr.bf16.mxu0 %v2846
    %3438 = vmatmul.mubr.bf16.gmra.mrb[0].mxu0 %v2845
    %v3439 = vpop.f32.mrb[0].mxu0
    %v3440 = vadd.f32 %v1551, %v3439
    %v3441 = vpop.f32.mrb[0].mxu0
    %v3442 = vpop.f32.mrb[0].mxu0
    %v3443 = vadd.f32 %v1555, %v3442
    %v3444 = vpop.f32.mrb[0].mxu0
    %3445 = vmatprep.mubr.bf16.mxu0 %v2850
    %3446 = vmatmul.mubr.bf16.gmra.mrb[0].mxu0 %v2849
    %v3447 = vpop.f32.mrb[0].mxu0
    %v3448 = vadd.f32 %v1559, %v3447
    %v3449 = vpop.f32.mrb[0].mxu0
    %v3450 = vpop.f32.mrb[0].mxu0
    %v3451 = vadd.f32 %v1563, %v3450
    %v3452 = vpop.f32.mrb[0].mxu0
    %3453 = vmatprep.mubr.bf16.mxu0 %v2854
    %3454 = vmatmul.mubr.bf16.gmra.mrb[0].mxu0 %v2853
    %v3455 = vpop.f32.mrb[0].mxu0
    %v3456 = vadd.f32 %v1567, %v3455
    %v3457 = vpop.f32.mrb[0].mxu0
    %v3458 = vpop.f32.mrb[0].mxu0
    %v3459 = vadd.f32 %v1571, %v3458
    %v3460 = vpop.f32.mrb[0].mxu0
    %3461 = vmatprep.mubr.bf16.mxu0 %v2858
    %3462 = vmatmul.mubr.bf16.gmra.mrb[0].mxu0 %v2857
    %v3463 = vpop.f32.mrb[0].mxu0
    %v3464 = vadd.f32 %v1575, %v3463
    %v3465 = vpop.f32.mrb[0].mxu0
    %v3466 = vpop.f32.mrb[0].mxu0
    %v3467 = vadd.f32 %v1579, %v3466
    %v3468 = vpop.f32.mrb[0].mxu0
    %3469 = vmatprep.mubr.bf16.mxu0 %v2862
    %3470 = vmatmul.mubr.bf16.gmra.mrb[0].mxu0 %v2861
    %v3471 = vpop.f32.mrb[0].mxu0
    %v3472 = vadd.f32 %v1583, %v3471
    %v3473 = vpop.f32.mrb[0].mxu0
    %v3474 = vpop.f32.mrb[0].mxu0
    %v3475 = vadd.f32 %v1587, %v3474
    %v3476 = vpop.f32.mrb[0].mxu0
    %3477 = vmatprep.mubr.bf16.mxu0 %v2866
    %3478 = vmatmul.mubr.bf16.gmra.mrb[0].mxu0 %v2865
    %v3479 = vpop.f32.mrb[0].mxu0
    %v3480 = vadd.f32 %v1591, %v3479
    %v3481 = vpop.f32.mrb[0].mxu0
    %v3482 = vpop.f32.mrb[0].mxu0
    %v3483 = vadd.f32 %v1595, %v3482
    %v3484 = vpop.f32.mrb[0].mxu0
    %3485 = vmatprep.mubr.bf16.mxu0 %v2870
    %3486 = vmatmul.mubr.bf16.gmra.mrb[0].mxu0 %v2869
    %v3487 = vpop.f32.mrb[0].mxu0
    %v3488 = vadd.f32 %v1599, %v3487
    %v3489 = vpop.f32.mrb[0].mxu0
    %v3490 = vpop.f32.mrb[0].mxu0
    %v3491 = vadd.f32 %v1603, %v3490
    %v3492 = vpop.f32.mrb[0].mxu0
    %3493 = vmatprep.mubr.bf16.mxu0 %v2874
    %3494 = vmatmul.mubr.bf16.gmra.mrb[0].mxu0 %v2873
    %v3495 = vpop.f32.mrb[0].mxu0
    %v3496 = vadd.f32 %v1607, %v3495
    %v3497 = vpop.f32.mrb[0].mxu0
    %v3498 = vpop.f32.mrb[0].mxu0
    %v3499 = vadd.f32 %v1611, %v3498
    %v3500 = vpop.f32.mrb[0].mxu0
    %3501 = vmatprep.mubr.bf16.mxu0 %v2878
    %3502 = vmatmul.mubr.bf16.gmra.mrb[0].mxu0 %v2877
    %v3503 = vpop.f32.mrb[0].mxu0
    %v3504 = vadd.f32 %v1615, %v3503
    %v3505 = vpop.f32.mrb[0].mxu0
    %v3506 = vpop.f32.mrb[0].mxu0
    %v3507 = vadd.f32 %v1619, %v3506
    %v3508 = vpop.f32.mrb[0].mxu0
    %3509 = vmatprep.mubr.bf16.mxu0 %v2882
    %3510 = vmatmul.mubr.bf16.gmra.mrb[0].mxu0 %v2881
    %v3511 = vpop.f32.mrb[0].mxu0
    %v3512 = vadd.f32 %v1623, %v3511
    %v3513 = vpop.f32.mrb[0].mxu0
    %v3514 = vpop.f32.mrb[0].mxu0
    %v3515 = vadd.f32 %v1627, %v3514
    %v3516 = vpop.f32.mrb[0].mxu0
    %3517 = vmatprep.mubr.bf16.mxu0 %v2886
    %3518 = vmatmul.mubr.bf16.gmra.mrb[0].mxu0 %v2885
    %v3519 = vpop.f32.mrb[0].mxu0
    %v3520 = vadd.f32 %v1631, %v3519
    %v3521 = vpop.f32.mrb[0].mxu0
    %v3522 = vpop.f32.mrb[0].mxu0
    %v3523 = vadd.f32 %v1635, %v3522
    %v3524 = vpop.f32.mrb[0].mxu0
    %3525 = vmatprep.mubr.bf16.mxu0 %v2890
    %3526 = vmatmul.mubr.bf16.gmra.mrb[0].mxu0 %v2889
    %v3527 = vpop.f32.mrb[0].mxu0
    %v3528 = vadd.f32 %v1639, %v3527
    %v3529 = vpop.f32.mrb[0].mxu0
    %v3530 = vpop.f32.mrb[0].mxu0
    %v3531 = vadd.f32 %v1643, %v3530
    %v3532 = vpop.f32.mrb[0].mxu0
    %3533 = vmatprep.mubr.bf16.mxu0 %v2894
    %3534 = vmatmul.mubr.bf16.gmra.mrb[0].mxu0 %v2893
    %v3535 = vpop.f32.mrb[0].mxu0
    %v3536 = vadd.f32 %v1647, %v3535
    %v3537 = vpop.f32.mrb[0].mxu0
    %v3538 = vpop.f32.mrb[0].mxu0
    %v3539 = vadd.f32 %v1651, %v3538
    %v3540 = vpop.f32.mrb[0].mxu0
    %3541 = vmatprep.mubr.bf16.mxu0 %v2898
    %3542 = vmatmul.mubr.bf16.gmra.mrb[0].mxu0 %v2897
    %v3543 = vpop.f32.mrb[0].mxu0
    %v3544 = vadd.f32 %v1655, %v3543
    %v3545 = vpop.f32.mrb[0].mxu0
    %v3546 = vpop.f32.mrb[0].mxu0
    %v3547 = vadd.f32 %v1659, %v3546
    %v3548 = vpop.f32.mrb[0].mxu0
    %3549 = vmatprep.mubr.bf16.mxu0 %v2902
    %3550 = vmatmul.mubr.bf16.gmra.mrb[0].mxu0 %v2901
    %v3551 = vpop.f32.mrb[0].mxu0
    %v3552 = vadd.f32 %v1663, %v3551
    %v3553 = vpop.f32.mrb[0].mxu0
    %v3554 = vpop.f32.mrb[0].mxu0
    %v3555 = vadd.f32 %v1667, %v3554
    %v3556 = vpop.f32.mrb[0].mxu0
    %3557 = vmatprep.mubr.bf16.mxu0 %v2906
    %3558 = vmatmul.mubr.bf16.gmra.mrb[0].mxu0 %v2905
    %v3559 = vpop.f32.mrb[0].mxu0
    %v3560 = vadd.f32 %v1671, %v3559
    %v3561 = vpop.f32.mrb[0].mxu0
    %v3562 = vpop.f32.mrb[0].mxu0
    %v3563 = vadd.f32 %v1675, %v3562
    %v3564 = vpop.f32.mrb[0].mxu0
    %3565 = vmatprep.mubr.bf16.mxu0 %v2910
    %3566 = vmatmul.mubr.bf16.gmra.mrb[0].mxu0 %v2909
    %v3567 = vpop.f32.mrb[0].mxu0
    %v3568 = vadd.f32 %v1679, %v3567
    %v3569 = vpop.f32.mrb[0].mxu0
    %v3570 = vpop.f32.mrb[0].mxu0
    %v3571 = vadd.f32 %v1683, %v3570
    %v3572 = vpop.f32.mrb[0].mxu0
    %3573 = vmatprep.mubr.bf16.mxu0 %v2914
    %3574 = vmatmul.mubr.bf16.gmra.mrb[0].mxu0 %v2913
    %v3575 = vpop.f32.mrb[0].mxu0
    %v3576 = vadd.f32 %v1687, %v3575
    %v3577 = vpop.f32.mrb[0].mxu0
    %v3578 = vpop.f32.mrb[0].mxu0
    %v3579 = vadd.f32 %v1691, %v3578
    %v3580 = vpop.f32.mrb[0].mxu0
    %3581 = vmatprep.mubr.bf16.mxu0 %v2918
    %3582 = vmatmul.mubr.bf16.gmra.mrb[0].mxu0 %v2917
    %v3583 = vpop.f32.mrb[0].mxu0
    %v3584 = vadd.f32 %v1695, %v3583
    %v3585 = vpop.f32.mrb[0].mxu0
    %v3586 = vpop.f32.mrb[0].mxu0
    %v3587 = vadd.f32 %v1699, %v3586
    %v3588 = vpop.f32.mrb[0].mxu0
    %3589 = vmatprep.mubr.bf16.mxu0 %v2922
    %3590 = vmatmul.mubr.bf16.gmra.mrb[0].mxu0 %v2921
    %v3591 = vpop.f32.mrb[0].mxu0
    %v3592 = vadd.f32 %v1703, %v3591
    %v3593 = vpop.f32.mrb[0].mxu0
    %v3594 = vpop.f32.mrb[0].mxu0
    %v3595 = vadd.f32 %v1707, %v3594
    %v3596 = vpop.f32.mrb[0].mxu0
    %3597 = vmatprep.mubr.bf16.mxu0 %v2926
    %3598 = vmatmul.mubr.bf16.gmra.mrb[0].mxu0 %v2925
    %v3599 = vpop.f32.mrb[0].mxu0
    %v3600 = vadd.f32 %v1712, %v3599
    %v3601 = vpop.f32.mrb[0].mxu0
    %v3602 = vpop.f32.mrb[0].mxu0
    %v3603 = vadd.f32 %v1717, %v3602
    %v3604 = vpop.f32.mrb[0].mxu0
    %3605 = vmatprep.mubr.bf16.mxu0 %v2930
    %3606 = vmatmul.mubr.bf16.gmra.mrb[0].mxu0 %v2929
    %v3607 = vpop.f32.mrb[0].mxu0
    %v3608 = vadd.f32 %v1722, %v3607
    %v3609 = vpop.f32.mrb[0].mxu0
    %v3610 = vpop.f32.mrb[0].mxu0
    %v3611 = vadd.f32 %v1727, %v3610
    %v3612 = vpop.f32.mrb[0].mxu0
    %3613 = vmatprep.mubr.bf16.mxu0 %v2934
    %3614 = vmatmul.mubr.bf16.gmra.mrb[0].mxu0 %v2933
    %v3615 = vpop.f32.mrb[0].mxu0
    %v3616 = vadd.f32 %v1732, %v3615
    %v3617 = vpop.f32.mrb[0].mxu0
    %v3618 = vpop.f32.mrb[0].mxu0
    %v3619 = vadd.f32 %v1737, %v3618
    %v3620 = vpop.f32.mrb[0].mxu0
    %3621 = vmatprep.mubr.bf16.mxu0 %v2938
    %3622 = vmatmul.mubr.bf16.gmra.mrb[0].mxu0 %v2937
    %v3623 = vpop.f32.mrb[0].mxu0
    %v3624 = vadd.f32 %v1742, %v3623
    %v3625 = vpop.f32.mrb[0].mxu0
    %v3626 = vpop.f32.mrb[0].mxu0
    %v3627 = vadd.f32 %v1747, %v3626
    %v3628 = vpop.f32.mrb[0].mxu0
    %3629 = vmatprep.mubr.bf16.mxu0 %v2942
    %3630 = vmatmul.mubr.bf16.gmra.mrb[0].mxu0 %v2941
    %v3631 = vpop.f32.mrb[0].mxu0
    %v3632 = vadd.f32 %v1752, %v3631
    %v3633 = vpop.f32.mrb[0].mxu0
    %v3634 = vpop.f32.mrb[0].mxu0
    %v3635 = vadd.f32 %v1757, %v3634
    %v3636 = vpop.f32.mrb[0].mxu0
    %3637 = vmatprep.mubr.bf16.mxu0 %v2946
    %3638 = vmatmul.mubr.bf16.gmra.mrb[0].mxu0 %v2945
    %v3639 = vpop.f32.mrb[0].mxu0
    %v3640 = vadd.f32 %v1762, %v3639
    %v3641 = vpop.f32.mrb[0].mxu0
    %v3642 = vpop.f32.mrb[0].mxu0
    %v3643 = vadd.f32 %v1767, %v3642
    %v3644 = vpop.f32.mrb[0].mxu0
    %3645 = vmatprep.mubr.bf16.mxu0 %v2950
    %3646 = vmatmul.mubr.bf16.gmra.mrb[0].mxu0 %v2949
    %v3647 = vpop.f32.mrb[0].mxu0
    %v3648 = vadd.f32 %v1772, %v3647
    %v3649 = vpop.f32.mrb[0].mxu0
    %v3650 = vpop.f32.mrb[0].mxu0
    %v3651 = vadd.f32 %v1777, %v3650
    %v3652 = vpop.f32.mrb[0].mxu0
    %3653 = vmatprep.mubr.bf16.mxu0 %v2954
    %3654 = vmatmul.mubr.bf16.gmra.mrb[0].mxu0 %v2953
    %v3655 = vpop.f32.mrb[0].mxu0
    %v3656 = vadd.f32 %v1782, %v3655
    %v3657 = vpop.f32.mrb[0].mxu0
    %v3658 = vpop.f32.mrb[0].mxu0
    %v3659 = vadd.f32 %v1787, %v3658
    %v3660 = vpop.f32.mrb[0].mxu0
    %3661 = vmatprep.mubr.bf16.mxu0 %v2958
    %3662 = vmatmul.mubr.bf16.gmra.mrb[0].mxu0 %v2957
    %v3663 = vpop.f32.mrb[0].mxu0
    %v3664 = vadd.f32 %v1792, %v3663
    %v3665 = vpop.f32.mrb[0].mxu0
    %v3666 = vpop.f32.mrb[0].mxu0
    %v3667 = vadd.f32 %v1797, %v3666
    %v3668 = vpop.f32.mrb[0].mxu0
    %3669 = vmatprep.mubr.bf16.mxu0 %v2962
    %3670 = vmatmul.mubr.bf16.gmra.mrb[0].mxu0 %v2961
    %v3671 = vpop.f32.mrb[0].mxu0
    %v3672 = vadd.f32 %v1802, %v3671
    %v3673 = vpop.f32.mrb[0].mxu0
    %v3674 = vpop.f32.mrb[0].mxu0
    %v3675 = vadd.f32 %v1807, %v3674
    %v3676 = vpop.f32.mrb[0].mxu0
    %3677 = vmatprep.mubr.bf16.mxu0 %v2966
    %3678 = vmatmul.mubr.bf16.gmra.mrb[0].mxu0 %v2965
    %v3679 = vpop.f32.mrb[0].mxu0
    %v3680 = vadd.f32 %v1812, %v3679
    %v3681 = vpop.f32.mrb[0].mxu0
    %v3682 = vpop.f32.mrb[0].mxu0
    %v3683 = vadd.f32 %v1817, %v3682
    %v3684 = vpop.f32.mrb[0].mxu0
    %3685 = vmatprep.mubr.bf16.mxu0 %v2970
    %3686 = vmatmul.mubr.bf16.gmra.mrb[0].mxu0 %v2969
    %v3687 = vpop.f32.mrb[0].mxu0
    %v3688 = vadd.f32 %v1822, %v3687
    %v3689 = vpop.f32.mrb[0].mxu0
    %v3690 = vpop.f32.mrb[0].mxu0
    %v3691 = vadd.f32 %v1827, %v3690
    %v3692 = vpop.f32.mrb[0].mxu0
    %3693 = vmatprep.mubr.bf16.mxu0 %v2974
    %3694 = vmatmul.mubr.bf16.gmra.mrb[0].mxu0 %v2973
    %v3695 = vpop.f32.mrb[0].mxu0
    %v3696 = vadd.f32 %v1832, %v3695
    %v3697 = vpop.f32.mrb[0].mxu0
    %v3698 = vpop.f32.mrb[0].mxu0
    %v3699 = vadd.f32 %v1837, %v3698
    %v3700 = vpop.f32.mrb[0].mxu0
    %3701 = vmatprep.mubr.bf16.mxu0 %v2978
    %3702 = vmatmul.mubr.bf16.gmra.mrb[0].mxu0 %v2977
    %v3703 = vpop.f32.mrb[0].mxu0
    %v3704 = vadd.f32 %v1842, %v3703
    %v3705 = vpop.f32.mrb[0].mxu0
    %v3706 = vpop.f32.mrb[0].mxu0
    %v3707 = vadd.f32 %v1847, %v3706
    %v3708 = vpop.f32.mrb[0].mxu0
    %3709 = vmatprep.mubr.bf16.mxu0 %v2982
    %3710 = vmatmul.mubr.bf16.gmra.mrb[0].mxu0 %v2981
    %v3711 = vpop.f32.mrb[0].mxu0
    %v3712 = vadd.f32 %v1852, %v3711
    %v3713 = vpop.f32.mrb[0].mxu0
    %v3714 = vpop.f32.mrb[0].mxu0
    %v3715 = vadd.f32 %v1857, %v3714
    %v3716 = vpop.f32.mrb[0].mxu0
    %3717 = vmatprep.mubr.bf16.mxu0 %v2986
    %3718 = vmatmul.mubr.bf16.gmra.mrb[0].mxu0 %v2985
    %v3719 = vpop.f32.mrb[0].mxu0
    %v3720 = vadd.f32 %v1862, %v3719
    %v3721 = vpop.f32.mrb[0].mxu0
    %v3722 = vpop.f32.mrb[0].mxu0
    %v3723 = vadd.f32 %v1867, %v3722
    %v3724 = vpop.f32.mrb[0].mxu0
    %3725 = vmatprep.mubr.bf16.mxu0 %v2990
    %3726 = vmatmul.mubr.bf16.gmra.mrb[0].mxu0 %v2989
    %v3727 = vpop.f32.mrb[0].mxu0
    %v3728 = vadd.f32 %v1872, %v3727
    %v3729 = vpop.f32.mrb[0].mxu0
    %v3730 = vpop.f32.mrb[0].mxu0
    %v3731 = vadd.f32 %v1877, %v3730
    %v3732 = vpop.f32.mrb[0].mxu0
    %3733 = vmatprep.mubr.bf16.mxu0 %v2994
    %3734 = vmatmul.mubr.bf16.gmra.mrb[0].mxu0 %v2993
    %v3735 = vpop.f32.mrb[0].mxu0
    %v3736 = vadd.f32 %v1882, %v3735
    %v3737 = vpop.f32.mrb[0].mxu0
    %v3738 = vpop.f32.mrb[0].mxu0
    %v3739 = vadd.f32 %v1887, %v3738
    %v3740 = vpop.f32.mrb[0].mxu0
    %3741 = vmatprep.mubr.bf16.mxu0 %v2998
    %3742 = vmatmul.mubr.bf16.gmra.mrb[0].mxu0 %v2997
    %v3743 = vpop.f32.mrb[0].mxu0
    %v3744 = vadd.f32 %v1892, %v3743
    %v3745 = vpop.f32.mrb[0].mxu0
    %v3746 = vpop.f32.mrb[0].mxu0
    %v3747 = vadd.f32 %v1897, %v3746
    %v3748 = vpop.f32.mrb[0].mxu0
    %3749 = vmatprep.mubr.bf16.mxu0 %v3002
    %3750 = vmatmul.mubr.bf16.gmra.mrb[0].mxu0 %v3001
    %v3751 = vpop.f32.mrb[0].mxu0
    %v3752 = vadd.f32 %v1902, %v3751
    %v3753 = vpop.f32.mrb[0].mxu0
    %v3754 = vpop.f32.mrb[0].mxu0
    %v3755 = vadd.f32 %v1907, %v3754
    %v3756 = vpop.f32.mrb[0].mxu0
    %3757 = vmatprep.mubr.bf16.mxu0 %v3006
    %3758 = vmatmul.mubr.bf16.gmra.mrb[0].mxu0 %v3005
    %v3759 = vpop.f32.mrb[0].mxu0
    %v3760 = vadd.f32 %v1912, %v3759
    %v3761 = vpop.f32.mrb[0].mxu0
    %v3762 = vpop.f32.mrb[0].mxu0
    %v3763 = vadd.f32 %v1917, %v3762
    %v3764 = vpop.f32.mrb[0].mxu0
    %3765 = vmatprep.mubr.bf16.mxu0 %v3010
    %3766 = vmatmul.mubr.bf16.gmra.mrb[0].mxu0 %v3009
    %v3767 = vpop.f32.mrb[0].mxu0
    %v3768 = vadd.f32 %v1922, %v3767
    %v3769 = vpop.f32.mrb[0].mxu0
    %v3770 = vpop.f32.mrb[0].mxu0
    %v3771 = vadd.f32 %v1927, %v3770
    %v3772 = vpop.f32.mrb[0].mxu0
    %3773 = vmatprep.mubr.bf16.mxu0 %v3014
    %3774 = vmatmul.mubr.bf16.gmra.mrb[0].mxu0 %v3013
    %v3775 = vpop.f32.mrb[0].mxu0
    %v3776 = vadd.f32 %v1932, %v3775
    %v3777 = vpop.f32.mrb[0].mxu0
    %v3778 = vpop.f32.mrb[0].mxu0
    %v3779 = vadd.f32 %v1937, %v3778
    %v3780 = vpop.f32.mrb[0].mxu0
    %3781 = vmatprep.mubr.bf16.mxu0 %v3018
    %3782 = vmatmul.mubr.bf16.gmra.mrb[0].mxu0 %v3017
    %v3783 = vpop.f32.mrb[0].mxu0
    %v3784 = vadd.f32 %v1942, %v3783
    %v3785 = vpop.f32.mrb[0].mxu0
    %v3786 = vpop.f32.mrb[0].mxu0
    %v3787 = vadd.f32 %v1947, %v3786
    %v3788 = vpop.f32.mrb[0].mxu0
    %3789 = vmatprep.mubr.bf16.mxu0 %v3022
    %3790 = vmatmul.mubr.bf16.gmra.mrb[0].mxu0 %v3021
    %v3791 = vpop.f32.mrb[0].mxu0
    %v3792 = vadd.f32 %v1952, %v3791
    %v3793 = vpop.f32.mrb[0].mxu0
    %v3794 = vpop.f32.mrb[0].mxu0
    %v3795 = vadd.f32 %v1957, %v3794
    %v3796 = vpop.f32.mrb[0].mxu0
    %3797 = vmatprep.mubr.bf16.mxu0 %v3026
    %3798 = vmatmul.mubr.bf16.gmra.mrb[0].mxu0 %v3025
    %v3799 = vpop.f32.mrb[0].mxu0
    %v3800 = vadd.f32 %v1962, %v3799
    %v3801 = vpop.f32.mrb[0].mxu0
    %v3802 = vpop.f32.mrb[0].mxu0
    %v3803 = vadd.f32 %v1967, %v3802
    %v3804 = vpop.f32.mrb[0].mxu0
    %3805 = vmatprep.mubr.bf16.mxu0 %v3030
    %3806 = vmatmul.mubr.bf16.gmra.mrb[0].mxu0 %v3029
    %v3807 = vpop.f32.mrb[0].mxu0
    %v3808 = vadd.f32 %v1972, %v3807
    %v3809 = vpop.f32.mrb[0].mxu0
    %v3810 = vpop.f32.mrb[0].mxu0
    %v3811 = vadd.f32 %v1977, %v3810
    %v3812 = vpop.f32.mrb[0].mxu0
    %3813 = vmatprep.mubr.bf16.mxu0 %v3034
    %3814 = vmatmul.mubr.bf16.gmra.mrb[0].mxu0 %v3033
    %v3815 = vpop.f32.mrb[0].mxu0
    %v3816 = vadd.f32 %v1982, %v3815
    %v3817 = vpop.f32.mrb[0].mxu0
    %v3818 = vpop.f32.mrb[0].mxu0
    %v3819 = vadd.f32 %v1987, %v3818
    %v3820 = vpop.f32.mrb[0].mxu0
    %3821 = vmatprep.mubr.bf16.mxu0 %v3038
    %3822 = vmatmul.mubr.bf16.gmra.mrb[0].mxu0 %v3037
    %v3823 = vpop.f32.mrb[0].mxu0
    %v3824 = vadd.f32 %v1992, %v3823
    %v3825 = vpop.f32.mrb[0].mxu0
    %v3826 = vpop.f32.mrb[0].mxu0
    %v3827 = vadd.f32 %v1997, %v3826
    %v3828 = vpop.f32.mrb[0].mxu0
    %3829 = vmatprep.mubr.bf16.mxu0 %v3042
    %3830 = vmatmul.mubr.bf16.gmra.mrb[0].mxu0 %v3041
    %v3831 = vpop.f32.mrb[0].mxu0
    %v3832 = vadd.f32 %v2002, %v3831
    %v3833 = vpop.f32.mrb[0].mxu0
    %v3834 = vpop.f32.mrb[0].mxu0
    %v3835 = vadd.f32 %v2007, %v3834
    %v3836 = vpop.f32.mrb[0].mxu0
    %3837 = vmatprep.mubr.bf16.mxu0 %v3046
    %3838 = vmatmul.mubr.bf16.gmra.mrb[0].mxu0 %v3045
    %v3839 = vpop.f32.mrb[0].mxu0
    %v3840 = vadd.f32 %v2012, %v3839
    %v3841 = vpop.f32.mrb[0].mxu0
    %v3842 = vpop.f32.mrb[0].mxu0
    %v3843 = vadd.f32 %v2017, %v3842
    %v3844 = vpop.f32.mrb[0].mxu0
    %3845 = vmatprep.mubr.bf16.mxu0 %v3050
    %3846 = vmatmul.mubr.bf16.gmra.mrb[0].mxu0 %v3049
    %v3847 = vpop.f32.mrb[0].mxu0
    %v3848 = vadd.f32 %v2022, %v3847
    %v3849 = vpop.f32.mrb[0].mxu0
    %v3850 = vpop.f32.mrb[0].mxu0
    %v3851 = vadd.f32 %v2027, %v3850
    %v3852 = vpop.f32.mrb[0].mxu0
    %3853 = vdwg.mxu0
    %3854 = vmatprep.subr.bf16.mxu0 0
    %3855 = vmatpush1.bf16.msra.mxu0 %v1437
    %3856 = vmatprep.subr.bf16.mxu0 0
    %3857 = vmatpush1.bf16.msra.mxu0 %v1438
    %3858 = vmatprep.subr.bf16.mxu0 0
    %3859 = vmatpush1.bf16.msra.mxu0 %v1439
    %3860 = vmatprep.subr.bf16.mxu0 0
    %3861 = vmatpush1.bf16.msra.mxu0 %v1440
    %3862 = vmatprep.subr.bf16.mxu0 0
    %3863 = vmatpush1.bf16.msra.mxu0 %v1441
    %3864 = vmatprep.subr.bf16.mxu0 0
    %3865 = vmatpush1.bf16.msra.mxu0 %v1442
    %3866 = vmatprep.subr.bf16.mxu0 0
    %3867 = vmatpush1.bf16.msra.mxu0 %v1443
    %3868 = vmatprep.subr.bf16.mxu0 0
    %3869 = vmatpush1.bf16.msra.mxu0 %v1444
    %3870 = vmatprep.subr.bf16.mxu0 0
    %3871 = vmatpush1.bf16.msra.mxu0 %v1445
    %3872 = vmatprep.subr.bf16.mxu0 0
    %3873 = vmatpush1.bf16.msra.mxu0 %v1446
    %3874 = vmatprep.subr.bf16.mxu0 0
    %3875 = vmatpush1.bf16.msra.mxu0 %v1447
    %3876 = vmatprep.subr.bf16.mxu0 0
    %3877 = vmatpush1.bf16.msra.mxu0 %v1448
    %3878 = vmatprep.subr.bf16.mxu0 0
    %3879 = vmatpush1.bf16.msra.mxu0 %v1449
    %3880 = vmatprep.subr.bf16.mxu0 0
    %3881 = vmatpush1.bf16.msra.mxu0 %v1450
    %3882 = vmatprep.subr.bf16.mxu0 0
    %3883 = vmatpush1.bf16.msra.mxu0 %v1451
    %3884 = vmatprep.subr.bf16.mxu0 0
    %3885 = vmatpush1.bf16.msra.mxu0 %v1452
    %3886 = vmatprep.mubr.bf16.mxu0 %v2800
    %3887 = vmatmul.mubr.bf16.gmra.mrb[0].mxu0 %v2799
    %v3888 = vpop.f32.mrb[0].mxu0
    %v3889 = vadd.f32 %v3344, %v3888
    %v3890 = vpop.f32.mrb[0].mxu0
    %v3891 = vpop.f32.mrb[0].mxu0
    %v3892 = vadd.f32 %v3347, %v3891
    %v3893 = vpop.f32.mrb[0].mxu0
    %3894 = vmatprep.mubr.bf16.mxu0 %v2804
    %3895 = vmatmul.mubr.bf16.gmra.mrb[0].mxu0 %v2803
    %v3896 = vpop.f32.mrb[0].mxu0
    %v3897 = vadd.f32 %v3352, %v3896
    %v3898 = vpop.f32.mrb[0].mxu0
    %v3899 = vpop.f32.mrb[0].mxu0
    %v3900 = vadd.f32 %v3355, %v3899
    %v3901 = vpop.f32.mrb[0].mxu0
    %3902 = vmatprep.mubr.bf16.mxu0 %v2808
    %3903 = vmatmul.mubr.bf16.gmra.mrb[0].mxu0 %v2807
    %v3904 = vpop.f32.mrb[0].mxu0
    %v3905 = vadd.f32 %v3360, %v3904
    %v3906 = vpop.f32.mrb[0].mxu0
    %v3907 = vpop.f32.mrb[0].mxu0
    %v3908 = vadd.f32 %v3363, %v3907
    %v3909 = vpop.f32.mrb[0].mxu0
    %3910 = vmatprep.mubr.bf16.mxu0 %v2812
    %3911 = vmatmul.mubr.bf16.gmra.mrb[0].mxu0 %v2811
    %v3912 = vpop.f32.mrb[0].mxu0
    %v3913 = vadd.f32 %v3368, %v3912
    %v3914 = vpop.f32.mrb[0].mxu0
    %v3915 = vpop.f32.mrb[0].mxu0
    %v3916 = vadd.f32 %v3371, %v3915
    %v3917 = vpop.f32.mrb[0].mxu0
    %3918 = vmatprep.mubr.bf16.mxu0 %v2816
    %3919 = vmatmul.mubr.bf16.gmra.mrb[0].mxu0 %v2815
    %v3920 = vpop.f32.mrb[0].mxu0
    %v3921 = vadd.f32 %v3376, %v3920
    %v3922 = vpop.f32.mrb[0].mxu0
    %v3923 = vpop.f32.mrb[0].mxu0
    %v3924 = vadd.f32 %v3379, %v3923
    %v3925 = vpop.f32.mrb[0].mxu0
    %3926 = vmatprep.mubr.bf16.mxu0 %v2820
    %3927 = vmatmul.mubr.bf16.gmra.mrb[0].mxu0 %v2819
    %v3928 = vpop.f32.mrb[0].mxu0
    %v3929 = vadd.f32 %v3384, %v3928
    %v3930 = vpop.f32.mrb[0].mxu0
    %v3931 = vpop.f32.mrb[0].mxu0
    %v3932 = vadd.f32 %v3387, %v3931
    %v3933 = vpop.f32.mrb[0].mxu0
    %3934 = vmatprep.mubr.bf16.mxu0 %v2824
    %3935 = vmatmul.mubr.bf16.gmra.mrb[0].mxu0 %v2823
    %v3936 = vpop.f32.mrb[0].mxu0
    %v3937 = vadd.f32 %v3392, %v3936
    %v3938 = vpop.f32.mrb[0].mxu0
    %v3939 = vpop.f32.mrb[0].mxu0
    %v3940 = vadd.f32 %v3395, %v3939
    %v3941 = vpop.f32.mrb[0].mxu0
    %3942 = vmatprep.mubr.bf16.mxu0 %v2828
    %3943 = vmatmul.mubr.bf16.gmra.mrb[0].mxu0 %v2827
    %v3944 = vpop.f32.mrb[0].mxu0
    %v3945 = vadd.f32 %v3400, %v3944
    %v3946 = vpop.f32.mrb[0].mxu0
    %v3947 = vpop.f32.mrb[0].mxu0
    %v3948 = vadd.f32 %v3403, %v3947
    %v3949 = vpop.f32.mrb[0].mxu0
    %3950 = vmatprep.mubr.bf16.mxu0 %v2832
    %3951 = vmatmul.mubr.bf16.gmra.mrb[0].mxu0 %v2831
    %v3952 = vpop.f32.mrb[0].mxu0
    %v3953 = vadd.f32 %v3408, %v3952
    %v3954 = vpop.f32.mrb[0].mxu0
    %v3955 = vpop.f32.mrb[0].mxu0
    %v3956 = vadd.f32 %v3411, %v3955
    %v3957 = vpop.f32.mrb[0].mxu0
    %3958 = vmatprep.mubr.bf16.mxu0 %v2836
    %3959 = vmatmul.mubr.bf16.gmra.mrb[0].mxu0 %v2835
    %v3960 = vpop.f32.mrb[0].mxu0
    %v3961 = vadd.f32 %v3416, %v3960
    %v3962 = vpop.f32.mrb[0].mxu0
    %v3963 = vpop.f32.mrb[0].mxu0
    %v3964 = vadd.f32 %v3419, %v3963
    %v3965 = vpop.f32.mrb[0].mxu0
    %3966 = vmatprep.mubr.bf16.mxu0 %v2840
    %3967 = vmatmul.mubr.bf16.gmra.mrb[0].mxu0 %v2839
    %v3968 = vpop.f32.mrb[0].mxu0
    %v3969 = vadd.f32 %v3424, %v3968
    %v3970 = vpop.f32.mrb[0].mxu0
    %v3971 = vpop.f32.mrb[0].mxu0
    %v3972 = vadd.f32 %v3427, %v3971
    %v3973 = vpop.f32.mrb[0].mxu0
    %3974 = vmatprep.mubr.bf16.mxu0 %v2844
    %3975 = vmatmul.mubr.bf16.gmra.mrb[0].mxu0 %v2843
    %v3976 = vpop.f32.mrb[0].mxu0
    %v3977 = vadd.f32 %v3432, %v3976
    %v3978 = vpop.f32.mrb[0].mxu0
    %v3979 = vpop.f32.mrb[0].mxu0
    %v3980 = vadd.f32 %v3435, %v3979
    %v3981 = vpop.f32.mrb[0].mxu0
    %3982 = vmatprep.mubr.bf16.mxu0 %v2848
    %3983 = vmatmul.mubr.bf16.gmra.mrb[0].mxu0 %v2847
    %v3984 = vpop.f32.mrb[0].mxu0
    %v3985 = vadd.f32 %v3440, %v3984
    %v3986 = vpop.f32.mrb[0].mxu0
    %v3987 = vpop.f32.mrb[0].mxu0
    %v3988 = vadd.f32 %v3443, %v3987
    %v3989 = vpop.f32.mrb[0].mxu0
    %3990 = vmatprep.mubr.bf16.mxu0 %v2852
    %3991 = vmatmul.mubr.bf16.gmra.mrb[0].mxu0 %v2851
    %v3992 = vpop.f32.mrb[0].mxu0
    %v3993 = vadd.f32 %v3448, %v3992
    %v3994 = vpop.f32.mrb[0].mxu0
    %v3995 = vpop.f32.mrb[0].mxu0
    %v3996 = vadd.f32 %v3451, %v3995
    %v3997 = vpop.f32.mrb[0].mxu0
    %3998 = vmatprep.mubr.bf16.mxu0 %v2856
    %3999 = vmatmul.mubr.bf16.gmra.mrb[0].mxu0 %v2855
    %v4000 = vpop.f32.mrb[0].mxu0
    %v4001 = vadd.f32 %v3456, %v4000
    %v4002 = vpop.f32.mrb[0].mxu0
    %v4003 = vpop.f32.mrb[0].mxu0
    %v4004 = vadd.f32 %v3459, %v4003
    %v4005 = vpop.f32.mrb[0].mxu0
    %4006 = vmatprep.mubr.bf16.mxu0 %v2860
    %4007 = vmatmul.mubr.bf16.gmra.mrb[0].mxu0 %v2859
    %v4008 = vpop.f32.mrb[0].mxu0
    %v4009 = vadd.f32 %v3464, %v4008
    %v4010 = vpop.f32.mrb[0].mxu0
    %v4011 = vpop.f32.mrb[0].mxu0
    %v4012 = vadd.f32 %v3467, %v4011
    %v4013 = vpop.f32.mrb[0].mxu0
    %4014 = vmatprep.mubr.bf16.mxu0 %v2864
    %4015 = vmatmul.mubr.bf16.gmra.mrb[0].mxu0 %v2863
    %v4016 = vpop.f32.mrb[0].mxu0
    %v4017 = vadd.f32 %v3472, %v4016
    %v4018 = vpop.f32.mrb[0].mxu0
    %v4019 = vpop.f32.mrb[0].mxu0
    %v4020 = vadd.f32 %v3475, %v4019
    %v4021 = vpop.f32.mrb[0].mxu0
    %4022 = vmatprep.mubr.bf16.mxu0 %v2868
    %4023 = vmatmul.mubr.bf16.gmra.mrb[0].mxu0 %v2867
    %v4024 = vpop.f32.mrb[0].mxu0
    %v4025 = vadd.f32 %v3480, %v4024
    %v4026 = vpop.f32.mrb[0].mxu0
    %v4027 = vpop.f32.mrb[0].mxu0
    %v4028 = vadd.f32 %v3483, %v4027
    %v4029 = vpop.f32.mrb[0].mxu0
    %4030 = vmatprep.mubr.bf16.mxu0 %v2872
    %4031 = vmatmul.mubr.bf16.gmra.mrb[0].mxu0 %v2871
    %v4032 = vpop.f32.mrb[0].mxu0
    %v4033 = vadd.f32 %v3488, %v4032
    %v4034 = vpop.f32.mrb[0].mxu0
    %v4035 = vpop.f32.mrb[0].mxu0
    %v4036 = vadd.f32 %v3491, %v4035
    %v4037 = vpop.f32.mrb[0].mxu0
    %4038 = vmatprep.mubr.bf16.mxu0 %v2876
    %4039 = vmatmul.mubr.bf16.gmra.mrb[0].mxu0 %v2875
    %v4040 = vpop.f32.mrb[0].mxu0
    %v4041 = vadd.f32 %v3496, %v4040
    %v4042 = vpop.f32.mrb[0].mxu0
    %v4043 = vpop.f32.mrb[0].mxu0
    %v4044 = vadd.f32 %v3499, %v4043
    %v4045 = vpop.f32.mrb[0].mxu0
    %4046 = vmatprep.mubr.bf16.mxu0 %v2880
    %4047 = vmatmul.mubr.bf16.gmra.mrb[0].mxu0 %v2879
    %v4048 = vpop.f32.mrb[0].mxu0
    %v4049 = vadd.f32 %v3504, %v4048
    %v4050 = vpop.f32.mrb[0].mxu0
    %v4051 = vpop.f32.mrb[0].mxu0
    %v4052 = vadd.f32 %v3507, %v4051
    %v4053 = vpop.f32.mrb[0].mxu0
    %4054 = vmatprep.mubr.bf16.mxu0 %v2884
    %4055 = vmatmul.mubr.bf16.gmra.mrb[0].mxu0 %v2883
    %v4056 = vpop.f32.mrb[0].mxu0
    %v4057 = vadd.f32 %v3512, %v4056
    %v4058 = vpop.f32.mrb[0].mxu0
    %v4059 = vpop.f32.mrb[0].mxu0
    %v4060 = vadd.f32 %v3515, %v4059
    %v4061 = vpop.f32.mrb[0].mxu0
    %4062 = vmatprep.mubr.bf16.mxu0 %v2888
    %4063 = vmatmul.mubr.bf16.gmra.mrb[0].mxu0 %v2887
    %v4064 = vpop.f32.mrb[0].mxu0
    %v4065 = vadd.f32 %v3520, %v4064
    %v4066 = vpop.f32.mrb[0].mxu0
    %v4067 = vpop.f32.mrb[0].mxu0
    %v4068 = vadd.f32 %v3523, %v4067
    %v4069 = vpop.f32.mrb[0].mxu0
    %4070 = vmatprep.mubr.bf16.mxu0 %v2892
    %4071 = vmatmul.mubr.bf16.gmra.mrb[0].mxu0 %v2891
    %v4072 = vpop.f32.mrb[0].mxu0
    %v4073 = vadd.f32 %v3528, %v4072
    %v4074 = vpop.f32.mrb[0].mxu0
    %v4075 = vpop.f32.mrb[0].mxu0
    %v4076 = vadd.f32 %v3531, %v4075
    %v4077 = vpop.f32.mrb[0].mxu0
    %4078 = vmatprep.mubr.bf16.mxu0 %v2896
    %4079 = vmatmul.mubr.bf16.gmra.mrb[0].mxu0 %v2895
    %v4080 = vpop.f32.mrb[0].mxu0
    %v4081 = vadd.f32 %v3536, %v4080
    %v4082 = vpop.f32.mrb[0].mxu0
    %v4083 = vpop.f32.mrb[0].mxu0
    %v4084 = vadd.f32 %v3539, %v4083
    %v4085 = vpop.f32.mrb[0].mxu0
    %4086 = vmatprep.mubr.bf16.mxu0 %v2900
    %4087 = vmatmul.mubr.bf16.gmra.mrb[0].mxu0 %v2899
    %v4088 = vpop.f32.mrb[0].mxu0
    %v4089 = vadd.f32 %v3544, %v4088
    %v4090 = vpop.f32.mrb[0].mxu0
    %v4091 = vpop.f32.mrb[0].mxu0
    %v4092 = vadd.f32 %v3547, %v4091
    %v4093 = vpop.f32.mrb[0].mxu0
    %4094 = vmatprep.mubr.bf16.mxu0 %v2904
    %4095 = vmatmul.mubr.bf16.gmra.mrb[0].mxu0 %v2903
    %v4096 = vpop.f32.mrb[0].mxu0
    %v4097 = vadd.f32 %v3552, %v4096
    %v4098 = vpop.f32.mrb[0].mxu0
    %v4099 = vpop.f32.mrb[0].mxu0
    %v4100 = vadd.f32 %v3555, %v4099
    %v4101 = vpop.f32.mrb[0].mxu0
    %4102 = vmatprep.mubr.bf16.mxu0 %v2908
    %4103 = vmatmul.mubr.bf16.gmra.mrb[0].mxu0 %v2907
    %v4104 = vpop.f32.mrb[0].mxu0
    %v4105 = vadd.f32 %v3560, %v4104
    %v4106 = vpop.f32.mrb[0].mxu0
    %v4107 = vpop.f32.mrb[0].mxu0
    %v4108 = vadd.f32 %v3563, %v4107
    %v4109 = vpop.f32.mrb[0].mxu0
    %4110 = vmatprep.mubr.bf16.mxu0 %v2912
    %4111 = vmatmul.mubr.bf16.gmra.mrb[0].mxu0 %v2911
    %v4112 = vpop.f32.mrb[0].mxu0
    %v4113 = vadd.f32 %v3568, %v4112
    %v4114 = vpop.f32.mrb[0].mxu0
    %v4115 = vpop.f32.mrb[0].mxu0
    %v4116 = vadd.f32 %v3571, %v4115
    %v4117 = vpop.f32.mrb[0].mxu0
    %4118 = vmatprep.mubr.bf16.mxu0 %v2916
    %4119 = vmatmul.mubr.bf16.gmra.mrb[0].mxu0 %v2915
    %v4120 = vpop.f32.mrb[0].mxu0
    %v4121 = vadd.f32 %v3576, %v4120
    %v4122 = vpop.f32.mrb[0].mxu0
    %v4123 = vpop.f32.mrb[0].mxu0
    %v4124 = vadd.f32 %v3579, %v4123
    %v4125 = vpop.f32.mrb[0].mxu0
    %4126 = vmatprep.mubr.bf16.mxu0 %v2920
    %4127 = vmatmul.mubr.bf16.gmra.mrb[0].mxu0 %v2919
    %v4128 = vpop.f32.mrb[0].mxu0
    %v4129 = vadd.f32 %v3584, %v4128
    %v4130 = vpop.f32.mrb[0].mxu0
    %v4131 = vpop.f32.mrb[0].mxu0
    %v4132 = vadd.f32 %v3587, %v4131
    %v4133 = vpop.f32.mrb[0].mxu0
    %4134 = vmatprep.mubr.bf16.mxu0 %v2924
    %4135 = vmatmul.mubr.bf16.gmra.mrb[0].mxu0 %v2923
    %v4136 = vpop.f32.mrb[0].mxu0
    %v4137 = vadd.f32 %v3592, %v4136
    %v4138 = vpop.f32.mrb[0].mxu0
    %v4139 = vpop.f32.mrb[0].mxu0
    %v4140 = vadd.f32 %v3595, %v4139
    %v4141 = vpop.f32.mrb[0].mxu0
    %4142 = vmatprep.mubr.bf16.mxu0 %v2928
    %4143 = vmatmul.mubr.bf16.gmra.mrb[0].mxu0 %v2927
    %v4144 = vpop.f32.mrb[0].mxu0
    %v4145 = vadd.f32 %v3600, %v4144
    %v4146 = vpop.f32.mrb[0].mxu0
    %v4147 = vpop.f32.mrb[0].mxu0
    %v4148 = vadd.f32 %v3603, %v4147
    %v4149 = vpop.f32.mrb[0].mxu0
    %4150 = vmatprep.mubr.bf16.mxu0 %v2932
    %4151 = vmatmul.mubr.bf16.gmra.mrb[0].mxu0 %v2931
    %v4152 = vpop.f32.mrb[0].mxu0
    %v4153 = vadd.f32 %v3608, %v4152
    %v4154 = vpop.f32.mrb[0].mxu0
    %v4155 = vpop.f32.mrb[0].mxu0
    %v4156 = vadd.f32 %v3611, %v4155
    %v4157 = vpop.f32.mrb[0].mxu0
    %4158 = vmatprep.mubr.bf16.mxu0 %v2936
    %4159 = vmatmul.mubr.bf16.gmra.mrb[0].mxu0 %v2935
    %v4160 = vpop.f32.mrb[0].mxu0
    %v4161 = vadd.f32 %v3616, %v4160
    %v4162 = vpop.f32.mrb[0].mxu0
    %v4163 = vpop.f32.mrb[0].mxu0
    %v4164 = vadd.f32 %v3619, %v4163
    %v4165 = vpop.f32.mrb[0].mxu0
    %4166 = vmatprep.mubr.bf16.mxu0 %v2940
    %4167 = vmatmul.mubr.bf16.gmra.mrb[0].mxu0 %v2939
    %v4168 = vpop.f32.mrb[0].mxu0
    %v4169 = vadd.f32 %v3624, %v4168
    %v4170 = vpop.f32.mrb[0].mxu0
    %v4171 = vpop.f32.mrb[0].mxu0
    %v4172 = vadd.f32 %v3627, %v4171
    %v4173 = vpop.f32.mrb[0].mxu0
    %4174 = vmatprep.mubr.bf16.mxu0 %v2944
    %4175 = vmatmul.mubr.bf16.gmra.mrb[0].mxu0 %v2943
    %v4176 = vpop.f32.mrb[0].mxu0
    %v4177 = vadd.f32 %v3632, %v4176
    %v4178 = vpop.f32.mrb[0].mxu0
    %v4179 = vpop.f32.mrb[0].mxu0
    %v4180 = vadd.f32 %v3635, %v4179
    %v4181 = vpop.f32.mrb[0].mxu0
    %4182 = vmatprep.mubr.bf16.mxu0 %v2948
    %4183 = vmatmul.mubr.bf16.gmra.mrb[0].mxu0 %v2947
    %v4184 = vpop.f32.mrb[0].mxu0
    %v4185 = vadd.f32 %v3640, %v4184
    %v4186 = vpop.f32.mrb[0].mxu0
    %v4187 = vpop.f32.mrb[0].mxu0
    %v4188 = vadd.f32 %v3643, %v4187
    %v4189 = vpop.f32.mrb[0].mxu0
    %4190 = vmatprep.mubr.bf16.mxu0 %v2952
    %4191 = vmatmul.mubr.bf16.gmra.mrb[0].mxu0 %v2951
    %v4192 = vpop.f32.mrb[0].mxu0
    %v4193 = vadd.f32 %v3648, %v4192
    %v4194 = vpop.f32.mrb[0].mxu0
    %v4195 = vpop.f32.mrb[0].mxu0
    %v4196 = vadd.f32 %v3651, %v4195
    %v4197 = vpop.f32.mrb[0].mxu0
    %4198 = vmatprep.mubr.bf16.mxu0 %v2956
    %4199 = vmatmul.mubr.bf16.gmra.mrb[0].mxu0 %v2955
    %v4200 = vpop.f32.mrb[0].mxu0
    %v4201 = vadd.f32 %v3656, %v4200
    %v4202 = vpop.f32.mrb[0].mxu0
    %v4203 = vpop.f32.mrb[0].mxu0
    %v4204 = vadd.f32 %v3659, %v4203
    %v4205 = vpop.f32.mrb[0].mxu0
    %4206 = vmatprep.mubr.bf16.mxu0 %v2960
    %4207 = vmatmul.mubr.bf16.gmra.mrb[0].mxu0 %v2959
    %v4208 = vpop.f32.mrb[0].mxu0
    %v4209 = vadd.f32 %v3664, %v4208
    %v4210 = vpop.f32.mrb[0].mxu0
    %v4211 = vpop.f32.mrb[0].mxu0
    %v4212 = vadd.f32 %v3667, %v4211
    %v4213 = vpop.f32.mrb[0].mxu0
    %4214 = vmatprep.mubr.bf16.mxu0 %v2964
    %4215 = vmatmul.mubr.bf16.gmra.mrb[0].mxu0 %v2963
    %v4216 = vpop.f32.mrb[0].mxu0
    %v4217 = vadd.f32 %v3672, %v4216
    %v4218 = vpop.f32.mrb[0].mxu0
    %v4219 = vpop.f32.mrb[0].mxu0
    %v4220 = vadd.f32 %v3675, %v4219
    %v4221 = vpop.f32.mrb[0].mxu0
    %4222 = vmatprep.mubr.bf16.mxu0 %v2968
    %4223 = vmatmul.mubr.bf16.gmra.mrb[0].mxu0 %v2967
    %v4224 = vpop.f32.mrb[0].mxu0
    %v4225 = vadd.f32 %v3680, %v4224
    %v4226 = vpop.f32.mrb[0].mxu0
    %v4227 = vpop.f32.mrb[0].mxu0
    %v4228 = vadd.f32 %v3683, %v4227
    %v4229 = vpop.f32.mrb[0].mxu0
    %4230 = vmatprep.mubr.bf16.mxu0 %v2972
    %4231 = vmatmul.mubr.bf16.gmra.mrb[0].mxu0 %v2971
    %v4232 = vpop.f32.mrb[0].mxu0
    %v4233 = vadd.f32 %v3688, %v4232
    %v4234 = vpop.f32.mrb[0].mxu0
    %v4235 = vpop.f32.mrb[0].mxu0
    %v4236 = vadd.f32 %v3691, %v4235
    %v4237 = vpop.f32.mrb[0].mxu0
    %4238 = vmatprep.mubr.bf16.mxu0 %v2976
    %4239 = vmatmul.mubr.bf16.gmra.mrb[0].mxu0 %v2975
    %v4240 = vpop.f32.mrb[0].mxu0
    %v4241 = vadd.f32 %v3696, %v4240
    %v4242 = vpop.f32.mrb[0].mxu0
    %v4243 = vpop.f32.mrb[0].mxu0
    %v4244 = vadd.f32 %v3699, %v4243
    %v4245 = vpop.f32.mrb[0].mxu0
    %4246 = vmatprep.mubr.bf16.mxu0 %v2980
    %4247 = vmatmul.mubr.bf16.gmra.mrb[0].mxu0 %v2979
    %v4248 = vpop.f32.mrb[0].mxu0
    %v4249 = vadd.f32 %v3704, %v4248
    %v4250 = vpop.f32.mrb[0].mxu0
    %v4251 = vpop.f32.mrb[0].mxu0
    %v4252 = vadd.f32 %v3707, %v4251
    %v4253 = vpop.f32.mrb[0].mxu0
    %4254 = vmatprep.mubr.bf16.mxu0 %v2984
    %4255 = vmatmul.mubr.bf16.gmra.mrb[0].mxu0 %v2983
    %v4256 = vpop.f32.mrb[0].mxu0
    %v4257 = vadd.f32 %v3712, %v4256
    %v4258 = vpop.f32.mrb[0].mxu0
    %v4259 = vpop.f32.mrb[0].mxu0
    %v4260 = vadd.f32 %v3715, %v4259
    %v4261 = vpop.f32.mrb[0].mxu0
    %4262 = vmatprep.mubr.bf16.mxu0 %v2988
    %4263 = vmatmul.mubr.bf16.gmra.mrb[0].mxu0 %v2987
    %v4264 = vpop.f32.mrb[0].mxu0
    %v4265 = vadd.f32 %v3720, %v4264
    %v4266 = vpop.f32.mrb[0].mxu0
    %v4267 = vpop.f32.mrb[0].mxu0
    %v4268 = vadd.f32 %v3723, %v4267
    %v4269 = vpop.f32.mrb[0].mxu0
    %4270 = vmatprep.mubr.bf16.mxu0 %v2992
    %4271 = vmatmul.mubr.bf16.gmra.mrb[0].mxu0 %v2991
    %v4272 = vpop.f32.mrb[0].mxu0
    %v4273 = vadd.f32 %v3728, %v4272
    %v4274 = vpop.f32.mrb[0].mxu0
    %v4275 = vpop.f32.mrb[0].mxu0
    %v4276 = vadd.f32 %v3731, %v4275
    %v4277 = vpop.f32.mrb[0].mxu0
    %4278 = vmatprep.mubr.bf16.mxu0 %v2996
    %4279 = vmatmul.mubr.bf16.gmra.mrb[0].mxu0 %v2995
    %v4280 = vpop.f32.mrb[0].mxu0
    %v4281 = vadd.f32 %v3736, %v4280
    %v4282 = vpop.f32.mrb[0].mxu0
    %v4283 = vpop.f32.mrb[0].mxu0
    %v4284 = vadd.f32 %v3739, %v4283
    %v4285 = vpop.f32.mrb[0].mxu0
    %4286 = vmatprep.mubr.bf16.mxu0 %v3000
    %4287 = vmatmul.mubr.bf16.gmra.mrb[0].mxu0 %v2999
    %v4288 = vpop.f32.mrb[0].mxu0
    %v4289 = vadd.f32 %v3744, %v4288
    %v4290 = vpop.f32.mrb[0].mxu0
    %v4291 = vpop.f32.mrb[0].mxu0
    %v4292 = vadd.f32 %v3747, %v4291
    %v4293 = vpop.f32.mrb[0].mxu0
    %4294 = vmatprep.mubr.bf16.mxu0 %v3004
    %4295 = vmatmul.mubr.bf16.gmra.mrb[0].mxu0 %v3003
    %v4296 = vpop.f32.mrb[0].mxu0
    %v4297 = vadd.f32 %v3752, %v4296
    %v4298 = vpop.f32.mrb[0].mxu0
    %v4299 = vpop.f32.mrb[0].mxu0
    %v4300 = vadd.f32 %v3755, %v4299
    %v4301 = vpop.f32.mrb[0].mxu0
    %4302 = vmatprep.mubr.bf16.mxu0 %v3008
    %4303 = vmatmul.mubr.bf16.gmra.mrb[0].mxu0 %v3007
    %v4304 = vpop.f32.mrb[0].mxu0
    %v4305 = vadd.f32 %v3760, %v4304
    %v4306 = vpop.f32.mrb[0].mxu0
    %v4307 = vpop.f32.mrb[0].mxu0
    %v4308 = vadd.f32 %v3763, %v4307
    %v4309 = vpop.f32.mrb[0].mxu0
    %4310 = vmatprep.mubr.bf16.mxu0 %v3012
    %4311 = vmatmul.mubr.bf16.gmra.mrb[0].mxu0 %v3011
    %v4312 = vpop.f32.mrb[0].mxu0
    %v4313 = vadd.f32 %v3768, %v4312
    %v4314 = vpop.f32.mrb[0].mxu0
    %v4315 = vpop.f32.mrb[0].mxu0
    %v4316 = vadd.f32 %v3771, %v4315
    %v4317 = vpop.f32.mrb[0].mxu0
    %4318 = vmatprep.mubr.bf16.mxu0 %v3016
    %4319 = vmatmul.mubr.bf16.gmra.mrb[0].mxu0 %v3015
    %v4320 = vpop.f32.mrb[0].mxu0
    %v4321 = vadd.f32 %v3776, %v4320
    %v4322 = vpop.f32.mrb[0].mxu0
    %v4323 = vpop.f32.mrb[0].mxu0
    %v4324 = vadd.f32 %v3779, %v4323
    %v4325 = vpop.f32.mrb[0].mxu0
    %4326 = vmatprep.mubr.bf16.mxu0 %v3020
    %4327 = vmatmul.mubr.bf16.gmra.mrb[0].mxu0 %v3019
    %v4328 = vpop.f32.mrb[0].mxu0
    %v4329 = vadd.f32 %v3784, %v4328
    %v4330 = vpop.f32.mrb[0].mxu0
    %v4331 = vpop.f32.mrb[0].mxu0
    %v4332 = vadd.f32 %v3787, %v4331
    %v4333 = vpop.f32.mrb[0].mxu0
    %4334 = vmatprep.mubr.bf16.mxu0 %v3024
    %4335 = vmatmul.mubr.bf16.gmra.mrb[0].mxu0 %v3023
    %v4336 = vpop.f32.mrb[0].mxu0
    %v4337 = vadd.f32 %v3792, %v4336
    %v4338 = vpop.f32.mrb[0].mxu0
    %v4339 = vpop.f32.mrb[0].mxu0
    %v4340 = vadd.f32 %v3795, %v4339
    %v4341 = vpop.f32.mrb[0].mxu0
    %4342 = vmatprep.mubr.bf16.mxu0 %v3028
    %4343 = vmatmul.mubr.bf16.gmra.mrb[0].mxu0 %v3027
    %v4344 = vpop.f32.mrb[0].mxu0
    %v4345 = vadd.f32 %v3800, %v4344
    %v4346 = vpop.f32.mrb[0].mxu0
    %v4347 = vpop.f32.mrb[0].mxu0
    %v4348 = vadd.f32 %v3803, %v4347
    %v4349 = vpop.f32.mrb[0].mxu0
    %4350 = vmatprep.mubr.bf16.mxu0 %v3032
    %4351 = vmatmul.mubr.bf16.gmra.mrb[0].mxu0 %v3031
    %v4352 = vpop.f32.mrb[0].mxu0
    %v4353 = vadd.f32 %v3808, %v4352
    %v4354 = vpop.f32.mrb[0].mxu0
    %v4355 = vpop.f32.mrb[0].mxu0
    %v4356 = vadd.f32 %v3811, %v4355
    %v4357 = vpop.f32.mrb[0].mxu0
    %4358 = vmatprep.mubr.bf16.mxu0 %v3036
    %4359 = vmatmul.mubr.bf16.gmra.mrb[0].mxu0 %v3035
    %v4360 = vpop.f32.mrb[0].mxu0
    %v4361 = vadd.f32 %v3816, %v4360
    %v4362 = vpop.f32.mrb[0].mxu0
    %v4363 = vpop.f32.mrb[0].mxu0
    %v4364 = vadd.f32 %v3819, %v4363
    %v4365 = vpop.f32.mrb[0].mxu0
    %4366 = vmatprep.mubr.bf16.mxu0 %v3040
    %4367 = vmatmul.mubr.bf16.gmra.mrb[0].mxu0 %v3039
    %v4368 = vpop.f32.mrb[0].mxu0
    %v4369 = vadd.f32 %v3824, %v4368
    %v4370 = vpop.f32.mrb[0].mxu0
    %v4371 = vpop.f32.mrb[0].mxu0
    %v4372 = vadd.f32 %v3827, %v4371
    %v4373 = vpop.f32.mrb[0].mxu0
    %4374 = vmatprep.mubr.bf16.mxu0 %v3044
    %4375 = vmatmul.mubr.bf16.gmra.mrb[0].mxu0 %v3043
    %v4376 = vpop.f32.mrb[0].mxu0
    %v4377 = vadd.f32 %v3832, %v4376
    %v4378 = vpop.f32.mrb[0].mxu0
    %v4379 = vpop.f32.mrb[0].mxu0
    %v4380 = vadd.f32 %v3835, %v4379
    %v4381 = vpop.f32.mrb[0].mxu0
    %4382 = vmatprep.mubr.bf16.mxu0 %v3048
    %4383 = vmatmul.mubr.bf16.gmra.mrb[0].mxu0 %v3047
    %v4384 = vpop.f32.mrb[0].mxu0
    %v4385 = vadd.f32 %v3840, %v4384
    %v4386 = vpop.f32.mrb[0].mxu0
    %v4387 = vpop.f32.mrb[0].mxu0
    %v4388 = vadd.f32 %v3843, %v4387
    %v4389 = vpop.f32.mrb[0].mxu0
    %4390 = vmatprep.mubr.bf16.mxu0 %v3052
    %4391 = vmatmul.mubr.bf16.gmra.mrb[0].mxu0 %v3051
    %v4392 = vpop.f32.mrb[0].mxu0
    %v4393 = vadd.f32 %v3848, %v4392
    %v4394 = vpop.f32.mrb[0].mxu0
    %v4395 = vpop.f32.mrb[0].mxu0
    %v4396 = vadd.f32 %v3851, %v4395
    %v4397 = vpop.f32.mrb[0].mxu0
    %4398 = vdwg.mxu0
    %v4399 = vtanh.pop %v3889
    %v4400 = vtanh.pop %v3892
    %v4401 = vtanh.pop %v3897
    %v4402 = vtanh.pop %v3900
    %v4403 = vtanh.pop %v3905
    %v4404 = vtanh.pop %v3908
    %v4405 = vtanh.pop %v3913
    %v4406 = vtanh.pop %v3916
    %v4407 = vtanh.pop %v3921
    %v4408 = vtanh.pop %v3924
    %v4409 = vtanh.pop %v3929
    %v4410 = vtanh.pop %v3932
    %v4411 = vtanh.pop %v3937
    %v4412 = vtanh.pop %v3940
    %v4413 = vtanh.pop %v3945
    %v4414 = vtanh.pop %v3948
    %v4415 = vtanh.pop %v3953
    %v4416 = vtanh.pop %v3956
    %v4417 = vtanh.pop %v3961
    %v4418 = vtanh.pop %v3964
    %v4419 = vtanh.pop %v3969
    %v4420 = vtanh.pop %v3972
    %v4421 = vtanh.pop %v3977
    %v4422 = vtanh.pop %v3980
    %v4423 = vtanh.pop %v3985
    %v4424 = vtanh.pop %v3988
    %v4425 = vtanh.pop %v3993
    %v4426 = vtanh.pop %v3996
    %v4427 = vtanh.pop %v4001
    %v4428 = vtanh.pop %v4004
    %v4429 = vtanh.pop %v4009
    %v4430 = vtanh.pop %v4012
    %v4431 = vtanh.pop %v4017
    %v4432 = vtanh.pop %v4020
    %v4433 = vtanh.pop %v4025
    %v4434 = vtanh.pop %v4028
    %v4435 = vtanh.pop %v4033
    %v4436 = vtanh.pop %v4036
    %v4437 = vtanh.pop %v4041
    %v4438 = vtanh.pop %v4044
    %v4439 = vtanh.pop %v4049
    %v4440 = vtanh.pop %v4052
    %v4441 = vtanh.pop %v4057
    %v4442 = vtanh.pop %v4060
    %v4443 = vtanh.pop %v4065
    %v4444 = vtanh.pop %v4068
    %v4445 = vtanh.pop %v4073
    %v4446 = vtanh.pop %v4076
    %v4447 = vtanh.pop %v4081
    %v4448 = vtanh.pop %v4084
    %v4449 = vtanh.pop %v4089
    %v4450 = vtanh.pop %v4092
    %v4451 = vtanh.pop %v4097
    %v4452 = vtanh.pop %v4100
    %v4453 = vtanh.pop %v4105
    %v4454 = vtanh.pop %v4108
    %v4455 = vtanh.pop %v4113
    %v4456 = vtanh.pop %v4116
    %v4457 = vtanh.pop %v4121
    %v4458 = vtanh.pop %v4124
    %v4459 = vtanh.pop %v4129
    %v4460 = vtanh.pop %v4132
    %v4461 = vtanh.pop %v4137
    %v4462 = vtanh.pop %v4140
    %v4463 = vtanh.pop %v4145
    %v4464 = vtanh.pop %v4148
    %v4465 = vtanh.pop %v4153
    %v4466 = vtanh.pop %v4156
    %v4467 = vtanh.pop %v4161
    %v4468 = vtanh.pop %v4164
    %v4469 = vtanh.pop %v4169
    %v4470 = vtanh.pop %v4172
    %v4471 = vtanh.pop %v4177
    %v4472 = vtanh.pop %v4180
    %v4473 = vtanh.pop %v4185
    %v4474 = vtanh.pop %v4188
    %v4475 = vtanh.pop %v4193
    %v4476 = vtanh.pop %v4196
    %v4477 = vtanh.pop %v4201
    %v4478 = vtanh.pop %v4204
    %v4479 = vtanh.pop %v4209
    %v4480 = vtanh.pop %v4212
    %v4481 = vtanh.pop %v4217
    %v4482 = vtanh.pop %v4220
    %v4483 = vtanh.pop %v4225
    %v4484 = vtanh.pop %v4228
    %v4485 = vtanh.pop %v4233
    %v4486 = vtanh.pop %v4236
    %v4487 = vtanh.pop %v4241
    %v4488 = vtanh.pop %v4244
    %v4489 = vtanh.pop %v4249
    %v4490 = vtanh.pop %v4252
    %v4491 = vtanh.pop %v4257
    %v4492 = vtanh.pop %v4260
    %v4493 = vtanh.pop %v4265
    %v4494 = vtanh.pop %v4268
    %v4495 = vtanh.pop %v4273
    %v4496 = vtanh.pop %v4276
    %v4497 = vtanh.pop %v4281
    %v4498 = vtanh.pop %v4284
    %v4499 = vtanh.pop %v4289
    %v4500 = vtanh.pop %v4292
    %v4501 = vtanh.pop %v4297
    %v4502 = vtanh.pop %v4300
    %v4503 = vtanh.pop %v4305
    %v4504 = vtanh.pop %v4308
    %v4505 = vtanh.pop %v4313
    %v4506 = vtanh.pop %v4316
    %v4507 = vtanh.pop %v4321
    %v4508 = vtanh.pop %v4324
    %v4509 = vtanh.pop %v4329
    %v4510 = vtanh.pop %v4332
    %v4511 = vtanh.pop %v4337
    %v4512 = vtanh.pop %v4340
    %v4513 = vtanh.pop %v4345
    %v4514 = vtanh.pop %v4348
    %v4515 = vtanh.pop %v4353
    %v4516 = vtanh.pop %v4356
    %v4517 = vtanh.pop %v4361
    %v4518 = vtanh.pop %v4364
    %v4519 = vtanh.pop %v4369
    %v4520 = vtanh.pop %v4372
    %v4521 = vtanh.pop %v4377
    %v4522 = vtanh.pop %v4380
    %v4523 = vtanh.pop %v4385
    %v4524 = vtanh.pop %v4388
    %v4525 = vtanh.pop %v4393
    %v4526 = vtanh.pop %v4396
    %v4527 = vld [vmem:[%s3] sm:$0xff]
    %v4528 = vld [vmem:[%s3 + $0x8] sm:$0xff]
    %v4529 = vld [vmem:[%s3 + $0x10] sm:$0xff]
    %v4530 = vld [vmem:[%s3 + $0x18] sm:$0xff]
    %v4531 = vld [vmem:[%s3 + $0x20] sm:$0xff]
    %v4532 = vld [vmem:[%s3 + $0x28] sm:$0xff]
    %v4533 = vld [vmem:[%s3 + $0x30] sm:$0xff]
    %v4534 = vld [vmem:[%s3 + $0x38] sm:$0xff]
    %v4535 = vld [vmem:[%s3 + $0x40] sm:$0xff]
    %v4536 = vld [vmem:[%s3 + $0x48] sm:$0xff]
    %v4537 = vld [vmem:[%s3 + $0x50] sm:$0xff]
    %v4538 = vld [vmem:[%s3 + $0x58] sm:$0xff]
    %v4539 = vld [vmem:[%s3 + $0x60] sm:$0xff]
    %v4540 = vld [vmem:[%s3 + $0x68] sm:$0xff]
    %v4541 = vld [vmem:[%s3 + $0x70] sm:$0xff]
    %v4542 = vld [vmem:[%s3 + $0x78] sm:$0xff]
    %v4543 = vpack.c.bf16 %v4400, %v4399
    %v4544 = vpack.c.bf16 %v4402, %v4401
    %v4545 = vpack.c.bf16 %v4404, %v4403
    %v4546 = vpack.c.bf16 %v4406, %v4405
    %v4547 = vpack.c.bf16 %v4408, %v4407
    %v4548 = vpack.c.bf16 %v4410, %v4409
    %v4549 = vpack.c.bf16 %v4412, %v4411
    %v4550 = vpack.c.bf16 %v4414, %v4413
    %v4551 = vpack.c.bf16 %v4416, %v4415
    %v4552 = vpack.c.bf16 %v4418, %v4417
    %v4553 = vpack.c.bf16 %v4420, %v4419
    %v4554 = vpack.c.bf16 %v4422, %v4421
    %v4555 = vpack.c.bf16 %v4424, %v4423
    %v4556 = vpack.c.bf16 %v4426, %v4425
    %v4557 = vpack.c.bf16 %v4428, %v4427
    %v4558 = vpack.c.bf16 %v4430, %v4429
    %v4559 = vpack.c.bf16 %v4432, %v4431
    %v4560 = vpack.c.bf16 %v4434, %v4433
    %v4561 = vpack.c.bf16 %v4436, %v4435
    %v4562 = vpack.c.bf16 %v4438, %v4437
    %v4563 = vpack.c.bf16 %v4440, %v4439
    %v4564 = vpack.c.bf16 %v4442, %v4441
    %v4565 = vpack.c.bf16 %v4444, %v4443
    %v4566 = vpack.c.bf16 %v4446, %v4445
    %v4567 = vpack.c.bf16 %v4448, %v4447
    %v4568 = vpack.c.bf16 %v4450, %v4449
    %v4569 = vpack.c.bf16 %v4452, %v4451
    %v4570 = vpack.c.bf16 %v4454, %v4453
    %v4571 = vpack.c.bf16 %v4456, %v4455
    %v4572 = vpack.c.bf16 %v4458, %v4457
    %v4573 = vpack.c.bf16 %v4460, %v4459
    %v4574 = vpack.c.bf16 %v4462, %v4461
    %v4575 = vpack.c.bf16 %v4464, %v4463
    %v4576 = vpack.c.bf16 %v4466, %v4465
    %v4577 = vpack.c.bf16 %v4468, %v4467
    %v4578 = vpack.c.bf16 %v4470, %v4469
    %v4579 = vpack.c.bf16 %v4472, %v4471
    %v4580 = vpack.c.bf16 %v4474, %v4473
    %v4581 = vpack.c.bf16 %v4476, %v4475
    %v4582 = vpack.c.bf16 %v4478, %v4477
    %v4583 = vpack.c.bf16 %v4480, %v4479
    %v4584 = vpack.c.bf16 %v4482, %v4481
    %v4585 = vpack.c.bf16 %v4484, %v4483
    %v4586 = vpack.c.bf16 %v4486, %v4485
    %v4587 = vpack.c.bf16 %v4488, %v4487
    %v4588 = vpack.c.bf16 %v4490, %v4489
    %v4589 = vpack.c.bf16 %v4492, %v4491
    %v4590 = vpack.c.bf16 %v4494, %v4493
    %v4591 = vpack.c.bf16 %v4496, %v4495
    %v4592 = vpack.c.bf16 %v4498, %v4497
    %v4593 = vpack.c.bf16 %v4500, %v4499
    %v4594 = vpack.c.bf16 %v4502, %v4501
    %v4595 = vpack.c.bf16 %v4504, %v4503
    %v4596 = vpack.c.bf16 %v4506, %v4505
    %v4597 = vpack.c.bf16 %v4508, %v4507
    %v4598 = vpack.c.bf16 %v4510, %v4509
    %v4599 = vpack.c.bf16 %v4512, %v4511
    %v4600 = vpack.c.bf16 %v4514, %v4513
    %v4601 = vpack.c.bf16 %v4516, %v4515
    %v4602 = vpack.c.bf16 %v4518, %v4517
    %v4603 = vpack.c.bf16 %v4520, %v4519
    %v4604 = vpack.c.bf16 %v4522, %v4521
    %v4605 = vpack.c.bf16 %v4524, %v4523
    %v4606 = vpack.c.bf16 %v4526, %v4525
    %4607 = vset.pattern.permute.xlu0 2
    %4608 = vperm.xlu0 %4607, %v42
    %v4609 = vpop.permute.xlu0 %4608
    %4611 = vset.pattern.permute.xlu0 2
    %4612 = vperm.xlu0 %4611, %v43
    %v4613 = vpop.permute.xlu0 %4612
    %4615 = vset.pattern.permute.xlu0 2
    %4616 = vperm.xlu0 %4615, %v44
    %v4617 = vpop.permute.xlu0 %4616
    %4619 = vset.pattern.permute.xlu0 2
    %4620 = vperm.xlu0 %4619, %v45
    %v4621 = vpop.permute.xlu0 %4620
    %v4639 = vunpack.c.l.b16 %v4527
    %v4640 = vunpack.c.h.b16 %v4527
    %v4641 = vunpack.c.l.b16 %v4528
    %v4642 = vunpack.c.h.b16 %v4528
    %v4643 = vunpack.c.l.b16 %v4529
    %v4644 = vunpack.c.h.b16 %v4529
    %v4645 = vunpack.c.l.b16 %v4530
    %v4646 = vunpack.c.h.b16 %v4530
    %v4647 = vunpack.c.l.b16 %v4531
    %v4648 = vunpack.c.h.b16 %v4531
    %v4649 = vunpack.c.l.b16 %v4532
    %v4650 = vunpack.c.h.b16 %v4532
    %v4651 = vunpack.c.l.b16 %v4533
    %v4652 = vunpack.c.h.b16 %v4533
    %v4653 = vunpack.c.l.b16 %v4534
    %v4654 = vunpack.c.h.b16 %v4534
    %v4655 = vunpack.c.l.b16 %v4535
    %v4656 = vunpack.c.h.b16 %v4535
    %v4657 = vunpack.c.l.b16 %v4536
    %v4658 = vunpack.c.h.b16 %v4536
    %v4659 = vunpack.c.l.b16 %v4537
    %v4660 = vunpack.c.h.b16 %v4537
    %v4661 = vunpack.c.l.b16 %v4538
    %v4662 = vunpack.c.h.b16 %v4538
    %v4663 = vunpack.c.l.b16 %v4539
    %v4664 = vunpack.c.h.b16 %v4539
    %v4665 = vunpack.c.l.b16 %v4540
    %v4666 = vunpack.c.h.b16 %v4540
    %v4667 = vunpack.c.l.b16 %v4541
    %v4668 = vunpack.c.h.b16 %v4541
    %v4669 = vunpack.c.l.b16 %v4542
    %v4670 = vunpack.c.h.b16 %v4542
    %v4671 = vpack.c.b16 %v4647, %v4639
    %v4672 = vpack.c.b16 %v4648, %v4640
    %v4673 = vpack.c.b16 %v4649, %v4641
    %v4674 = vpack.c.b16 %v4650, %v4642
    %v4675 = vpack.c.b16 %v4651, %v4643
    %v4676 = vpack.c.b16 %v4652, %v4644
    %v4677 = vpack.c.b16 %v4653, %v4645
    %v4678 = vpack.c.b16 %v4654, %v4646
    %v4679 = vpack.c.b16 %v4663, %v4655
    %v4680 = vpack.c.b16 %v4664, %v4656
    %v4681 = vpack.c.b16 %v4665, %v4657
    %v4682 = vpack.c.b16 %v4666, %v4658
    %v4683 = vpack.c.b16 %v4667, %v4659
    %v4684 = vpack.c.b16 %v4668, %v4660
    %v4685 = vpack.c.b16 %v4669, %v4661
    %v4686 = vpack.c.b16 %v4670, %v4662
    %4703 = vmatprep.subr.bf16.mxu0 0
    %4704 = vmatpush1.bf16.msra.mxu0 %v4543
    %4705 = vmatprep.subr.bf16.mxu0 0
    %4706 = vmatpush1.bf16.msra.mxu0 %v4544
    %4707 = vmatprep.subr.bf16.mxu0 0
    %4708 = vmatpush1.bf16.msra.mxu0 %v4545
    %4709 = vmatprep.subr.bf16.mxu0 0
    %4710 = vmatpush1.bf16.msra.mxu0 %v4546
    %4711 = vmatprep.subr.bf16.mxu0 0
    %4712 = vmatpush1.bf16.msra.mxu0 %v4547
    %4713 = vmatprep.subr.bf16.mxu0 0
    %4714 = vmatpush1.bf16.msra.mxu0 %v4548
    %4715 = vmatprep.subr.bf16.mxu0 0
    %4716 = vmatpush1.bf16.msra.mxu0 %v4549
    %4717 = vmatprep.subr.bf16.mxu0 0
    %4718 = vmatpush1.bf16.msra.mxu0 %v4550
    %4719 = vmatprep.subr.bf16.mxu0 0
    %4720 = vmatpush1.bf16.msra.mxu0 %v4551
    %4721 = vmatprep.subr.bf16.mxu0 0
    %4722 = vmatpush1.bf16.msra.mxu0 %v4552
    %4723 = vmatprep.subr.bf16.mxu0 0
    %4724 = vmatpush1.bf16.msra.mxu0 %v4553
    %4725 = vmatprep.subr.bf16.mxu0 0
    %4726 = vmatpush1.bf16.msra.mxu0 %v4554
    %4727 = vmatprep.subr.bf16.mxu0 0
    %4728 = vmatpush1.bf16.msra.mxu0 %v4555
    %4729 = vmatprep.subr.bf16.mxu0 0
    %4730 = vmatpush1.bf16.msra.mxu0 %v4556
    %4731 = vmatprep.subr.bf16.mxu0 0
    %4732 = vmatpush1.bf16.msra.mxu0 %v4557
    %4733 = vmatprep.subr.bf16.mxu0 0
    %4734 = vmatpush1.bf16.msra.mxu0 %v4558
    %4735 = vmatprep.mubr.bf16.mxu0 %v4672
    %4736 = vmatmul.mubr.bf16.gmra.mrb[0].mxu0 %v4671
    %v4737 = vpop.f32.mrb[0].mxu0
    %v4738 = vadd.f32 %v4609, %v4737
    %v4739 = vpop.f32.mrb[0].mxu0
    %v4740 = vpop.f32.mrb[0].mxu0
    %v4741 = vadd.f32 %v4613, %v4740
    %v4742 = vpop.f32.mrb[0].mxu0
    %4743 = vmatprep.mubr.bf16.mxu0 %v4680
    %4744 = vmatmul.mubr.bf16.gmra.mrb[0].mxu0 %v4679
    %v4745 = vpop.f32.mrb[0].mxu0
    %v4746 = vadd.f32 %v4617, %v4745
    %v4747 = vpop.f32.mrb[0].mxu0
    %v4748 = vpop.f32.mrb[0].mxu0
    %v4749 = vadd.f32 %v4621, %v4748
    %v4750 = vpop.f32.mrb[0].mxu0
    %4751 = vdwg.mxu0
    %4752 = vmatprep.subr.bf16.mxu0 0
    %4753 = vmatpush1.bf16.msra.mxu0 %v4559
    %4754 = vmatprep.subr.bf16.mxu0 0
    %4755 = vmatpush1.bf16.msra.mxu0 %v4560
    %4756 = vmatprep.subr.bf16.mxu0 0
    %4757 = vmatpush1.bf16.msra.mxu0 %v4561
    %4758 = vmatprep.subr.bf16.mxu0 0
    %4759 = vmatpush1.bf16.msra.mxu0 %v4562
    %4760 = vmatprep.subr.bf16.mxu0 0
    %4761 = vmatpush1.bf16.msra.mxu0 %v4563
    %4762 = vmatprep.subr.bf16.mxu0 0
    %4763 = vmatpush1.bf16.msra.mxu0 %v4564
    %4764 = vmatprep.subr.bf16.mxu0 0
    %4765 = vmatpush1.bf16.msra.mxu0 %v4565
    %4766 = vmatprep.subr.bf16.mxu0 0
    %4767 = vmatpush1.bf16.msra.mxu0 %v4566
    %4768 = vmatprep.subr.bf16.mxu0 0
    %4769 = vmatpush1.bf16.msra.mxu0 %v4567
    %4770 = vmatprep.subr.bf16.mxu0 0
    %4771 = vmatpush1.bf16.msra.mxu0 %v4568
    %4772 = vmatprep.subr.bf16.mxu0 0
    %4773 = vmatpush1.bf16.msra.mxu0 %v4569
    %4774 = vmatprep.subr.bf16.mxu0 0
    %4775 = vmatpush1.bf16.msra.mxu0 %v4570
    %4776 = vmatprep.subr.bf16.mxu0 0
    %4777 = vmatpush1.bf16.msra.mxu0 %v4571
    %4778 = vmatprep.subr.bf16.mxu0 0
    %4779 = vmatpush1.bf16.msra.mxu0 %v4572
    %4780 = vmatprep.subr.bf16.mxu0 0
    %4781 = vmatpush1.bf16.msra.mxu0 %v4573
    %4782 = vmatprep.subr.bf16.mxu0 0
    %4783 = vmatpush1.bf16.msra.mxu0 %v4574
    %4784 = vmatprep.mubr.bf16.mxu0 %v4674
    %4785 = vmatmul.mubr.bf16.gmra.mrb[0].mxu0 %v4673
    %v4786 = vpop.f32.mrb[0].mxu0
    %v4787 = vadd.f32 %v4738, %v4786
    %v4788 = vpop.f32.mrb[0].mxu0
    %v4789 = vpop.f32.mrb[0].mxu0
    %v4790 = vadd.f32 %v4741, %v4789
    %v4791 = vpop.f32.mrb[0].mxu0
    %4792 = vmatprep.mubr.bf16.mxu0 %v4682
    %4793 = vmatmul.mubr.bf16.gmra.mrb[0].mxu0 %v4681
    %v4794 = vpop.f32.mrb[0].mxu0
    %v4795 = vadd.f32 %v4746, %v4794
    %v4796 = vpop.f32.mrb[0].mxu0
    %v4797 = vpop.f32.mrb[0].mxu0
    %v4798 = vadd.f32 %v4749, %v4797
    %v4799 = vpop.f32.mrb[0].mxu0
    %4800 = vdwg.mxu0
    %4801 = vmatprep.subr.bf16.mxu0 0
    %4802 = vmatpush1.bf16.msra.mxu0 %v4575
    %4803 = vmatprep.subr.bf16.mxu0 0
    %4804 = vmatpush1.bf16.msra.mxu0 %v4576
    %4805 = vmatprep.subr.bf16.mxu0 0
    %4806 = vmatpush1.bf16.msra.mxu0 %v4577
    %4807 = vmatprep.subr.bf16.mxu0 0
    %4808 = vmatpush1.bf16.msra.mxu0 %v4578
    %4809 = vmatprep.subr.bf16.mxu0 0
    %4810 = vmatpush1.bf16.msra.mxu0 %v4579
    %4811 = vmatprep.subr.bf16.mxu0 0
    %4812 = vmatpush1.bf16.msra.mxu0 %v4580
    %4813 = vmatprep.subr.bf16.mxu0 0
    %4814 = vmatpush1.bf16.msra.mxu0 %v4581
    %4815 = vmatprep.subr.bf16.mxu0 0
    %4816 = vmatpush1.bf16.msra.mxu0 %v4582
    %4817 = vmatprep.subr.bf16.mxu0 0
    %4818 = vmatpush1.bf16.msra.mxu0 %v4583
    %4819 = vmatprep.subr.bf16.mxu0 0
    %4820 = vmatpush1.bf16.msra.mxu0 %v4584
    %4821 = vmatprep.subr.bf16.mxu0 0
    %4822 = vmatpush1.bf16.msra.mxu0 %v4585
    %4823 = vmatprep.subr.bf16.mxu0 0
    %4824 = vmatpush1.bf16.msra.mxu0 %v4586
    %4825 = vmatprep.subr.bf16.mxu0 0
    %4826 = vmatpush1.bf16.msra.mxu0 %v4587
    %4827 = vmatprep.subr.bf16.mxu0 0
    %4828 = vmatpush1.bf16.msra.mxu0 %v4588
    %4829 = vmatprep.subr.bf16.mxu0 0
    %4830 = vmatpush1.bf16.msra.mxu0 %v4589
    %4831 = vmatprep.subr.bf16.mxu0 0
    %4832 = vmatpush1.bf16.msra.mxu0 %v4590
    %4833 = vmatprep.mubr.bf16.mxu0 %v4676
    %4834 = vmatmul.mubr.bf16.gmra.mrb[0].mxu0 %v4675
    %v4835 = vpop.f32.mrb[0].mxu0
    %v4836 = vadd.f32 %v4787, %v4835
    %v4837 = vpop.f32.mrb[0].mxu0
    %v4838 = vpop.f32.mrb[0].mxu0
    %v4839 = vadd.f32 %v4790, %v4838
    %v4840 = vpop.f32.mrb[0].mxu0
    %4841 = vmatprep.mubr.bf16.mxu0 %v4684
    %4842 = vmatmul.mubr.bf16.gmra.mrb[0].mxu0 %v4683
    %v4843 = vpop.f32.mrb[0].mxu0
    %v4844 = vadd.f32 %v4795, %v4843
    %v4845 = vpop.f32.mrb[0].mxu0
    %v4846 = vpop.f32.mrb[0].mxu0
    %v4847 = vadd.f32 %v4798, %v4846
    %v4848 = vpop.f32.mrb[0].mxu0
    %4849 = vdwg.mxu0
    %4850 = vmatprep.subr.bf16.mxu0 0
    %4851 = vmatpush1.bf16.msra.mxu0 %v4591
    %4852 = vmatprep.subr.bf16.mxu0 0
    %4853 = vmatpush1.bf16.msra.mxu0 %v4592
    %4854 = vmatprep.subr.bf16.mxu0 0
    %4855 = vmatpush1.bf16.msra.mxu0 %v4593
    %4856 = vmatprep.subr.bf16.mxu0 0
    %4857 = vmatpush1.bf16.msra.mxu0 %v4594
    %4858 = vmatprep.subr.bf16.mxu0 0
    %4859 = vmatpush1.bf16.msra.mxu0 %v4595
    %4860 = vmatprep.subr.bf16.mxu0 0
    %4861 = vmatpush1.bf16.msra.mxu0 %v4596
    %4862 = vmatprep.subr.bf16.mxu0 0
    %4863 = vmatpush1.bf16.msra.mxu0 %v4597
    %4864 = vmatprep.subr.bf16.mxu0 0
    %4865 = vmatpush1.bf16.msra.mxu0 %v4598
    %4866 = vmatprep.subr.bf16.mxu0 0
    %4867 = vmatpush1.bf16.msra.mxu0 %v4599
    %4868 = vmatprep.subr.bf16.mxu0 0
    %4869 = vmatpush1.bf16.msra.mxu0 %v4600
    %4870 = vmatprep.subr.bf16.mxu0 0
    %4871 = vmatpush1.bf16.msra.mxu0 %v4601
    %4872 = vmatprep.subr.bf16.mxu0 0
    %4873 = vmatpush1.bf16.msra.mxu0 %v4602
    %4874 = vmatprep.subr.bf16.mxu0 0
    %4875 = vmatpush1.bf16.msra.mxu0 %v4603
    %4876 = vmatprep.subr.bf16.mxu0 0
    %4877 = vmatpush1.bf16.msra.mxu0 %v4604
    %4878 = vmatprep.subr.bf16.mxu0 0
    %4879 = vmatpush1.bf16.msra.mxu0 %v4605
    %4880 = vmatprep.subr.bf16.mxu0 0
    %4881 = vmatpush1.bf16.msra.mxu0 %v4606
    %4882 = vmatprep.mubr.bf16.mxu0 %v4678
    %4883 = vmatmul.mubr.bf16.gmra.mrb[0].mxu0 %v4677
    %v4884 = vpop.f32.mrb[0].mxu0
    %v4885 = vadd.f32 %v4836, %v4884
    %v4886 = vpop.f32.mrb[0].mxu0
    %v4887 = vpop.f32.mrb[0].mxu0
    %v4888 = vadd.f32 %v4839, %v4887
    %v4889 = vpop.f32.mrb[0].mxu0
    %4890 = vmatprep.mubr.bf16.mxu0 %v4686
    %4891 = vmatmul.mubr.bf16.gmra.mrb[0].mxu0 %v4685
    %v4892 = vpop.f32.mrb[0].mxu0
    %v4893 = vadd.f32 %v4844, %v4892
    %v4894 = vpop.f32.mrb[0].mxu0
    %v4895 = vpop.f32.mrb[0].mxu0
    %v4896 = vadd.f32 %v4847, %v4895
    %v4897 = vpop.f32.mrb[0].mxu0
    %4898 = vdwg.mxu0
    %v4899 = vtanh.pop %v4885
    %v4900 = vtanh.pop %v4888
    %v4901 = vtanh.pop %v4893
    %v4902 = vtanh.pop %v4896
    %v4903 = vld [vmem:[%s4] sm:$0x1]
    %4905 = vset.pattern.permute.xlu0 3
    %4906 = vperm.xlu0 %4905, %v170
    %v4907 = vpop.permute.xlu0 %4906
    %vm4909 = vcmask 261120
    %v4911 = vsel %vm4909, %v4903, 0
    %4913 = vmatprep.subr.mxu0 0.0
    %4914 = vmatpush1.msra.mxu0 %v4899
    %4915 = vmatprep.subr.mxu0 0.0
    %4916 = vmatpush1.msra.mxu0 %v4900
    %4917 = vmatprep.subr.mxu0 0.0
    %4918 = vmatpush1.msra.mxu0 %v4901
    %4919 = vmatprep.subr.mxu0 0.0
    %4920 = vmatpush1.msra.mxu0 %v4902
    %4921 = vmatprep.subr.mxu0 0.0
    %4922 = vmatpush1.msra.mxu0 0.0
    %4923 = vmatprep.subr.mxu0 0.0
    %4924 = vmatpush1.msra.mxu0 0.0
    %4925 = vmatprep.subr.mxu0 0.0
    %4926 = vmatpush1.msra.mxu0 0.0
    %4927 = vmatprep.subr.mxu0 0.0
    %4928 = vmatpush1.msra.mxu0 0.0
    %4929 = vmatprep.subr.mxu0 0.0
    %4930 = vmatpush1.msra.mxu0 0.0
    %4931 = vmatprep.subr.mxu0 0.0
    %4932 = vmatpush1.msra.mxu0 0.0
    %4933 = vmatprep.subr.mxu0 0.0
    %4934 = vmatpush1.msra.mxu0 0.0
    %4935 = vmatprep.subr.mxu0 0.0
    %4936 = vmatpush1.msra.mxu0 0.0
    %4937 = vmatprep.subr.mxu0 0.0
    %4938 = vmatpush1.msra.mxu0 0.0
    %4939 = vmatprep.subr.mxu0 0.0
    %4940 = vmatpush1.msra.mxu0 0.0
    %4941 = vmatprep.subr.mxu0 0.0
    %4942 = vmatpush1.msra.mxu0 0.0
    %4943 = vmatprep.subr.mxu0 0.0
    %4944 = vmatpush1.msra.mxu0 0.0
    %4945 = vmatprep.subr.mxu0 0.0
    %4946 = vmatpush1.msra.mxu0 0.0
    %4947 = vmatprep.subr.mxu0 0.0
    %4948 = vmatpush1.msra.mxu0 0.0
    %4949 = vmatprep.subr.mxu0 0.0
    %4950 = vmatpush1.msra.mxu0 0.0
    %4951 = vmatprep.subr.mxu0 0.0
    %4952 = vmatpush1.msra.mxu0 0.0
    %4953 = vmatprep.subr.mxu0 0.0
    %4954 = vmatpush1.msra.mxu0 0.0
    %4955 = vmatprep.subr.mxu0 0.0
    %4956 = vmatpush1.msra.mxu0 0.0
    %4957 = vmatprep.subr.mxu0 0.0
    %4958 = vmatpush1.msra.mxu0 0.0
    %4959 = vmatprep.subr.mxu0 0.0
    %4960 = vmatpush1.msra.mxu0 0.0
    %4961 = vmatprep.subr.mxu0 0.0
    %4962 = vmatpush1.msra.mxu0 0.0
    %4963 = vmatprep.subr.mxu0 0.0
    %4964 = vmatpush1.msra.mxu0 0.0
    %4965 = vmatprep.subr.mxu0 0.0
    %4966 = vmatpush1.msra.mxu0 0.0
    %4967 = vmatprep.subr.mxu0 0.0
    %4968 = vmatpush1.msra.mxu0 0.0
    %4969 = vmatprep.subr.mxu0 0.0
    %4970 = vmatpush1.msra.mxu0 0.0
    %4971 = vmatprep.subr.mxu0 0.0
    %4972 = vmatpush1.msra.mxu0 0.0
    %4973 = vmatprep.subr.mxu0 0.0
    %4974 = vmatpush1.msra.mxu0 0.0
    %4975 = vmatprep.subr.mxu0 0.0
    %4976 = vmatpush1.msra.mxu0 0.0
    %4977 = vmatprep.mubr.f32.mxu0 0.0
    %4978 = vmatmul.mubr.f32.gmra.mrb[0].mxu0 %v4911
    %v4979 = vpop.f32.mrb[0].mxu0
    %v4980 = vadd.f32 %v4907, %v4979
    %v4981 = vpop.f32.mrb[0].mxu0
    %4982 = vdwg.mxu0
    %v4983 = vmax.f32 %v4980, 0.0
    %4984 = vst [vmem:[#allocation5] sm:$0x1] %v4983
    // Predicated region
    $region30: #{tpu_custom_call.1} parent=1 // pred_check
      _
    $region31: #{tpu_custom_call.1} parent=1 // pred_check_branch
      %4986 = sbr.rel (0) target = $region33
    $region32: #{tpu_custom_call.1} parent=1 // pred_region
      %s4988 = ssub.s32 16, 16
      %4989 = vsyncadd [#allocation4], %s4988
      %s4991 = sshll.u32 [#allocation5], 4
      %s4992 = int_to_ptr.vmem [resolvable:$true] %s4991
      %4994 = dma.vmem_to_hbm [thread:$0]  %s4992, 16, %s6, [#allocation4]
    $region33: #{tpu_custom_call.1} parent=1 // pred_fallthru
      _
    // Predicated region
    $region34: #{tpu_custom_call.1} parent=1 // pred_check
      _
    $region35: #{tpu_custom_call.1} parent=1 // pred_check_branch
      %4996 = sbr.rel (0) target = $region37
    $region36: #{tpu_custom_call.1} parent=1 // pred_region
      %4997 = dma.done [#allocation4], 16
    $region37: #{tpu_custom_call.1} parent=1 // pred_fallthru
      _
    %4998 = vsyncpa [#allocation3], 1
    %4999 = vsyncpa [#allocation4], 1

// kernel: tpu_custom_call.1
$region0: #{tpu_custom_call.1}
  #allocation0 [shape = 'u32[]', space=smem, size = 0x4, offset = 0x4, fixed_abs, tag = 'smem constant byte address 0x4 - core index']
  #allocation1 [shape = 'u32[144,128]{1,0:T(1,128)}', space=vmem, size = 0x12000, scoped, tag = 'internal scratch']
  %s0 = inlined_call_operand.vmem [shape: f32[16,128], index: 0, kind: input, shape index: {}]
  %s1 = inlined_call_operand.vmem [shape: bf16[512,16], index: 1, kind: input, shape index: {}]
  %s2 = inlined_call_operand.hbm [shape: bf16[1024,512], index: 2, kind: input, shape index: {}]
  %s3 = inlined_call_operand.vmem [shape: bf16[32,1024], index: 3, kind: input, shape index: {}]
  %s4 = inlined_call_operand.vmem [shape: f32[1,32], index: 4, kind: input, shape index: {}]
  %s5 = inlined_call_operand.vmem [shape: f32[1024,4], index: 5, kind: input, shape index: {}]
  %s6 = inlined_call_operand.hbm [shape: f32[1,128], index: 6, kind: output, shape index: {}]
  %s7 = sld [smem:[#allocation0]]
  $region38: #{tpu_custom_call.1} parent=0
    _
  %s9 = ssub.s32 1, %s7
  %s10 = scalar_select 0, %s9, %s7
  $region1: #{tpu_custom_call.1} parent=0
    #allocation2 [shape = 'u8[1048576]{0}', space=vmem, size = 0x100000, scoped, tag = 'input window, operand 2, single buffered']
    #allocation3 [shape = 's32[1]{0}', space=sflag, size = 0x4, scoped, tag = 'scoped memory for tpu_custom_call.1']
    #allocation4 [shape = 's32[1]{0}', space=sflag, size = 0x4, scoped, tag = 'scoped memory for tpu_custom_call.1']
    #allocation5 [shape = 'u8[512]{0}', space=vmem, size = 0x400, scoped, tag = 'output window, operand 0, single buffered']
    %11 = vsyncpa [#allocation3], 0
    %12 = vsyncpa [#allocation4], 0
    // Predicated region
    $region2: #{tpu_custom_call.1} parent=1 // pred_check
      _
    $region3: #{tpu_custom_call.1} parent=1 // pred_check_branch
      %14 = sbr.rel (0) target = $region5
    $region4: #{tpu_custom_call.1} parent=1 // pred_region
      _
    $region5: #{tpu_custom_call.1} parent=1 // pred_fallthru
      _
    // Predicated region
    $region6: #{tpu_custom_call.1} parent=1 // pred_check
      _
    $region7: #{tpu_custom_call.1} parent=1 // pred_check_branch
      %16 = sbr.rel (0) target = $region9
    $region8: #{tpu_custom_call.1} parent=1 // pred_region
      _
    $region9: #{tpu_custom_call.1} parent=1 // pred_fallthru
      _
    // Predicated region
    $region10: #{tpu_custom_call.1} parent=1 // pred_check
      _
    $region11: #{tpu_custom_call.1} parent=1 // pred_check_branch
      %18 = sbr.rel (0) target = $region13
    $region12: #{tpu_custom_call.1} parent=1 // pred_region
      %s20 = ssub.s32 32768, 32768
      %21 = vsyncadd [#allocation3], %s20
      %s22 = sshll.u32 [#allocation2], 4
      %s23 = int_to_ptr.vmem [resolvable:$true] %s22
      %28 = dma.hbm_to_vmem [thread:$0]  %s2, 32768, %s23, [#allocation3], 256, 256, 16
    $region13: #{tpu_custom_call.1} parent=1 // pred_fallthru
      _
    // Predicated region
    $region14: #{tpu_custom_call.1} parent=1 // pred_check
      _
    $region15: #{tpu_custom_call.1} parent=1 // pred_check_branch
      %30 = sbr.rel (0) target = $region17
    $region16: #{tpu_custom_call.1} parent=1 // pred_region
      _
    $region17: #{tpu_custom_call.1} parent=1 // pred_fallthru
      _
    // Predicated region
    $region18: #{tpu_custom_call.1} parent=1 // pred_check
      _
    $region19: #{tpu_custom_call.1} parent=1 // pred_check_branch
      %32 = sbr.rel (0) target = $region21
    $region20: #{tpu_custom_call.1} parent=1 // pred_region
      _
    $region21: #{tpu_custom_call.1} parent=1 // pred_fallthru
      _
    // Predicated region
    $region22: #{tpu_custom_call.1} parent=1 // pred_check
      _
    $region23: #{tpu_custom_call.1} parent=1 // pred_check_branch
      %34 = sbr.rel (0) target = $region25
    $region24: #{tpu_custom_call.1} parent=1 // pred_region
      _
    $region25: #{tpu_custom_call.1} parent=1 // pred_fallthru
      _
    // Predicated region
    $region26: #{tpu_custom_call.1} parent=1 // pred_check
      _
    $region27: #{tpu_custom_call.1} parent=1 // pred_check_branch
      %36 = sbr.rel (0) target = $region29
    $region28: #{tpu_custom_call.1} parent=1 // pred_region
      %37 = dma.done [#allocation3], 32768
    $region29: #{tpu_custom_call.1} parent=1 // pred_fallthru
      _
    %v39 = vld [vmem:[%s0] sm:$0xff]
    %v40 = vld [vmem:[%s0 + $0x8] sm:$0xff]
    %v41 = vpack.c.bf16 %v40, %v39
    %v42 = vld [vmem:[%s5] sm:$0xff]
    %v43 = vld [vmem:[%s5 + $0x8] sm:$0xff]
    %v44 = vld [vmem:[%s5 + $0x10] sm:$0xff]
    %v45 = vld [vmem:[%s5 + $0x18] sm:$0xff]
    %v46 = vld [vmem:[%s5 + $0x20] sm:$0xff]
    %v47 = vld [vmem:[%s5 + $0x28] sm:$0xff]
    %v48 = vld [vmem:[%s5 + $0x30] sm:$0xff]
    %v49 = vld [vmem:[%s5 + $0x38] sm:$0xff]
    %v50 = vld [vmem:[%s5 + $0x40] sm:$0xff]
    %v51 = vld [vmem:[%s5 + $0x48] sm:$0xff]
    %v52 = vld [vmem:[%s5 + $0x50] sm:$0xff]
    %v53 = vld [vmem:[%s5 + $0x58] sm:$0xff]
    %v54 = vld [vmem:[%s5 + $0x60] sm:$0xff]
    %v55 = vld [vmem:[%s5 + $0x68] sm:$0xff]
    %v56 = vld [vmem:[%s5 + $0x70] sm:$0xff]
    %v57 = vld [vmem:[%s5 + $0x78] sm:$0xff]
    %v58 = vld [vmem:[%s5 + $0x80] sm:$0xff]
    %v59 = vld [vmem:[%s5 + $0x88] sm:$0xff]
    %v60 = vld [vmem:[%s5 + $0x90] sm:$0xff]
    %v61 = vld [vmem:[%s5 + $0x98] sm:$0xff]
    %v62 = vld [vmem:[%s5 + $0xa0] sm:$0xff]
    %v63 = vld [vmem:[%s5 + $0xa8] sm:$0xff]
    %v64 = vld [vmem:[%s5 + $0xb0] sm:$0xff]
    %v65 = vld [vmem:[%s5 + $0xb8] sm:$0xff]
    %v66 = vld [vmem:[%s5 + $0xc0] sm:$0xff]
    %v67 = vld [vmem:[%s5 + $0xc8] sm:$0xff]
    %v68 = vld [vmem:[%s5 + $0xd0] sm:$0xff]
    %v69 = vld [vmem:[%s5 + $0xd8] sm:$0xff]
    %v70 = vld [vmem:[%s5 + $0xe0] sm:$0xff]
    %v71 = vld [vmem:[%s5 + $0xe8] sm:$0xff]
    %v72 = vld [vmem:[%s5 + $0xf0] sm:$0xff]
    %v73 = vld [vmem:[%s5 + $0xf8] sm:$0xff]
    %v74 = vld [vmem:[%s5 + $0x100] sm:$0xff]
    %v75 = vld [vmem:[%s5 + $0x108] sm:$0xff]
    %v76 = vld [vmem:[%s5 + $0x110] sm:$0xff]
    %v77 = vld [vmem:[%s5 + $0x118] sm:$0xff]
    %v78 = vld [vmem:[%s5 + $0x120] sm:$0xff]
    %v79 = vld [vmem:[%s5 + $0x128] sm:$0xff]
    %v80 = vld [vmem:[%s5 + $0x130] sm:$0xff]
    %v81 = vld [vmem:[%s5 + $0x138] sm:$0xff]
    %v82 = vld [vmem:[%s5 + $0x140] sm:$0xff]
    %v83 = vld [vmem:[%s5 + $0x148] sm:$0xff]
    %v84 = vld [vmem:[%s5 + $0x150] sm:$0xff]
    %v85 = vld [vmem:[%s5 + $0x158] sm:$0xff]
    %v86 = vld [vmem:[%s5 + $0x160] sm:$0xff]
    %v87 = vld [vmem:[%s5 + $0x168] sm:$0xff]
    %v88 = vld [vmem:[%s5 + $0x170] sm:$0xff]
    %v89 = vld [vmem:[%s5 + $0x178] sm:$0xff]
    %v90 = vld [vmem:[%s5 + $0x180] sm:$0xff]
    %v91 = vld [vmem:[%s5 + $0x188] sm:$0xff]
    %v92 = vld [vmem:[%s5 + $0x190] sm:$0xff]
    %v93 = vld [vmem:[%s5 + $0x198] sm:$0xff]
    %v94 = vld [vmem:[%s5 + $0x1a0] sm:$0xff]
    %v95 = vld [vmem:[%s5 + $0x1a8] sm:$0xff]
    %v96 = vld [vmem:[%s5 + $0x1b0] sm:$0xff]
    %v97 = vld [vmem:[%s5 + $0x1b8] sm:$0xff]
    %v98 = vld [vmem:[%s5 + $0x1c0] sm:$0xff]
    %v99 = vld [vmem:[%s5 + $0x1c8] sm:$0xff]
    %v100 = vld [vmem:[%s5 + $0x1d0] sm:$0xff]
    %v101 = vld [vmem:[%s5 + $0x1d8] sm:$0xff]
    %v102 = vld [vmem:[%s5 + $0x1e0] sm:$0xff]
    %v103 = vld [vmem:[%s5 + $0x1e8] sm:$0xff]
    %v104 = vld [vmem:[%s5 + $0x1f0] sm:$0xff]
    %v105 = vld [vmem:[%s5 + $0x1f8] sm:$0xff]
    %v106 = vld [vmem:[%s5 + $0x200] sm:$0xff]
    %v107 = vld [vmem:[%s5 + $0x208] sm:$0xff]
    %v108 = vld [vmem:[%s5 + $0x210] sm:$0xff]
    %v109 = vld [vmem:[%s5 + $0x218] sm:$0xff]
    %v110 = vld [vmem:[%s5 + $0x220] sm:$0xff]
    %v111 = vld [vmem:[%s5 + $0x228] sm:$0xff]
    %v112 = vld [vmem:[%s5 + $0x230] sm:$0xff]
    %v113 = vld [vmem:[%s5 + $0x238] sm:$0xff]
    %v114 = vld [vmem:[%s5 + $0x240] sm:$0xff]
    %v115 = vld [vmem:[%s5 + $0x248] sm:$0xff]
    %v116 = vld [vmem:[%s5 + $0x250] sm:$0xff]
    %v117 = vld [vmem:[%s5 + $0x258] sm:$0xff]
    %v118 = vld [vmem:[%s5 + $0x260] sm:$0xff]
    %v119 = vld [vmem:[%s5 + $0x268] sm:$0xff]
    %v120 = vld [vmem:[%s5 + $0x270] sm:$0xff]
    %v121 = vld [vmem:[%s5 + $0x278] sm:$0xff]
    %v122 = vld [vmem:[%s5 + $0x280] sm:$0xff]
    %v123 = vld [vmem:[%s5 + $0x288] sm:$0xff]
    %v124 = vld [vmem:[%s5 + $0x290] sm:$0xff]
    %v125 = vld [vmem:[%s5 + $0x298] sm:$0xff]
    %v126 = vld [vmem:[%s5 + $0x2a0] sm:$0xff]
    %v127 = vld [vmem:[%s5 + $0x2a8] sm:$0xff]
    %v128 = vld [vmem:[%s5 + $0x2b0] sm:$0xff]
    %v129 = vld [vmem:[%s5 + $0x2b8] sm:$0xff]
    %v130 = vld [vmem:[%s5 + $0x2c0] sm:$0xff]
    %v131 = vld [vmem:[%s5 + $0x2c8] sm:$0xff]
    %v132 = vld [vmem:[%s5 + $0x2d0] sm:$0xff]
    %v133 = vld [vmem:[%s5 + $0x2d8] sm:$0xff]
    %v134 = vld [vmem:[%s5 + $0x2e0] sm:$0xff]
    %v135 = vld [vmem:[%s5 + $0x2e8] sm:$0xff]
    %v136 = vld [vmem:[%s5 + $0x2f0] sm:$0xff]
    %v137 = vld [vmem:[%s5 + $0x2f8] sm:$0xff]
    %v138 = vld [vmem:[%s5 + $0x300] sm:$0xff]
    %v139 = vld [vmem:[%s5 + $0x308] sm:$0xff]
    %v140 = vld [vmem:[%s5 + $0x310] sm:$0xff]
    %v141 = vld [vmem:[%s5 + $0x318] sm:$0xff]
    %v142 = vld [vmem:[%s5 + $0x320] sm:$0xff]
    %v143 = vld [vmem:[%s5 + $0x328] sm:$0xff]
    %v144 = vld [vmem:[%s5 + $0x330] sm:$0xff]
    %v145 = vld [vmem:[%s5 + $0x338] sm:$0xff]
    %v146 = vld [vmem:[%s5 + $0x340] sm:$0xff]
    %v147 = vld [vmem:[%s5 + $0x348] sm:$0xff]
    %v148 = vld [vmem:[%s5 + $0x350] sm:$0xff]
    %v149 = vld [vmem:[%s5 + $0x358] sm:$0xff]
    %v150 = vld [vmem:[%s5 + $0x360] sm:$0xff]
    %v151 = vld [vmem:[%s5 + $0x368] sm:$0xff]
    %v152 = vld [vmem:[%s5 + $0x370] sm:$0xff]
    %v153 = vld [vmem:[%s5 + $0x378] sm:$0xff]
    %v154 = vld [vmem:[%s5 + $0x380] sm:$0xff]
    %v155 = vld [vmem:[%s5 + $0x388] sm:$0xff]
    %v156 = vld [vmem:[%s5 + $0x390] sm:$0xff]
    %v157 = vld [vmem:[%s5 + $0x398] sm:$0xff]
    %v158 = vld [vmem:[%s5 + $0x3a0] sm:$0xff]
    %v159 = vld [vmem:[%s5 + $0x3a8] sm:$0xff]
    %v160 = vld [vmem:[%s5 + $0x3b0] sm:$0xff]
    %v161 = vld [vmem:[%s5 + $0x3b8] sm:$0xff]
    %v162 = vld [vmem:[%s5 + $0x3c0] sm:$0xff]
    %v163 = vld [vmem:[%s5 + $0x3c8] sm:$0xff]
    %v164 = vld [vmem:[%s5 + $0x3d0] sm:$0xff]
    %v165 = vld [vmem:[%s5 + $0x3d8] sm:$0xff]
    %v166 = vld [vmem:[%s5 + $0x3e0] sm:$0xff]
    %v167 = vld [vmem:[%s5 + $0x3e8] sm:$0xff]
    %v168 = vld [vmem:[%s5 + $0x3f0] sm:$0xff]
    %v169 = vld [vmem:[%s5 + $0x3f8] sm:$0xff]
    %v170 = vld [vmem:[%s5] sm:$0x1]
    %v171 = vld [vmem:[%s1] sm:$0xf]
    %v172 = vld [vmem:[%s1 + $0x4] sm:$0xf]
    %v173 = vld [vmem:[%s1 + $0x8] sm:$0xf]
    %v174 = vld [vmem:[%s1 + $0xc] sm:$0xf]
    %v175 = vld [vmem:[%s1 + $0x10] sm:$0xf]
    %v176 = vld [vmem:[%s1 + $0x14] sm:$0xf]
    %v177 = vld [vmem:[%s1 + $0x18] sm:$0xf]
    %v178 = vld [vmem:[%s1 + $0x1c] sm:$0xf]
    %v179 = vld [vmem:[%s1 + $0x20] sm:$0xf]
    %v180 = vld [vmem:[%s1 + $0x24] sm:$0xf]
    %v181 = vld [vmem:[%s1 + $0x28] sm:$0xf]
    %v182 = vld [vmem:[%s1 + $0x2c] sm:$0xf]
    %v183 = vld [vmem:[%s1 + $0x30] sm:$0xf]
    %v184 = vld [vmem:[%s1 + $0x34] sm:$0xf]
    %v185 = vld [vmem:[%s1 + $0x38] sm:$0xf]
    %v186 = vld [vmem:[%s1 + $0x3c] sm:$0xf]
    %v187 = vld [vmem:[%s1 + $0x40] sm:$0xf]
    %v188 = vld [vmem:[%s1 + $0x44] sm:$0xf]
    %v189 = vld [vmem:[%s1 + $0x48] sm:$0xf]
    %v190 = vld [vmem:[%s1 + $0x4c] sm:$0xf]
    %v191 = vld [vmem:[%s1 + $0x50] sm:$0xf]
    %v192 = vld [vmem:[%s1 + $0x54] sm:$0xf]
    %v193 = vld [vmem:[%s1 + $0x58] sm:$0xf]
    %v194 = vld [vmem:[%s1 + $0x5c] sm:$0xf]
    %v195 = vld [vmem:[%s1 + $0x60] sm:$0xf]
    %v196 = vld [vmem:[%s1 + $0x64] sm:$0xf]
    %v197 = vld [vmem:[%s1 + $0x68] sm:$0xf]
    %v198 = vld [vmem:[%s1 + $0x6c] sm:$0xf]
    %v199 = vld [vmem:[%s1 + $0x70] sm:$0xf]
    %v200 = vld [vmem:[%s1 + $0x74] sm:$0xf]
    %v201 = vld [vmem:[%s1 + $0x78] sm:$0xf]
    %v202 = vld [vmem:[%s1 + $0x7c] sm:$0xf]
    %v203 = vld [vmem:[%s1 + $0x80] sm:$0xf]
    %v204 = vld [vmem:[%s1 + $0x84] sm:$0xf]
    %v205 = vld [vmem:[%s1 + $0x88] sm:$0xf]
    %v206 = vld [vmem:[%s1 + $0x8c] sm:$0xf]
    %v207 = vld [vmem:[%s1 + $0x90] sm:$0xf]
    %v208 = vld [vmem:[%s1 + $0x94] sm:$0xf]
    %v209 = vld [vmem:[%s1 + $0x98] sm:$0xf]
    %v210 = vld [vmem:[%s1 + $0x9c] sm:$0xf]
    %v211 = vld [vmem:[%s1 + $0xa0] sm:$0xf]
    %v212 = vld [vmem:[%s1 + $0xa4] sm:$0xf]
    %v213 = vld [vmem:[%s1 + $0xa8] sm:$0xf]
    %v214 = vld [vmem:[%s1 + $0xac] sm:$0xf]
    %v215 = vld [vmem:[%s1 + $0xb0] sm:$0xf]
    %v216 = vld [vmem:[%s1 + $0xb4] sm:$0xf]
    %v217 = vld [vmem:[%s1 + $0xb8] sm:$0xf]
    %v218 = vld [vmem:[%s1 + $0xbc] sm:$0xf]
    %v219 = vld [vmem:[%s1 + $0xc0] sm:$0xf]
    %v220 = vld [vmem:[%s1 + $0xc4] sm:$0xf]
    %v221 = vld [vmem:[%s1 + $0xc8] sm:$0xf]
    %v222 = vld [vmem:[%s1 + $0xcc] sm:$0xf]
    %v223 = vld [vmem:[%s1 + $0xd0] sm:$0xf]
    %v224 = vld [vmem:[%s1 + $0xd4] sm:$0xf]
    %v225 = vld [vmem:[%s1 + $0xd8] sm:$0xf]
    %v226 = vld [vmem:[%s1 + $0xdc] sm:$0xf]
    %v227 = vld [vmem:[%s1 + $0xe0] sm:$0xf]
    %v228 = vld [vmem:[%s1 + $0xe4] sm:$0xf]
    %v229 = vld [vmem:[%s1 + $0xe8] sm:$0xf]
    %v230 = vld [vmem:[%s1 + $0xec] sm:$0xf]
    %v231 = vld [vmem:[%s1 + $0xf0] sm:$0xf]
    %v232 = vld [vmem:[%s1 + $0xf4] sm:$0xf]
    %v233 = vld [vmem:[%s1 + $0xf8] sm:$0xf]
    %v234 = vld [vmem:[%s1 + $0xfc] sm:$0xf]
    %236 = vset.pattern.permute.xlu0 0
    %237 = vperm.xlu0 %236, %v42
    %v238 = vpop.permute.xlu0 %237
    %241 = vset.pattern.permute.xlu0 0
    %242 = vperm.xlu0 %241, %v43
    %v243 = vpop.permute.xlu0 %242
    %246 = vset.pattern.permute.xlu0 0
    %247 = vperm.xlu0 %246, %v44
    %v248 = vpop.permute.xlu0 %247
    %251 = vset.pattern.permute.xlu0 0
    %252 = vperm.xlu0 %251, %v45
    %v253 = vpop.permute.xlu0 %252
    %256 = vset.pattern.permute.xlu0 0
    %257 = vperm.xlu0 %256, %v46
    %v258 = vpop.permute.xlu0 %257
    %261 = vset.pattern.permute.xlu0 0
    %262 = vperm.xlu0 %261, %v47
    %v263 = vpop.permute.xlu0 %262
    %266 = vset.pattern.permute.xlu0 0
    %267 = vperm.xlu0 %266, %v48
    %v268 = vpop.permute.xlu0 %267
    %271 = vset.pattern.permute.xlu0 0
    %272 = vperm.xlu0 %271, %v49
    %v273 = vpop.permute.xlu0 %272
    %276 = vset.pattern.permute.xlu0 0
    %277 = vperm.xlu0 %276, %v50
    %v278 = vpop.permute.xlu0 %277
    %281 = vset.pattern.permute.xlu0 0
    %282 = vperm.xlu0 %281, %v51
    %v283 = vpop.permute.xlu0 %282
    %286 = vset.pattern.permute.xlu0 0
    %287 = vperm.xlu0 %286, %v52
    %v288 = vpop.permute.xlu0 %287
    %291 = vset.pattern.permute.xlu0 0
    %292 = vperm.xlu0 %291, %v53
    %v293 = vpop.permute.xlu0 %292
    %296 = vset.pattern.permute.xlu0 0
    %297 = vperm.xlu0 %296, %v54
    %v298 = vpop.permute.xlu0 %297
    %301 = vset.pattern.permute.xlu0 0
    %302 = vperm.xlu0 %301, %v55
    %v303 = vpop.permute.xlu0 %302
    %306 = vset.pattern.permute.xlu0 0
    %307 = vperm.xlu0 %306, %v56
    %v308 = vpop.permute.xlu0 %307
    %311 = vset.pattern.permute.xlu0 0
    %312 = vperm.xlu0 %311, %v57
    %v313 = vpop.permute.xlu0 %312
    %316 = vset.pattern.permute.xlu0 0
    %317 = vperm.xlu0 %316, %v58
    %v318 = vpop.permute.xlu0 %317
    %321 = vset.pattern.permute.xlu0 0
    %322 = vperm.xlu0 %321, %v59
    %v323 = vpop.permute.xlu0 %322
    %326 = vset.pattern.permute.xlu0 0
    %327 = vperm.xlu0 %326, %v60
    %v328 = vpop.permute.xlu0 %327
    %331 = vset.pattern.permute.xlu0 0
    %332 = vperm.xlu0 %331, %v61
    %v333 = vpop.permute.xlu0 %332
    %336 = vset.pattern.permute.xlu0 0
    %337 = vperm.xlu0 %336, %v62
    %v338 = vpop.permute.xlu0 %337
    %341 = vset.pattern.permute.xlu0 0
    %342 = vperm.xlu0 %341, %v63
    %v343 = vpop.permute.xlu0 %342
    %346 = vset.pattern.permute.xlu0 0
    %347 = vperm.xlu0 %346, %v64
    %v348 = vpop.permute.xlu0 %347
    %351 = vset.pattern.permute.xlu0 0
    %352 = vperm.xlu0 %351, %v65
    %v353 = vpop.permute.xlu0 %352
    %356 = vset.pattern.permute.xlu0 0
    %357 = vperm.xlu0 %356, %v66
    %v358 = vpop.permute.xlu0 %357
    %361 = vset.pattern.permute.xlu0 0
    %362 = vperm.xlu0 %361, %v67
    %v363 = vpop.permute.xlu0 %362
    %366 = vset.pattern.permute.xlu0 0
    %367 = vperm.xlu0 %366, %v68
    %v368 = vpop.permute.xlu0 %367
    %371 = vset.pattern.permute.xlu0 0
    %372 = vperm.xlu0 %371, %v69
    %v373 = vpop.permute.xlu0 %372
    %376 = vset.pattern.permute.xlu0 0
    %377 = vperm.xlu0 %376, %v70
    %v378 = vpop.permute.xlu0 %377
    %381 = vset.pattern.permute.xlu0 0
    %382 = vperm.xlu0 %381, %v71
    %v383 = vpop.permute.xlu0 %382
    %386 = vset.pattern.permute.xlu0 0
    %387 = vperm.xlu0 %386, %v72
    %v388 = vpop.permute.xlu0 %387
    %391 = vset.pattern.permute.xlu0 0
    %392 = vperm.xlu0 %391, %v73
    %v393 = vpop.permute.xlu0 %392
    %396 = vset.pattern.permute.xlu0 0
    %397 = vperm.xlu0 %396, %v74
    %v398 = vpop.permute.xlu0 %397
    %401 = vset.pattern.permute.xlu0 0
    %402 = vperm.xlu0 %401, %v75
    %v403 = vpop.permute.xlu0 %402
    %406 = vset.pattern.permute.xlu0 0
    %407 = vperm.xlu0 %406, %v76
    %v408 = vpop.permute.xlu0 %407
    %411 = vset.pattern.permute.xlu0 0
    %412 = vperm.xlu0 %411, %v77
    %v413 = vpop.permute.xlu0 %412
    %416 = vset.pattern.permute.xlu0 0
    %417 = vperm.xlu0 %416, %v78
    %v418 = vpop.permute.xlu0 %417
    %421 = vset.pattern.permute.xlu0 0
    %422 = vperm.xlu0 %421, %v79
    %v423 = vpop.permute.xlu0 %422
    %426 = vset.pattern.permute.xlu0 0
    %427 = vperm.xlu0 %426, %v80
    %v428 = vpop.permute.xlu0 %427
    %431 = vset.pattern.permute.xlu0 0
    %432 = vperm.xlu0 %431, %v81
    %v433 = vpop.permute.xlu0 %432
    %436 = vset.pattern.permute.xlu0 0
    %437 = vperm.xlu0 %436, %v82
    %v438 = vpop.permute.xlu0 %437
    %441 = vset.pattern.permute.xlu0 0
    %442 = vperm.xlu0 %441, %v83
    %v443 = vpop.permute.xlu0 %442
    %446 = vset.pattern.permute.xlu0 0
    %447 = vperm.xlu0 %446, %v84
    %v448 = vpop.permute.xlu0 %447
    %451 = vset.pattern.permute.xlu0 0
    %452 = vperm.xlu0 %451, %v85
    %v453 = vpop.permute.xlu0 %452
    %456 = vset.pattern.permute.xlu0 0
    %457 = vperm.xlu0 %456, %v86
    %v458 = vpop.permute.xlu0 %457
    %461 = vset.pattern.permute.xlu0 0
    %462 = vperm.xlu0 %461, %v87
    %v463 = vpop.permute.xlu0 %462
    %466 = vset.pattern.permute.xlu0 0
    %467 = vperm.xlu0 %466, %v88
    %v468 = vpop.permute.xlu0 %467
    %471 = vset.pattern.permute.xlu0 0
    %472 = vperm.xlu0 %471, %v89
    %v473 = vpop.permute.xlu0 %472
    %476 = vset.pattern.permute.xlu0 0
    %477 = vperm.xlu0 %476, %v90
    %v478 = vpop.permute.xlu0 %477
    %481 = vset.pattern.permute.xlu0 0
    %482 = vperm.xlu0 %481, %v91
    %v483 = vpop.permute.xlu0 %482
    %486 = vset.pattern.permute.xlu0 0
    %487 = vperm.xlu0 %486, %v92
    %v488 = vpop.permute.xlu0 %487
    %491 = vset.pattern.permute.xlu0 0
    %492 = vperm.xlu0 %491, %v93
    %v493 = vpop.permute.xlu0 %492
    %496 = vset.pattern.permute.xlu0 0
    %497 = vperm.xlu0 %496, %v94
    %v498 = vpop.permute.xlu0 %497
    %501 = vset.pattern.permute.xlu0 0
    %502 = vperm.xlu0 %501, %v95
    %v503 = vpop.permute.xlu0 %502
    %506 = vset.pattern.permute.xlu0 0
    %507 = vperm.xlu0 %506, %v96
    %v508 = vpop.permute.xlu0 %507
    %511 = vset.pattern.permute.xlu0 0
    %512 = vperm.xlu0 %511, %v97
    %v513 = vpop.permute.xlu0 %512
    %516 = vset.pattern.permute.xlu0 0
    %517 = vperm.xlu0 %516, %v98
    %v518 = vpop.permute.xlu0 %517
    %521 = vset.pattern.permute.xlu0 0
    %522 = vperm.xlu0 %521, %v99
    %v523 = vpop.permute.xlu0 %522
    %526 = vset.pattern.permute.xlu0 0
    %527 = vperm.xlu0 %526, %v100
    %v528 = vpop.permute.xlu0 %527
    %531 = vset.pattern.permute.xlu0 0
    %532 = vperm.xlu0 %531, %v101
    %v533 = vpop.permute.xlu0 %532
    %536 = vset.pattern.permute.xlu0 0
    %537 = vperm.xlu0 %536, %v102
    %v538 = vpop.permute.xlu0 %537
    %541 = vset.pattern.permute.xlu0 0
    %542 = vperm.xlu0 %541, %v103
    %v543 = vpop.permute.xlu0 %542
    %546 = vset.pattern.permute.xlu0 0
    %547 = vperm.xlu0 %546, %v104
    %v548 = vpop.permute.xlu0 %547
    %551 = vset.pattern.permute.xlu0 0
    %552 = vperm.xlu0 %551, %v105
    %v553 = vpop.permute.xlu0 %552
    %v619 = vunpack.c.l.b16 %v171
    %v620 = vunpack.c.l.b16 %v172
    %v621 = vunpack.c.l.b16 %v173
    %v622 = vunpack.c.l.b16 %v174
    %v623 = vunpack.c.l.b16 %v175
    %v624 = vunpack.c.l.b16 %v176
    %v625 = vunpack.c.l.b16 %v177
    %v626 = vunpack.c.l.b16 %v178
    %v627 = vunpack.c.l.b16 %v179
    %v628 = vunpack.c.l.b16 %v180
    %v629 = vunpack.c.l.b16 %v181
    %v630 = vunpack.c.l.b16 %v182
    %v631 = vunpack.c.l.b16 %v183
    %v632 = vunpack.c.l.b16 %v184
    %v633 = vunpack.c.l.b16 %v185
    %v634 = vunpack.c.l.b16 %v186
    %v635 = vunpack.c.l.b16 %v187
    %v636 = vunpack.c.l.b16 %v188
    %v637 = vunpack.c.l.b16 %v189
    %v638 = vunpack.c.l.b16 %v190
    %v639 = vunpack.c.l.b16 %v191
    %v640 = vunpack.c.l.b16 %v192
    %v641 = vunpack.c.l.b16 %v193
    %v642 = vunpack.c.l.b16 %v194
    %v643 = vunpack.c.l.b16 %v195
    %v644 = vunpack.c.l.b16 %v196
    %v645 = vunpack.c.l.b16 %v197
    %v646 = vunpack.c.l.b16 %v198
    %v647 = vunpack.c.l.b16 %v199
    %v648 = vunpack.c.l.b16 %v200
    %v649 = vunpack.c.l.b16 %v201
    %v650 = vunpack.c.l.b16 %v202
    %v651 = vunpack.c.l.b16 %v203
    %v652 = vunpack.c.l.b16 %v204
    %v653 = vunpack.c.l.b16 %v205
    %v654 = vunpack.c.l.b16 %v206
    %v655 = vunpack.c.l.b16 %v207
    %v656 = vunpack.c.l.b16 %v208
    %v657 = vunpack.c.l.b16 %v209
    %v658 = vunpack.c.l.b16 %v210
    %v659 = vunpack.c.l.b16 %v211
    %v660 = vunpack.c.l.b16 %v212
    %v661 = vunpack.c.l.b16 %v213
    %v662 = vunpack.c.l.b16 %v214
    %v663 = vunpack.c.l.b16 %v215
    %v664 = vunpack.c.l.b16 %v216
    %v665 = vunpack.c.l.b16 %v217
    %v666 = vunpack.c.l.b16 %v218
    %v667 = vunpack.c.l.b16 %v219
    %v668 = vunpack.c.l.b16 %v220
    %v669 = vunpack.c.l.b16 %v221
    %v670 = vunpack.c.l.b16 %v222
    %v671 = vunpack.c.l.b16 %v223
    %v672 = vunpack.c.l.b16 %v224
    %v673 = vunpack.c.l.b16 %v225
    %v674 = vunpack.c.l.b16 %v226
    %v675 = vunpack.c.l.b16 %v227
    %v676 = vunpack.c.l.b16 %v228
    %v677 = vunpack.c.l.b16 %v229
    %v678 = vunpack.c.l.b16 %v230
    %v679 = vunpack.c.l.b16 %v231
    %v680 = vunpack.c.l.b16 %v232
    %v681 = vunpack.c.l.b16 %v233
    %v682 = vunpack.c.l.b16 %v234
    %v683 = vpack.c.b16 %v620, %v619
    %v684 = vpack.c.b16 %v622, %v621
    %v685 = vpack.c.b16 %v624, %v623
    %v686 = vpack.c.b16 %v626, %v625
    %v687 = vpack.c.b16 %v628, %v627
    %v688 = vpack.c.b16 %v630, %v629
    %v689 = vpack.c.b16 %v632, %v631
    %v690 = vpack.c.b16 %v634, %v633
    %v691 = vpack.c.b16 %v636, %v635
    %v692 = vpack.c.b16 %v638, %v637
    %v693 = vpack.c.b16 %v640, %v639
    %v694 = vpack.c.b16 %v642, %v641
    %v695 = vpack.c.b16 %v644, %v643
    %v696 = vpack.c.b16 %v646, %v645
    %v697 = vpack.c.b16 %v648, %v647
    %v698 = vpack.c.b16 %v650, %v649
    %v699 = vpack.c.b16 %v652, %v651
    %v700 = vpack.c.b16 %v654, %v653
    %v701 = vpack.c.b16 %v656, %v655
    %v702 = vpack.c.b16 %v658, %v657
    %v703 = vpack.c.b16 %v660, %v659
    %v704 = vpack.c.b16 %v662, %v661
    %v705 = vpack.c.b16 %v664, %v663
    %v706 = vpack.c.b16 %v666, %v665
    %v707 = vpack.c.b16 %v668, %v667
    %v708 = vpack.c.b16 %v670, %v669
    %v709 = vpack.c.b16 %v672, %v671
    %v710 = vpack.c.b16 %v674, %v673
    %v711 = vpack.c.b16 %v676, %v675
    %v712 = vpack.c.b16 %v678, %v677
    %v713 = vpack.c.b16 %v680, %v679
    %v714 = vpack.c.b16 %v682, %v681
    %vm715 = vcmask 130048
    %v717 = vsel %vm715, %v683, 0
    %v720 = vsel %vm715, %v684, 0
    %v723 = vsel %vm715, %v685, 0
    %v726 = vsel %vm715, %v686, 0
    %v729 = vsel %vm715, %v687, 0
    %v732 = vsel %vm715, %v688, 0
    %v735 = vsel %vm715, %v689, 0
    %v738 = vsel %vm715, %v690, 0
    %v741 = vsel %vm715, %v691, 0
    %v744 = vsel %vm715, %v692, 0
    %v747 = vsel %vm715, %v693, 0
    %v750 = vsel %vm715, %v694, 0
    %v753 = vsel %vm715, %v695, 0
    %v756 = vsel %vm715, %v696, 0
    %v759 = vsel %vm715, %v697, 0
    %v762 = vsel %vm715, %v698, 0
    %v765 = vsel %vm715, %v699, 0
    %v768 = vsel %vm715, %v700, 0
    %v771 = vsel %vm715, %v701, 0
    %v774 = vsel %vm715, %v702, 0
    %v777 = vsel %vm715, %v703, 0
    %v780 = vsel %vm715, %v704, 0
    %v783 = vsel %vm715, %v705, 0
    %v786 = vsel %vm715, %v706, 0
    %v789 = vsel %vm715, %v707, 0
    %v792 = vsel %vm715, %v708, 0
    %v795 = vsel %vm715, %v709, 0
    %v798 = vsel %vm715, %v710, 0
    %v801 = vsel %vm715, %v711, 0
    %v804 = vsel %vm715, %v712, 0
    %v807 = vsel %vm715, %v713, 0
    %v810 = vsel %vm715, %v714, 0
    %812 = vmatprep.subr.bf16.mxu0 0
    %813 = vmatpush1.bf16.msra.mxu0 %v41
    %814 = vmatprep.subr.bf16.mxu0 0
    %815 = vmatpush1.bf16.msra.mxu0 0
    %816 = vmatprep.subr.bf16.mxu0 0
    %817 = vmatpush1.bf16.msra.mxu0 0
    %818 = vmatprep.subr.bf16.mxu0 0
    %819 = vmatpush1.bf16.msra.mxu0 0
    %820 = vmatprep.subr.bf16.mxu0 0
    %821 = vmatpush1.bf16.msra.mxu0 0
    %822 = vmatprep.subr.bf16.mxu0 0
    %823 = vmatpush1.bf16.msra.mxu0 0
    %824 = vmatprep.subr.bf16.mxu0 0
    %825 = vmatpush1.bf16.msra.mxu0 0
    %826 = vmatprep.subr.bf16.mxu0 0
    %827 = vmatpush1.bf16.msra.mxu0 0
    %828 = vmatprep.subr.bf16.mxu0 0
    %829 = vmatpush1.bf16.msra.mxu0 0
    %830 = vmatprep.subr.bf16.mxu0 0
    %831 = vmatpush1.bf16.msra.mxu0 0
    %832 = vmatprep.subr.bf16.mxu0 0
    %833 = vmatpush1.bf16.msra.mxu0 0
    %834 = vmatprep.subr.bf16.mxu0 0
    %835 = vmatpush1.bf16.msra.mxu0 0
    %836 = vmatprep.subr.bf16.mxu0 0
    %837 = vmatpush1.bf16.msra.mxu0 0
    %838 = vmatprep.subr.bf16.mxu0 0
    %839 = vmatpush1.bf16.msra.mxu0 0
    %840 = vmatprep.subr.bf16.mxu0 0
    %841 = vmatpush1.bf16.msra.mxu0 0
    %842 = vmatprep.subr.bf16.mxu0 0
    %843 = vmatpush1.bf16.msra.mxu0 0
    %844 = vmatprep.mubr.bf16.mxu0 0
    %845 = vmatmul.mubr.bf16.gmra.mrb[0].mxu0 %v717
    %v846 = vpop.f32.mrb[0].mxu0
    %v847 = vadd.f32 %v238, %v846
    %v848 = vpop.f32.mrb[0].mxu0
    %v849 = vpop.f32.mrb[0].mxu0
    %v850 = vadd.f32 %v243, %v849
    %v851 = vpop.f32.mrb[0].mxu0
    %852 = vmatprep.mubr.bf16.mxu0 0
    %853 = vmatmul.mubr.bf16.gmra.mrb[0].mxu0 %v720
    %v854 = vpop.f32.mrb[0].mxu0
    %v855 = vadd.f32 %v248, %v854
    %v856 = vpop.f32.mrb[0].mxu0
    %v857 = vpop.f32.mrb[0].mxu0
    %v858 = vadd.f32 %v253, %v857
    %v859 = vpop.f32.mrb[0].mxu0
    %860 = vmatprep.mubr.bf16.mxu0 0
    %861 = vmatmul.mubr.bf16.gmra.mrb[0].mxu0 %v723
    %v862 = vpop.f32.mrb[0].mxu0
    %v863 = vadd.f32 %v258, %v862
    %v864 = vpop.f32.mrb[0].mxu0
    %v865 = vpop.f32.mrb[0].mxu0
    %v866 = vadd.f32 %v263, %v865
    %v867 = vpop.f32.mrb[0].mxu0
    %868 = vmatprep.mubr.bf16.mxu0 0
    %869 = vmatmul.mubr.bf16.gmra.mrb[0].mxu0 %v726
    %v870 = vpop.f32.mrb[0].mxu0
    %v871 = vadd.f32 %v268, %v870
    %v872 = vpop.f32.mrb[0].mxu0
    %v873 = vpop.f32.mrb[0].mxu0
    %v874 = vadd.f32 %v273, %v873
    %v875 = vpop.f32.mrb[0].mxu0
    %876 = vmatprep.mubr.bf16.mxu0 0
    %877 = vmatmul.mubr.bf16.gmra.mrb[0].mxu0 %v729
    %v878 = vpop.f32.mrb[0].mxu0
    %v879 = vadd.f32 %v278, %v878
    %v880 = vpop.f32.mrb[0].mxu0
    %v881 = vpop.f32.mrb[0].mxu0
    %v882 = vadd.f32 %v283, %v881
    %v883 = vpop.f32.mrb[0].mxu0
    %884 = vmatprep.mubr.bf16.mxu0 0
    %885 = vmatmul.mubr.bf16.gmra.mrb[0].mxu0 %v732
    %v886 = vpop.f32.mrb[0].mxu0
    %v887 = vadd.f32 %v288, %v886
    %v888 = vpop.f32.mrb[0].mxu0
    %v889 = vpop.f32.mrb[0].mxu0
    %v890 = vadd.f32 %v293, %v889
    %v891 = vpop.f32.mrb[0].mxu0
    %892 = vmatprep.mubr.bf16.mxu0 0
    %893 = vmatmul.mubr.bf16.gmra.mrb[0].mxu0 %v735
    %v894 = vpop.f32.mrb[0].mxu0
    %v895 = vadd.f32 %v298, %v894
    %v896 = vpop.f32.mrb[0].mxu0
    %v897 = vpop.f32.mrb[0].mxu0
    %v898 = vadd.f32 %v303, %v897
    %v899 = vpop.f32.mrb[0].mxu0
    %900 = vmatprep.mubr.bf16.mxu0 0
    %901 = vmatmul.mubr.bf16.gmra.mrb[0].mxu0 %v738
    %v902 = vpop.f32.mrb[0].mxu0
    %v903 = vadd.f32 %v308, %v902
    %v904 = vpop.f32.mrb[0].mxu0
    %v905 = vpop.f32.mrb[0].mxu0
    %v906 = vadd.f32 %v313, %v905
    %v907 = vpop.f32.mrb[0].mxu0
    %908 = vmatprep.mubr.bf16.mxu0 0
    %909 = vmatmul.mubr.bf16.gmra.mrb[0].mxu0 %v741
    %v910 = vpop.f32.mrb[0].mxu0
    %v911 = vadd.f32 %v318, %v910
    %v912 = vpop.f32.mrb[0].mxu0
    %v913 = vpop.f32.mrb[0].mxu0
    %v914 = vadd.f32 %v323, %v913
    %v915 = vpop.f32.mrb[0].mxu0
    %916 = vmatprep.mubr.bf16.mxu0 0
    %917 = vmatmul.mubr.bf16.gmra.mrb[0].mxu0 %v744
    %v918 = vpop.f32.mrb[0].mxu0
    %v919 = vadd.f32 %v328, %v918
    %v920 = vpop.f32.mrb[0].mxu0
    %v921 = vpop.f32.mrb[0].mxu0
    %v922 = vadd.f32 %v333, %v921
    %v923 = vpop.f32.mrb[0].mxu0
    %924 = vmatprep.mubr.bf16.mxu0 0
    %925 = vmatmul.mubr.bf16.gmra.mrb[0].mxu0 %v747
    %v926 = vpop.f32.mrb[0].mxu0
    %v927 = vadd.f32 %v338, %v926
    %v928 = vpop.f32.mrb[0].mxu0
    %v929 = vpop.f32.mrb[0].mxu0
    %v930 = vadd.f32 %v343, %v929
    %v931 = vpop.f32.mrb[0].mxu0
    %932 = vmatprep.mubr.bf16.mxu0 0
    %933 = vmatmul.mubr.bf16.gmra.mrb[0].mxu0 %v750
    %v934 = vpop.f32.mrb[0].mxu0
    %v935 = vadd.f32 %v348, %v934
    %v936 = vpop.f32.mrb[0].mxu0
    %v937 = vpop.f32.mrb[0].mxu0
    %v938 = vadd.f32 %v353, %v937
    %v939 = vpop.f32.mrb[0].mxu0
    %940 = vmatprep.mubr.bf16.mxu0 0
    %941 = vmatmul.mubr.bf16.gmra.mrb[0].mxu0 %v753
    %v942 = vpop.f32.mrb[0].mxu0
    %v943 = vadd.f32 %v358, %v942
    %v944 = vpop.f32.mrb[0].mxu0
    %v945 = vpop.f32.mrb[0].mxu0
    %v946 = vadd.f32 %v363, %v945
    %v947 = vpop.f32.mrb[0].mxu0
    %948 = vmatprep.mubr.bf16.mxu0 0
    %949 = vmatmul.mubr.bf16.gmra.mrb[0].mxu0 %v756
    %v950 = vpop.f32.mrb[0].mxu0
    %v951 = vadd.f32 %v368, %v950
    %v952 = vpop.f32.mrb[0].mxu0
    %v953 = vpop.f32.mrb[0].mxu0
    %v954 = vadd.f32 %v373, %v953
    %v955 = vpop.f32.mrb[0].mxu0
    %956 = vmatprep.mubr.bf16.mxu0 0
    %957 = vmatmul.mubr.bf16.gmra.mrb[0].mxu0 %v759
    %v958 = vpop.f32.mrb[0].mxu0
    %v959 = vadd.f32 %v378, %v958
    %v960 = vpop.f32.mrb[0].mxu0
    %v961 = vpop.f32.mrb[0].mxu0
    %v962 = vadd.f32 %v383, %v961
    %v963 = vpop.f32.mrb[0].mxu0
    %964 = vmatprep.mubr.bf16.mxu0 0
    %965 = vmatmul.mubr.bf16.gmra.mrb[0].mxu0 %v762
    %v966 = vpop.f32.mrb[0].mxu0
    %v967 = vadd.f32 %v388, %v966
    %v968 = vpop.f32.mrb[0].mxu0
    %v969 = vpop.f32.mrb[0].mxu0
    %v970 = vadd.f32 %v393, %v969
    %v971 = vpop.f32.mrb[0].mxu0
    %972 = vmatprep.mubr.bf16.mxu0 0
    %973 = vmatmul.mubr.bf16.gmra.mrb[0].mxu0 %v765
    %v974 = vpop.f32.mrb[0].mxu0
    %v975 = vadd.f32 %v398, %v974
    %v976 = vpop.f32.mrb[0].mxu0
    %v977 = vpop.f32.mrb[0].mxu0
    %v978 = vadd.f32 %v403, %v977
    %v979 = vpop.f32.mrb[0].mxu0
    %980 = vmatprep.mubr.bf16.mxu0 0
    %981 = vmatmul.mubr.bf16.gmra.mrb[0].mxu0 %v768
    %v982 = vpop.f32.mrb[0].mxu0
    %v983 = vadd.f32 %v408, %v982
    %v984 = vpop.f32.mrb[0].mxu0
    %v985 = vpop.f32.mrb[0].mxu0
    %v986 = vadd.f32 %v413, %v985
    %v987 = vpop.f32.mrb[0].mxu0
    %988 = vmatprep.mubr.bf16.mxu0 0
    %989 = vmatmul.mubr.bf16.gmra.mrb[0].mxu0 %v771
    %v990 = vpop.f32.mrb[0].mxu0
    %v991 = vadd.f32 %v418, %v990
    %v992 = vpop.f32.mrb[0].mxu0
    %v993 = vpop.f32.mrb[0].mxu0
    %v994 = vadd.f32 %v423, %v993
    %v995 = vpop.f32.mrb[0].mxu0
    %996 = vmatprep.mubr.bf16.mxu0 0
    %997 = vmatmul.mubr.bf16.gmra.mrb[0].mxu0 %v774
    %v998 = vpop.f32.mrb[0].mxu0
    %v999 = vadd.f32 %v428, %v998
    %v1000 = vpop.f32.mrb[0].mxu0
    %v1001 = vpop.f32.mrb[0].mxu0
    %v1002 = vadd.f32 %v433, %v1001
    %v1003 = vpop.f32.mrb[0].mxu0
    %1004 = vmatprep.mubr.bf16.mxu0 0
    %1005 = vmatmul.mubr.bf16.gmra.mrb[0].mxu0 %v777
    %v1006 = vpop.f32.mrb[0].mxu0
    %v1007 = vadd.f32 %v438, %v1006
    %v1008 = vpop.f32.mrb[0].mxu0
    %v1009 = vpop.f32.mrb[0].mxu0
    %v1010 = vadd.f32 %v443, %v1009
    %v1011 = vpop.f32.mrb[0].mxu0
    %1012 = vmatprep.mubr.bf16.mxu0 0
    %1013 = vmatmul.mubr.bf16.gmra.mrb[0].mxu0 %v780
    %v1014 = vpop.f32.mrb[0].mxu0
    %v1015 = vadd.f32 %v448, %v1014
    %v1016 = vpop.f32.mrb[0].mxu0
    %v1017 = vpop.f32.mrb[0].mxu0
    %v1018 = vadd.f32 %v453, %v1017
    %v1019 = vpop.f32.mrb[0].mxu0
    %1020 = vmatprep.mubr.bf16.mxu0 0
    %1021 = vmatmul.mubr.bf16.gmra.mrb[0].mxu0 %v783
    %v1022 = vpop.f32.mrb[0].mxu0
    %v1023 = vadd.f32 %v458, %v1022
    %v1024 = vpop.f32.mrb[0].mxu0
    %v1025 = vpop.f32.mrb[0].mxu0
    %v1026 = vadd.f32 %v463, %v1025
    %v1027 = vpop.f32.mrb[0].mxu0
    %1028 = vmatprep.mubr.bf16.mxu0 0
    %1029 = vmatmul.mubr.bf16.gmra.mrb[0].mxu0 %v786
    %v1030 = vpop.f32.mrb[0].mxu0
    %v1031 = vadd.f32 %v468, %v1030
    %v1032 = vpop.f32.mrb[0].mxu0
    %v1033 = vpop.f32.mrb[0].mxu0
    %v1034 = vadd.f32 %v473, %v1033
    %v1035 = vpop.f32.mrb[0].mxu0
    %1036 = vmatprep.mubr.bf16.mxu0 0
    %1037 = vmatmul.mubr.bf16.gmra.mrb[0].mxu0 %v789
    %v1038 = vpop.f32.mrb[0].mxu0
    %v1039 = vadd.f32 %v478, %v1038
    %v1040 = vpop.f32.mrb[0].mxu0
    %v1041 = vpop.f32.mrb[0].mxu0
    %v1042 = vadd.f32 %v483, %v1041
    %v1043 = vpop.f32.mrb[0].mxu0
    %1044 = vmatprep.mubr.bf16.mxu0 0
    %1045 = vmatmul.mubr.bf16.gmra.mrb[0].mxu0 %v792
    %v1046 = vpop.f32.mrb[0].mxu0
    %v1047 = vadd.f32 %v488, %v1046
    %v1048 = vpop.f32.mrb[0].mxu0
    %v1049 = vpop.f32.mrb[0].mxu0
    %v1050 = vadd.f32 %v493, %v1049
    %v1051 = vpop.f32.mrb[0].mxu0
    %1052 = vmatprep.mubr.bf16.mxu0 0
    %1053 = vmatmul.mubr.bf16.gmra.mrb[0].mxu0 %v795
    %v1054 = vpop.f32.mrb[0].mxu0
    %v1055 = vadd.f32 %v498, %v1054
    %v1056 = vpop.f32.mrb[0].mxu0
    %v1057 = vpop.f32.mrb[0].mxu0
    %v1058 = vadd.f32 %v503, %v1057
    %v1059 = vpop.f32.mrb[0].mxu0
    %1060 = vmatprep.mubr.bf16.mxu0 0
    %1061 = vmatmul.mubr.bf16.gmra.mrb[0].mxu0 %v798
    %v1062 = vpop.f32.mrb[0].mxu0
    %v1063 = vadd.f32 %v508, %v1062
    %v1064 = vpop.f32.mrb[0].mxu0
    %v1065 = vpop.f32.mrb[0].mxu0
    %v1066 = vadd.f32 %v513, %v1065
    %v1067 = vpop.f32.mrb[0].mxu0
    %1068 = vmatprep.mubr.bf16.mxu0 0
    %1069 = vmatmul.mubr.bf16.gmra.mrb[0].mxu0 %v801
    %v1070 = vpop.f32.mrb[0].mxu0
    %v1071 = vadd.f32 %v518, %v1070
    %v1072 = vpop.f32.mrb[0].mxu0
    %v1073 = vpop.f32.mrb[0].mxu0
    %v1074 = vadd.f32 %v523, %v1073
    %v1075 = vpop.f32.mrb[0].mxu0
    %1076 = vmatprep.mubr.bf16.mxu0 0
    %1077 = vmatmul.mubr.bf16.gmra.mrb[0].mxu0 %v804
    %v1078 = vpop.f32.mrb[0].mxu0
    %v1079 = vadd.f32 %v528, %v1078
    %v1080 = vpop.f32.mrb[0].mxu0
    %v1081 = vpop.f32.mrb[0].mxu0
    %v1082 = vadd.f32 %v533, %v1081
    %v1083 = vpop.f32.mrb[0].mxu0
    %1084 = vmatprep.mubr.bf16.mxu0 0
    %1085 = vmatmul.mubr.bf16.gmra.mrb[0].mxu0 %v807
    %v1086 = vpop.f32.mrb[0].mxu0
    %v1087 = vadd.f32 %v538, %v1086
    %v1088 = vpop.f32.mrb[0].mxu0
    %v1089 = vpop.f32.mrb[0].mxu0
    %v1090 = vadd.f32 %v543, %v1089
    %v1091 = vpop.f32.mrb[0].mxu0
    %1092 = vmatprep.mubr.bf16.mxu0 0
    %1093 = vmatmul.mubr.bf16.gmra.mrb[0].mxu0 %v810
    %v1094 = vpop.f32.mrb[0].mxu0
    %v1095 = vadd.f32 %v548, %v1094
    %v1096 = vpop.f32.mrb[0].mxu0
    %v1097 = vpop.f32.mrb[0].mxu0
    %v1098 = vadd.f32 %v553, %v1097
    %v1099 = vpop.f32.mrb[0].mxu0
    %1100 = vdwg.mxu0
    %v1101 = vtanh.pop %v847
    %v1102 = vtanh.pop %v850
    %v1103 = vtanh.pop %v855
    %v1104 = vtanh.pop %v858
    %v1105 = vtanh.pop %v863
    %v1106 = vtanh.pop %v866
    %v1107 = vtanh.pop %v871
    %v1108 = vtanh.pop %v874
    %v1109 = vtanh.pop %v879
    %v1110 = vtanh.pop %v882
    %v1111 = vtanh.pop %v887
    %v1112 = vtanh.pop %v890
    %v1113 = vtanh.pop %v895
    %v1114 = vtanh.pop %v898
    %v1115 = vtanh.pop %v903
    %v1116 = vtanh.pop %v906
    %v1117 = vtanh.pop %v911
    %v1118 = vtanh.pop %v914
    %v1119 = vtanh.pop %v919
    %v1120 = vtanh.pop %v922
    %v1121 = vtanh.pop %v927
    %v1122 = vtanh.pop %v930
    %v1123 = vtanh.pop %v935
    %v1124 = vtanh.pop %v938
    %v1125 = vtanh.pop %v943
    %v1126 = vtanh.pop %v946
    %v1127 = vtanh.pop %v951
    %v1128 = vtanh.pop %v954
    %v1129 = vtanh.pop %v959
    %v1130 = vtanh.pop %v962
    %v1131 = vtanh.pop %v967
    %v1132 = vtanh.pop %v970
    %v1133 = vtanh.pop %v975
    %v1134 = vtanh.pop %v978
    %v1135 = vtanh.pop %v983
    %v1136 = vtanh.pop %v986
    %v1137 = vtanh.pop %v991
    %v1138 = vtanh.pop %v994
    %v1139 = vtanh.pop %v999
    %v1140 = vtanh.pop %v1002
    %v1141 = vtanh.pop %v1007
    %v1142 = vtanh.pop %v1010
    %v1143 = vtanh.pop %v1015
    %v1144 = vtanh.pop %v1018
    %v1145 = vtanh.pop %v1023
    %v1146 = vtanh.pop %v1026
    %v1147 = vtanh.pop %v1031
    %v1148 = vtanh.pop %v1034
    %v1149 = vtanh.pop %v1039
    %v1150 = vtanh.pop %v1042
    %v1151 = vtanh.pop %v1047
    %v1152 = vtanh.pop %v1050
    %v1153 = vtanh.pop %v1055
    %v1154 = vtanh.pop %v1058
    %v1155 = vtanh.pop %v1063
    %v1156 = vtanh.pop %v1066
    %v1157 = vtanh.pop %v1071
    %v1158 = vtanh.pop %v1074
    %v1159 = vtanh.pop %v1079
    %v1160 = vtanh.pop %v1082
    %v1161 = vtanh.pop %v1087
    %v1162 = vtanh.pop %v1090
    %v1163 = vtanh.pop %v1095
    %v1164 = vtanh.pop %v1098
    %v1165 = vld [vmem:[#allocation2] sm:$0xff]
    %v1166 = vld [vmem:[#allocation2 + $0x8] sm:$0xff]
    %v1167 = vld [vmem:[#allocation2 + $0x10] sm:$0xff]
    %v1168 = vld [vmem:[#allocation2 + $0x18] sm:$0xff]
    %v1169 = vld [vmem:[#allocation2 + $0x20] sm:$0xff]
    %v1170 = vld [vmem:[#allocation2 + $0x28] sm:$0xff]
    %v1171 = vld [vmem:[#allocation2 + $0x30] sm:$0xff]
    %v1172 = vld [vmem:[#allocation2 + $0x38] sm:$0xff]
    %v1173 = vld [vmem:[#allocation2 + $0x40] sm:$0xff]
    %v1174 = vld [vmem:[#allocation2 + $0x48] sm:$0xff]
    %v1175 = vld [vmem:[#allocation2 + $0x50] sm:$0xff]
    %v1176 = vld [vmem:[#allocation2 + $0x58] sm:$0xff]
    %v1177 = vld [vmem:[#allocation2 + $0x60] sm:$0xff]
    %v1178 = vld [vmem:[#allocation2 + $0x68] sm:$0xff]
    %v1179 = vld [vmem:[#allocation2 + $0x70] sm:$0xff]
    %v1180 = vld [vmem:[#allocation2 + $0x78] sm:$0xff]
    %v1181 = vld [vmem:[#allocation2 + $0x80] sm:$0xff]
    %v1182 = vld [vmem:[#allocation2 + $0x88] sm:$0xff]
    %v1183 = vld [vmem:[#allocation2 + $0x90] sm:$0xff]
    %v1184 = vld [vmem:[#allocation2 + $0x98] sm:$0xff]
    %v1185 = vld [vmem:[#allocation2 + $0xa0] sm:$0xff]
    %v1186 = vld [vmem:[#allocation2 + $0xa8] sm:$0xff]
    %v1187 = vld [vmem:[#allocation2 + $0xb0] sm:$0xff]
    %v1188 = vld [vmem:[#allocation2 + $0xb8] sm:$0xff]
    %v1189 = vld [vmem:[#allocation2 + $0xc0] sm:$0xff]
    %v1190 = vld [vmem:[#allocation2 + $0xc8] sm:$0xff]
    %v1191 = vld [vmem:[#allocation2 + $0xd0] sm:$0xff]
    %v1192 = vld [vmem:[#allocation2 + $0xd8] sm:$0xff]
    %v1193 = vld [vmem:[#allocation2 + $0xe0] sm:$0xff]
    %v1194 = vld [vmem:[#allocation2 + $0xe8] sm:$0xff]
    %v1195 = vld [vmem:[#allocation2 + $0xf0] sm:$0xff]
    %v1196 = vld [vmem:[#allocation2 + $0xf8] sm:$0xff]
    %v1197 = vld [vmem:[#allocation2 + $0x100] sm:$0xff]
    %v1198 = vld [vmem:[#allocation2 + $0x108] sm:$0xff]
    %v1199 = vld [vmem:[#allocation2 + $0x110] sm:$0xff]
    %v1200 = vld [vmem:[#allocation2 + $0x118] sm:$0xff]
    %v1201 = vld [vmem:[#allocation2 + $0x120] sm:$0xff]
    %v1202 = vld [vmem:[#allocation2 + $0x128] sm:$0xff]
    %v1203 = vld [vmem:[#allocation2 + $0x130] sm:$0xff]
    %v1204 = vld [vmem:[#allocation2 + $0x138] sm:$0xff]
    %v1205 = vld [vmem:[#allocation2 + $0x140] sm:$0xff]
    %v1206 = vld [vmem:[#allocation2 + $0x148] sm:$0xff]
    %v1207 = vld [vmem:[#allocation2 + $0x150] sm:$0xff]
    %v1208 = vld [vmem:[#allocation2 + $0x158] sm:$0xff]
    %v1209 = vld [vmem:[#allocation2 + $0x160] sm:$0xff]
    %v1210 = vld [vmem:[#allocation2 + $0x168] sm:$0xff]
    %v1211 = vld [vmem:[#allocation2 + $0x170] sm:$0xff]
    %v1212 = vld [vmem:[#allocation2 + $0x178] sm:$0xff]
    %v1213 = vld [vmem:[#allocation2 + $0x180] sm:$0xff]
    %v1214 = vld [vmem:[#allocation2 + $0x188] sm:$0xff]
    %v1215 = vld [vmem:[#allocation2 + $0x190] sm:$0xff]
    %v1216 = vld [vmem:[#allocation2 + $0x198] sm:$0xff]
    %v1217 = vld [vmem:[#allocation2 + $0x1a0] sm:$0xff]
    %v1218 = vld [vmem:[#allocation2 + $0x1a8] sm:$0xff]
    %v1219 = vld [vmem:[#allocation2 + $0x1b0] sm:$0xff]
    %v1220 = vld [vmem:[#allocation2 + $0x1b8] sm:$0xff]
    %v1221 = vld [vmem:[#allocation2 + $0x1c0] sm:$0xff]
    %v1222 = vld [vmem:[#allocation2 + $0x1c8] sm:$0xff]
    %v1223 = vld [vmem:[#allocation2 + $0x1d0] sm:$0xff]
    %v1224 = vld [vmem:[#allocation2 + $0x1d8] sm:$0xff]
    %v1225 = vld [vmem:[#allocation2 + $0x1e0] sm:$0xff]
    %v1226 = vld [vmem:[#allocation2 + $0x1e8] sm:$0xff]
    %v1227 = vld [vmem:[#allocation2 + $0x1f0] sm:$0xff]
    %v1228 = vld [vmem:[#allocation2 + $0x1f8] sm:$0xff]
    %v1229 = vld [vmem:[#allocation2 + $0x200] sm:$0xff]
    %v1230 = vld [vmem:[#allocation2 + $0x208] sm:$0xff]
    %v1231 = vld [vmem:[#allocation2 + $0x210] sm:$0xff]
    %v1232 = vld [vmem:[#allocation2 + $0x218] sm:$0xff]
    %v1233 = vld [vmem:[#allocation2 + $0x220] sm:$0xff]
    %v1234 = vld [vmem:[#allocation2 + $0x228] sm:$0xff]
    %v1235 = vld [vmem:[#allocation2 + $0x230] sm:$0xff]
    %v1236 = vld [vmem:[#allocation2 + $0x238] sm:$0xff]
    %v1237 = vld [vmem:[#allocation2 + $0x240] sm:$0xff]
    %v1238 = vld [vmem:[#allocation2 + $0x248] sm:$0xff]
    %v1239 = vld [vmem:[#allocation2 + $0x250] sm:$0xff]
    %v1240 = vld [vmem:[#allocation2 + $0x258] sm:$0xff]
    %v1241 = vld [vmem:[#allocation2 + $0x260] sm:$0xff]
    %v1242 = vld [vmem:[#allocation2 + $0x268] sm:$0xff]
    %v1243 = vld [vmem:[#allocation2 + $0x270] sm:$0xff]
    %v1244 = vld [vmem:[#allocation2 + $0x278] sm:$0xff]
    %v1245 = vld [vmem:[#allocation2 + $0x280] sm:$0xff]
    %v1246 = vld [vmem:[#allocation2 + $0x288] sm:$0xff]
    %v1247 = vld [vmem:[#allocation2 + $0x290] sm:$0xff]
    %v1248 = vld [vmem:[#allocation2 + $0x298] sm:$0xff]
    %v1249 = vld [vmem:[#allocation2 + $0x2a0] sm:$0xff]
    %v1250 = vld [vmem:[#allocation2 + $0x2a8] sm:$0xff]
    %v1251 = vld [vmem:[#allocation2 + $0x2b0] sm:$0xff]
    %v1252 = vld [vmem:[#allocation2 + $0x2b8] sm:$0xff]
    %v1253 = vld [vmem:[#allocation2 + $0x2c0] sm:$0xff]
    %v1254 = vld [vmem:[#allocation2 + $0x2c8] sm:$0xff]
    %v1255 = vld [vmem:[#allocation2 + $0x2d0] sm:$0xff]
    %v1256 = vld [vmem:[#allocation2 + $0x2d8] sm:$0xff]
    %v1257 = vld [vmem:[#allocation2 + $0x2e0] sm:$0xff]
    %v1258 = vld [vmem:[#allocation2 + $0x2e8] sm:$0xff]
    %v1259 = vld [vmem:[#allocation2 + $0x2f0] sm:$0xff]
    %v1260 = vld [vmem:[#allocation2 + $0x2f8] sm:$0xff]
    %v1261 = vld [vmem:[#allocation2 + $0x300] sm:$0xff]
    %v1262 = vld [vmem:[#allocation2 + $0x308] sm:$0xff]
    %v1263 = vld [vmem:[#allocation2 + $0x310] sm:$0xff]
    %v1264 = vld [vmem:[#allocation2 + $0x318] sm:$0xff]
    %v1265 = vld [vmem:[#allocation2 + $0x320] sm:$0xff]
    %v1266 = vld [vmem:[#allocation2 + $0x328] sm:$0xff]
    %v1267 = vld [vmem:[#allocation2 + $0x330] sm:$0xff]
    %v1268 = vld [vmem:[#allocation2 + $0x338] sm:$0xff]
    %v1269 = vld [vmem:[#allocation2 + $0x340] sm:$0xff]
    %v1270 = vld [vmem:[#allocation2 + $0x348] sm:$0xff]
    %v1271 = vld [vmem:[#allocation2 + $0x350] sm:$0xff]
    %v1272 = vld [vmem:[#allocation2 + $0x358] sm:$0xff]
    %v1273 = vld [vmem:[#allocation2 + $0x360] sm:$0xff]
    %v1274 = vld [vmem:[#allocation2 + $0x368] sm:$0xff]
    %v1275 = vld [vmem:[#allocation2 + $0x370] sm:$0xff]
    %v1276 = vld [vmem:[#allocation2 + $0x378] sm:$0xff]
    %v1277 = vld [vmem:[#allocation2 + $0x380] sm:$0xff]
    %v1278 = vld [vmem:[#allocation2 + $0x388] sm:$0xff]
    %v1279 = vld [vmem:[#allocation2 + $0x390] sm:$0xff]
    %v1280 = vld [vmem:[#allocation2 + $0x398] sm:$0xff]
    %v1281 = vld [vmem:[#allocation2 + $0x3a0] sm:$0xff]
    %v1282 = vld [vmem:[#allocation2 + $0x3a8] sm:$0xff]
    %v1283 = vld [vmem:[#allocation2 + $0x3b0] sm:$0xff]
    %v1284 = vld [vmem:[#allocation2 + $0x3b8] sm:$0xff]
    %v1285 = vld [vmem:[#allocation2 + $0x3c0] sm:$0xff]
    %v1286 = vld [vmem:[#allocation2 + $0x3c8] sm:$0xff]
    %v1287 = vld [vmem:[#allocation2 + $0x3d0] sm:$0xff]
    %v1288 = vld [vmem:[#allocation2 + $0x3d8] sm:$0xff]
    %v1289 = vld [vmem:[#allocation2 + $0x3e0] sm:$0xff]
    %v1290 = vld [vmem:[#allocation2 + $0x3e8] sm:$0xff]
    %v1291 = vld [vmem:[#allocation2 + $0x3f0] sm:$0xff]
    %v1292 = vld [vmem:[#allocation2 + $0x3f8] sm:$0xff]
    %v1293 = vld [vmem:[#allocation2 + $0x400] sm:$0xff]
    %v1294 = vld [vmem:[#allocation2 + $0x408] sm:$0xff]
    %v1295 = vld [vmem:[#allocation2 + $0x410] sm:$0xff]
    %v1296 = vld [vmem:[#allocation2 + $0x418] sm:$0xff]
    %v1297 = vld [vmem:[#allocation2 + $0x420] sm:$0xff]
    %v1298 = vld [vmem:[#allocation2 + $0x428] sm:$0xff]
    %v1299 = vld [vmem:[#allocation2 + $0x430] sm:$0xff]
    %v1300 = vld [vmem:[#allocation2 + $0x438] sm:$0xff]
    %v1301 = vld [vmem:[#allocation2 + $0x440] sm:$0xff]
    %v1302 = vld [vmem:[#allocation2 + $0x448] sm:$0xff]
    %v1303 = vld [vmem:[#allocation2 + $0x450] sm:$0xff]
    %v1304 = vld [vmem:[#allocation2 + $0x458] sm:$0xff]
    %v1305 = vld [vmem:[#allocation2 + $0x460] sm:$0xff]
    %v1306 = vld [vmem:[#allocation2 + $0x468] sm:$0xff]
    %v1307 = vld [vmem:[#allocation2 + $0x470] sm:$0xff]
    %v1308 = vld [vmem:[#allocation2 + $0x478] sm:$0xff]
    %v1309 = vld [vmem:[#allocation2 + $0x480] sm:$0xff]
    %v1310 = vld [vmem:[#allocation2 + $0x488] sm:$0xff]
    %v1311 = vld [vmem:[#allocation2 + $0x490] sm:$0xff]
    %v1312 = vld [vmem:[#allocation2 + $0x498] sm:$0xff]
    %v1313 = vld [vmem:[#allocation2 + $0x4a0] sm:$0xff]
    %v1314 = vld [vmem:[#allocation2 + $0x4a8] sm:$0xff]
    %v1315 = vld [vmem:[#allocation2 + $0x4b0] sm:$0xff]
    %v1316 = vld [vmem:[#allocation2 + $0x4b8] sm:$0xff]
    %v1317 = vld [vmem:[#allocation2 + $0x4c0] sm:$0xff]
    %v1318 = vld [vmem:[#allocation2 + $0x4c8] sm:$0xff]
    %v1319 = vld [vmem:[#allocation2 + $0x4d0] sm:$0xff]
    %v1320 = vld [vmem:[#allocation2 + $0x4d8] sm:$0xff]
    %v1321 = vld [vmem:[#allocation2 + $0x4e0] sm:$0xff]
    %v1322 = vld [vmem:[#allocation2 + $0x4e8] sm:$0xff]
    %v1323 = vld [vmem:[#allocation2 + $0x4f0] sm:$0xff]
    %v1324 = vld [vmem:[#allocation2 + $0x4f8] sm:$0xff]
    %v1325 = vld [vmem:[#allocation2 + $0x500] sm:$0xff]
    %v1326 = vld [vmem:[#allocation2 + $0x508] sm:$0xff]
    %v1327 = vld [vmem:[#allocation2 + $0x510] sm:$0xff]
    %v1328 = vld [vmem:[#allocation2 + $0x518] sm:$0xff]
    %v1329 = vld [vmem:[#allocation2 + $0x520] sm:$0xff]
    %v1330 = vld [vmem:[#allocation2 + $0x528] sm:$0xff]
    %v1331 = vld [vmem:[#allocation2 + $0x530] sm:$0xff]
    %v1332 = vld [vmem:[#allocation2 + $0x538] sm:$0xff]
    %v1333 = vld [vmem:[#allocation2 + $0x540] sm:$0xff]
    %v1334 = vld [vmem:[#allocation2 + $0x548] sm:$0xff]
    %v1335 = vld [vmem:[#allocation2 + $0x550] sm:$0xff]
    %v1336 = vld [vmem:[#allocation2 + $0x558] sm:$0xff]
    %v1337 = vld [vmem:[#allocation2 + $0x560] sm:$0xff]
    %v1338 = vld [vmem:[#allocation2 + $0x568] sm:$0xff]
    %v1339 = vld [vmem:[#allocation2 + $0x570] sm:$0xff]
    %v1340 = vld [vmem:[#allocation2 + $0x578] sm:$0xff]
    %v1341 = vld [vmem:[#allocation2 + $0x580] sm:$0xff]
    %v1342 = vld [vmem:[#allocation2 + $0x588] sm:$0xff]
    %v1343 = vld [vmem:[#allocation2 + $0x590] sm:$0xff]
    %v1344 = vld [vmem:[#allocation2 + $0x598] sm:$0xff]
    %v1345 = vld [vmem:[#allocation2 + $0x5a0] sm:$0xff]
    %v1346 = vld [vmem:[#allocation2 + $0x5a8] sm:$0xff]
    %v1347 = vld [vmem:[#allocation2 + $0x5b0] sm:$0xff]
    %v1348 = vld [vmem:[#allocation2 + $0x5b8] sm:$0xff]
    %v1349 = vld [vmem:[#allocation2 + $0x5c0] sm:$0xff]
    %v1350 = vld [vmem:[#allocation2 + $0x5c8] sm:$0xff]
    %v1351 = vld [vmem:[#allocation2 + $0x5d0] sm:$0xff]
    %v1352 = vld [vmem:[#allocation2 + $0x5d8] sm:$0xff]
    %v1353 = vld [vmem:[#allocation2 + $0x5e0] sm:$0xff]
    %v1354 = vld [vmem:[#allocation2 + $0x5e8] sm:$0xff]
    %v1355 = vld [vmem:[#allocation2 + $0x5f0] sm:$0xff]
    %v1356 = vld [vmem:[#allocation2 + $0x5f8] sm:$0xff]
    %v1357 = vld [vmem:[#allocation2 + $0x600] sm:$0xff]
    %v1358 = vld [vmem:[#allocation2 + $0x608] sm:$0xff]
    %v1359 = vld [vmem:[#allocation2 + $0x610] sm:$0xff]
    %v1360 = vld [vmem:[#allocation2 + $0x618] sm:$0xff]
    %v1361 = vld [vmem:[#allocation2 + $0x620] sm:$0xff]
    %v1362 = vld [vmem:[#allocation2 + $0x628] sm:$0xff]
    %v1363 = vld [vmem:[#allocation2 + $0x630] sm:$0xff]
    %v1364 = vld [vmem:[#allocation2 + $0x638] sm:$0xff]
    %v1365 = vld [vmem:[#allocation2 + $0x640] sm:$0xff]
    %v1366 = vld [vmem:[#allocation2 + $0x648] sm:$0xff]
    %v1367 = vld [vmem:[#allocation2 + $0x650] sm:$0xff]
    %v1368 = vld [vmem:[#allocation2 + $0x658] sm:$0xff]
    %v1369 = vld [vmem:[#allocation2 + $0x660] sm:$0xff]
    %v1370 = vld [vmem:[#allocation2 + $0x668] sm:$0xff]
    %v1371 = vld [vmem:[#allocation2 + $0x670] sm:$0xff]
    %v1372 = vld [vmem:[#allocation2 + $0x678] sm:$0xff]
    %v1373 = vld [vmem:[#allocation2 + $0x680] sm:$0xff]
    %v1374 = vld [vmem:[#allocation2 + $0x688] sm:$0xff]
    %v1375 = vld [vmem:[#allocation2 + $0x690] sm:$0xff]
    %v1376 = vld [vmem:[#allocation2 + $0x698] sm:$0xff]
    %v1377 = vld [vmem:[#allocation2 + $0x6a0] sm:$0xff]
    %v1378 = vld [vmem:[#allocation2 + $0x6a8] sm:$0xff]
    %v1379 = vld [vmem:[#allocation2 + $0x6b0] sm:$0xff]
    %v1380 = vld [vmem:[#allocation2 + $0x6b8] sm:$0xff]
    %v1381 = vld [vmem:[#allocation2 + $0x6c0] sm:$0xff]
    %v1382 = vld [vmem:[#allocation2 + $0x6c8] sm:$0xff]
    %v1383 = vld [vmem:[#allocation2 + $0x6d0] sm:$0xff]
    %v1384 = vld [vmem:[#allocation2 + $0x6d8] sm:$0xff]
    %v1385 = vld [vmem:[#allocation2 + $0x6e0] sm:$0xff]
    %v1386 = vld [vmem:[#allocation2 + $0x6e8] sm:$0xff]
    %v1387 = vld [vmem:[#allocation2 + $0x6f0] sm:$0xff]
    %v1388 = vld [vmem:[#allocation2 + $0x6f8] sm:$0xff]
    %v1389 = vld [vmem:[#allocation2 + $0x700] sm:$0xff]
    %v1390 = vld [vmem:[#allocation2 + $0x708] sm:$0xff]
    %v1391 = vld [vmem:[#allocation2 + $0x710] sm:$0xff]
    %v1392 = vld [vmem:[#allocation2 + $0x718] sm:$0xff]
    %v1393 = vld [vmem:[#allocation2 + $0x720] sm:$0xff]
    %v1394 = vld [vmem:[#allocation2 + $0x728] sm:$0xff]
    %v1395 = vld [vmem:[#allocation2 + $0x730] sm:$0xff]
    %v1396 = vld [vmem:[#allocation2 + $0x738] sm:$0xff]
    %v1397 = vld [vmem:[#allocation2 + $0x740] sm:$0xff]
    %v1398 = vld [vmem:[#allocation2 + $0x748] sm:$0xff]
    %v1399 = vld [vmem:[#allocation2 + $0x750] sm:$0xff]
    %v1400 = vld [vmem:[#allocation2 + $0x758] sm:$0xff]
    %v1401 = vld [vmem:[#allocation2 + $0x760] sm:$0xff]
    %v1402 = vld [vmem:[#allocation2 + $0x768] sm:$0xff]
    %v1403 = vld [vmem:[#allocation2 + $0x770] sm:$0xff]
    %v1404 = vld [vmem:[#allocation2 + $0x778] sm:$0xff]
    %v1405 = vld [vmem:[#allocation2 + $0x780] sm:$0xff]
    %v1406 = vld [vmem:[#allocation2 + $0x788] sm:$0xff]
    %v1407 = vld [vmem:[#allocation2 + $0x790] sm:$0xff]
    %v1408 = vld [vmem:[#allocation2 + $0x798] sm:$0xff]
    %v1409 = vld [vmem:[#allocation2 + $0x7a0] sm:$0xff]
    %v1410 = vld [vmem:[#allocation2 + $0x7a8] sm:$0xff]
    %v1411 = vld [vmem:[#allocation2 + $0x7b0] sm:$0xff]
    %v1412 = vld [vmem:[#allocation2 + $0x7b8] sm:$0xff]
    %v1413 = vld [vmem:[#allocation2 + $0x7c0] sm:$0xff]
    %v1414 = vld [vmem:[#allocation2 + $0x7c8] sm:$0xff]
    %v1415 = vld [vmem:[#allocation2 + $0x7d0] sm:$0xff]
    %v1416 = vld [vmem:[#allocation2 + $0x7d8] sm:$0xff]
    %v1417 = vld [vmem:[#allocation2 + $0x7e0] sm:$0xff]
    %v1418 = vld [vmem:[#allocation2 + $0x7e8] sm:$0xff]
    %v1419 = vld [vmem:[#allocation2 + $0x7f0] sm:$0xff]
    %v1420 = vld [vmem:[#allocation2 + $0x7f8] sm:$0xff]
    %v1421 = vpack.c.bf16 %v1102, %v1101
    %v1422 = vpack.c.bf16 %v1104, %v1103
    %v1423 = vpack.c.bf16 %v1106, %v1105
    %v1424 = vpack.c.bf16 %v1108, %v1107
    %v1425 = vpack.c.bf16 %v1110, %v1109
    %v1426 = vpack.c.bf16 %v1112, %v1111
    %v1427 = vpack.c.bf16 %v1114, %v1113
    %v1428 = vpack.c.bf16 %v1116, %v1115
    %v1429 = vpack.c.bf16 %v1118, %v1117
    %v1430 = vpack.c.bf16 %v1120, %v1119
    %v1431 = vpack.c.bf16 %v1122, %v1121
    %v1432 = vpack.c.bf16 %v1124, %v1123
    %v1433 = vpack.c.bf16 %v1126, %v1125
    %v1434 = vpack.c.bf16 %v1128, %v1127
    %v1435 = vpack.c.bf16 %v1130, %v1129
    %v1436 = vpack.c.bf16 %v1132, %v1131
    %v1437 = vpack.c.bf16 %v1134, %v1133
    %v1438 = vpack.c.bf16 %v1136, %v1135
    %v1439 = vpack.c.bf16 %v1138, %v1137
    %v1440 = vpack.c.bf16 %v1140, %v1139
    %v1441 = vpack.c.bf16 %v1142, %v1141
    %v1442 = vpack.c.bf16 %v1144, %v1143
    %v1443 = vpack.c.bf16 %v1146, %v1145
    %v1444 = vpack.c.bf16 %v1148, %v1147
    %v1445 = vpack.c.bf16 %v1150, %v1149
    %v1446 = vpack.c.bf16 %v1152, %v1151
    %v1447 = vpack.c.bf16 %v1154, %v1153
    %v1448 = vpack.c.bf16 %v1156, %v1155
    %v1449 = vpack.c.bf16 %v1158, %v1157
    %v1450 = vpack.c.bf16 %v1160, %v1159
    %v1451 = vpack.c.bf16 %v1162, %v1161
    %v1452 = vpack.c.bf16 %v1164, %v1163
    %1453 = vset.pattern.permute.xlu0 1
    %1454 = vperm.xlu0 %1453, %v42
    %v1455 = vpop.permute.xlu0 %1454
    %1457 = vset.pattern.permute.xlu0 1
    %1458 = vperm.xlu0 %1457, %v43
    %v1459 = vpop.permute.xlu0 %1458
    %1461 = vset.pattern.permute.xlu0 1
    %1462 = vperm.xlu0 %1461, %v44
    %v1463 = vpop.permute.xlu0 %1462
    %1465 = vset.pattern.permute.xlu0 1
    %1466 = vperm.xlu0 %1465, %v45
    %v1467 = vpop.permute.xlu0 %1466
    %1469 = vset.pattern.permute.xlu0 1
    %1470 = vperm.xlu0 %1469, %v46
    %v1471 = vpop.permute.xlu0 %1470
    %1473 = vset.pattern.permute.xlu0 1
    %1474 = vperm.xlu0 %1473, %v47
    %v1475 = vpop.permute.xlu0 %1474
    %1477 = vset.pattern.permute.xlu0 1
    %1478 = vperm.xlu0 %1477, %v48
    %v1479 = vpop.permute.xlu0 %1478
    %1481 = vset.pattern.permute.xlu0 1
    %1482 = vperm.xlu0 %1481, %v49
    %v1483 = vpop.permute.xlu0 %1482
    %1485 = vset.pattern.permute.xlu0 1
    %1486 = vperm.xlu0 %1485, %v50
    %v1487 = vpop.permute.xlu0 %1486
    %1489 = vset.pattern.permute.xlu0 1
    %1490 = vperm.xlu0 %1489, %v51
    %v1491 = vpop.permute.xlu0 %1490
    %1493 = vset.pattern.permute.xlu0 1
    %1494 = vperm.xlu0 %1493, %v52
    %v1495 = vpop.permute.xlu0 %1494
    %1497 = vset.pattern.permute.xlu0 1
    %1498 = vperm.xlu0 %1497, %v53
    %v1499 = vpop.permute.xlu0 %1498
    %1501 = vset.pattern.permute.xlu0 1
    %1502 = vperm.xlu0 %1501, %v54
    %v1503 = vpop.permute.xlu0 %1502
    %1505 = vset.pattern.permute.xlu0 1
    %1506 = vperm.xlu0 %1505, %v55
    %v1507 = vpop.permute.xlu0 %1506
    %1509 = vset.pattern.permute.xlu0 1
    %1510 = vperm.xlu0 %1509, %v56
    %v1511 = vpop.permute.xlu0 %1510
    %1513 = vset.pattern.permute.xlu0 1
    %1514 = vperm.xlu0 %1513, %v57
    %v1515 = vpop.permute.xlu0 %1514
    %1517 = vset.pattern.permute.xlu0 1
    %1518 = vperm.xlu0 %1517, %v58
    %v1519 = vpop.permute.xlu0 %1518
    %1521 = vset.pattern.permute.xlu0 1
    %1522 = vperm.xlu0 %1521, %v59
    %v1523 = vpop.permute.xlu0 %1522
    %1525 = vset.pattern.permute.xlu0 1
    %1526 = vperm.xlu0 %1525, %v60
    %v1527 = vpop.permute.xlu0 %1526
    %1529 = vset.pattern.permute.xlu0 1
    %1530 = vperm.xlu0 %1529, %v61
    %v1531 = vpop.permute.xlu0 %1530
    %1533 = vset.pattern.permute.xlu0 1
    %1534 = vperm.xlu0 %1533, %v62
    %v1535 = vpop.permute.xlu0 %1534
    %1537 = vset.pattern.permute.xlu0 1
    %1538 = vperm.xlu0 %1537, %v63
    %v1539 = vpop.permute.xlu0 %1538
    %1541 = vset.pattern.permute.xlu0 1
    %1542 = vperm.xlu0 %1541, %v64
    %v1543 = vpop.permute.xlu0 %1542
    %1545 = vset.pattern.permute.xlu0 1
    %1546 = vperm.xlu0 %1545, %v65
    %v1547 = vpop.permute.xlu0 %1546
    %1549 = vset.pattern.permute.xlu0 1
    %1550 = vperm.xlu0 %1549, %v66
    %v1551 = vpop.permute.xlu0 %1550
    %1553 = vset.pattern.permute.xlu0 1
    %1554 = vperm.xlu0 %1553, %v67
    %v1555 = vpop.permute.xlu0 %1554
    %1557 = vset.pattern.permute.xlu0 1
    %1558 = vperm.xlu0 %1557, %v68
    %v1559 = vpop.permute.xlu0 %1558
    %1561 = vset.pattern.permute.xlu0 1
    %1562 = vperm.xlu0 %1561, %v69
    %v1563 = vpop.permute.xlu0 %1562
    %1565 = vset.pattern.permute.xlu0 1
    %1566 = vperm.xlu0 %1565, %v70
    %v1567 = vpop.permute.xlu0 %1566
    %1569 = vset.pattern.permute.xlu0 1
    %1570 = vperm.xlu0 %1569, %v71
    %v1571 = vpop.permute.xlu0 %1570
    %1573 = vset.pattern.permute.xlu0 1
    %1574 = vperm.xlu0 %1573, %v72
    %v1575 = vpop.permute.xlu0 %1574
    %1577 = vset.pattern.permute.xlu0 1
    %1578 = vperm.xlu0 %1577, %v73
    %v1579 = vpop.permute.xlu0 %1578
    %1581 = vset.pattern.permute.xlu0 1
    %1582 = vperm.xlu0 %1581, %v74
    %v1583 = vpop.permute.xlu0 %1582
    %1585 = vset.pattern.permute.xlu0 1
    %1586 = vperm.xlu0 %1585, %v75
    %v1587 = vpop.permute.xlu0 %1586
    %1589 = vset.pattern.permute.xlu0 1
    %1590 = vperm.xlu0 %1589, %v76
    %v1591 = vpop.permute.xlu0 %1590
    %1593 = vset.pattern.permute.xlu0 1
    %1594 = vperm.xlu0 %1593, %v77
    %v1595 = vpop.permute.xlu0 %1594
    %1597 = vset.pattern.permute.xlu0 1
    %1598 = vperm.xlu0 %1597, %v78
    %v1599 = vpop.permute.xlu0 %1598
    %1601 = vset.pattern.permute.xlu0 1
    %1602 = vperm.xlu0 %1601, %v79
    %v1603 = vpop.permute.xlu0 %1602
    %1605 = vset.pattern.permute.xlu0 1
    %1606 = vperm.xlu0 %1605, %v80
    %v1607 = vpop.permute.xlu0 %1606
    %1609 = vset.pattern.permute.xlu0 1
    %1610 = vperm.xlu0 %1609, %v81
    %v1611 = vpop.permute.xlu0 %1610
    %1613 = vset.pattern.permute.xlu0 1
    %1614 = vperm.xlu0 %1613, %v82
    %v1615 = vpop.permute.xlu0 %1614
    %1617 = vset.pattern.permute.xlu0 1
    %1618 = vperm.xlu0 %1617, %v83
    %v1619 = vpop.permute.xlu0 %1618
    %1621 = vset.pattern.permute.xlu0 1
    %1622 = vperm.xlu0 %1621, %v84
    %v1623 = vpop.permute.xlu0 %1622
    %1625 = vset.pattern.permute.xlu0 1
    %1626 = vperm.xlu0 %1625, %v85
    %v1627 = vpop.permute.xlu0 %1626
    %1629 = vset.pattern.permute.xlu0 1
    %1630 = vperm.xlu0 %1629, %v86
    %v1631 = vpop.permute.xlu0 %1630
    %1633 = vset.pattern.permute.xlu0 1
    %1634 = vperm.xlu0 %1633, %v87
    %v1635 = vpop.permute.xlu0 %1634
    %1637 = vset.pattern.permute.xlu0 1
    %1638 = vperm.xlu0 %1637, %v88
    %v1639 = vpop.permute.xlu0 %1638
    %1641 = vset.pattern.permute.xlu0 1
    %1642 = vperm.xlu0 %1641, %v89
    %v1643 = vpop.permute.xlu0 %1642
    %1645 = vset.pattern.permute.xlu0 1
    %1646 = vperm.xlu0 %1645, %v90
    %v1647 = vpop.permute.xlu0 %1646
    %1649 = vset.pattern.permute.xlu0 1
    %1650 = vperm.xlu0 %1649, %v91
    %v1651 = vpop.permute.xlu0 %1650
    %1653 = vset.pattern.permute.xlu0 1
    %1654 = vperm.xlu0 %1653, %v92
    %v1655 = vpop.permute.xlu0 %1654
    %1657 = vset.pattern.permute.xlu0 1
    %1658 = vperm.xlu0 %1657, %v93
    %v1659 = vpop.permute.xlu0 %1658
    %1661 = vset.pattern.permute.xlu0 1
    %1662 = vperm.xlu0 %1661, %v94
    %v1663 = vpop.permute.xlu0 %1662
    %1665 = vset.pattern.permute.xlu0 1
    %1666 = vperm.xlu0 %1665, %v95
    %v1667 = vpop.permute.xlu0 %1666
    %1669 = vset.pattern.permute.xlu0 1
    %1670 = vperm.xlu0 %1669, %v96
    %v1671 = vpop.permute.xlu0 %1670
    %1673 = vset.pattern.permute.xlu0 1
    %1674 = vperm.xlu0 %1673, %v97
    %v1675 = vpop.permute.xlu0 %1674
    %1677 = vset.pattern.permute.xlu0 1
    %1678 = vperm.xlu0 %1677, %v98
    %v1679 = vpop.permute.xlu0 %1678
    %1681 = vset.pattern.permute.xlu0 1
    %1682 = vperm.xlu0 %1681, %v99
    %v1683 = vpop.permute.xlu0 %1682
    %1685 = vset.pattern.permute.xlu0 1
    %1686 = vperm.xlu0 %1685, %v100
    %v1687 = vpop.permute.xlu0 %1686
    %1689 = vset.pattern.permute.xlu0 1
    %1690 = vperm.xlu0 %1689, %v101
    %v1691 = vpop.permute.xlu0 %1690
    %1693 = vset.pattern.permute.xlu0 1
    %1694 = vperm.xlu0 %1693, %v102
    %v1695 = vpop.permute.xlu0 %1694
    %1697 = vset.pattern.permute.xlu0 1
    %1698 = vperm.xlu0 %1697, %v103
    %v1699 = vpop.permute.xlu0 %1698
    %1701 = vset.pattern.permute.xlu0 1
    %1702 = vperm.xlu0 %1701, %v104
    %v1703 = vpop.permute.xlu0 %1702
    %1705 = vset.pattern.permute.xlu0 1
    %1706 = vperm.xlu0 %1705, %v105
    %v1707 = vpop.permute.xlu0 %1706
    %1710 = vset.pattern.permute.xlu0 1
    %1711 = vperm.xlu0 %1710, %v106
    %v1712 = vpop.permute.xlu0 %1711
    %1715 = vset.pattern.permute.xlu0 1
    %1716 = vperm.xlu0 %1715, %v107
    %v1717 = vpop.permute.xlu0 %1716
    %1720 = vset.pattern.permute.xlu0 1
    %1721 = vperm.xlu0 %1720, %v108
    %v1722 = vpop.permute.xlu0 %1721
    %1725 = vset.pattern.permute.xlu0 1
    %1726 = vperm.xlu0 %1725, %v109
    %v1727 = vpop.permute.xlu0 %1726
    %1730 = vset.pattern.permute.xlu0 1
    %1731 = vperm.xlu0 %1730, %v110
    %v1732 = vpop.permute.xlu0 %1731
    %1735 = vset.pattern.permute.xlu0 1
    %1736 = vperm.xlu0 %1735, %v111
    %v1737 = vpop.permute.xlu0 %1736
    %1740 = vset.pattern.permute.xlu0 1
    %1741 = vperm.xlu0 %1740, %v112
    %v1742 = vpop.permute.xlu0 %1741
    %1745 = vset.pattern.permute.xlu0 1
    %1746 = vperm.xlu0 %1745, %v113
    %v1747 = vpop.permute.xlu0 %1746
    %1750 = vset.pattern.permute.xlu0 1
    %1751 = vperm.xlu0 %1750, %v114
    %v1752 = vpop.permute.xlu0 %1751
    %1755 = vset.pattern.permute.xlu0 1
    %1756 = vperm.xlu0 %1755, %v115
    %v1757 = vpop.permute.xlu0 %1756
    %1760 = vset.pattern.permute.xlu0 1
    %1761 = vperm.xlu0 %1760, %v116
    %v1762 = vpop.permute.xlu0 %1761
    %1765 = vset.pattern.permute.xlu0 1
    %1766 = vperm.xlu0 %1765, %v117
    %v1767 = vpop.permute.xlu0 %1766
    %1770 = vset.pattern.permute.xlu0 1
    %1771 = vperm.xlu0 %1770, %v118
    %v1772 = vpop.permute.xlu0 %1771
    %1775 = vset.pattern.permute.xlu0 1
    %1776 = vperm.xlu0 %1775, %v119
    %v1777 = vpop.permute.xlu0 %1776
    %1780 = vset.pattern.permute.xlu0 1
    %1781 = vperm.xlu0 %1780, %v120
    %v1782 = vpop.permute.xlu0 %1781
    %1785 = vset.pattern.permute.xlu0 1
    %1786 = vperm.xlu0 %1785, %v121
    %v1787 = vpop.permute.xlu0 %1786
    %1790 = vset.pattern.permute.xlu0 1
    %1791 = vperm.xlu0 %1790, %v122
    %v1792 = vpop.permute.xlu0 %1791
    %1795 = vset.pattern.permute.xlu0 1
    %1796 = vperm.xlu0 %1795, %v123
    %v1797 = vpop.permute.xlu0 %1796
    %1800 = vset.pattern.permute.xlu0 1
    %1801 = vperm.xlu0 %1800, %v124
    %v1802 = vpop.permute.xlu0 %1801
    %1805 = vset.pattern.permute.xlu0 1
    %1806 = vperm.xlu0 %1805, %v125
    %v1807 = vpop.permute.xlu0 %1806
    %1810 = vset.pattern.permute.xlu0 1
    %1811 = vperm.xlu0 %1810, %v126
    %v1812 = vpop.permute.xlu0 %1811
    %1815 = vset.pattern.permute.xlu0 1
    %1816 = vperm.xlu0 %1815, %v127
    %v1817 = vpop.permute.xlu0 %1816
    %1820 = vset.pattern.permute.xlu0 1
    %1821 = vperm.xlu0 %1820, %v128
    %v1822 = vpop.permute.xlu0 %1821
    %1825 = vset.pattern.permute.xlu0 1
    %1826 = vperm.xlu0 %1825, %v129
    %v1827 = vpop.permute.xlu0 %1826
    %1830 = vset.pattern.permute.xlu0 1
    %1831 = vperm.xlu0 %1830, %v130
    %v1832 = vpop.permute.xlu0 %1831
    %1835 = vset.pattern.permute.xlu0 1
    %1836 = vperm.xlu0 %1835, %v131
    %v1837 = vpop.permute.xlu0 %1836
    %1840 = vset.pattern.permute.xlu0 1
    %1841 = vperm.xlu0 %1840, %v132
    %v1842 = vpop.permute.xlu0 %1841
    %1845 = vset.pattern.permute.xlu0 1
    %1846 = vperm.xlu0 %1845, %v133
    %v1847 = vpop.permute.xlu0 %1846
    %1850 = vset.pattern.permute.xlu0 1
    %1851 = vperm.xlu0 %1850, %v134
    %v1852 = vpop.permute.xlu0 %1851
    %1855 = vset.pattern.permute.xlu0 1
    %1856 = vperm.xlu0 %1855, %v135
    %v1857 = vpop.permute.xlu0 %1856
    %1860 = vset.pattern.permute.xlu0 1
    %1861 = vperm.xlu0 %1860, %v136
    %v1862 = vpop.permute.xlu0 %1861
    %1865 = vset.pattern.permute.xlu0 1
    %1866 = vperm.xlu0 %1865, %v137
    %v1867 = vpop.permute.xlu0 %1866
    %1870 = vset.pattern.permute.xlu0 1
    %1871 = vperm.xlu0 %1870, %v138
    %v1872 = vpop.permute.xlu0 %1871
    %1875 = vset.pattern.permute.xlu0 1
    %1876 = vperm.xlu0 %1875, %v139
    %v1877 = vpop.permute.xlu0 %1876
    %1880 = vset.pattern.permute.xlu0 1
    %1881 = vperm.xlu0 %1880, %v140
    %v1882 = vpop.permute.xlu0 %1881
    %1885 = vset.pattern.permute.xlu0 1
    %1886 = vperm.xlu0 %1885, %v141
    %v1887 = vpop.permute.xlu0 %1886
    %1890 = vset.pattern.permute.xlu0 1
    %1891 = vperm.xlu0 %1890, %v142
    %v1892 = vpop.permute.xlu0 %1891
    %1895 = vset.pattern.permute.xlu0 1
    %1896 = vperm.xlu0 %1895, %v143
    %v1897 = vpop.permute.xlu0 %1896
    %1900 = vset.pattern.permute.xlu0 1
    %1901 = vperm.xlu0 %1900, %v144
    %v1902 = vpop.permute.xlu0 %1901
    %1905 = vset.pattern.permute.xlu0 1
    %1906 = vperm.xlu0 %1905, %v145
    %v1907 = vpop.permute.xlu0 %1906
    %1910 = vset.pattern.permute.xlu0 1
    %1911 = vperm.xlu0 %1910, %v146
    %v1912 = vpop.permute.xlu0 %1911
    %1915 = vset.pattern.permute.xlu0 1
    %1916 = vperm.xlu0 %1915, %v147
    %v1917 = vpop.permute.xlu0 %1916
    %1920 = vset.pattern.permute.xlu0 1
    %1921 = vperm.xlu0 %1920, %v148
    %v1922 = vpop.permute.xlu0 %1921
    %1925 = vset.pattern.permute.xlu0 1
    %1926 = vperm.xlu0 %1925, %v149
    %v1927 = vpop.permute.xlu0 %1926
    %1930 = vset.pattern.permute.xlu0 1
    %1931 = vperm.xlu0 %1930, %v150
    %v1932 = vpop.permute.xlu0 %1931
    %1935 = vset.pattern.permute.xlu0 1
    %1936 = vperm.xlu0 %1935, %v151
    %v1937 = vpop.permute.xlu0 %1936
    %1940 = vset.pattern.permute.xlu0 1
    %1941 = vperm.xlu0 %1940, %v152
    %v1942 = vpop.permute.xlu0 %1941
    %1945 = vset.pattern.permute.xlu0 1
    %1946 = vperm.xlu0 %1945, %v153
    %v1947 = vpop.permute.xlu0 %1946
    %1950 = vset.pattern.permute.xlu0 1
    %1951 = vperm.xlu0 %1950, %v154
    %v1952 = vpop.permute.xlu0 %1951
    %1955 = vset.pattern.permute.xlu0 1
    %1956 = vperm.xlu0 %1955, %v155
    %v1957 = vpop.permute.xlu0 %1956
    %1960 = vset.pattern.permute.xlu0 1
    %1961 = vperm.xlu0 %1960, %v156
    %v1962 = vpop.permute.xlu0 %1961
    %1965 = vset.pattern.permute.xlu0 1
    %1966 = vperm.xlu0 %1965, %v157
    %v1967 = vpop.permute.xlu0 %1966
    %1970 = vset.pattern.permute.xlu0 1
    %1971 = vperm.xlu0 %1970, %v158
    %v1972 = vpop.permute.xlu0 %1971
    %1975 = vset.pattern.permute.xlu0 1
    %1976 = vperm.xlu0 %1975, %v159
    %v1977 = vpop.permute.xlu0 %1976
    %1980 = vset.pattern.permute.xlu0 1
    %1981 = vperm.xlu0 %1980, %v160
    %v1982 = vpop.permute.xlu0 %1981
    %1985 = vset.pattern.permute.xlu0 1
    %1986 = vperm.xlu0 %1985, %v161
    %v1987 = vpop.permute.xlu0 %1986
    %1990 = vset.pattern.permute.xlu0 1
    %1991 = vperm.xlu0 %1990, %v162
    %v1992 = vpop.permute.xlu0 %1991
    %1995 = vset.pattern.permute.xlu0 1
    %1996 = vperm.xlu0 %1995, %v163
    %v1997 = vpop.permute.xlu0 %1996
    %2000 = vset.pattern.permute.xlu0 1
    %2001 = vperm.xlu0 %2000, %v164
    %v2002 = vpop.permute.xlu0 %2001
    %2005 = vset.pattern.permute.xlu0 1
    %2006 = vperm.xlu0 %2005, %v165
    %v2007 = vpop.permute.xlu0 %2006
    %2010 = vset.pattern.permute.xlu0 1
    %2011 = vperm.xlu0 %2010, %v166
    %v2012 = vpop.permute.xlu0 %2011
    %2015 = vset.pattern.permute.xlu0 1
    %2016 = vperm.xlu0 %2015, %v167
    %v2017 = vpop.permute.xlu0 %2016
    %2020 = vset.pattern.permute.xlu0 1
    %2021 = vperm.xlu0 %2020, %v168
    %v2022 = vpop.permute.xlu0 %2021
    %2025 = vset.pattern.permute.xlu0 1
    %2026 = vperm.xlu0 %2025, %v169
    %v2027 = vpop.permute.xlu0 %2026
    %v2285 = vunpack.c.l.b16 %v1165
    %v2286 = vunpack.c.h.b16 %v1165
    %v2287 = vunpack.c.l.b16 %v1166
    %v2288 = vunpack.c.h.b16 %v1166
    %v2289 = vunpack.c.l.b16 %v1167
    %v2290 = vunpack.c.h.b16 %v1167
    %v2291 = vunpack.c.l.b16 %v1168
    %v2292 = vunpack.c.h.b16 %v1168
    %v2293 = vunpack.c.l.b16 %v1169
    %v2294 = vunpack.c.h.b16 %v1169
    %v2295 = vunpack.c.l.b16 %v1170
    %v2296 = vunpack.c.h.b16 %v1170
    %v2297 = vunpack.c.l.b16 %v1171
    %v2298 = vunpack.c.h.b16 %v1171
    %v2299 = vunpack.c.l.b16 %v1172
    %v2300 = vunpack.c.h.b16 %v1172
    %v2301 = vunpack.c.l.b16 %v1173
    %v2302 = vunpack.c.h.b16 %v1173
    %v2303 = vunpack.c.l.b16 %v1174
    %v2304 = vunpack.c.h.b16 %v1174
    %v2305 = vunpack.c.l.b16 %v1175
    %v2306 = vunpack.c.h.b16 %v1175
    %v2307 = vunpack.c.l.b16 %v1176
    %v2308 = vunpack.c.h.b16 %v1176
    %v2309 = vunpack.c.l.b16 %v1177
    %v2310 = vunpack.c.h.b16 %v1177
    %v2311 = vunpack.c.l.b16 %v1178
    %v2312 = vunpack.c.h.b16 %v1178
    %v2313 = vunpack.c.l.b16 %v1179
    %v2314 = vunpack.c.h.b16 %v1179
    %v2315 = vunpack.c.l.b16 %v1180
    %v2316 = vunpack.c.h.b16 %v1180
    %v2317 = vunpack.c.l.b16 %v1181
    %v2318 = vunpack.c.h.b16 %v1181
    %v2319 = vunpack.c.l.b16 %v1182
    %v2320 = vunpack.c.h.b16 %v1182
    %v2321 = vunpack.c.l.b16 %v1183
    %v2322 = vunpack.c.h.b16 %v1183
    %v2323 = vunpack.c.l.b16 %v1184
    %v2324 = vunpack.c.h.b16 %v1184
    %v2325 = vunpack.c.l.b16 %v1185
    %v2326 = vunpack.c.h.b16 %v1185
    %v2327 = vunpack.c.l.b16 %v1186
    %v2328 = vunpack.c.h.b16 %v1186
    %v2329 = vunpack.c.l.b16 %v1187
    %v2330 = vunpack.c.h.b16 %v1187
    %v2331 = vunpack.c.l.b16 %v1188
    %v2332 = vunpack.c.h.b16 %v1188
    %v2333 = vunpack.c.l.b16 %v1189
    %v2334 = vunpack.c.h.b16 %v1189
    %v2335 = vunpack.c.l.b16 %v1190
    %v2336 = vunpack.c.h.b16 %v1190
    %v2337 = vunpack.c.l.b16 %v1191
    %v2338 = vunpack.c.h.b16 %v1191
    %v2339 = vunpack.c.l.b16 %v1192
    %v2340 = vunpack.c.h.b16 %v1192
    %v2341 = vunpack.c.l.b16 %v1193
    %v2342 = vunpack.c.h.b16 %v1193
    %v2343 = vunpack.c.l.b16 %v1194
    %v2344 = vunpack.c.h.b16 %v1194
    %v2345 = vunpack.c.l.b16 %v1195
    %v2346 = vunpack.c.h.b16 %v1195
    %v2347 = vunpack.c.l.b16 %v1196
    %v2348 = vunpack.c.h.b16 %v1196
    %v2349 = vunpack.c.l.b16 %v1197
    %v2350 = vunpack.c.h.b16 %v1197
    %v2351 = vunpack.c.l.b16 %v1198
    %v2352 = vunpack.c.h.b16 %v1198
    %v2353 = vunpack.c.l.b16 %v1199
    %v2354 = vunpack.c.h.b16 %v1199
    %v2355 = vunpack.c.l.b16 %v1200
    %v2356 = vunpack.c.h.b16 %v1200
    %v2357 = vunpack.c.l.b16 %v1201
    %v2358 = vunpack.c.h.b16 %v1201
    %v2359 = vunpack.c.l.b16 %v1202
    %v2360 = vunpack.c.h.b16 %v1202
    %v2361 = vunpack.c.l.b16 %v1203
    %v2362 = vunpack.c.h.b16 %v1203
    %v2363 = vunpack.c.l.b16 %v1204
    %v2364 = vunpack.c.h.b16 %v1204
    %v2365 = vunpack.c.l.b16 %v1205
    %v2366 = vunpack.c.h.b16 %v1205
    %v2367 = vunpack.c.l.b16 %v1206
    %v2368 = vunpack.c.h.b16 %v1206
    %v2369 = vunpack.c.l.b16 %v1207
    %v2370 = vunpack.c.h.b16 %v1207
    %v2371 = vunpack.c.l.b16 %v1208
    %v2372 = vunpack.c.h.b16 %v1208
    %v2373 = vunpack.c.l.b16 %v1209
    %v2374 = vunpack.c.h.b16 %v1209
    %v2375 = vunpack.c.l.b16 %v1210
    %v2376 = vunpack.c.h.b16 %v1210
    %v2377 = vunpack.c.l.b16 %v1211
    %v2378 = vunpack.c.h.b16 %v1211
    %v2379 = vunpack.c.l.b16 %v1212
    %v2380 = vunpack.c.h.b16 %v1212
    %v2381 = vunpack.c.l.b16 %v1213
    %v2382 = vunpack.c.h.b16 %v1213
    %v2383 = vunpack.c.l.b16 %v1214
    %v2384 = vunpack.c.h.b16 %v1214
    %v2385 = vunpack.c.l.b16 %v1215
    %v2386 = vunpack.c.h.b16 %v1215
    %v2387 = vunpack.c.l.b16 %v1216
    %v2388 = vunpack.c.h.b16 %v1216
    %v2389 = vunpack.c.l.b16 %v1217
    %v2390 = vunpack.c.h.b16 %v1217
    %v2391 = vunpack.c.l.b16 %v1218
    %v2392 = vunpack.c.h.b16 %v1218
    %v2393 = vunpack.c.l.b16 %v1219
    %v2394 = vunpack.c.h.b16 %v1219
    %v2395 = vunpack.c.l.b16 %v1220
    %v2396 = vunpack.c.h.b16 %v1220
    %v2397 = vunpack.c.l.b16 %v1221
    %v2398 = vunpack.c.h.b16 %v1221
    %v2399 = vunpack.c.l.b16 %v1222
    %v2400 = vunpack.c.h.b16 %v1222
    %v2401 = vunpack.c.l.b16 %v1223
    %v2402 = vunpack.c.h.b16 %v1223
    %v2403 = vunpack.c.l.b16 %v1224
    %v2404 = vunpack.c.h.b16 %v1224
    %v2405 = vunpack.c.l.b16 %v1225
    %v2406 = vunpack.c.h.b16 %v1225
    %v2407 = vunpack.c.l.b16 %v1226
    %v2408 = vunpack.c.h.b16 %v1226
    %v2409 = vunpack.c.l.b16 %v1227
    %v2410 = vunpack.c.h.b16 %v1227
    %v2411 = vunpack.c.l.b16 %v1228
    %v2412 = vunpack.c.h.b16 %v1228
    %v2413 = vunpack.c.l.b16 %v1229
    %v2414 = vunpack.c.h.b16 %v1229
    %v2415 = vunpack.c.l.b16 %v1230
    %v2416 = vunpack.c.h.b16 %v1230
    %v2417 = vunpack.c.l.b16 %v1231
    %v2418 = vunpack.c.h.b16 %v1231
    %v2419 = vunpack.c.l.b16 %v1232
    %v2420 = vunpack.c.h.b16 %v1232
    %v2421 = vunpack.c.l.b16 %v1233
    %v2422 = vunpack.c.h.b16 %v1233
    %v2423 = vunpack.c.l.b16 %v1234
    %v2424 = vunpack.c.h.b16 %v1234
    %v2425 = vunpack.c.l.b16 %v1235
    %v2426 = vunpack.c.h.b16 %v1235
    %v2427 = vunpack.c.l.b16 %v1236
    %v2428 = vunpack.c.h.b16 %v1236
    %v2429 = vunpack.c.l.b16 %v1237
    %v2430 = vunpack.c.h.b16 %v1237
    %v2431 = vunpack.c.l.b16 %v1238
    %v2432 = vunpack.c.h.b16 %v1238
    %v2433 = vunpack.c.l.b16 %v1239
    %v2434 = vunpack.c.h.b16 %v1239
    %v2435 = vunpack.c.l.b16 %v1240
    %v2436 = vunpack.c.h.b16 %v1240
    %v2437 = vunpack.c.l.b16 %v1241
    %v2438 = vunpack.c.h.b16 %v1241
    %v2439 = vunpack.c.l.b16 %v1242
    %v2440 = vunpack.c.h.b16 %v1242
    %v2441 = vunpack.c.l.b16 %v1243
    %v2442 = vunpack.c.h.b16 %v1243
    %v2443 = vunpack.c.l.b16 %v1244
    %v2444 = vunpack.c.h.b16 %v1244
    %v2445 = vunpack.c.l.b16 %v1245
    %v2446 = vunpack.c.h.b16 %v1245
    %v2447 = vunpack.c.l.b16 %v1246
    %v2448 = vunpack.c.h.b16 %v1246
    %v2449 = vunpack.c.l.b16 %v1247
    %v2450 = vunpack.c.h.b16 %v1247
    %v2451 = vunpack.c.l.b16 %v1248
    %v2452 = vunpack.c.h.b16 %v1248
    %v2453 = vunpack.c.l.b16 %v1249
    %v2454 = vunpack.c.h.b16 %v1249
    %v2455 = vunpack.c.l.b16 %v1250
    %v2456 = vunpack.c.h.b16 %v1250
    %v2457 = vunpack.c.l.b16 %v1251
    %v2458 = vunpack.c.h.b16 %v1251
    %v2459 = vunpack.c.l.b16 %v1252
    %v2460 = vunpack.c.h.b16 %v1252
    %v2461 = vunpack.c.l.b16 %v1253
    %v2462 = vunpack.c.h.b16 %v1253
    %v2463 = vunpack.c.l.b16 %v1254
    %v2464 = vunpack.c.h.b16 %v1254
    %v2465 = vunpack.c.l.b16 %v1255
    %v2466 = vunpack.c.h.b16 %v1255
    %v2467 = vunpack.c.l.b16 %v1256
    %v2468 = vunpack.c.h.b16 %v1256
    %v2469 = vunpack.c.l.b16 %v1257
    %v2470 = vunpack.c.h.b16 %v1257
    %v2471 = vunpack.c.l.b16 %v1258
    %v2472 = vunpack.c.h.b16 %v1258
    %v2473 = vunpack.c.l.b16 %v1259
    %v2474 = vunpack.c.h.b16 %v1259
    %v2475 = vunpack.c.l.b16 %v1260
    %v2476 = vunpack.c.h.b16 %v1260
    %v2477 = vunpack.c.l.b16 %v1261
    %v2478 = vunpack.c.h.b16 %v1261
    %v2479 = vunpack.c.l.b16 %v1262
    %v2480 = vunpack.c.h.b16 %v1262
    %v2481 = vunpack.c.l.b16 %v1263
    %v2482 = vunpack.c.h.b16 %v1263
    %v2483 = vunpack.c.l.b16 %v1264
    %v2484 = vunpack.c.h.b16 %v1264
    %v2485 = vunpack.c.l.b16 %v1265
    %v2486 = vunpack.c.h.b16 %v1265
    %v2487 = vunpack.c.l.b16 %v1266
    %v2488 = vunpack.c.h.b16 %v1266
    %v2489 = vunpack.c.l.b16 %v1267
    %v2490 = vunpack.c.h.b16 %v1267
    %v2491 = vunpack.c.l.b16 %v1268
    %v2492 = vunpack.c.h.b16 %v1268
    %v2493 = vunpack.c.l.b16 %v1269
    %v2494 = vunpack.c.h.b16 %v1269
    %v2495 = vunpack.c.l.b16 %v1270
    %v2496 = vunpack.c.h.b16 %v1270
    %v2497 = vunpack.c.l.b16 %v1271
    %v2498 = vunpack.c.h.b16 %v1271
    %v2499 = vunpack.c.l.b16 %v1272
    %v2500 = vunpack.c.h.b16 %v1272
    %v2501 = vunpack.c.l.b16 %v1273
    %v2502 = vunpack.c.h.b16 %v1273
    %v2503 = vunpack.c.l.b16 %v1274
    %v2504 = vunpack.c.h.b16 %v1274
    %v2505 = vunpack.c.l.b16 %v1275
    %v2506 = vunpack.c.h.b16 %v1275
    %v2507 = vunpack.c.l.b16 %v1276
    %v2508 = vunpack.c.h.b16 %v1276
    %v2509 = vunpack.c.l.b16 %v1277
    %v2510 = vunpack.c.h.b16 %v1277
    %v2511 = vunpack.c.l.b16 %v1278
    %v2512 = vunpack.c.h.b16 %v1278
    %v2513 = vunpack.c.l.b16 %v1279
    %v2514 = vunpack.c.h.b16 %v1279
    %v2515 = vunpack.c.l.b16 %v1280
    %v2516 = vunpack.c.h.b16 %v1280
    %v2517 = vunpack.c.l.b16 %v1281
    %v2518 = vunpack.c.h.b16 %v1281
    %v2519 = vunpack.c.l.b16 %v1282
    %v2520 = vunpack.c.h.b16 %v1282
    %v2521 = vunpack.c.l.b16 %v1283
    %v2522 = vunpack.c.h.b16 %v1283
    %v2523 = vunpack.c.l.b16 %v1284
    %v2524 = vunpack.c.h.b16 %v1284
    %v2525 = vunpack.c.l.b16 %v1285
    %v2526 = vunpack.c.h.b16 %v1285
    %v2527 = vunpack.c.l.b16 %v1286
    %v2528 = vunpack.c.h.b16 %v1286
    %v2529 = vunpack.c.l.b16 %v1287
    %v2530 = vunpack.c.h.b16 %v1287
    %v2531 = vunpack.c.l.b16 %v1288
    %v2532 = vunpack.c.h.b16 %v1288
    %v2533 = vunpack.c.l.b16 %v1289
    %v2534 = vunpack.c.h.b16 %v1289
    %v2535 = vunpack.c.l.b16 %v1290
    %v2536 = vunpack.c.h.b16 %v1290
    %v2537 = vunpack.c.l.b16 %v1291
    %v2538 = vunpack.c.h.b16 %v1291
    %v2539 = vunpack.c.l.b16 %v1292
    %v2540 = vunpack.c.h.b16 %v1292
    %v2541 = vunpack.c.l.b16 %v1293
    %v2542 = vunpack.c.h.b16 %v1293
    %v2543 = vunpack.c.l.b16 %v1294
    %v2544 = vunpack.c.h.b16 %v1294
    %v2545 = vunpack.c.l.b16 %v1295
    %v2546 = vunpack.c.h.b16 %v1295
    %v2547 = vunpack.c.l.b16 %v1296
    %v2548 = vunpack.c.h.b16 %v1296
    %v2549 = vunpack.c.l.b16 %v1297
    %v2550 = vunpack.c.h.b16 %v1297
    %v2551 = vunpack.c.l.b16 %v1298
    %v2552 = vunpack.c.h.b16 %v1298
    %v2553 = vunpack.c.l.b16 %v1299
    %v2554 = vunpack.c.h.b16 %v1299
    %v2555 = vunpack.c.l.b16 %v1300
    %v2556 = vunpack.c.h.b16 %v1300
    %v2557 = vunpack.c.l.b16 %v1301
    %v2558 = vunpack.c.h.b16 %v1301
    %v2559 = vunpack.c.l.b16 %v1302
    %v2560 = vunpack.c.h.b16 %v1302
    %v2561 = vunpack.c.l.b16 %v1303
    %v2562 = vunpack.c.h.b16 %v1303
    %v2563 = vunpack.c.l.b16 %v1304
    %v2564 = vunpack.c.h.b16 %v1304
    %v2565 = vunpack.c.l.b16 %v1305
    %v2566 = vunpack.c.h.b16 %v1305
    %v2567 = vunpack.c.l.b16 %v1306
    %v2568 = vunpack.c.h.b16 %v1306
    %v2569 = vunpack.c.l.b16 %v1307
    %v2570 = vunpack.c.h.b16 %v1307
    %v2571 = vunpack.c.l.b16 %v1308
    %v2572 = vunpack.c.h.b16 %v1308
    %v2573 = vunpack.c.l.b16 %v1309
    %v2574 = vunpack.c.h.b16 %v1309
    %v2575 = vunpack.c.l.b16 %v1310
    %v2576 = vunpack.c.h.b16 %v1310
    %v2577 = vunpack.c.l.b16 %v1311
    %v2578 = vunpack.c.h.b16 %v1311
    %v2579 = vunpack.c.l.b16 %v1312
    %v2580 = vunpack.c.h.b16 %v1312
    %v2581 = vunpack.c.l.b16 %v1313
    %v2582 = vunpack.c.h.b16 %v1313
    %v2583 = vunpack.c.l.b16 %v1314
    %v2584 = vunpack.c.h.b16 %v1314
    %v2585 = vunpack.c.l.b16 %v1315
    %v2586 = vunpack.c.h.b16 %v1315
    %v2587 = vunpack.c.l.b16 %v1316
    %v2588 = vunpack.c.h.b16 %v1316
    %v2589 = vunpack.c.l.b16 %v1317
    %v2590 = vunpack.c.h.b16 %v1317
    %v2591 = vunpack.c.l.b16 %v1318
    %v2592 = vunpack.c.h.b16 %v1318
    %v2593 = vunpack.c.l.b16 %v1319
    %v2594 = vunpack.c.h.b16 %v1319
    %v2595 = vunpack.c.l.b16 %v1320
    %v2596 = vunpack.c.h.b16 %v1320
    %v2597 = vunpack.c.l.b16 %v1321
    %v2598 = vunpack.c.h.b16 %v1321
    %v2599 = vunpack.c.l.b16 %v1322
    %v2600 = vunpack.c.h.b16 %v1322
    %v2601 = vunpack.c.l.b16 %v1323
    %v2602 = vunpack.c.h.b16 %v1323
    %v2603 = vunpack.c.l.b16 %v1324
    %v2604 = vunpack.c.h.b16 %v1324
    %v2605 = vunpack.c.l.b16 %v1325
    %v2606 = vunpack.c.h.b16 %v1325
    %v2607 = vunpack.c.l.b16 %v1326
    %v2608 = vunpack.c.h.b16 %v1326
    %v2609 = vunpack.c.l.b16 %v1327
    %v2610 = vunpack.c.h.b16 %v1327
    %v2611 = vunpack.c.l.b16 %v1328
    %v2612 = vunpack.c.h.b16 %v1328
    %v2613 = vunpack.c.l.b16 %v1329
    %v2614 = vunpack.c.h.b16 %v1329
    %v2615 = vunpack.c.l.b16 %v1330
    %v2616 = vunpack.c.h.b16 %v1330
    %v2617 = vunpack.c.l.b16 %v1331
    %v2618 = vunpack.c.h.b16 %v1331
    %v2619 = vunpack.c.l.b16 %v1332
    %v2620 = vunpack.c.h.b16 %v1332
    %v2621 = vunpack.c.l.b16 %v1333
    %v2622 = vunpack.c.h.b16 %v1333
    %v2623 = vunpack.c.l.b16 %v1334
    %v2624 = vunpack.c.h.b16 %v1334
    %v2625 = vunpack.c.l.b16 %v1335
    %v2626 = vunpack.c.h.b16 %v1335
    %v2627 = vunpack.c.l.b16 %v1336
    %v2628 = vunpack.c.h.b16 %v1336
    %v2629 = vunpack.c.l.b16 %v1337
    %v2630 = vunpack.c.h.b16 %v1337
    %v2631 = vunpack.c.l.b16 %v1338
    %v2632 = vunpack.c.h.b16 %v1338
    %v2633 = vunpack.c.l.b16 %v1339
    %v2634 = vunpack.c.h.b16 %v1339
    %v2635 = vunpack.c.l.b16 %v1340
    %v2636 = vunpack.c.h.b16 %v1340
    %v2637 = vunpack.c.l.b16 %v1341
    %v2638 = vunpack.c.h.b16 %v1341
    %v2639 = vunpack.c.l.b16 %v1342
    %v2640 = vunpack.c.h.b16 %v1342
    %v2641 = vunpack.c.l.b16 %v1343
    %v2642 = vunpack.c.h.b16 %v1343
    %v2643 = vunpack.c.l.b16 %v1344
    %v2644 = vunpack.c.h.b16 %v1344
    %v2645 = vunpack.c.l.b16 %v1345
    %v2646 = vunpack.c.h.b16 %v1345
    %v2647 = vunpack.c.l.b16 %v1346
    %v2648 = vunpack.c.h.b16 %v1346
    %v2649 = vunpack.c.l.b16 %v1347
    %v2650 = vunpack.c.h.b16 %v1347
    %v2651 = vunpack.c.l.b16 %v1348
    %v2652 = vunpack.c.h.b16 %v1348
    %v2653 = vunpack.c.l.b16 %v1349
    %v2654 = vunpack.c.h.b16 %v1349
    %v2655 = vunpack.c.l.b16 %v1350
    %v2656 = vunpack.c.h.b16 %v1350
    %v2657 = vunpack.c.l.b16 %v1351
    %v2658 = vunpack.c.h.b16 %v1351
    %v2659 = vunpack.c.l.b16 %v1352
    %v2660 = vunpack.c.h.b16 %v1352
    %v2661 = vunpack.c.l.b16 %v1353
    %v2662 = vunpack.c.h.b16 %v1353
    %v2663 = vunpack.c.l.b16 %v1354
    %v2664 = vunpack.c.h.b16 %v1354
    %v2665 = vunpack.c.l.b16 %v1355
    %v2666 = vunpack.c.h.b16 %v1355
    %v2667 = vunpack.c.l.b16 %v1356
    %v2668 = vunpack.c.h.b16 %v1356
    %v2669 = vunpack.c.l.b16 %v1357
    %v2670 = vunpack.c.h.b16 %v1357
    %v2671 = vunpack.c.l.b16 %v1358
    %v2672 = vunpack.c.h.b16 %v1358
    %v2673 = vunpack.c.l.b16 %v1359
    %v2674 = vunpack.c.h.b16 %v1359
    %v2675 = vunpack.c.l.b16 %v1360
    %v2676 = vunpack.c.h.b16 %v1360
    %v2677 = vunpack.c.l.b16 %v1361
    %v2678 = vunpack.c.h.b16 %v1361
    %v2679 = vunpack.c.l.b16 %v1362
    %v2680 = vunpack.c.h.b16 %v1362
    %v2681 = vunpack.c.l.b16 %v1363
    %v2682 = vunpack.c.h.b16 %v1363
    %v2683 = vunpack.c.l.b16 %v1364
    %v2684 = vunpack.c.h.b16 %v1364
    %v2685 = vunpack.c.l.b16 %v1365
    %v2686 = vunpack.c.h.b16 %v1365
    %v2687 = vunpack.c.l.b16 %v1366
    %v2688 = vunpack.c.h.b16 %v1366
    %v2689 = vunpack.c.l.b16 %v1367
    %v2690 = vunpack.c.h.b16 %v1367
    %v2691 = vunpack.c.l.b16 %v1368
    %v2692 = vunpack.c.h.b16 %v1368
    %v2693 = vunpack.c.l.b16 %v1369
    %v2694 = vunpack.c.h.b16 %v1369
    %v2695 = vunpack.c.l.b16 %v1370
    %v2696 = vunpack.c.h.b16 %v1370
    %v2697 = vunpack.c.l.b16 %v1371
    %v2698 = vunpack.c.h.b16 %v1371
    %v2699 = vunpack.c.l.b16 %v1372
    %v2700 = vunpack.c.h.b16 %v1372
    %v2701 = vunpack.c.l.b16 %v1373
    %v2702 = vunpack.c.h.b16 %v1373
    %v2703 = vunpack.c.l.b16 %v1374
    %v2704 = vunpack.c.h.b16 %v1374
    %v2705 = vunpack.c.l.b16 %v1375
    %v2706 = vunpack.c.h.b16 %v1375
    %v2707 = vunpack.c.l.b16 %v1376
    %v2708 = vunpack.c.h.b16 %v1376
    %v2709 = vunpack.c.l.b16 %v1377
    %v2710 = vunpack.c.h.b16 %v1377
    %v2711 = vunpack.c.l.b16 %v1378
    %v2712 = vunpack.c.h.b16 %v1378
    %v2713 = vunpack.c.l.b16 %v1379
    %v2714 = vunpack.c.h.b16 %v1379
    %v2715 = vunpack.c.l.b16 %v1380
    %v2716 = vunpack.c.h.b16 %v1380
    %v2717 = vunpack.c.l.b16 %v1381
    %v2718 = vunpack.c.h.b16 %v1381
    %v2719 = vunpack.c.l.b16 %v1382
    %v2720 = vunpack.c.h.b16 %v1382
    %v2721 = vunpack.c.l.b16 %v1383
    %v2722 = vunpack.c.h.b16 %v1383
    %v2723 = vunpack.c.l.b16 %v1384
    %v2724 = vunpack.c.h.b16 %v1384
    %v2725 = vunpack.c.l.b16 %v1385
    %v2726 = vunpack.c.h.b16 %v1385
    %v2727 = vunpack.c.l.b16 %v1386
    %v2728 = vunpack.c.h.b16 %v1386
    %v2729 = vunpack.c.l.b16 %v1387
    %v2730 = vunpack.c.h.b16 %v1387
    %v2731 = vunpack.c.l.b16 %v1388
    %v2732 = vunpack.c.h.b16 %v1388
    %v2733 = vunpack.c.l.b16 %v1389
    %v2734 = vunpack.c.h.b16 %v1389
    %v2735 = vunpack.c.l.b16 %v1390
    %v2736 = vunpack.c.h.b16 %v1390
    %v2737 = vunpack.c.l.b16 %v1391
    %v2738 = vunpack.c.h.b16 %v1391
    %v2739 = vunpack.c.l.b16 %v1392
    %v2740 = vunpack.c.h.b16 %v1392
    %v2741 = vunpack.c.l.b16 %v1393
    %v2742 = vunpack.c.h.b16 %v1393
    %v2743 = vunpack.c.l.b16 %v1394
    %v2744 = vunpack.c.h.b16 %v1394
    %v2745 = vunpack.c.l.b16 %v1395
    %v2746 = vunpack.c.h.b16 %v1395
    %v2747 = vunpack.c.l.b16 %v1396
    %v2748 = vunpack.c.h.b16 %v1396
    %v2749 = vunpack.c.l.b16 %v1397
    %v2750 = vunpack.c.h.b16 %v1397
    %v2751 = vunpack.c.l.b16 %v1398
    %v2752 = vunpack.c.h.b16 %v1398
    %v2753 = vunpack.c.l.b16 %v1399
    %v2754 = vunpack.c.h.b16 %v1399
    %v2755 = vunpack.c.l.b16 %v1400
    %v2756 = vunpack.c.h.b16 %v1400
    %v2757 = vunpack.c.l.b16 %v1401
    %v2758 = vunpack.c.h.b16 %v1401
    %v2759 = vunpack.c.l.b16 %v1402
    %v2760 = vunpack.c.h.b16 %v1402
    %v2761 = vunpack.c.l.b16 %v1403
    %v2762 = vunpack.c.h.b16 %v1403
    %v2763 = vunpack.c.l.b16 %v1404
    %v2764 = vunpack.c.h.b16 %v1404
    %v2765 = vunpack.c.l.b16 %v1405
    %v2766 = vunpack.c.h.b16 %v1405
    %v2767 = vunpack.c.l.b16 %v1406
    %v2768 = vunpack.c.h.b16 %v1406
    %v2769 = vunpack.c.l.b16 %v1407
    %v2770 = vunpack.c.h.b16 %v1407
    %v2771 = vunpack.c.l.b16 %v1408
    %v2772 = vunpack.c.h.b16 %v1408
    %v2773 = vunpack.c.l.b16 %v1409
    %v2774 = vunpack.c.h.b16 %v1409
    %v2775 = vunpack.c.l.b16 %v1410
    %v2776 = vunpack.c.h.b16 %v1410
    %v2777 = vunpack.c.l.b16 %v1411
    %v2778 = vunpack.c.h.b16 %v1411
    %v2779 = vunpack.c.l.b16 %v1412
    %v2780 = vunpack.c.h.b16 %v1412
    %v2781 = vunpack.c.l.b16 %v1413
    %v2782 = vunpack.c.h.b16 %v1413
    %v2783 = vunpack.c.l.b16 %v1414
    %v2784 = vunpack.c.h.b16 %v1414
    %v2785 = vunpack.c.l.b16 %v1415
    %v2786 = vunpack.c.h.b16 %v1415
    %v2787 = vunpack.c.l.b16 %v1416
    %v2788 = vunpack.c.h.b16 %v1416
    %v2789 = vunpack.c.l.b16 %v1417
    %v2790 = vunpack.c.h.b16 %v1417
    %v2791 = vunpack.c.l.b16 %v1418
    %v2792 = vunpack.c.h.b16 %v1418
    %v2793 = vunpack.c.l.b16 %v1419
    %v2794 = vunpack.c.h.b16 %v1419
    %v2795 = vunpack.c.l.b16 %v1420
    %v2796 = vunpack.c.h.b16 %v1420
    %v2797 = vpack.c.b16 %v2289, %v2285
    %v2798 = vpack.c.b16 %v2290, %v2286
    %v2799 = vpack.c.b16 %v2291, %v2287
    %v2800 = vpack.c.b16 %v2292, %v2288
    %v2801 = vpack.c.b16 %v2297, %v2293
    %v2802 = vpack.c.b16 %v2298, %v2294
    %v2803 = vpack.c.b16 %v2299, %v2295
    %v2804 = vpack.c.b16 %v2300, %v2296
    %v2805 = vpack.c.b16 %v2305, %v2301
    %v2806 = vpack.c.b16 %v2306, %v2302
    %v2807 = vpack.c.b16 %v2307, %v2303
    %v2808 = vpack.c.b16 %v2308, %v2304
    %v2809 = vpack.c.b16 %v2313, %v2309
    %v2810 = vpack.c.b16 %v2314, %v2310
    %v2811 = vpack.c.b16 %v2315, %v2311
    %v2812 = vpack.c.b16 %v2316, %v2312
    %v2813 = vpack.c.b16 %v2321, %v2317
    %v2814 = vpack.c.b16 %v2322, %v2318
    %v2815 = vpack.c.b16 %v2323, %v2319
    %v2816 = vpack.c.b16 %v2324, %v2320
    %v2817 = vpack.c.b16 %v2329, %v2325
    %v2818 = vpack.c.b16 %v2330, %v2326
    %v2819 = vpack.c.b16 %v2331, %v2327
    %v2820 = vpack.c.b16 %v2332, %v2328
    %v2821 = vpack.c.b16 %v2337, %v2333
    %v2822 = vpack.c.b16 %v2338, %v2334
    %v2823 = vpack.c.b16 %v2339, %v2335
    %v2824 = vpack.c.b16 %v2340, %v2336
    %v2825 = vpack.c.b16 %v2345, %v2341
    %v2826 = vpack.c.b16 %v2346, %v2342
    %v2827 = vpack.c.b16 %v2347, %v2343
    %v2828 = vpack.c.b16 %v2348, %v2344
    %v2829 = vpack.c.b16 %v2353, %v2349
    %v2830 = vpack.c.b16 %v2354, %v2350
    %v2831 = vpack.c.b16 %v2355, %v2351
    %v2832 = vpack.c.b16 %v2356, %v2352
    %v2833 = vpack.c.b16 %v2361, %v2357
    %v2834 = vpack.c.b16 %v2362, %v2358
    %v2835 = vpack.c.b16 %v2363, %v2359
    %v2836 = vpack.c.b16 %v2364, %v2360
    %v2837 = vpack.c.b16 %v2369, %v2365
    %v2838 = vpack.c.b16 %v2370, %v2366
    %v2839 = vpack.c.b16 %v2371, %v2367
    %v2840 = vpack.c.b16 %v2372, %v2368
    %v2841 = vpack.c.b16 %v2377, %v2373
    %v2842 = vpack.c.b16 %v2378, %v2374
    %v2843 = vpack.c.b16 %v2379, %v2375
    %v2844 = vpack.c.b16 %v2380, %v2376
    %v2845 = vpack.c.b16 %v2385, %v2381
    %v2846 = vpack.c.b16 %v2386, %v2382
    %v2847 = vpack.c.b16 %v2387, %v2383
    %v2848 = vpack.c.b16 %v2388, %v2384
    %v2849 = vpack.c.b16 %v2393, %v2389
    %v2850 = vpack.c.b16 %v2394, %v2390
    %v2851 = vpack.c.b16 %v2395, %v2391
    %v2852 = vpack.c.b16 %v2396, %v2392
    %v2853 = vpack.c.b16 %v2401, %v2397
    %v2854 = vpack.c.b16 %v2402, %v2398
    %v2855 = vpack.c.b16 %v2403, %v2399
    %v2856 = vpack.c.b16 %v2404, %v2400
    %v2857 = vpack.c.b16 %v2409, %v2405
    %v2858 = vpack.c.b16 %v2410, %v2406
    %v2859 = vpack.c.b16 %v2411, %v2407
    %v2860 = vpack.c.b16 %v2412, %v2408
    %v2861 = vpack.c.b16 %v2417, %v2413
    %v2862 = vpack.c.b16 %v2418, %v2414
    %v2863 = vpack.c.b16 %v2419, %v2415
    %v2864 = vpack.c.b16 %v2420, %v2416
    %v2865 = vpack.c.b16 %v2425, %v2421
    %v2866 = vpack.c.b16 %v2426, %v2422
    %v2867 = vpack.c.b16 %v2427, %v2423
    %v2868 = vpack.c.b16 %v2428, %v2424
    %v2869 = vpack.c.b16 %v2433, %v2429
    %v2870 = vpack.c.b16 %v2434, %v2430
    %v2871 = vpack.c.b16 %v2435, %v2431
    %v2872 = vpack.c.b16 %v2436, %v2432
    %v2873 = vpack.c.b16 %v2441, %v2437
    %v2874 = vpack.c.b16 %v2442, %v2438
    %v2875 = vpack.c.b16 %v2443, %v2439
    %v2876 = vpack.c.b16 %v2444, %v2440
    %v2877 = vpack.c.b16 %v2449, %v2445
    %v2878 = vpack.c.b16 %v2450, %v2446
    %v2879 = vpack.c.b16 %v2451, %v2447
    %v2880 = vpack.c.b16 %v2452, %v2448
    %v2881 = vpack.c.b16 %v2457, %v2453
    %v2882 = vpack.c.b16 %v2458, %v2454
    %v2883 = vpack.c.b16 %v2459, %v2455
    %v2884 = vpack.c.b16 %v2460, %v2456
    %v2885 = vpack.c.b16 %v2465, %v2461
    %v2886 = vpack.c.b16 %v2466, %v2462
    %v2887 = vpack.c.b16 %v2467, %v2463
    %v2888 = vpack.c.b16 %v2468, %v2464
    %v2889 = vpack.c.b16 %v2473, %v2469
    %v2890 = vpack.c.b16 %v2474, %v2470
    %v2891 = vpack.c.b16 %v2475, %v2471
    %v2892 = vpack.c.b16 %v2476, %v2472
    %v2893 = vpack.c.b16 %v2481, %v2477
    %v2894 = vpack.c.b16 %v2482, %v2478
    %v2895 = vpack.c.b16 %v2483, %v2479
    %v2896 = vpack.c.b16 %v2484, %v2480
    %v2897 = vpack.c.b16 %v2489, %v2485
    %v2898 = vpack.c.b16 %v2490, %v2486
    %v2899 = vpack.c.b16 %v2491, %v2487
    %v2900 = vpack.c.b16 %v2492, %v2488
    %v2901 = vpack.c.b16 %v2497, %v2493
    %v2902 = vpack.c.b16 %v2498, %v2494
    %v2903 = vpack.c.b16 %v2499, %v2495
    %v2904 = vpack.c.b16 %v2500, %v2496
    %v2905 = vpack.c.b16 %v2505, %v2501
    %v2906 = vpack.c.b16 %v2506, %v2502
    %v2907 = vpack.c.b16 %v2507, %v2503
    %v2908 = vpack.c.b16 %v2508, %v2504
    %v2909 = vpack.c.b16 %v2513, %v2509
    %v2910 = vpack.c.b16 %v2514, %v2510
    %v2911 = vpack.c.b16 %v2515, %v2511
    %v2912 = vpack.c.b16 %v2516, %v2512
    %v2913 = vpack.c.b16 %v2521, %v2517
    %v2914 = vpack.c.b16 %v2522, %v2518
    %v2915 = vpack.c.b16 %v2523, %v2519
    %v2916 = vpack.c.b16 %v2524, %v2520
    %v2917 = vpack.c.b16 %v2529, %v2525
    %v2918 = vpack.c.b16 %v2530, %v2526
    %v2919 = vpack.c.b16 %v2531, %v2527
    %v2920 = vpack.c.b16 %v2532, %v2528
    %v2921 = vpack.c.b16 %v2537, %v2533
    %v2922 = vpack.c.b16 %v2538, %v2534
    %v2923 = vpack.c.b16 %v2539, %v2535
    %v2924 = vpack.c.b16 %v2540, %v2536
    %v2925 = vpack.c.b16 %v2545, %v2541
    %v2926 = vpack.c.b16 %v2546, %v2542
    %v2927 = vpack.c.b16 %v2547, %v2543
    %v2928 = vpack.c.b16 %v2548, %v2544
    %v2929 = vpack.c.b16 %v2553, %v2549
    %v2930 = vpack.c.b16 %v2554, %v2550
    %v2931 = vpack.c.b16 %v2555, %v2551
    %v2932 = vpack.c.b16 %v2556, %v2552
    %v2933 = vpack.c.b16 %v2561, %v2557
    %v2934 = vpack.c.b16 %v2562, %v2558
    %v2935 = vpack.c.b16 %v2563, %v2559
    %v2936 = vpack.c.b16 %v2564, %v2560
    %v2937 = vpack.c.b16 %v2569, %v2565
    %v2938 = vpack.c.b16 %v2570, %v2566
    %v2939 = vpack.c.b16 %v2571, %v2567
    %v2940 = vpack.c.b16 %v2572, %v2568
    %v2941 = vpack.c.b16 %v2577, %v2573
    %v2942 = vpack.c.b16 %v2578, %v2574
    %v2943 = vpack.c.b16 %v2579, %v2575
    %v2944 = vpack.c.b16 %v2580, %v2576
    %v2945 = vpack.c.b16 %v2585, %v2581
    %v2946 = vpack.c.b16 %v2586, %v2582
    %v2947 = vpack.c.b16 %v2587, %v2583
    %v2948 = vpack.c.b16 %v2588, %v2584
    %v2949 = vpack.c.b16 %v2593, %v2589
    %v2950 = vpack.c.b16 %v2594, %v2590
    %v2951 = vpack.c.b16 %v2595, %v2591
    %v2952 = vpack.c.b16 %v2596, %v2592
    %v2953 = vpack.c.b16 %v2601, %v2597
    %v2954 = vpack.c.b16 %v2602, %v2598
    %v2955 = vpack.c.b16 %v2603, %v2599
    %v2956 = vpack.c.b16 %v2604, %v2600
    %v2957 = vpack.c.b16 %v2609, %v2605
    %v2958 = vpack.c.b16 %v2610, %v2606
    %v2959 = vpack.c.b16 %v2611, %v2607
    %v2960 = vpack.c.b16 %v2612, %v2608
    %v2961 = vpack.c.b16 %v2617, %v2613
    %v2962 = vpack.c.b16 %v2618, %v2614
    %v2963 = vpack.c.b16 %v2619, %v2615
    %v2964 = vpack.c.b16 %v2620, %v2616
    %v2965 = vpack.c.b16 %v2625, %v2621
    %v2966 = vpack.c.b16 %v2626, %v2622
    %v2967 = vpack.c.b16 %v2627, %v2623
    %v2968 = vpack.c.b16 %v2628, %v2624
    %v2969 = vpack.c.b16 %v2633, %v2629
    %v2970 = vpack.c.b16 %v2634, %v2630
    %v2971 = vpack.c.b16 %v2635, %v2631
    %v2972 = vpack.c.b16 %v2636, %v2632
    %v2973 = vpack.c.b16 %v2641, %v2637
    %v2974 = vpack.c.b16 %v2642, %v2638
    %v2975 = vpack.c.b16 %v2643, %v2639
    %v2976 = vpack.c.b16 %v2644, %v2640
    %v2977 = vpack.c.b16 %v2649, %v2645
    %v2978 = vpack.c.b16 %v2650, %v2646
    %v2979 = vpack.c.b16 %v2651, %v2647
    %v2980 = vpack.c.b16 %v2652, %v2648
    %v2981 = vpack.c.b16 %v2657, %v2653
    %v2982 = vpack.c.b16 %v2658, %v2654
    %v2983 = vpack.c.b16 %v2659, %v2655
    %v2984 = vpack.c.b16 %v2660, %v2656
    %v2985 = vpack.c.b16 %v2665, %v2661
    %v2986 = vpack.c.b16 %v2666, %v2662
    %v2987 = vpack.c.b16 %v2667, %v2663
    %v2988 = vpack.c.b16 %v2668, %v2664
    %v2989 = vpack.c.b16 %v2673, %v2669
    %v2990 = vpack.c.b16 %v2674, %v2670
    %v2991 = vpack.c.b16 %v2675, %v2671
    %v2992 = vpack.c.b16 %v2676, %v2672
    %v2993 = vpack.c.b16 %v2681, %v2677
    %v2994 = vpack.c.b16 %v2682, %v2678
    %v2995 = vpack.c.b16 %v2683, %v2679
    %v2996 = vpack.c.b16 %v2684, %v2680
    %v2997 = vpack.c.b16 %v2689, %v2685
    %v2998 = vpack.c.b16 %v2690, %v2686
    %v2999 = vpack.c.b16 %v2691, %v2687
    %v3000 = vpack.c.b16 %v2692, %v2688
    %v3001 = vpack.c.b16 %v2697, %v2693
    %v3002 = vpack.c.b16 %v2698, %v2694
    %v3003 = vpack.c.b16 %v2699, %v2695
    %v3004 = vpack.c.b16 %v2700, %v2696
    %v3005 = vpack.c.b16 %v2705, %v2701
    %v3006 = vpack.c.b16 %v2706, %v2702
    %v3007 = vpack.c.b16 %v2707, %v2703
    %v3008 = vpack.c.b16 %v2708, %v2704
    %v3009 = vpack.c.b16 %v2713, %v2709
    %v3010 = vpack.c.b16 %v2714, %v2710
    %v3011 = vpack.c.b16 %v2715, %v2711
    %v3012 = vpack.c.b16 %v2716, %v2712
    %v3013 = vpack.c.b16 %v2721, %v2717
    %v3014 = vpack.c.b16 %v2722, %v2718
    %v3015 = vpack.c.b16 %v2723, %v2719
    %v3016 = vpack.c.b16 %v2724, %v2720
    %v3017 = vpack.c.b16 %v2729, %v2725
    %v3018 = vpack.c.b16 %v2730, %v2726
    %v3019 = vpack.c.b16 %v2731, %v2727
    %v3020 = vpack.c.b16 %v2732, %v2728
    %v3021 = vpack.c.b16 %v2737, %v2733
    %v3022 = vpack.c.b16 %v2738, %v2734
    %v3023 = vpack.c.b16 %v2739, %v2735
    %v3024 = vpack.c.b16 %v2740, %v2736
    %v3025 = vpack.c.b16 %v2745, %v2741
    %v3026 = vpack.c.b16 %v2746, %v2742
    %v3027 = vpack.c.b16 %v2747, %v2743
    %v3028 = vpack.c.b16 %v2748, %v2744
    %v3029 = vpack.c.b16 %v2753, %v2749
    %v3030 = vpack.c.b16 %v2754, %v2750
    %v3031 = vpack.c.b16 %v2755, %v2751
    %v3032 = vpack.c.b16 %v2756, %v2752
    %v3033 = vpack.c.b16 %v2761, %v2757
    %v3034 = vpack.c.b16 %v2762, %v2758
    %v3035 = vpack.c.b16 %v2763, %v2759
    %v3036 = vpack.c.b16 %v2764, %v2760
    %v3037 = vpack.c.b16 %v2769, %v2765
    %v3038 = vpack.c.b16 %v2770, %v2766
    %v3039 = vpack.c.b16 %v2771, %v2767
    %v3040 = vpack.c.b16 %v2772, %v2768
    %v3041 = vpack.c.b16 %v2777, %v2773
    %v3042 = vpack.c.b16 %v2778, %v2774
    %v3043 = vpack.c.b16 %v2779, %v2775
    %v3044 = vpack.c.b16 %v2780, %v2776
    %v3045 = vpack.c.b16 %v2785, %v2781
    %v3046 = vpack.c.b16 %v2786, %v2782
    %v3047 = vpack.c.b16 %v2787, %v2783
    %v3048 = vpack.c.b16 %v2788, %v2784
    %v3049 = vpack.c.b16 %v2793, %v2789
    %v3050 = vpack.c.b16 %v2794, %v2790
    %v3051 = vpack.c.b16 %v2795, %v2791
    %v3052 = vpack.c.b16 %v2796, %v2792
    %3309 = vmatprep.subr.bf16.mxu0 0
    %3310 = vmatpush1.bf16.msra.mxu0 %v1421
    %3311 = vmatprep.subr.bf16.mxu0 0
    %3312 = vmatpush1.bf16.msra.mxu0 %v1422
    %3313 = vmatprep.subr.bf16.mxu0 0
    %3314 = vmatpush1.bf16.msra.mxu0 %v1423
    %3315 = vmatprep.subr.bf16.mxu0 0
    %3316 = vmatpush1.bf16.msra.mxu0 %v1424
    %3317 = vmatprep.subr.bf16.mxu0 0
    %3318 = vmatpush1.bf16.msra.mxu0 %v1425
    %3319 = vmatprep.subr.bf16.mxu0 0
    %3320 = vmatpush1.bf16.msra.mxu0 %v1426
    %3321 = vmatprep.subr.bf16.mxu0 0
    %3322 = vmatpush1.bf16.msra.mxu0 %v1427
    %3323 = vmatprep.subr.bf16.mxu0 0
    %3324 = vmatpush1.bf16.msra.mxu0 %v1428
    %3325 = vmatprep.subr.bf16.mxu0 0
    %3326 = vmatpush1.bf16.msra.mxu0 %v1429
    %3327 = vmatprep.subr.bf16.mxu0 0
    %3328 = vmatpush1.bf16.msra.mxu0 %v1430
    %3329 = vmatprep.subr.bf16.mxu0 0
    %3330 = vmatpush1.bf16.msra.mxu0 %v1431
    %3331 = vmatprep.subr.bf16.mxu0 0
    %3332 = vmatpush1.bf16.msra.mxu0 %v1432
    %3333 = vmatprep.subr.bf16.mxu0 0
    %3334 = vmatpush1.bf16.msra.mxu0 %v1433
    %3335 = vmatprep.subr.bf16.mxu0 0
    %3336 = vmatpush1.bf16.msra.mxu0 %v1434
    %3337 = vmatprep.subr.bf16.mxu0 0
    %3338 = vmatpush1.bf16.msra.mxu0 %v1435
    %3339 = vmatprep.subr.bf16.mxu0 0
    %3340 = vmatpush1.bf16.msra.mxu0 %v1436
    %3341 = vmatprep.mubr.bf16.mxu0 %v2798
    %3342 = vmatmul.mubr.bf16.gmra.mrb[0].mxu0 %v2797
    %v3343 = vpop.f32.mrb[0].mxu0
    %v3344 = vadd.f32 %v1455, %v3343
    %v3345 = vpop.f32.mrb[0].mxu0
    %v3346 = vpop.f32.mrb[0].mxu0
    %v3347 = vadd.f32 %v1459, %v3346
    %v3348 = vpop.f32.mrb[0].mxu0
    %3349 = vmatprep.mubr.bf16.mxu0 %v2802
    %3350 = vmatmul.mubr.bf16.gmra.mrb[0].mxu0 %v2801
    %v3351 = vpop.f32.mrb[0].mxu0
    %v3352 = vadd.f32 %v1463, %v3351
    %v3353 = vpop.f32.mrb[0].mxu0
    %v3354 = vpop.f32.mrb[0].mxu0
    %v3355 = vadd.f32 %v1467, %v3354
    %v3356 = vpop.f32.mrb[0].mxu0
    %3357 = vmatprep.mubr.bf16.mxu0 %v2806
    %3358 = vmatmul.mubr.bf16.gmra.mrb[0].mxu0 %v2805
    %v3359 = vpop.f32.mrb[0].mxu0
    %v3360 = vadd.f32 %v1471, %v3359
    %v3361 = vpop.f32.mrb[0].mxu0
    %v3362 = vpop.f32.mrb[0].mxu0
    %v3363 = vadd.f32 %v1475, %v3362
    %v3364 = vpop.f32.mrb[0].mxu0
    %3365 = vmatprep.mubr.bf16.mxu0 %v2810
    %3366 = vmatmul.mubr.bf16.gmra.mrb[0].mxu0 %v2809
    %v3367 = vpop.f32.mrb[0].mxu0
    %v3368 = vadd.f32 %v1479, %v3367
    %v3369 = vpop.f32.mrb[0].mxu0
    %v3370 = vpop.f32.mrb[0].mxu0
    %v3371 = vadd.f32 %v1483, %v3370
    %v3372 = vpop.f32.mrb[0].mxu0
    %3373 = vmatprep.mubr.bf16.mxu0 %v2814
    %3374 = vmatmul.mubr.bf16.gmra.mrb[0].mxu0 %v2813
    %v3375 = vpop.f32.mrb[0].mxu0
    %v3376 = vadd.f32 %v1487, %v3375
    %v3377 = vpop.f32.mrb[0].mxu0
    %v3378 = vpop.f32.mrb[0].mxu0
    %v3379 = vadd.f32 %v1491, %v3378
    %v3380 = vpop.f32.mrb[0].mxu0
    %3381 = vmatprep.mubr.bf16.mxu0 %v2818
    %3382 = vmatmul.mubr.bf16.gmra.mrb[0].mxu0 %v2817
    %v3383 = vpop.f32.mrb[0].mxu0
    %v3384 = vadd.f32 %v1495, %v3383
    %v3385 = vpop.f32.mrb[0].mxu0
    %v3386 = vpop.f32.mrb[0].mxu0
    %v3387 = vadd.f32 %v1499, %v3386
    %v3388 = vpop.f32.mrb[0].mxu0
    %3389 = vmatprep.mubr.bf16.mxu0 %v2822
    %3390 = vmatmul.mubr.bf16.gmra.mrb[0].mxu0 %v2821
    %v3391 = vpop.f32.mrb[0].mxu0
    %v3392 = vadd.f32 %v1503, %v3391
    %v3393 = vpop.f32.mrb[0].mxu0
    %v3394 = vpop.f32.mrb[0].mxu0
    %v3395 = vadd.f32 %v1507, %v3394
    %v3396 = vpop.f32.mrb[0].mxu0
    %3397 = vmatprep.mubr.bf16.mxu0 %v2826
    %3398 = vmatmul.mubr.bf16.gmra.mrb[0].mxu0 %v2825
    %v3399 = vpop.f32.mrb[0].mxu0
    %v3400 = vadd.f32 %v1511, %v3399
    %v3401 = vpop.f32.mrb[0].mxu0
    %v3402 = vpop.f32.mrb[0].mxu0
    %v3403 = vadd.f32 %v1515, %v3402
    %v3404 = vpop.f32.mrb[0].mxu0
    %3405 = vmatprep.mubr.bf16.mxu0 %v2830
    %3406 = vmatmul.mubr.bf16.gmra.mrb[0].mxu0 %v2829
    %v3407 = vpop.f32.mrb[0].mxu0
    %v3408 = vadd.f32 %v1519, %v3407
    %v3409 = vpop.f32.mrb[0].mxu0
    %v3410 = vpop.f32.mrb[0].mxu0
    %v3411 = vadd.f32 %v1523, %v3410
    %v3412 = vpop.f32.mrb[0].mxu0
    %3413 = vmatprep.mubr.bf16.mxu0 %v2834
    %3414 = vmatmul.mubr.bf16.gmra.mrb[0].mxu0 %v2833
    %v3415 = vpop.f32.mrb[0].mxu0
    %v3416 = vadd.f32 %v1527, %v3415
    %v3417 = vpop.f32.mrb[0].mxu0
    %v3418 = vpop.f32.mrb[0].mxu0
    %v3419 = vadd.f32 %v1531, %v3418
    %v3420 = vpop.f32.mrb[0].mxu0
    %3421 = vmatprep.mubr.bf16.mxu0 %v2838
    %3422 = vmatmul.mubr.bf16.gmra.mrb[0].mxu0 %v2837
    %v3423 = vpop.f32.mrb[0].mxu0
    %v3424 = vadd.f32 %v1535, %v3423
    %v3425 = vpop.f32.mrb[0].mxu0
    %v3426 = vpop.f32.mrb[0].mxu0
    %v3427 = vadd.f32 %v1539, %v3426
    %v3428 = vpop.f32.mrb[0].mxu0
    %3429 = vmatprep.mubr.bf16.mxu0 %v2842
    %3430 = vmatmul.mubr.bf16.gmra.mrb[0].mxu0 %v2841
    %v3431 = vpop.f32.mrb[0].mxu0
    %v3432 = vadd.f32 %v1543, %v3431
    %v3433 = vpop.f32.mrb[0].mxu0
    %v3434 = vpop.f32.mrb[0].mxu0
    %v3435 = vadd.f32 %v1547, %v3434
    %v3436 = vpop.f32.mrb[0].mxu0
    %3437 = vmatprep.mubr.bf16.mxu0 %v2846
    %3438 = vmatmul.mubr.bf16.gmra.mrb[0].mxu0 %v2845
    %v3439 = vpop.f32.mrb[0].mxu0
    %v3440 = vadd.f32 %v1551, %v3439
    %v3441 = vpop.f32.mrb[0].mxu0
    %v3442 = vpop.f32.mrb[0].mxu0
    %v3443 = vadd.f32 %v1555, %v3442
    %v3444 = vpop.f32.mrb[0].mxu0
    %3445 = vmatprep.mubr.bf16.mxu0 %v2850
    %3446 = vmatmul.mubr.bf16.gmra.mrb[0].mxu0 %v2849
    %v3447 = vpop.f32.mrb[0].mxu0
    %v3448 = vadd.f32 %v1559, %v3447
    %v3449 = vpop.f32.mrb[0].mxu0
    %v3450 = vpop.f32.mrb[0].mxu0
    %v3451 = vadd.f32 %v1563, %v3450
    %v3452 = vpop.f32.mrb[0].mxu0
    %3453 = vmatprep.mubr.bf16.mxu0 %v2854
    %3454 = vmatmul.mubr.bf16.gmra.mrb[0].mxu0 %v2853
    %v3455 = vpop.f32.mrb[0].mxu0
    %v3456 = vadd.f32 %v1567, %v3455
    %v3457 = vpop.f32.mrb[0].mxu0
    %v3458 = vpop.f32.mrb[0].mxu0
    %v3459 = vadd.f32 %v1571, %v3458
    %v3460 = vpop.f32.mrb[0].mxu0
    %3461 = vmatprep.mubr.bf16.mxu0 %v2858
    %3462 = vmatmul.mubr.bf16.gmra.mrb[0].mxu0 %v2857
    %v3463 = vpop.f32.mrb[0].mxu0
    %v3464 = vadd.f32 %v1575, %v3463
    %v3465 = vpop.f32.mrb[0].mxu0
    %v3466 = vpop.f32.mrb[0].mxu0
    %v3467 = vadd.f32 %v1579, %v3466
    %v3468 = vpop.f32.mrb[0].mxu0
    %3469 = vmatprep.mubr.bf16.mxu0 %v2862
    %3470 = vmatmul.mubr.bf16.gmra.mrb[0].mxu0 %v2861
    %v3471 = vpop.f32.mrb[0].mxu0
    %v3472 = vadd.f32 %v1583, %v3471
    %v3473 = vpop.f32.mrb[0].mxu0
    %v3474 = vpop.f32.mrb[0].mxu0
    %v3475 = vadd.f32 %v1587, %v3474
    %v3476 = vpop.f32.mrb[0].mxu0
    %3477 = vmatprep.mubr.bf16.mxu0 %v2866
    %3478 = vmatmul.mubr.bf16.gmra.mrb[0].mxu0 %v2865
    %v3479 = vpop.f32.mrb[0].mxu0
    %v3480 = vadd.f32 %v1591, %v3479
    %v3481 = vpop.f32.mrb[0].mxu0
    %v3482 = vpop.f32.mrb[0].mxu0
    %v3483 = vadd.f32 %v1595, %v3482
    %v3484 = vpop.f32.mrb[0].mxu0
    %3485 = vmatprep.mubr.bf16.mxu0 %v2870
    %3486 = vmatmul.mubr.bf16.gmra.mrb[0].mxu0 %v2869
    %v3487 = vpop.f32.mrb[0].mxu0
    %v3488 = vadd.f32 %v1599, %v3487
    %v3489 = vpop.f32.mrb[0].mxu0
    %v3490 = vpop.f32.mrb[0].mxu0
    %v3491 = vadd.f32 %v1603, %v3490
    %v3492 = vpop.f32.mrb[0].mxu0
    %3493 = vmatprep.mubr.bf16.mxu0 %v2874
    %3494 = vmatmul.mubr.bf16.gmra.mrb[0].mxu0 %v2873
    %v3495 = vpop.f32.mrb[0].mxu0
    %v3496 = vadd.f32 %v1607, %v3495
    %v3497 = vpop.f32.mrb[0].mxu0
    %v3498 = vpop.f32.mrb[0].mxu0
    %v3499 = vadd.f32 %v1611, %v3498
    %v3500 = vpop.f32.mrb[0].mxu0
    %3501 = vmatprep.mubr.bf16.mxu0 %v2878
    %3502 = vmatmul.mubr.bf16.gmra.mrb[0].mxu0 %v2877
    %v3503 = vpop.f32.mrb[0].mxu0
    %v3504 = vadd.f32 %v1615, %v3503
    %v3505 = vpop.f32.mrb[0].mxu0
    %v3506 = vpop.f32.mrb[0].mxu0
    %v3507 = vadd.f32 %v1619, %v3506
    %v3508 = vpop.f32.mrb[0].mxu0
    %3509 = vmatprep.mubr.bf16.mxu0 %v2882
    %3510 = vmatmul.mubr.bf16.gmra.mrb[0].mxu0 %v2881
    %v3511 = vpop.f32.mrb[0].mxu0
    %v3512 = vadd.f32 %v1623, %v3511
    %v3513 = vpop.f32.mrb[0].mxu0
    %v3514 = vpop.f32.mrb[0].mxu0
    %v3515 = vadd.f32 %v1627, %v3514
    %v3516 = vpop.f32.mrb[0].mxu0
    %3517 = vmatprep.mubr.bf16.mxu0 %v2886
    %3518 = vmatmul.mubr.bf16.gmra.mrb[0].mxu0 %v2885
    %v3519 = vpop.f32.mrb[0].mxu0
    %v3520 = vadd.f32 %v1631, %v3519
    %v3521 = vpop.f32.mrb[0].mxu0
    %v3522 = vpop.f32.mrb[0].mxu0
    %v3523 = vadd.f32 %v1635, %v3522
    %v3524 = vpop.f32.mrb[0].mxu0
    %3525 = vmatprep.mubr.bf16.mxu0 %v2890
    %3526 = vmatmul.mubr.bf16.gmra.mrb[0].mxu0 %v2889
    %v3527 = vpop.f32.mrb[0].mxu0
    %v3528 = vadd.f32 %v1639, %v3527
    %v3529 = vpop.f32.mrb[0].mxu0
    %v3530 = vpop.f32.mrb[0].mxu0
    %v3531 = vadd.f32 %v1643, %v3530
    %v3532 = vpop.f32.mrb[0].mxu0
    %3533 = vmatprep.mubr.bf16.mxu0 %v2894
    %3534 = vmatmul.mubr.bf16.gmra.mrb[0].mxu0 %v2893
    %v3535 = vpop.f32.mrb[0].mxu0
    %v3536 = vadd.f32 %v1647, %v3535
    %v3537 = vpop.f32.mrb[0].mxu0
    %v3538 = vpop.f32.mrb[0].mxu0
    %v3539 = vadd.f32 %v1651, %v3538
    %v3540 = vpop.f32.mrb[0].mxu0
    %3541 = vmatprep.mubr.bf16.mxu0 %v2898
    %3542 = vmatmul.mubr.bf16.gmra.mrb[0].mxu0 %v2897
    %v3543 = vpop.f32.mrb[0].mxu0
    %v3544 = vadd.f32 %v1655, %v3543
    %v3545 = vpop.f32.mrb[0].mxu0
    %v3546 = vpop.f32.mrb[0].mxu0
    %v3547 = vadd.f32 %v1659, %v3546
    %v3548 = vpop.f32.mrb[0].mxu0
    %3549 = vmatprep.mubr.bf16.mxu0 %v2902
    %3550 = vmatmul.mubr.bf16.gmra.mrb[0].mxu0 %v2901
    %v3551 = vpop.f32.mrb[0].mxu0
    %v3552 = vadd.f32 %v1663, %v3551
    %v3553 = vpop.f32.mrb[0].mxu0
    %v3554 = vpop.f32.mrb[0].mxu0
    %v3555 = vadd.f32 %v1667, %v3554
    %v3556 = vpop.f32.mrb[0].mxu0
    %3557 = vmatprep.mubr.bf16.mxu0 %v2906
    %3558 = vmatmul.mubr.bf16.gmra.mrb[0].mxu0 %v2905
    %v3559 = vpop.f32.mrb[0].mxu0
    %v3560 = vadd.f32 %v1671, %v3559
    %v3561 = vpop.f32.mrb[0].mxu0
    %v3562 = vpop.f32.mrb[0].mxu0
    %v3563 = vadd.f32 %v1675, %v3562
    %v3564 = vpop.f32.mrb[0].mxu0
    %3565 = vmatprep.mubr.bf16.mxu0 %v2910
    %3566 = vmatmul.mubr.bf16.gmra.mrb[0].mxu0 %v2909
    %v3567 = vpop.f32.mrb[0].mxu0
    %v3568 = vadd.f32 %v1679, %v3567
    %v3569 = vpop.f32.mrb[0].mxu0
    %v3570 = vpop.f32.mrb[0].mxu0
    %v3571 = vadd.f32 %v1683, %v3570
    %v3572 = vpop.f32.mrb[0].mxu0
    %3573 = vmatprep.mubr.bf16.mxu0 %v2914
    %3574 = vmatmul.mubr.bf16.gmra.mrb[0].mxu0 %v2913
    %v3575 = vpop.f32.mrb[0].mxu0
    %v3576 = vadd.f32 %v1687, %v3575
    %v3577 = vpop.f32.mrb[0].mxu0
    %v3578 = vpop.f32.mrb[0].mxu0
    %v3579 = vadd.f32 %v1691, %v3578
    %v3580 = vpop.f32.mrb[0].mxu0
    %3581 = vmatprep.mubr.bf16.mxu0 %v2918
    %3582 = vmatmul.mubr.bf16.gmra.mrb[0].mxu0 %v2917
    %v3583 = vpop.f32.mrb[0].mxu0
    %v3584 = vadd.f32 %v1695, %v3583
    %v3585 = vpop.f32.mrb[0].mxu0
    %v3586 = vpop.f32.mrb[0].mxu0
    %v3587 = vadd.f32 %v1699, %v3586
    %v3588 = vpop.f32.mrb[0].mxu0
    %3589 = vmatprep.mubr.bf16.mxu0 %v2922
    %3590 = vmatmul.mubr.bf16.gmra.mrb[0].mxu0 %v2921
    %v3591 = vpop.f32.mrb[0].mxu0
    %v3592 = vadd.f32 %v1703, %v3591
    %v3593 = vpop.f32.mrb[0].mxu0
    %v3594 = vpop.f32.mrb[0].mxu0
    %v3595 = vadd.f32 %v1707, %v3594
    %v3596 = vpop.f32.mrb[0].mxu0
    %3597 = vmatprep.mubr.bf16.mxu0 %v2926
    %3598 = vmatmul.mubr.bf16.gmra.mrb[0].mxu0 %v2925
    %v3599 = vpop.f32.mrb[0].mxu0
    %v3600 = vadd.f32 %v1712, %v3599
    %v3601 = vpop.f32.mrb[0].mxu0
    %v3602 = vpop.f32.mrb[0].mxu0
    %v3603 = vadd.f32 %v1717, %v3602
    %v3604 = vpop.f32.mrb[0].mxu0
    %3605 = vmatprep.mubr.bf16.mxu0 %v2930
    %3606 = vmatmul.mubr.bf16.gmra.mrb[0].mxu0 %v2929
    %v3607 = vpop.f32.mrb[0].mxu0
    %v3608 = vadd.f32 %v1722, %v3607
    %v3609 = vpop.f32.mrb[0].mxu0
    %v3610 = vpop.f32.mrb[0].mxu0
    %v3611 = vadd.f32 %v1727, %v3610
    %v3612 = vpop.f32.mrb[0].mxu0
    %3613 = vmatprep.mubr.bf16.mxu0 %v2934
    %3614 = vmatmul.mubr.bf16.gmra.mrb[0].mxu0 %v2933
    %v3615 = vpop.f32.mrb[0].mxu0
    %v3616 = vadd.f32 %v1732, %v3615
    %v3617 = vpop.f32.mrb[0].mxu0
    %v3618 = vpop.f32.mrb[0].mxu0
    %v3619 = vadd.f32 %v1737, %v3618
    %v3620 = vpop.f32.mrb[0].mxu0
    %3621 = vmatprep.mubr.bf16.mxu0 %v2938
    %3622 = vmatmul.mubr.bf16.gmra.mrb[0].mxu0 %v2937
    %v3623 = vpop.f32.mrb[0].mxu0
    %v3624 = vadd.f32 %v1742, %v3623
    %v3625 = vpop.f32.mrb[0].mxu0
    %v3626 = vpop.f32.mrb[0].mxu0
    %v3627 = vadd.f32 %v1747, %v3626
    %v3628 = vpop.f32.mrb[0].mxu0
    %3629 = vmatprep.mubr.bf16.mxu0 %v2942
    %3630 = vmatmul.mubr.bf16.gmra.mrb[0].mxu0 %v2941
    %v3631 = vpop.f32.mrb[0].mxu0
    %v3632 = vadd.f32 %v1752, %v3631
    %v3633 = vpop.f32.mrb[0].mxu0
    %v3634 = vpop.f32.mrb[0].mxu0
    %v3635 = vadd.f32 %v1757, %v3634
    %v3636 = vpop.f32.mrb[0].mxu0
    %3637 = vmatprep.mubr.bf16.mxu0 %v2946
    %3638 = vmatmul.mubr.bf16.gmra.mrb[0].mxu0 %v2945
    %v3639 = vpop.f32.mrb[0].mxu0
    %v3640 = vadd.f32 %v1762, %v3639
    %v3641 = vpop.f32.mrb[0].mxu0
    %v3642 = vpop.f32.mrb[0].mxu0
    %v3643 = vadd.f32 %v1767, %v3642
    %v3644 = vpop.f32.mrb[0].mxu0
    %3645 = vmatprep.mubr.bf16.mxu0 %v2950
    %3646 = vmatmul.mubr.bf16.gmra.mrb[0].mxu0 %v2949
    %v3647 = vpop.f32.mrb[0].mxu0
    %v3648 = vadd.f32 %v1772, %v3647
    %v3649 = vpop.f32.mrb[0].mxu0
    %v3650 = vpop.f32.mrb[0].mxu0
    %v3651 = vadd.f32 %v1777, %v3650
    %v3652 = vpop.f32.mrb[0].mxu0
    %3653 = vmatprep.mubr.bf16.mxu0 %v2954
    %3654 = vmatmul.mubr.bf16.gmra.mrb[0].mxu0 %v2953
    %v3655 = vpop.f32.mrb[0].mxu0
    %v3656 = vadd.f32 %v1782, %v3655
    %v3657 = vpop.f32.mrb[0].mxu0
    %v3658 = vpop.f32.mrb[0].mxu0
    %v3659 = vadd.f32 %v1787, %v3658
    %v3660 = vpop.f32.mrb[0].mxu0
    %3661 = vmatprep.mubr.bf16.mxu0 %v2958
    %3662 = vmatmul.mubr.bf16.gmra.mrb[0].mxu0 %v2957
    %v3663 = vpop.f32.mrb[0].mxu0
    %v3664 = vadd.f32 %v1792, %v3663
    %v3665 = vpop.f32.mrb[0].mxu0
    %v3666 = vpop.f32.mrb[0].mxu0
    %v3667 = vadd.f32 %v1797, %v3666
    %v3668 = vpop.f32.mrb[0].mxu0
    %3669 = vmatprep.mubr.bf16.mxu0 %v2962
    %3670 = vmatmul.mubr.bf16.gmra.mrb[0].mxu0 %v2961
    %v3671 = vpop.f32.mrb[0].mxu0
    %v3672 = vadd.f32 %v1802, %v3671
    %v3673 = vpop.f32.mrb[0].mxu0
    %v3674 = vpop.f32.mrb[0].mxu0
    %v3675 = vadd.f32 %v1807, %v3674
    %v3676 = vpop.f32.mrb[0].mxu0
    %3677 = vmatprep.mubr.bf16.mxu0 %v2966
    %3678 = vmatmul.mubr.bf16.gmra.mrb[0].mxu0 %v2965
    %v3679 = vpop.f32.mrb[0].mxu0
    %v3680 = vadd.f32 %v1812, %v3679
    %v3681 = vpop.f32.mrb[0].mxu0
    %v3682 = vpop.f32.mrb[0].mxu0
    %v3683 = vadd.f32 %v1817, %v3682
    %v3684 = vpop.f32.mrb[0].mxu0
    %3685 = vmatprep.mubr.bf16.mxu0 %v2970
    %3686 = vmatmul.mubr.bf16.gmra.mrb[0].mxu0 %v2969
    %v3687 = vpop.f32.mrb[0].mxu0
    %v3688 = vadd.f32 %v1822, %v3687
    %v3689 = vpop.f32.mrb[0].mxu0
    %v3690 = vpop.f32.mrb[0].mxu0
    %v3691 = vadd.f32 %v1827, %v3690
    %v3692 = vpop.f32.mrb[0].mxu0
    %3693 = vmatprep.mubr.bf16.mxu0 %v2974
    %3694 = vmatmul.mubr.bf16.gmra.mrb[0].mxu0 %v2973
    %v3695 = vpop.f32.mrb[0].mxu0
    %v3696 = vadd.f32 %v1832, %v3695
    %v3697 = vpop.f32.mrb[0].mxu0
    %v3698 = vpop.f32.mrb[0].mxu0
    %v3699 = vadd.f32 %v1837, %v3698
    %v3700 = vpop.f32.mrb[0].mxu0
    %3701 = vmatprep.mubr.bf16.mxu0 %v2978
    %3702 = vmatmul.mubr.bf16.gmra.mrb[0].mxu0 %v2977
    %v3703 = vpop.f32.mrb[0].mxu0
    %v3704 = vadd.f32 %v1842, %v3703
    %v3705 = vpop.f32.mrb[0].mxu0
    %v3706 = vpop.f32.mrb[0].mxu0
    %v3707 = vadd.f32 %v1847, %v3706
    %v3708 = vpop.f32.mrb[0].mxu0
    %3709 = vmatprep.mubr.bf16.mxu0 %v2982
    %3710 = vmatmul.mubr.bf16.gmra.mrb[0].mxu0 %v2981
    %v3711 = vpop.f32.mrb[0].mxu0
    %v3712 = vadd.f32 %v1852, %v3711
    %v3713 = vpop.f32.mrb[0].mxu0
    %v3714 = vpop.f32.mrb[0].mxu0
    %v3715 = vadd.f32 %v1857, %v3714
    %v3716 = vpop.f32.mrb[0].mxu0
    %3717 = vmatprep.mubr.bf16.mxu0 %v2986
    %3718 = vmatmul.mubr.bf16.gmra.mrb[0].mxu0 %v2985
    %v3719 = vpop.f32.mrb[0].mxu0
    %v3720 = vadd.f32 %v1862, %v3719
    %v3721 = vpop.f32.mrb[0].mxu0
    %v3722 = vpop.f32.mrb[0].mxu0
    %v3723 = vadd.f32 %v1867, %v3722
    %v3724 = vpop.f32.mrb[0].mxu0
    %3725 = vmatprep.mubr.bf16.mxu0 %v2990
    %3726 = vmatmul.mubr.bf16.gmra.mrb[0].mxu0 %v2989
    %v3727 = vpop.f32.mrb[0].mxu0
    %v3728 = vadd.f32 %v1872, %v3727
    %v3729 = vpop.f32.mrb[0].mxu0
    %v3730 = vpop.f32.mrb[0].mxu0
    %v3731 = vadd.f32 %v1877, %v3730
    %v3732 = vpop.f32.mrb[0].mxu0
    %3733 = vmatprep.mubr.bf16.mxu0 %v2994
    %3734 = vmatmul.mubr.bf16.gmra.mrb[0].mxu0 %v2993
    %v3735 = vpop.f32.mrb[0].mxu0
    %v3736 = vadd.f32 %v1882, %v3735
    %v3737 = vpop.f32.mrb[0].mxu0
    %v3738 = vpop.f32.mrb[0].mxu0
    %v3739 = vadd.f32 %v1887, %v3738
    %v3740 = vpop.f32.mrb[0].mxu0
    %3741 = vmatprep.mubr.bf16.mxu0 %v2998
    %3742 = vmatmul.mubr.bf16.gmra.mrb[0].mxu0 %v2997
    %v3743 = vpop.f32.mrb[0].mxu0
    %v3744 = vadd.f32 %v1892, %v3743
    %v3745 = vpop.f32.mrb[0].mxu0
    %v3746 = vpop.f32.mrb[0].mxu0
    %v3747 = vadd.f32 %v1897, %v3746
    %v3748 = vpop.f32.mrb[0].mxu0
    %3749 = vmatprep.mubr.bf16.mxu0 %v3002
    %3750 = vmatmul.mubr.bf16.gmra.mrb[0].mxu0 %v3001
    %v3751 = vpop.f32.mrb[0].mxu0
    %v3752 = vadd.f32 %v1902, %v3751
    %v3753 = vpop.f32.mrb[0].mxu0
    %v3754 = vpop.f32.mrb[0].mxu0
    %v3755 = vadd.f32 %v1907, %v3754
    %v3756 = vpop.f32.mrb[0].mxu0
    %3757 = vmatprep.mubr.bf16.mxu0 %v3006
    %3758 = vmatmul.mubr.bf16.gmra.mrb[0].mxu0 %v3005
    %v3759 = vpop.f32.mrb[0].mxu0
    %v3760 = vadd.f32 %v1912, %v3759
    %v3761 = vpop.f32.mrb[0].mxu0
    %v3762 = vpop.f32.mrb[0].mxu0
    %v3763 = vadd.f32 %v1917, %v3762
    %v3764 = vpop.f32.mrb[0].mxu0
    %3765 = vmatprep.mubr.bf16.mxu0 %v3010
    %3766 = vmatmul.mubr.bf16.gmra.mrb[0].mxu0 %v3009
    %v3767 = vpop.f32.mrb[0].mxu0
    %v3768 = vadd.f32 %v1922, %v3767
    %v3769 = vpop.f32.mrb[0].mxu0
    %v3770 = vpop.f32.mrb[0].mxu0
    %v3771 = vadd.f32 %v1927, %v3770
    %v3772 = vpop.f32.mrb[0].mxu0
    %3773 = vmatprep.mubr.bf16.mxu0 %v3014
    %3774 = vmatmul.mubr.bf16.gmra.mrb[0].mxu0 %v3013
    %v3775 = vpop.f32.mrb[0].mxu0
    %v3776 = vadd.f32 %v1932, %v3775
    %v3777 = vpop.f32.mrb[0].mxu0
    %v3778 = vpop.f32.mrb[0].mxu0
    %v3779 = vadd.f32 %v1937, %v3778
    %v3780 = vpop.f32.mrb[0].mxu0
    %3781 = vmatprep.mubr.bf16.mxu0 %v3018
    %3782 = vmatmul.mubr.bf16.gmra.mrb[0].mxu0 %v3017
    %v3783 = vpop.f32.mrb[0].mxu0
    %v3784 = vadd.f32 %v1942, %v3783
    %v3785 = vpop.f32.mrb[0].mxu0
    %v3786 = vpop.f32.mrb[0].mxu0
    %v3787 = vadd.f32 %v1947, %v3786
    %v3788 = vpop.f32.mrb[0].mxu0
    %3789 = vmatprep.mubr.bf16.mxu0 %v3022
    %3790 = vmatmul.mubr.bf16.gmra.mrb[0].mxu0 %v3021
    %v3791 = vpop.f32.mrb[0].mxu0
    %v3792 = vadd.f32 %v1952, %v3791
    %v3793 = vpop.f32.mrb[0].mxu0
    %v3794 = vpop.f32.mrb[0].mxu0
    %v3795 = vadd.f32 %v1957, %v3794
    %v3796 = vpop.f32.mrb[0].mxu0
    %3797 = vmatprep.mubr.bf16.mxu0 %v3026
    %3798 = vmatmul.mubr.bf16.gmra.mrb[0].mxu0 %v3025
    %v3799 = vpop.f32.mrb[0].mxu0
    %v3800 = vadd.f32 %v1962, %v3799
    %v3801 = vpop.f32.mrb[0].mxu0
    %v3802 = vpop.f32.mrb[0].mxu0
    %v3803 = vadd.f32 %v1967, %v3802
    %v3804 = vpop.f32.mrb[0].mxu0
    %3805 = vmatprep.mubr.bf16.mxu0 %v3030
    %3806 = vmatmul.mubr.bf16.gmra.mrb[0].mxu0 %v3029
    %v3807 = vpop.f32.mrb[0].mxu0
    %v3808 = vadd.f32 %v1972, %v3807
    %v3809 = vpop.f32.mrb[0].mxu0
    %v3810 = vpop.f32.mrb[0].mxu0
    %v3811 = vadd.f32 %v1977, %v3810
    %v3812 = vpop.f32.mrb[0].mxu0
    %3813 = vmatprep.mubr.bf16.mxu0 %v3034
    %3814 = vmatmul.mubr.bf16.gmra.mrb[0].mxu0 %v3033
    %v3815 = vpop.f32.mrb[0].mxu0
    %v3816 = vadd.f32 %v1982, %v3815
    %v3817 = vpop.f32.mrb[0].mxu0
    %v3818 = vpop.f32.mrb[0].mxu0
    %v3819 = vadd.f32 %v1987, %v3818
    %v3820 = vpop.f32.mrb[0].mxu0
    %3821 = vmatprep.mubr.bf16.mxu0 %v3038
    %3822 = vmatmul.mubr.bf16.gmra.mrb[0].mxu0 %v3037
    %v3823 = vpop.f32.mrb[0].mxu0
    %v3824 = vadd.f32 %v1992, %v3823
    %v3825 = vpop.f32.mrb[0].mxu0
    %v3826 = vpop.f32.mrb[0].mxu0
    %v3827 = vadd.f32 %v1997, %v3826
    %v3828 = vpop.f32.mrb[0].mxu0
    %3829 = vmatprep.mubr.bf16.mxu0 %v3042
    %3830 = vmatmul.mubr.bf16.gmra.mrb[0].mxu0 %v3041
    %v3831 = vpop.f32.mrb[0].mxu0
    %v3832 = vadd.f32 %v2002, %v3831
    %v3833 = vpop.f32.mrb[0].mxu0
    %v3834 = vpop.f32.mrb[0].mxu0
    %v3835 = vadd.f32 %v2007, %v3834
    %v3836 = vpop.f32.mrb[0].mxu0
    %3837 = vmatprep.mubr.bf16.mxu0 %v3046
    %3838 = vmatmul.mubr.bf16.gmra.mrb[0].mxu0 %v3045
    %v3839 = vpop.f32.mrb[0].mxu0
    %v3840 = vadd.f32 %v2012, %v3839
    %v3841 = vpop.f32.mrb[0].mxu0
    %v3842 = vpop.f32.mrb[0].mxu0
    %v3843 = vadd.f32 %v2017, %v3842
    %v3844 = vpop.f32.mrb[0].mxu0
    %3845 = vmatprep.mubr.bf16.mxu0 %v3050
    %3846 = vmatmul.mubr.bf16.gmra.mrb[0].mxu0 %v3049
    %v3847 = vpop.f32.mrb[0].mxu0
    %v3848 = vadd.f32 %v2022, %v3847
    %v3849 = vpop.f32.mrb[0].mxu0
    %v3850 = vpop.f32.mrb[0].mxu0
    %v3851 = vadd.f32 %v2027, %v3850
    %v3852 = vpop.f32.mrb[0].mxu0
    %3853 = vdwg.mxu0
    %3854 = vmatprep.subr.bf16.mxu0 0
    %3855 = vmatpush1.bf16.msra.mxu0 %v1437
    %3856 = vmatprep.subr.bf16.mxu0 0
    %3857 = vmatpush1.bf16.msra.mxu0 %v1438
    %3858 = vmatprep.subr.bf16.mxu0 0
    %3859 = vmatpush1.bf16.msra.mxu0 %v1439
    %3860 = vmatprep.subr.bf16.mxu0 0
    %3861 = vmatpush1.bf16.msra.mxu0 %v1440
    %3862 = vmatprep.subr.bf16.mxu0 0
    %3863 = vmatpush1.bf16.msra.mxu0 %v1441
    %3864 = vmatprep.subr.bf16.mxu0 0
    %3865 = vmatpush1.bf16.msra.mxu0 %v1442
    %3866 = vmatprep.subr.bf16.mxu0 0
    %3867 = vmatpush1.bf16.msra.mxu0 %v1443
    %3868 = vmatprep.subr.bf16.mxu0 0
    %3869 = vmatpush1.bf16.msra.mxu0 %v1444
    %3870 = vmatprep.subr.bf16.mxu0 0
    %3871 = vmatpush1.bf16.msra.mxu0 %v1445
    %3872 = vmatprep.subr.bf16.mxu0 0
    %3873 = vmatpush1.bf16.msra.mxu0 %v1446
    %3874 = vmatprep.subr.bf16.mxu0 0
    %3875 = vmatpush1.bf16.msra.mxu0 %v1447
    %3876 = vmatprep.subr.bf16.mxu0 0
    %3877 = vmatpush1.bf16.msra.mxu0 %v1448
    %3878 = vmatprep.subr.bf16.mxu0 0
    %3879 = vmatpush1.bf16.msra.mxu0 %v1449
    %3880 = vmatprep.subr.bf16.mxu0 0
    %3881 = vmatpush1.bf16.msra.mxu0 %v1450
    %3882 = vmatprep.subr.bf16.mxu0 0
    %3883 = vmatpush1.bf16.msra.mxu0 %v1451
    %3884 = vmatprep.subr.bf16.mxu0 0
    %3885 = vmatpush1.bf16.msra.mxu0 %v1452
    %3886 = vmatprep.mubr.bf16.mxu0 %v2800
    %3887 = vmatmul.mubr.bf16.gmra.mrb[0].mxu0 %v2799
    %v3888 = vpop.f32.mrb[0].mxu0
    %v3889 = vadd.f32 %v3344, %v3888
    %v3890 = vpop.f32.mrb[0].mxu0
    %v3891 = vpop.f32.mrb[0].mxu0
    %v3892 = vadd.f32 %v3347, %v3891
    %v3893 = vpop.f32.mrb[0].mxu0
    %3894 = vmatprep.mubr.bf16.mxu0 %v2804
    %3895 = vmatmul.mubr.bf16.gmra.mrb[0].mxu0 %v2803
    %v3896 = vpop.f32.mrb[0].mxu0
    %v3897 = vadd.f32 %v3352, %v3896
    %v3898 = vpop.f32.mrb[0].mxu0
    %v3899 = vpop.f32.mrb[0].mxu0
    %v3900 = vadd.f32 %v3355, %v3899
    %v3901 = vpop.f32.mrb[0].mxu0
    %3902 = vmatprep.mubr.bf16.mxu0 %v2808
    %3903 = vmatmul.mubr.bf16.gmra.mrb[0].mxu0 %v2807
    %v3904 = vpop.f32.mrb[0].mxu0
    %v3905 = vadd.f32 %v3360, %v3904
    %v3906 = vpop.f32.mrb[0].mxu0
    %v3907 = vpop.f32.mrb[0].mxu0
    %v3908 = vadd.f32 %v3363, %v3907
    %v3909 = vpop.f32.mrb[0].mxu0
    %3910 = vmatprep.mubr.bf16.mxu0 %v2812
    %3911 = vmatmul.mubr.bf16.gmra.mrb[0].mxu0 %v2811
    %v3912 = vpop.f32.mrb[0].mxu0
    %v3913 = vadd.f32 %v3368, %v3912
    %v3914 = vpop.f32.mrb[0].mxu0
    %v3915 = vpop.f32.mrb[0].mxu0
    %v3916 = vadd.f32 %v3371, %v3915
    %v3917 = vpop.f32.mrb[0].mxu0
    %3918 = vmatprep.mubr.bf16.mxu0 %v2816
    %3919 = vmatmul.mubr.bf16.gmra.mrb[0].mxu0 %v2815
    %v3920 = vpop.f32.mrb[0].mxu0
    %v3921 = vadd.f32 %v3376, %v3920
    %v3922 = vpop.f32.mrb[0].mxu0
    %v3923 = vpop.f32.mrb[0].mxu0
    %v3924 = vadd.f32 %v3379, %v3923
    %v3925 = vpop.f32.mrb[0].mxu0
    %3926 = vmatprep.mubr.bf16.mxu0 %v2820
    %3927 = vmatmul.mubr.bf16.gmra.mrb[0].mxu0 %v2819
    %v3928 = vpop.f32.mrb[0].mxu0
    %v3929 = vadd.f32 %v3384, %v3928
    %v3930 = vpop.f32.mrb[0].mxu0
    %v3931 = vpop.f32.mrb[0].mxu0
    %v3932 = vadd.f32 %v3387, %v3931
    %v3933 = vpop.f32.mrb[0].mxu0
    %3934 = vmatprep.mubr.bf16.mxu0 %v2824
    %3935 = vmatmul.mubr.bf16.gmra.mrb[0].mxu0 %v2823
    %v3936 = vpop.f32.mrb[0].mxu0
    %v3937 = vadd.f32 %v3392, %v3936
    %v3938 = vpop.f32.mrb[0].mxu0
    %v3939 = vpop.f32.mrb[0].mxu0
    %v3940 = vadd.f32 %v3395, %v3939
    %v3941 = vpop.f32.mrb[0].mxu0
    %3942 = vmatprep.mubr.bf16.mxu0 %v2828
    %3943 = vmatmul.mubr.bf16.gmra.mrb[0].mxu0 %v2827
    %v3944 = vpop.f32.mrb[0].mxu0
    %v3945 = vadd.f32 %v3400, %v3944
    %v3946 = vpop.f32.mrb[0].mxu0
    %v3947 = vpop.f32.mrb[0].mxu0
    %v3948 = vadd.f32 %v3403, %v3947
    %v3949 = vpop.f32.mrb[0].mxu0
    %3950 = vmatprep.mubr.bf16.mxu0 %v2832
    %3951 = vmatmul.mubr.bf16.gmra.mrb[0].mxu0 %v2831
    %v3952 = vpop.f32.mrb[0].mxu0
    %v3953 = vadd.f32 %v3408, %v3952
    %v3954 = vpop.f32.mrb[0].mxu0
    %v3955 = vpop.f32.mrb[0].mxu0
    %v3956 = vadd.f32 %v3411, %v3955
    %v3957 = vpop.f32.mrb[0].mxu0
    %3958 = vmatprep.mubr.bf16.mxu0 %v2836
    %3959 = vmatmul.mubr.bf16.gmra.mrb[0].mxu0 %v2835
    %v3960 = vpop.f32.mrb[0].mxu0
    %v3961 = vadd.f32 %v3416, %v3960
    %v3962 = vpop.f32.mrb[0].mxu0
    %v3963 = vpop.f32.mrb[0].mxu0
    %v3964 = vadd.f32 %v3419, %v3963
    %v3965 = vpop.f32.mrb[0].mxu0
    %3966 = vmatprep.mubr.bf16.mxu0 %v2840
    %3967 = vmatmul.mubr.bf16.gmra.mrb[0].mxu0 %v2839
    %v3968 = vpop.f32.mrb[0].mxu0
    %v3969 = vadd.f32 %v3424, %v3968
    %v3970 = vpop.f32.mrb[0].mxu0
    %v3971 = vpop.f32.mrb[0].mxu0
    %v3972 = vadd.f32 %v3427, %v3971
    %v3973 = vpop.f32.mrb[0].mxu0
    %3974 = vmatprep.mubr.bf16.mxu0 %v2844
    %3975 = vmatmul.mubr.bf16.gmra.mrb[0].mxu0 %v2843
    %v3976 = vpop.f32.mrb[0].mxu0
    %v3977 = vadd.f32 %v3432, %v3976
    %v3978 = vpop.f32.mrb[0].mxu0
    %v3979 = vpop.f32.mrb[0].mxu0
    %v3980 = vadd.f32 %v3435, %v3979
    %v3981 = vpop.f32.mrb[0].mxu0
    %3982 = vmatprep.mubr.bf16.mxu0 %v2848
    %3983 = vmatmul.mubr.bf16.gmra.mrb[0].mxu0 %v2847
    %v3984 = vpop.f32.mrb[0].mxu0
    %v3985 = vadd.f32 %v3440, %v3984
    %v3986 = vpop.f32.mrb[0].mxu0
    %v3987 = vpop.f32.mrb[0].mxu0
    %v3988 = vadd.f32 %v3443, %v3987
    %v3989 = vpop.f32.mrb[0].mxu0
    %3990 = vmatprep.mubr.bf16.mxu0 %v2852
    %3991 = vmatmul.mubr.bf16.gmra.mrb[0].mxu0 %v2851
    %v3992 = vpop.f32.mrb[0].mxu0
    %v3993 = vadd.f32 %v3448, %v3992
    %v3994 = vpop.f32.mrb[0].mxu0
    %v3995 = vpop.f32.mrb[0].mxu0
    %v3996 = vadd.f32 %v3451, %v3995
    %v3997 = vpop.f32.mrb[0].mxu0
    %3998 = vmatprep.mubr.bf16.mxu0 %v2856
    %3999 = vmatmul.mubr.bf16.gmra.mrb[0].mxu0 %v2855
    %v4000 = vpop.f32.mrb[0].mxu0
    %v4001 = vadd.f32 %v3456, %v4000
    %v4002 = vpop.f32.mrb[0].mxu0
    %v4003 = vpop.f32.mrb[0].mxu0
    %v4004 = vadd.f32 %v3459, %v4003
    %v4005 = vpop.f32.mrb[0].mxu0
    %4006 = vmatprep.mubr.bf16.mxu0 %v2860
    %4007 = vmatmul.mubr.bf16.gmra.mrb[0].mxu0 %v2859
    %v4008 = vpop.f32.mrb[0].mxu0
    %v4009 = vadd.f32 %v3464, %v4008
    %v4010 = vpop.f32.mrb[0].mxu0
    %v4011 = vpop.f32.mrb[0].mxu0
    %v4012 = vadd.f32 %v3467, %v4011
    %v4013 = vpop.f32.mrb[0].mxu0
    %4014 = vmatprep.mubr.bf16.mxu0 %v2864
    %4015 = vmatmul.mubr.bf16.gmra.mrb[0].mxu0 %v2863
    %v4016 = vpop.f32.mrb[0].mxu0
    %v4017 = vadd.f32 %v3472, %v4016
    %v4018 = vpop.f32.mrb[0].mxu0
    %v4019 = vpop.f32.mrb[0].mxu0
    %v4020 = vadd.f32 %v3475, %v4019
    %v4021 = vpop.f32.mrb[0].mxu0
    %4022 = vmatprep.mubr.bf16.mxu0 %v2868
    %4023 = vmatmul.mubr.bf16.gmra.mrb[0].mxu0 %v2867
    %v4024 = vpop.f32.mrb[0].mxu0
    %v4025 = vadd.f32 %v3480, %v4024
    %v4026 = vpop.f32.mrb[0].mxu0
    %v4027 = vpop.f32.mrb[0].mxu0
    %v4028 = vadd.f32 %v3483, %v4027
    %v4029 = vpop.f32.mrb[0].mxu0
    %4030 = vmatprep.mubr.bf16.mxu0 %v2872
    %4031 = vmatmul.mubr.bf16.gmra.mrb[0].mxu0 %v2871
    %v4032 = vpop.f32.mrb[0].mxu0
    %v4033 = vadd.f32 %v3488, %v4032
    %v4034 = vpop.f32.mrb[0].mxu0
    %v4035 = vpop.f32.mrb[0].mxu0
    %v4036 = vadd.f32 %v3491, %v4035
    %v4037 = vpop.f32.mrb[0].mxu0
    %4038 = vmatprep.mubr.bf16.mxu0 %v2876
    %4039 = vmatmul.mubr.bf16.gmra.mrb[0].mxu0 %v2875
    %v4040 = vpop.f32.mrb[0].mxu0
    %v4041 = vadd.f32 %v3496, %v4040
    %v4042 = vpop.f32.mrb[0].mxu0
    %v4043 = vpop.f32.mrb[0].mxu0
    %v4044 = vadd.f32 %v3499, %v4043
    %v4045 = vpop.f32.mrb[0].mxu0
    %4046 = vmatprep.mubr.bf16.mxu0 %v2880
    %4047 = vmatmul.mubr.bf16.gmra.mrb[0].mxu0 %v2879
    %v4048 = vpop.f32.mrb[0].mxu0
    %v4049 = vadd.f32 %v3504, %v4048
    %v4050 = vpop.f32.mrb[0].mxu0
    %v4051 = vpop.f32.mrb[0].mxu0
    %v4052 = vadd.f32 %v3507, %v4051
    %v4053 = vpop.f32.mrb[0].mxu0
    %4054 = vmatprep.mubr.bf16.mxu0 %v2884
    %4055 = vmatmul.mubr.bf16.gmra.mrb[0].mxu0 %v2883
    %v4056 = vpop.f32.mrb[0].mxu0
    %v4057 = vadd.f32 %v3512, %v4056
    %v4058 = vpop.f32.mrb[0].mxu0
    %v4059 = vpop.f32.mrb[0].mxu0
    %v4060 = vadd.f32 %v3515, %v4059
    %v4061 = vpop.f32.mrb[0].mxu0
    %4062 = vmatprep.mubr.bf16.mxu0 %v2888
    %4063 = vmatmul.mubr.bf16.gmra.mrb[0].mxu0 %v2887
    %v4064 = vpop.f32.mrb[0].mxu0
    %v4065 = vadd.f32 %v3520, %v4064
    %v4066 = vpop.f32.mrb[0].mxu0
    %v4067 = vpop.f32.mrb[0].mxu0
    %v4068 = vadd.f32 %v3523, %v4067
    %v4069 = vpop.f32.mrb[0].mxu0
    %4070 = vmatprep.mubr.bf16.mxu0 %v2892
    %4071 = vmatmul.mubr.bf16.gmra.mrb[0].mxu0 %v2891
    %v4072 = vpop.f32.mrb[0].mxu0
    %v4073 = vadd.f32 %v3528, %v4072
    %v4074 = vpop.f32.mrb[0].mxu0
    %v4075 = vpop.f32.mrb[0].mxu0
    %v4076 = vadd.f32 %v3531, %v4075
    %v4077 = vpop.f32.mrb[0].mxu0
    %4078 = vmatprep.mubr.bf16.mxu0 %v2896
    %4079 = vmatmul.mubr.bf16.gmra.mrb[0].mxu0 %v2895
    %v4080 = vpop.f32.mrb[0].mxu0
    %v4081 = vadd.f32 %v3536, %v4080
    %v4082 = vpop.f32.mrb[0].mxu0
    %v4083 = vpop.f32.mrb[0].mxu0
    %v4084 = vadd.f32 %v3539, %v4083
    %v4085 = vpop.f32.mrb[0].mxu0
    %4086 = vmatprep.mubr.bf16.mxu0 %v2900
    %4087 = vmatmul.mubr.bf16.gmra.mrb[0].mxu0 %v2899
    %v4088 = vpop.f32.mrb[0].mxu0
    %v4089 = vadd.f32 %v3544, %v4088
    %v4090 = vpop.f32.mrb[0].mxu0
    %v4091 = vpop.f32.mrb[0].mxu0
    %v4092 = vadd.f32 %v3547, %v4091
    %v4093 = vpop.f32.mrb[0].mxu0
    %4094 = vmatprep.mubr.bf16.mxu0 %v2904
    %4095 = vmatmul.mubr.bf16.gmra.mrb[0].mxu0 %v2903
    %v4096 = vpop.f32.mrb[0].mxu0
    %v4097 = vadd.f32 %v3552, %v4096
    %v4098 = vpop.f32.mrb[0].mxu0
    %v4099 = vpop.f32.mrb[0].mxu0
    %v4100 = vadd.f32 %v3555, %v4099
    %v4101 = vpop.f32.mrb[0].mxu0
    %4102 = vmatprep.mubr.bf16.mxu0 %v2908
    %4103 = vmatmul.mubr.bf16.gmra.mrb[0].mxu0 %v2907
    %v4104 = vpop.f32.mrb[0].mxu0
    %v4105 = vadd.f32 %v3560, %v4104
    %v4106 = vpop.f32.mrb[0].mxu0
    %v4107 = vpop.f32.mrb[0].mxu0
    %v4108 = vadd.f32 %v3563, %v4107
    %v4109 = vpop.f32.mrb[0].mxu0
    %4110 = vmatprep.mubr.bf16.mxu0 %v2912
    %4111 = vmatmul.mubr.bf16.gmra.mrb[0].mxu0 %v2911
    %v4112 = vpop.f32.mrb[0].mxu0
    %v4113 = vadd.f32 %v3568, %v4112
    %v4114 = vpop.f32.mrb[0].mxu0
    %v4115 = vpop.f32.mrb[0].mxu0
    %v4116 = vadd.f32 %v3571, %v4115
    %v4117 = vpop.f32.mrb[0].mxu0
    %4118 = vmatprep.mubr.bf16.mxu0 %v2916
    %4119 = vmatmul.mubr.bf16.gmra.mrb[0].mxu0 %v2915
    %v4120 = vpop.f32.mrb[0].mxu0
    %v4121 = vadd.f32 %v3576, %v4120
    %v4122 = vpop.f32.mrb[0].mxu0
    %v4123 = vpop.f32.mrb[0].mxu0
    %v4124 = vadd.f32 %v3579, %v4123
    %v4125 = vpop.f32.mrb[0].mxu0
    %4126 = vmatprep.mubr.bf16.mxu0 %v2920
    %4127 = vmatmul.mubr.bf16.gmra.mrb[0].mxu0 %v2919
    %v4128 = vpop.f32.mrb[0].mxu0
    %v4129 = vadd.f32 %v3584, %v4128
    %v4130 = vpop.f32.mrb[0].mxu0
    %v4131 = vpop.f32.mrb[0].mxu0
    %v4132 = vadd.f32 %v3587, %v4131
    %v4133 = vpop.f32.mrb[0].mxu0
    %4134 = vmatprep.mubr.bf16.mxu0 %v2924
    %4135 = vmatmul.mubr.bf16.gmra.mrb[0].mxu0 %v2923
    %v4136 = vpop.f32.mrb[0].mxu0
    %v4137 = vadd.f32 %v3592, %v4136
    %v4138 = vpop.f32.mrb[0].mxu0
    %v4139 = vpop.f32.mrb[0].mxu0
    %v4140 = vadd.f32 %v3595, %v4139
    %v4141 = vpop.f32.mrb[0].mxu0
    %4142 = vmatprep.mubr.bf16.mxu0 %v2928
    %4143 = vmatmul.mubr.bf16.gmra.mrb[0].mxu0 %v2927
    %v4144 = vpop.f32.mrb[0].mxu0
    %v4145 = vadd.f32 %v3600, %v4144
    %v4146 = vpop.f32.mrb[0].mxu0
    %v4147 = vpop.f32.mrb[0].mxu0
    %v4148 = vadd.f32 %v3603, %v4147
    %v4149 = vpop.f32.mrb[0].mxu0
    %4150 = vmatprep.mubr.bf16.mxu0 %v2932
    %4151 = vmatmul.mubr.bf16.gmra.mrb[0].mxu0 %v2931
    %v4152 = vpop.f32.mrb[0].mxu0
    %v4153 = vadd.f32 %v3608, %v4152
    %v4154 = vpop.f32.mrb[0].mxu0
    %v4155 = vpop.f32.mrb[0].mxu0
    %v4156 = vadd.f32 %v3611, %v4155
    %v4157 = vpop.f32.mrb[0].mxu0
    %4158 = vmatprep.mubr.bf16.mxu0 %v2936
    %4159 = vmatmul.mubr.bf16.gmra.mrb[0].mxu0 %v2935
    %v4160 = vpop.f32.mrb[0].mxu0
    %v4161 = vadd.f32 %v3616, %v4160
    %v4162 = vpop.f32.mrb[0].mxu0
    %v4163 = vpop.f32.mrb[0].mxu0
    %v4164 = vadd.f32 %v3619, %v4163
    %v4165 = vpop.f32.mrb[0].mxu0
    %4166 = vmatprep.mubr.bf16.mxu0 %v2940
    %4167 = vmatmul.mubr.bf16.gmra.mrb[0].mxu0 %v2939
    %v4168 = vpop.f32.mrb[0].mxu0
    %v4169 = vadd.f32 %v3624, %v4168
    %v4170 = vpop.f32.mrb[0].mxu0
    %v4171 = vpop.f32.mrb[0].mxu0
    %v4172 = vadd.f32 %v3627, %v4171
    %v4173 = vpop.f32.mrb[0].mxu0
    %4174 = vmatprep.mubr.bf16.mxu0 %v2944
    %4175 = vmatmul.mubr.bf16.gmra.mrb[0].mxu0 %v2943
    %v4176 = vpop.f32.mrb[0].mxu0
    %v4177 = vadd.f32 %v3632, %v4176
    %v4178 = vpop.f32.mrb[0].mxu0
    %v4179 = vpop.f32.mrb[0].mxu0
    %v4180 = vadd.f32 %v3635, %v4179
    %v4181 = vpop.f32.mrb[0].mxu0
    %4182 = vmatprep.mubr.bf16.mxu0 %v2948
    %4183 = vmatmul.mubr.bf16.gmra.mrb[0].mxu0 %v2947
    %v4184 = vpop.f32.mrb[0].mxu0
    %v4185 = vadd.f32 %v3640, %v4184
    %v4186 = vpop.f32.mrb[0].mxu0
    %v4187 = vpop.f32.mrb[0].mxu0
    %v4188 = vadd.f32 %v3643, %v4187
    %v4189 = vpop.f32.mrb[0].mxu0
    %4190 = vmatprep.mubr.bf16.mxu0 %v2952
    %4191 = vmatmul.mubr.bf16.gmra.mrb[0].mxu0 %v2951
    %v4192 = vpop.f32.mrb[0].mxu0
    %v4193 = vadd.f32 %v3648, %v4192
    %v4194 = vpop.f32.mrb[0].mxu0
    %v4195 = vpop.f32.mrb[0].mxu0
    %v4196 = vadd.f32 %v3651, %v4195
    %v4197 = vpop.f32.mrb[0].mxu0
    %4198 = vmatprep.mubr.bf16.mxu0 %v2956
    %4199 = vmatmul.mubr.bf16.gmra.mrb[0].mxu0 %v2955
    %v4200 = vpop.f32.mrb[0].mxu0
    %v4201 = vadd.f32 %v3656, %v4200
    %v4202 = vpop.f32.mrb[0].mxu0
    %v4203 = vpop.f32.mrb[0].mxu0
    %v4204 = vadd.f32 %v3659, %v4203
    %v4205 = vpop.f32.mrb[0].mxu0
    %4206 = vmatprep.mubr.bf16.mxu0 %v2960
    %4207 = vmatmul.mubr.bf16.gmra.mrb[0].mxu0 %v2959
    %v4208 = vpop.f32.mrb[0].mxu0
    %v4209 = vadd.f32 %v3664, %v4208
    %v4210 = vpop.f32.mrb[0].mxu0
    %v4211 = vpop.f32.mrb[0].mxu0
    %v4212 = vadd.f32 %v3667, %v4211
    %v4213 = vpop.f32.mrb[0].mxu0
    %4214 = vmatprep.mubr.bf16.mxu0 %v2964
    %4215 = vmatmul.mubr.bf16.gmra.mrb[0].mxu0 %v2963
    %v4216 = vpop.f32.mrb[0].mxu0
    %v4217 = vadd.f32 %v3672, %v4216
    %v4218 = vpop.f32.mrb[0].mxu0
    %v4219 = vpop.f32.mrb[0].mxu0
    %v4220 = vadd.f32 %v3675, %v4219
    %v4221 = vpop.f32.mrb[0].mxu0
    %4222 = vmatprep.mubr.bf16.mxu0 %v2968
    %4223 = vmatmul.mubr.bf16.gmra.mrb[0].mxu0 %v2967
    %v4224 = vpop.f32.mrb[0].mxu0
    %v4225 = vadd.f32 %v3680, %v4224
    %v4226 = vpop.f32.mrb[0].mxu0
    %v4227 = vpop.f32.mrb[0].mxu0
    %v4228 = vadd.f32 %v3683, %v4227
    %v4229 = vpop.f32.mrb[0].mxu0
    %4230 = vmatprep.mubr.bf16.mxu0 %v2972
    %4231 = vmatmul.mubr.bf16.gmra.mrb[0].mxu0 %v2971
    %v4232 = vpop.f32.mrb[0].mxu0
    %v4233 = vadd.f32 %v3688, %v4232
    %v4234 = vpop.f32.mrb[0].mxu0
    %v4235 = vpop.f32.mrb[0].mxu0
    %v4236 = vadd.f32 %v3691, %v4235
    %v4237 = vpop.f32.mrb[0].mxu0
    %4238 = vmatprep.mubr.bf16.mxu0 %v2976
    %4239 = vmatmul.mubr.bf16.gmra.mrb[0].mxu0 %v2975
    %v4240 = vpop.f32.mrb[0].mxu0
    %v4241 = vadd.f32 %v3696, %v4240
    %v4242 = vpop.f32.mrb[0].mxu0
    %v4243 = vpop.f32.mrb[0].mxu0
    %v4244 = vadd.f32 %v3699, %v4243
    %v4245 = vpop.f32.mrb[0].mxu0
    %4246 = vmatprep.mubr.bf16.mxu0 %v2980
    %4247 = vmatmul.mubr.bf16.gmra.mrb[0].mxu0 %v2979
    %v4248 = vpop.f32.mrb[0].mxu0
    %v4249 = vadd.f32 %v3704, %v4248
    %v4250 = vpop.f32.mrb[0].mxu0
    %v4251 = vpop.f32.mrb[0].mxu0
    %v4252 = vadd.f32 %v3707, %v4251
    %v4253 = vpop.f32.mrb[0].mxu0
    %4254 = vmatprep.mubr.bf16.mxu0 %v2984
    %4255 = vmatmul.mubr.bf16.gmra.mrb[0].mxu0 %v2983
    %v4256 = vpop.f32.mrb[0].mxu0
    %v4257 = vadd.f32 %v3712, %v4256
    %v4258 = vpop.f32.mrb[0].mxu0
    %v4259 = vpop.f32.mrb[0].mxu0
    %v4260 = vadd.f32 %v3715, %v4259
    %v4261 = vpop.f32.mrb[0].mxu0
    %4262 = vmatprep.mubr.bf16.mxu0 %v2988
    %4263 = vmatmul.mubr.bf16.gmra.mrb[0].mxu0 %v2987
    %v4264 = vpop.f32.mrb[0].mxu0
    %v4265 = vadd.f32 %v3720, %v4264
    %v4266 = vpop.f32.mrb[0].mxu0
    %v4267 = vpop.f32.mrb[0].mxu0
    %v4268 = vadd.f32 %v3723, %v4267
    %v4269 = vpop.f32.mrb[0].mxu0
    %4270 = vmatprep.mubr.bf16.mxu0 %v2992
    %4271 = vmatmul.mubr.bf16.gmra.mrb[0].mxu0 %v2991
    %v4272 = vpop.f32.mrb[0].mxu0
    %v4273 = vadd.f32 %v3728, %v4272
    %v4274 = vpop.f32.mrb[0].mxu0
    %v4275 = vpop.f32.mrb[0].mxu0
    %v4276 = vadd.f32 %v3731, %v4275
    %v4277 = vpop.f32.mrb[0].mxu0
    %4278 = vmatprep.mubr.bf16.mxu0 %v2996
    %4279 = vmatmul.mubr.bf16.gmra.mrb[0].mxu0 %v2995
    %v4280 = vpop.f32.mrb[0].mxu0
    %v4281 = vadd.f32 %v3736, %v4280
    %v4282 = vpop.f32.mrb[0].mxu0
    %v4283 = vpop.f32.mrb[0].mxu0
    %v4284 = vadd.f32 %v3739, %v4283
    %v4285 = vpop.f32.mrb[0].mxu0
    %4286 = vmatprep.mubr.bf16.mxu0 %v3000
    %4287 = vmatmul.mubr.bf16.gmra.mrb[0].mxu0 %v2999
    %v4288 = vpop.f32.mrb[0].mxu0
    %v4289 = vadd.f32 %v3744, %v4288
    %v4290 = vpop.f32.mrb[0].mxu0
    %v4291 = vpop.f32.mrb[0].mxu0
    %v4292 = vadd.f32 %v3747, %v4291
    %v4293 = vpop.f32.mrb[0].mxu0
    %4294 = vmatprep.mubr.bf16.mxu0 %v3004
    %4295 = vmatmul.mubr.bf16.gmra.mrb[0].mxu0 %v3003
    %v4296 = vpop.f32.mrb[0].mxu0
    %v4297 = vadd.f32 %v3752, %v4296
    %v4298 = vpop.f32.mrb[0].mxu0
    %v4299 = vpop.f32.mrb[0].mxu0
    %v4300 = vadd.f32 %v3755, %v4299
    %v4301 = vpop.f32.mrb[0].mxu0
    %4302 = vmatprep.mubr.bf16.mxu0 %v3008
    %4303 = vmatmul.mubr.bf16.gmra.mrb[0].mxu0 %v3007
    %v4304 = vpop.f32.mrb[0].mxu0
    %v4305 = vadd.f32 %v3760, %v4304
    %v4306 = vpop.f32.mrb[0].mxu0
    %v4307 = vpop.f32.mrb[0].mxu0
    %v4308 = vadd.f32 %v3763, %v4307
    %v4309 = vpop.f32.mrb[0].mxu0
    %4310 = vmatprep.mubr.bf16.mxu0 %v3012
    %4311 = vmatmul.mubr.bf16.gmra.mrb[0].mxu0 %v3011
    %v4312 = vpop.f32.mrb[0].mxu0
    %v4313 = vadd.f32 %v3768, %v4312
    %v4314 = vpop.f32.mrb[0].mxu0
    %v4315 = vpop.f32.mrb[0].mxu0
    %v4316 = vadd.f32 %v3771, %v4315
    %v4317 = vpop.f32.mrb[0].mxu0
    %4318 = vmatprep.mubr.bf16.mxu0 %v3016
    %4319 = vmatmul.mubr.bf16.gmra.mrb[0].mxu0 %v3015
    %v4320 = vpop.f32.mrb[0].mxu0
    %v4321 = vadd.f32 %v3776, %v4320
    %v4322 = vpop.f32.mrb[0].mxu0
    %v4323 = vpop.f32.mrb[0].mxu0
    %v4324 = vadd.f32 %v3779, %v4323
    %v4325 = vpop.f32.mrb[0].mxu0
    %4326 = vmatprep.mubr.bf16.mxu0 %v3020
    %4327 = vmatmul.mubr.bf16.gmra.mrb[0].mxu0 %v3019
    %v4328 = vpop.f32.mrb[0].mxu0
    %v4329 = vadd.f32 %v3784, %v4328
    %v4330 = vpop.f32.mrb[0].mxu0
    %v4331 = vpop.f32.mrb[0].mxu0
    %v4332 = vadd.f32 %v3787, %v4331
    %v4333 = vpop.f32.mrb[0].mxu0
    %4334 = vmatprep.mubr.bf16.mxu0 %v3024
    %4335 = vmatmul.mubr.bf16.gmra.mrb[0].mxu0 %v3023
    %v4336 = vpop.f32.mrb[0].mxu0
    %v4337 = vadd.f32 %v3792, %v4336
    %v4338 = vpop.f32.mrb[0].mxu0
    %v4339 = vpop.f32.mrb[0].mxu0
    %v4340 = vadd.f32 %v3795, %v4339
    %v4341 = vpop.f32.mrb[0].mxu0
    %4342 = vmatprep.mubr.bf16.mxu0 %v3028
    %4343 = vmatmul.mubr.bf16.gmra.mrb[0].mxu0 %v3027
    %v4344 = vpop.f32.mrb[0].mxu0
    %v4345 = vadd.f32 %v3800, %v4344
    %v4346 = vpop.f32.mrb[0].mxu0
    %v4347 = vpop.f32.mrb[0].mxu0
    %v4348 = vadd.f32 %v3803, %v4347
    %v4349 = vpop.f32.mrb[0].mxu0
    %4350 = vmatprep.mubr.bf16.mxu0 %v3032
    %4351 = vmatmul.mubr.bf16.gmra.mrb[0].mxu0 %v3031
    %v4352 = vpop.f32.mrb[0].mxu0
    %v4353 = vadd.f32 %v3808, %v4352
    %v4354 = vpop.f32.mrb[0].mxu0
    %v4355 = vpop.f32.mrb[0].mxu0
    %v4356 = vadd.f32 %v3811, %v4355
    %v4357 = vpop.f32.mrb[0].mxu0
    %4358 = vmatprep.mubr.bf16.mxu0 %v3036
    %4359 = vmatmul.mubr.bf16.gmra.mrb[0].mxu0 %v3035
    %v4360 = vpop.f32.mrb[0].mxu0
    %v4361 = vadd.f32 %v3816, %v4360
    %v4362 = vpop.f32.mrb[0].mxu0
    %v4363 = vpop.f32.mrb[0].mxu0
    %v4364 = vadd.f32 %v3819, %v4363
    %v4365 = vpop.f32.mrb[0].mxu0
    %4366 = vmatprep.mubr.bf16.mxu0 %v3040
    %4367 = vmatmul.mubr.bf16.gmra.mrb[0].mxu0 %v3039
    %v4368 = vpop.f32.mrb[0].mxu0
    %v4369 = vadd.f32 %v3824, %v4368
    %v4370 = vpop.f32.mrb[0].mxu0
    %v4371 = vpop.f32.mrb[0].mxu0
    %v4372 = vadd.f32 %v3827, %v4371
    %v4373 = vpop.f32.mrb[0].mxu0
    %4374 = vmatprep.mubr.bf16.mxu0 %v3044
    %4375 = vmatmul.mubr.bf16.gmra.mrb[0].mxu0 %v3043
    %v4376 = vpop.f32.mrb[0].mxu0
    %v4377 = vadd.f32 %v3832, %v4376
    %v4378 = vpop.f32.mrb[0].mxu0
    %v4379 = vpop.f32.mrb[0].mxu0
    %v4380 = vadd.f32 %v3835, %v4379
    %v4381 = vpop.f32.mrb[0].mxu0
    %4382 = vmatprep.mubr.bf16.mxu0 %v3048
    %4383 = vmatmul.mubr.bf16.gmra.mrb[0].mxu0 %v3047
    %v4384 = vpop.f32.mrb[0].mxu0
    %v4385 = vadd.f32 %v3840, %v4384
    %v4386 = vpop.f32.mrb[0].mxu0
    %v4387 = vpop.f32.mrb[0].mxu0
    %v4388 = vadd.f32 %v3843, %v4387
    %v4389 = vpop.f32.mrb[0].mxu0
    %4390 = vmatprep.mubr.bf16.mxu0 %v3052
    %4391 = vmatmul.mubr.bf16.gmra.mrb[0].mxu0 %v3051
    %v4392 = vpop.f32.mrb[0].mxu0
    %v4393 = vadd.f32 %v3848, %v4392
    %v4394 = vpop.f32.mrb[0].mxu0
    %v4395 = vpop.f32.mrb[0].mxu0
    %v4396 = vadd.f32 %v3851, %v4395
    %v4397 = vpop.f32.mrb[0].mxu0
    %4398 = vdwg.mxu0
    %v4399 = vtanh.pop %v3889
    %v4400 = vtanh.pop %v3892
    %v4401 = vtanh.pop %v3897
    %v4402 = vtanh.pop %v3900
    %v4403 = vtanh.pop %v3905
    %v4404 = vtanh.pop %v3908
    %v4405 = vtanh.pop %v3913
    %v4406 = vtanh.pop %v3916
    %v4407 = vtanh.pop %v3921
    %v4408 = vtanh.pop %v3924
    %v4409 = vtanh.pop %v3929
    %v4410 = vtanh.pop %v3932
    %v4411 = vtanh.pop %v3937
    %v4412 = vtanh.pop %v3940
    %v4413 = vtanh.pop %v3945
    %v4414 = vtanh.pop %v3948
    %v4415 = vtanh.pop %v3953
    %v4416 = vtanh.pop %v3956
    %v4417 = vtanh.pop %v3961
    %v4418 = vtanh.pop %v3964
    %v4419 = vtanh.pop %v3969
    %v4420 = vtanh.pop %v3972
    %v4421 = vtanh.pop %v3977
    %v4422 = vtanh.pop %v3980
    %v4423 = vtanh.pop %v3985
    %v4424 = vtanh.pop %v3988
    %v4425 = vtanh.pop %v3993
    %v4426 = vtanh.pop %v3996
    %v4427 = vtanh.pop %v4001
    %v4428 = vtanh.pop %v4004
    %v4429 = vtanh.pop %v4009
    %v4430 = vtanh.pop %v4012
    %v4431 = vtanh.pop %v4017
    %v4432 = vtanh.pop %v4020
    %v4433 = vtanh.pop %v4025
    %v4434 = vtanh.pop %v4028
    %v4435 = vtanh.pop %v4033
    %v4436 = vtanh.pop %v4036
    %v4437 = vtanh.pop %v4041
    %v4438 = vtanh.pop %v4044
    %v4439 = vtanh.pop %v4049
    %v4440 = vtanh.pop %v4052
    %v4441 = vtanh.pop %v4057
    %v4442 = vtanh.pop %v4060
    %v4443 = vtanh.pop %v4065
    %v4444 = vtanh.pop %v4068
    %v4445 = vtanh.pop %v4073
    %v4446 = vtanh.pop %v4076
    %v4447 = vtanh.pop %v4081
    %v4448 = vtanh.pop %v4084
    %v4449 = vtanh.pop %v4089
    %v4450 = vtanh.pop %v4092
    %v4451 = vtanh.pop %v4097
    %v4452 = vtanh.pop %v4100
    %v4453 = vtanh.pop %v4105
    %v4454 = vtanh.pop %v4108
    %v4455 = vtanh.pop %v4113
    %v4456 = vtanh.pop %v4116
    %v4457 = vtanh.pop %v4121
    %v4458 = vtanh.pop %v4124
    %v4459 = vtanh.pop %v4129
    %v4460 = vtanh.pop %v4132
    %v4461 = vtanh.pop %v4137
    %v4462 = vtanh.pop %v4140
    %v4463 = vtanh.pop %v4145
    %v4464 = vtanh.pop %v4148
    %v4465 = vtanh.pop %v4153
    %v4466 = vtanh.pop %v4156
    %v4467 = vtanh.pop %v4161
    %v4468 = vtanh.pop %v4164
    %v4469 = vtanh.pop %v4169
    %v4470 = vtanh.pop %v4172
    %v4471 = vtanh.pop %v4177
    %v4472 = vtanh.pop %v4180
    %v4473 = vtanh.pop %v4185
    %v4474 = vtanh.pop %v4188
    %v4475 = vtanh.pop %v4193
    %v4476 = vtanh.pop %v4196
    %v4477 = vtanh.pop %v4201
    %v4478 = vtanh.pop %v4204
    %v4479 = vtanh.pop %v4209
    %v4480 = vtanh.pop %v4212
    %v4481 = vtanh.pop %v4217
    %v4482 = vtanh.pop %v4220
    %v4483 = vtanh.pop %v4225
    %v4484 = vtanh.pop %v4228
    %v4485 = vtanh.pop %v4233
    %v4486 = vtanh.pop %v4236
    %v4487 = vtanh.pop %v4241
    %v4488 = vtanh.pop %v4244
    %v4489 = vtanh.pop %v4249
    %v4490 = vtanh.pop %v4252
    %v4491 = vtanh.pop %v4257
    %v4492 = vtanh.pop %v4260
    %v4493 = vtanh.pop %v4265
    %v4494 = vtanh.pop %v4268
    %v4495 = vtanh.pop %v4273
    %v4496 = vtanh.pop %v4276
    %v4497 = vtanh.pop %v4281
    %v4498 = vtanh.pop %v4284
    %v4499 = vtanh.pop %v4289
    %v4500 = vtanh.pop %v4292
    %v4501 = vtanh.pop %v4297
    %v4502 = vtanh.pop %v4300
    %v4503 = vtanh.pop %v4305
    %v4504 = vtanh.pop %v4308
    %v4505 = vtanh.pop %v4313
    %v4506 = vtanh.pop %v4316
    %v4507 = vtanh.pop %v4321
    %v4508 = vtanh.pop %v4324
    %v4509 = vtanh.pop %v4329
    %v4510 = vtanh.pop %v4332
    %v4511 = vtanh.pop %v4337
    %v4512 = vtanh.pop %v4340
    %v4513 = vtanh.pop %v4345
    %v4514 = vtanh.pop %v4348
    %v4515 = vtanh.pop %v4353
    %v4516 = vtanh.pop %v4356
    %v4517 = vtanh.pop %v4361
    %v4518 = vtanh.pop %v4364
    %v4519 = vtanh.pop %v4369
    %v4520 = vtanh.pop %v4372
    %v4521 = vtanh.pop %v4377
    %v4522 = vtanh.pop %v4380
    %v4523 = vtanh.pop %v4385
    %v4524 = vtanh.pop %v4388
    %v4525 = vtanh.pop %v4393
    %v4526 = vtanh.pop %v4396
    %v4527 = vld [vmem:[%s3] sm:$0xff]
    %v4528 = vld [vmem:[%s3 + $0x8] sm:$0xff]
    %v4529 = vld [vmem:[%s3 + $0x10] sm:$0xff]
    %v4530 = vld [vmem:[%s3 + $0x18] sm:$0xff]
    %v4531 = vld [vmem:[%s3 + $0x20] sm:$0xff]
    %v4532 = vld [vmem:[%s3 + $0x28] sm:$0xff]
    %v4533 = vld [vmem:[%s3 + $0x30] sm:$0xff]
    %v4534 = vld [vmem:[%s3 + $0x38] sm:$0xff]
    %v4535 = vld [vmem:[%s3 + $0x40] sm:$0xff]
    %v4536 = vld [vmem:[%s3 + $0x48] sm:$0xff]
    %v4537 = vld [vmem:[%s3 + $0x50] sm:$0xff]
    %v4538 = vld [vmem:[%s3 + $0x58] sm:$0xff]
    %v4539 = vld [vmem:[%s3 + $0x60] sm:$0xff]
    %v4540 = vld [vmem:[%s3 + $0x68] sm:$0xff]
    %v4541 = vld [vmem:[%s3 + $0x70] sm:$0xff]
    %v4542 = vld [vmem:[%s3 + $0x78] sm:$0xff]
    %v4543 = vpack.c.bf16 %v4400, %v4399
    %v4544 = vpack.c.bf16 %v4402, %v4401
    %v4545 = vpack.c.bf16 %v4404, %v4403
    %v4546 = vpack.c.bf16 %v4406, %v4405
    %v4547 = vpack.c.bf16 %v4408, %v4407
    %v4548 = vpack.c.bf16 %v4410, %v4409
    %v4549 = vpack.c.bf16 %v4412, %v4411
    %v4550 = vpack.c.bf16 %v4414, %v4413
    %v4551 = vpack.c.bf16 %v4416, %v4415
    %v4552 = vpack.c.bf16 %v4418, %v4417
    %v4553 = vpack.c.bf16 %v4420, %v4419
    %v4554 = vpack.c.bf16 %v4422, %v4421
    %v4555 = vpack.c.bf16 %v4424, %v4423
    %v4556 = vpack.c.bf16 %v4426, %v4425
    %v4557 = vpack.c.bf16 %v4428, %v4427
    %v4558 = vpack.c.bf16 %v4430, %v4429
    %v4559 = vpack.c.bf16 %v4432, %v4431
    %v4560 = vpack.c.bf16 %v4434, %v4433
    %v4561 = vpack.c.bf16 %v4436, %v4435
    %v4562 = vpack.c.bf16 %v4438, %v4437
    %v4563 = vpack.c.bf16 %v4440, %v4439
    %v4564 = vpack.c.bf16 %v4442, %v4441
    %v4565 = vpack.c.bf16 %v4444, %v4443
    %v4566 = vpack.c.bf16 %v4446, %v4445
    %v4567 = vpack.c.bf16 %v4448, %v4447
    %v4568 = vpack.c.bf16 %v4450, %v4449
    %v4569 = vpack.c.bf16 %v4452, %v4451
    %v4570 = vpack.c.bf16 %v4454, %v4453
    %v4571 = vpack.c.bf16 %v4456, %v4455
    %v4572 = vpack.c.bf16 %v4458, %v4457
    %v4573 = vpack.c.bf16 %v4460, %v4459
    %v4574 = vpack.c.bf16 %v4462, %v4461
    %v4575 = vpack.c.bf16 %v4464, %v4463
    %v4576 = vpack.c.bf16 %v4466, %v4465
    %v4577 = vpack.c.bf16 %v4468, %v4467
    %v4578 = vpack.c.bf16 %v4470, %v4469
    %v4579 = vpack.c.bf16 %v4472, %v4471
    %v4580 = vpack.c.bf16 %v4474, %v4473
    %v4581 = vpack.c.bf16 %v4476, %v4475
    %v4582 = vpack.c.bf16 %v4478, %v4477
    %v4583 = vpack.c.bf16 %v4480, %v4479
    %v4584 = vpack.c.bf16 %v4482, %v4481
    %v4585 = vpack.c.bf16 %v4484, %v4483
    %v4586 = vpack.c.bf16 %v4486, %v4485
    %v4587 = vpack.c.bf16 %v4488, %v4487
    %v4588 = vpack.c.bf16 %v4490, %v4489
    %v4589 = vpack.c.bf16 %v4492, %v4491
    %v4590 = vpack.c.bf16 %v4494, %v4493
    %v4591 = vpack.c.bf16 %v4496, %v4495
    %v4592 = vpack.c.bf16 %v4498, %v4497
    %v4593 = vpack.c.bf16 %v4500, %v4499
    %v4594 = vpack.c.bf16 %v4502, %v4501
    %v4595 = vpack.c.bf16 %v4504, %v4503
    %v4596 = vpack.c.bf16 %v4506, %v4505
    %v4597 = vpack.c.bf16 %v4508, %v4507
    %v4598 = vpack.c.bf16 %v4510, %v4509
    %v4599 = vpack.c.bf16 %v4512, %v4511
    %v4600 = vpack.c.bf16 %v4514, %v4513
    %v4601 = vpack.c.bf16 %v4516, %v4515
    %v4602 = vpack.c.bf16 %v4518, %v4517
    %v4603 = vpack.c.bf16 %v4520, %v4519
    %v4604 = vpack.c.bf16 %v4522, %v4521
    %v4605 = vpack.c.bf16 %v4524, %v4523
    %v4606 = vpack.c.bf16 %v4526, %v4525
    %4607 = vset.pattern.permute.xlu0 2
    %4608 = vperm.xlu0 %4607, %v42
    %v4609 = vpop.permute.xlu0 %4608
    %4611 = vset.pattern.permute.xlu0 2
    %4612 = vperm.xlu0 %4611, %v43
    %v4613 = vpop.permute.xlu0 %4612
    %4615 = vset.pattern.permute.xlu0 2
    %4616 = vperm.xlu0 %4615, %v44
    %v4617 = vpop.permute.xlu0 %4616
    %4619 = vset.pattern.permute.xlu0 2
    %4620 = vperm.xlu0 %4619, %v45
    %v4621 = vpop.permute.xlu0 %4620
    %v4639 = vunpack.c.l.b16 %v4527
    %v4640 = vunpack.c.h.b16 %v4527
    %v4641 = vunpack.c.l.b16 %v4528
    %v4642 = vunpack.c.h.b16 %v4528
    %v4643 = vunpack.c.l.b16 %v4529
    %v4644 = vunpack.c.h.b16 %v4529
    %v4645 = vunpack.c.l.b16 %v4530
    %v4646 = vunpack.c.h.b16 %v4530
    %v4647 = vunpack.c.l.b16 %v4531
    %v4648 = vunpack.c.h.b16 %v4531
    %v4649 = vunpack.c.l.b16 %v4532
    %v4650 = vunpack.c.h.b16 %v4532
    %v4651 = vunpack.c.l.b16 %v4533
    %v4652 = vunpack.c.h.b16 %v4533
    %v4653 = vunpack.c.l.b16 %v4534
    %v4654 = vunpack.c.h.b16 %v4534
    %v4655 = vunpack.c.l.b16 %v4535
    %v4656 = vunpack.c.h.b16 %v4535
    %v4657 = vunpack.c.l.b16 %v4536
    %v4658 = vunpack.c.h.b16 %v4536
    %v4659 = vunpack.c.l.b16 %v4537
    %v4660 = vunpack.c.h.b16 %v4537
    %v4661 = vunpack.c.l.b16 %v4538
    %v4662 = vunpack.c.h.b16 %v4538
    %v4663 = vunpack.c.l.b16 %v4539
    %v4664 = vunpack.c.h.b16 %v4539
    %v4665 = vunpack.c.l.b16 %v4540
    %v4666 = vunpack.c.h.b16 %v4540
    %v4667 = vunpack.c.l.b16 %v4541
    %v4668 = vunpack.c.h.b16 %v4541
    %v4669 = vunpack.c.l.b16 %v4542
    %v4670 = vunpack.c.h.b16 %v4542
    %v4671 = vpack.c.b16 %v4647, %v4639
    %v4672 = vpack.c.b16 %v4648, %v4640
    %v4673 = vpack.c.b16 %v4649, %v4641
    %v4674 = vpack.c.b16 %v4650, %v4642
    %v4675 = vpack.c.b16 %v4651, %v4643
    %v4676 = vpack.c.b16 %v4652, %v4644
    %v4677 = vpack.c.b16 %v4653, %v4645
    %v4678 = vpack.c.b16 %v4654, %v4646
    %v4679 = vpack.c.b16 %v4663, %v4655
    %v4680 = vpack.c.b16 %v4664, %v4656
    %v4681 = vpack.c.b16 %v4665, %v4657
    %v4682 = vpack.c.b16 %v4666, %v4658
    %v4683 = vpack.c.b16 %v4667, %v4659
    %v4684 = vpack.c.b16 %v4668, %v4660
    %v4685 = vpack.c.b16 %v4669, %v4661
    %v4686 = vpack.c.b16 %v4670, %v4662
    %4703 = vmatprep.subr.bf16.mxu0 0
    %4704 = vmatpush1.bf16.msra.mxu0 %v4543
    %4705 = vmatprep.subr.bf16.mxu0 0
    %4706 = vmatpush1.bf16.msra.mxu0 %v4544
    %4707 = vmatprep.subr.bf16.mxu0 0
    %4708 = vmatpush1.bf16.msra.mxu0 %v4545
    %4709 = vmatprep.subr.bf16.mxu0 0
    %4710 = vmatpush1.bf16.msra.mxu0 %v4546
    %4711 = vmatprep.subr.bf16.mxu0 0
    %4712 = vmatpush1.bf16.msra.mxu0 %v4547
    %4713 = vmatprep.subr.bf16.mxu0 0
    %4714 = vmatpush1.bf16.msra.mxu0 %v4548
    %4715 = vmatprep.subr.bf16.mxu0 0
    %4716 = vmatpush1.bf16.msra.mxu0 %v4549
    %4717 = vmatprep.subr.bf16.mxu0 0
    %4718 = vmatpush1.bf16.msra.mxu0 %v4550
    %4719 = vmatprep.subr.bf16.mxu0 0
    %4720 = vmatpush1.bf16.msra.mxu0 %v4551
    %4721 = vmatprep.subr.bf16.mxu0 0
    %4722 = vmatpush1.bf16.msra.mxu0 %v4552
    %4723 = vmatprep.subr.bf16.mxu0 0
    %4724 = vmatpush1.bf16.msra.mxu0 %v4553
    %4725 = vmatprep.subr.bf16.mxu0 0
    %4726 = vmatpush1.bf16.msra.mxu0 %v4554
    %4727 = vmatprep.subr.bf16.mxu0 0
    %4728 = vmatpush1.bf16.msra.mxu0 %v4555
    %4729 = vmatprep.subr.bf16.mxu0 0
    %4730 = vmatpush1.bf16.msra.mxu0 %v4556
    %4731 = vmatprep.subr.bf16.mxu0 0
    %4732 = vmatpush1.bf16.msra.mxu0 %v4557
    %4733 = vmatprep.subr.bf16.mxu0 0
    %4734 = vmatpush1.bf16.msra.mxu0 %v4558
    %4735 = vmatprep.mubr.bf16.mxu0 %v4672
    %4736 = vmatmul.mubr.bf16.gmra.mrb[0].mxu0 %v4671
    %v4737 = vpop.f32.mrb[0].mxu0
    %v4738 = vadd.f32 %v4609, %v4737
    %v4739 = vpop.f32.mrb[0].mxu0
    %v4740 = vpop.f32.mrb[0].mxu0
    %v4741 = vadd.f32 %v4613, %v4740
    %v4742 = vpop.f32.mrb[0].mxu0
    %4743 = vmatprep.mubr.bf16.mxu0 %v4680
    %4744 = vmatmul.mubr.bf16.gmra.mrb[0].mxu0 %v4679
    %v4745 = vpop.f32.mrb[0].mxu0
    %v4746 = vadd.f32 %v4617, %v4745
    %v4747 = vpop.f32.mrb[0].mxu0
    %v4748 = vpop.f32.mrb[0].mxu0
    %v4749 = vadd.f32 %v4621, %v4748
    %v4750 = vpop.f32.mrb[0].mxu0
    %4751 = vdwg.mxu0
    %4752 = vmatprep.subr.bf16.mxu0 0
    %4753 = vmatpush1.bf16.msra.mxu0 %v4559
    %4754 = vmatprep.subr.bf16.mxu0 0
    %4755 = vmatpush1.bf16.msra.mxu0 %v4560
    %4756 = vmatprep.subr.bf16.mxu0 0
    %4757 = vmatpush1.bf16.msra.mxu0 %v4561
    %4758 = vmatprep.subr.bf16.mxu0 0
    %4759 = vmatpush1.bf16.msra.mxu0 %v4562
    %4760 = vmatprep.subr.bf16.mxu0 0
    %4761 = vmatpush1.bf16.msra.mxu0 %v4563
    %4762 = vmatprep.subr.bf16.mxu0 0
    %4763 = vmatpush1.bf16.msra.mxu0 %v4564
    %4764 = vmatprep.subr.bf16.mxu0 0
    %4765 = vmatpush1.bf16.msra.mxu0 %v4565
    %4766 = vmatprep.subr.bf16.mxu0 0
    %4767 = vmatpush1.bf16.msra.mxu0 %v4566
    %4768 = vmatprep.subr.bf16.mxu0 0
    %4769 = vmatpush1.bf16.msra.mxu0 %v4567
    %4770 = vmatprep.subr.bf16.mxu0 0
    %4771 = vmatpush1.bf16.msra.mxu0 %v4568
    %4772 = vmatprep.subr.bf16.mxu0 0
    %4773 = vmatpush1.bf16.msra.mxu0 %v4569
    %4774 = vmatprep.subr.bf16.mxu0 0
    %4775 = vmatpush1.bf16.msra.mxu0 %v4570
    %4776 = vmatprep.subr.bf16.mxu0 0
    %4777 = vmatpush1.bf16.msra.mxu0 %v4571
    %4778 = vmatprep.subr.bf16.mxu0 0
    %4779 = vmatpush1.bf16.msra.mxu0 %v4572
    %4780 = vmatprep.subr.bf16.mxu0 0
    %4781 = vmatpush1.bf16.msra.mxu0 %v4573
    %4782 = vmatprep.subr.bf16.mxu0 0
    %4783 = vmatpush1.bf16.msra.mxu0 %v4574
    %4784 = vmatprep.mubr.bf16.mxu0 %v4674
    %4785 = vmatmul.mubr.bf16.gmra.mrb[0].mxu0 %v4673
    %v4786 = vpop.f32.mrb[0].mxu0
    %v4787 = vadd.f32 %v4738, %v4786
    %v4788 = vpop.f32.mrb[0].mxu0
    %v4789 = vpop.f32.mrb[0].mxu0
    %v4790 = vadd.f32 %v4741, %v4789
    %v4791 = vpop.f32.mrb[0].mxu0
    %4792 = vmatprep.mubr.bf16.mxu0 %v4682
    %4793 = vmatmul.mubr.bf16.gmra.mrb[0].mxu0 %v4681
    %v4794 = vpop.f32.mrb[0].mxu0
    %v4795 = vadd.f32 %v4746, %v4794
    %v4796 = vpop.f32.mrb[0].mxu0
    %v4797 = vpop.f32.mrb[0].mxu0
    %v4798 = vadd.f32 %v4749, %v4797
    %v4799 = vpop.f32.mrb[0].mxu0
    %4800 = vdwg.mxu0
    %4801 = vmatprep.subr.bf16.mxu0 0
    %4802 = vmatpush1.bf16.msra.mxu0 %v4575
    %4803 = vmatprep.subr.bf16.mxu0 0
    %4804 = vmatpush1.bf16.msra.mxu0 %v4576
    %4805 = vmatprep.subr.bf16.mxu0 0
    %4806 = vmatpush1.bf16.msra.mxu0 %v4577
    %4807 = vmatprep.subr.bf16.mxu0 0
    %4808 = vmatpush1.bf16.msra.mxu0 %v4578
    %4809 = vmatprep.subr.bf16.mxu0 0
    %4810 = vmatpush1.bf16.msra.mxu0 %v4579
    %4811 = vmatprep.subr.bf16.mxu0 0
    %4812 = vmatpush1.bf16.msra.mxu0 %v4580
    %4813 = vmatprep.subr.bf16.mxu0 0
    %4814 = vmatpush1.bf16.msra.mxu0 %v4581
    %4815 = vmatprep.subr.bf16.mxu0 0
    %4816 = vmatpush1.bf16.msra.mxu0 %v4582
    %4817 = vmatprep.subr.bf16.mxu0 0
    %4818 = vmatpush1.bf16.msra.mxu0 %v4583
    %4819 = vmatprep.subr.bf16.mxu0 0
    %4820 = vmatpush1.bf16.msra.mxu0 %v4584
    %4821 = vmatprep.subr.bf16.mxu0 0
    %4822 = vmatpush1.bf16.msra.mxu0 %v4585
    %4823 = vmatprep.subr.bf16.mxu0 0
    %4824 = vmatpush1.bf16.msra.mxu0 %v4586
    %4825 = vmatprep.subr.bf16.mxu0 0
    %4826 = vmatpush1.bf16.msra.mxu0 %v4587
    %4827 = vmatprep.subr.bf16.mxu0 0
    %4828 = vmatpush1.bf16.msra.mxu0 %v4588
    %4829 = vmatprep.subr.bf16.mxu0 0
    %4830 = vmatpush1.bf16.msra.mxu0 %v4589
    %4831 = vmatprep.subr.bf16.mxu0 0
    %4832 = vmatpush1.bf16.msra.mxu0 %v4590
    %4833 = vmatprep.mubr.bf16.mxu0 %v4676
    %4834 = vmatmul.mubr.bf16.gmra.mrb[0].mxu0 %v4675
    %v4835 = vpop.f32.mrb[0].mxu0
    %v4836 = vadd.f32 %v4787, %v4835
    %v4837 = vpop.f32.mrb[0].mxu0
    %v4838 = vpop.f32.mrb[0].mxu0
    %v4839 = vadd.f32 %v4790, %v4838
    %v4840 = vpop.f32.mrb[0].mxu0
    %4841 = vmatprep.mubr.bf16.mxu0 %v4684
    %4842 = vmatmul.mubr.bf16.gmra.mrb[0].mxu0 %v4683
    %v4843 = vpop.f32.mrb[0].mxu0
    %v4844 = vadd.f32 %v4795, %v4843
    %v4845 = vpop.f32.mrb[0].mxu0
    %v4846 = vpop.f32.mrb[0].mxu0
    %v4847 = vadd.f32 %v4798, %v4846
    %v4848 = vpop.f32.mrb[0].mxu0
    %4849 = vdwg.mxu0
    %4850 = vmatprep.subr.bf16.mxu0 0
    %4851 = vmatpush1.bf16.msra.mxu0 %v4591
    %4852 = vmatprep.subr.bf16.mxu0 0
    %4853 = vmatpush1.bf16.msra.mxu0 %v4592
    %4854 = vmatprep.subr.bf16.mxu0 0
    %4855 = vmatpush1.bf16.msra.mxu0 %v4593
    %4856 = vmatprep.subr.bf16.mxu0 0
    %4857 = vmatpush1.bf16.msra.mxu0 %v4594
    %4858 = vmatprep.subr.bf16.mxu0 0
    %4859 = vmatpush1.bf16.msra.mxu0 %v4595
    %4860 = vmatprep.subr.bf16.mxu0 0
    %4861 = vmatpush1.bf16.msra.mxu0 %v4596
    %4862 = vmatprep.subr.bf16.mxu0 0
    %4863 = vmatpush1.bf16.msra.mxu0 %v4597
    %4864 = vmatprep.subr.bf16.mxu0 0
    %4865 = vmatpush1.bf16.msra.mxu0 %v4598
    %4866 = vmatprep.subr.bf16.mxu0 0
    %4867 = vmatpush1.bf16.msra.mxu0 %v4599
    %4868 = vmatprep.subr.bf16.mxu0 0
    %4869 = vmatpush1.bf16.msra.mxu0 %v4600
    %4870 = vmatprep.subr.bf16.mxu0 0
    %4871 = vmatpush1.bf16.msra.mxu0 %v4601
    %4872 = vmatprep.subr.bf16.mxu0 0
    %4873 = vmatpush1.bf16.msra.mxu0 %v4602
    %4874 = vmatprep.subr.bf16.mxu0 0
    %4875 = vmatpush1.bf16.msra.mxu0 %v4603
    %4876 = vmatprep.subr.bf16.mxu0 0
    %4877 = vmatpush1.bf16.msra.mxu0 %v4604
    %4878 = vmatprep.subr.bf16.mxu0 0
    %4879 = vmatpush1.bf16.msra.mxu0 %v4605
    %4880 = vmatprep.subr.bf16.mxu0 0
    %4881 = vmatpush1.bf16.msra.mxu0 %v4606
    %4882 = vmatprep.mubr.bf16.mxu0 %v4678
    %4883 = vmatmul.mubr.bf16.gmra.mrb[0].mxu0 %v4677
    %v4884 = vpop.f32.mrb[0].mxu0
    %v4885 = vadd.f32 %v4836, %v4884
    %v4886 = vpop.f32.mrb[0].mxu0
    %v4887 = vpop.f32.mrb[0].mxu0
    %v4888 = vadd.f32 %v4839, %v4887
    %v4889 = vpop.f32.mrb[0].mxu0
    %4890 = vmatprep.mubr.bf16.mxu0 %v4686
    %4891 = vmatmul.mubr.bf16.gmra.mrb[0].mxu0 %v4685
    %v4892 = vpop.f32.mrb[0].mxu0
    %v4893 = vadd.f32 %v4844, %v4892
    %v4894 = vpop.f32.mrb[0].mxu0
    %v4895 = vpop.f32.mrb[0].mxu0
    %v4896 = vadd.f32 %v4847, %v4895
    %v4897 = vpop.f32.mrb[0].mxu0
    %4898 = vdwg.mxu0
    %v4899 = vtanh.pop %v4885
    %v4900 = vtanh.pop %v4888
    %v4901 = vtanh.pop %v4893
    %v4902 = vtanh.pop %v4896
    %v4903 = vld [vmem:[%s4] sm:$0x1]
    %4905 = vset.pattern.permute.xlu0 3
    %4906 = vperm.xlu0 %4905, %v170
    %v4907 = vpop.permute.xlu0 %4906
    %vm4909 = vcmask 261120
    %v4911 = vsel %vm4909, %v4903, 0
    %4913 = vmatprep.subr.mxu0 0.0
    %4914 = vmatpush1.msra.mxu0 %v4899
    %4915 = vmatprep.subr.mxu0 0.0
    %4916 = vmatpush1.msra.mxu0 %v4900
    %4917 = vmatprep.subr.mxu0 0.0
    %4918 = vmatpush1.msra.mxu0 %v4901
    %4919 = vmatprep.subr.mxu0 0.0
    %4920 = vmatpush1.msra.mxu0 %v4902
    %4921 = vmatprep.subr.mxu0 0.0
    %4922 = vmatpush1.msra.mxu0 0.0
    %4923 = vmatprep.subr.mxu0 0.0
    %4924 = vmatpush1.msra.mxu0 0.0
    %4925 = vmatprep.subr.mxu0 0.0
    %4926 = vmatpush1.msra.mxu0 0.0
    %4927 = vmatprep.subr.mxu0 0.0
    %4928 = vmatpush1.msra.mxu0 0.0
    %4929 = vmatprep.subr.mxu0 0.0
    %4930 = vmatpush1.msra.mxu0 0.0
    %4931 = vmatprep.subr.mxu0 0.0
    %4932 = vmatpush1.msra.mxu0 0.0
    %4933 = vmatprep.subr.mxu0 0.0
    %4934 = vmatpush1.msra.mxu0 0.0
    %4935 = vmatprep.subr.mxu0 0.0
    %4936 = vmatpush1.msra.mxu0 0.0
    %4937 = vmatprep.subr.mxu0 0.0
    %4938 = vmatpush1.msra.mxu0 0.0
    %4939 = vmatprep.subr.mxu0 0.0
    %4940 = vmatpush1.msra.mxu0 0.0
    %4941 = vmatprep.subr.mxu0 0.0
    %4942 = vmatpush1.msra.mxu0 0.0
    %4943 = vmatprep.subr.mxu0 0.0
    %4944 = vmatpush1.msra.mxu0 0.0
    %4945 = vmatprep.subr.mxu0 0.0
    %4946 = vmatpush1.msra.mxu0 0.0
    %4947 = vmatprep.subr.mxu0 0.0
    %4948 = vmatpush1.msra.mxu0 0.0
    %4949 = vmatprep.subr.mxu0 0.0
    %4950 = vmatpush1.msra.mxu0 0.0
    %4951 = vmatprep.subr.mxu0 0.0
    %4952 = vmatpush1.msra.mxu0 0.0
    %4953 = vmatprep.subr.mxu0 0.0
    %4954 = vmatpush1.msra.mxu0 0.0
    %4955 = vmatprep.subr.mxu0 0.0
    %4956 = vmatpush1.msra.mxu0 0.0
    %4957 = vmatprep.subr.mxu0 0.0
    %4958 = vmatpush1.msra.mxu0 0.0
    %4959 = vmatprep.subr.mxu0 0.0
    %4960 = vmatpush1.msra.mxu0 0.0
    %4961 = vmatprep.subr.mxu0 0.0
    %4962 = vmatpush1.msra.mxu0 0.0
    %4963 = vmatprep.subr.mxu0 0.0
    %4964 = vmatpush1.msra.mxu0 0.0
    %4965 = vmatprep.subr.mxu0 0.0
    %4966 = vmatpush1.msra.mxu0 0.0
    %4967 = vmatprep.subr.mxu0 0.0
    %4968 = vmatpush1.msra.mxu0 0.0
    %4969 = vmatprep.subr.mxu0 0.0
    %4970 = vmatpush1.msra.mxu0 0.0
    %4971 = vmatprep.subr.mxu0 0.0
    %4972 = vmatpush1.msra.mxu0 0.0
    %4973 = vmatprep.subr.mxu0 0.0
    %4974 = vmatpush1.msra.mxu0 0.0
    %4975 = vmatprep.subr.mxu0 0.0
    %4976 = vmatpush1.msra.mxu0 0.0
    %4977 = vmatprep.mubr.f32.mxu0 0.0
    %4978 = vmatmul.mubr.f32.gmra.mrb[0].mxu0 %v4911
    %v4979 = vpop.f32.mrb[0].mxu0
    %v4980 = vadd.f32 %v4907, %v4979
    %v4981 = vpop.f32.mrb[0].mxu0
    %4982 = vdwg.mxu0
    %v4983 = vmax.f32 %v4980, 0.0
    %4984 = vst [vmem:[#allocation5] sm:$0x1] %v4983
    // Predicated region
    $region30: #{tpu_custom_call.1} parent=1 // pred_check
      _
    $region31: #{tpu_custom_call.1} parent=1 // pred_check_branch
      %4986 = sbr.rel (0) target = $region33
    $region32: #{tpu_custom_call.1} parent=1 // pred_region
      %s4988 = ssub.s32 16, 16
      %4989 = vsyncadd [#allocation4], %s4988
      %s4991 = sshll.u32 [#allocation5], 4
      %s4992 = int_to_ptr.vmem [resolvable:$true] %s4991
      %4994 = dma.vmem_to_hbm [thread:$0]  %s4992, 16, %s6, [#allocation4]
    $region33: #{tpu_custom_call.1} parent=1 // pred_fallthru
      _
    // Predicated region
    $region34: #{tpu_custom_call.1} parent=1 // pred_check
      _
    $region35: #{tpu_custom_call.1} parent=1 // pred_check_branch
      %4996 = sbr.rel (0) target = $region37
    $region36: #{tpu_custom_call.1} parent=1 // pred_region
      %4997 = dma.done [#allocation4], 16
    $region37: #{tpu_custom_call.1} parent=1 // pred_fallthru
      _
    %4998 = vsyncpa [#allocation3], 1
    %4999 = vsyncpa [#allocation4], 1

</llo_original>
